<compile_context>
chip_gen: v5e
topology: v5e:2x2
jax: 0.10.0
libtpu: 0.0.40
codegen_flags: <defaults>
</compile_context>

<pallas_src>
import jax
import jax.numpy as jnp
from jax import lax
from jax.experimental import pallas as pl
from jax.experimental.pallas import tpu as pltpu
import numpy as np


def _make_se_res_block_kernel(B, C, D, H, W, ksize):
    # Roll+mask zero-padding trick is only valid when every wrapped / cross-batch
    # read lands on a position the boundary masks zero out.
    assert D >= ksize and H >= ksize and W >= ksize, (
        "roll+mask 'same' conv requires D, H, W >= kernel_size")

    K3 = ksize ** 3
    p = (ksize - 1) // 2
    HW = H * W
    DHW = D * H * W
    L = B * DHW

    # Static tap table, (kd, kh, kw) row-major -- must match the (K3, C, C)
    # weight layout built in the wrapper.  Entry: (lane roll amount that brings
    # a[:, n + s] to lane n, needs_boundary_mask).
    taps = []
    for kd in range(ksize):
        for kh in range(ksize):
            for kw in range(ksize):
                dd, dh, dw = kd - p, kh - p, kw - p
                s = dd * HW + dh * W + dw
                taps.append(((-s) % L, (dd, dh, dw) != (0, 0, 0)))

    def kernel(x_ref, mask_ref, w1_ref, b1_ref, w2_ref, b2_ref, pool_ref,
               fc1w_ref, fc1b_ref, fc2w_ref, fc2b_ref, o_ref):
        x = x_ref[...]  # (C, L) f32, batch folded onto the lane axis

        def conv(a, w_ref_, b_ref_):
            # 3-D 'same' conv = sum of K3 per-tap (C, C) @ (C, L) MXU matmuls.
            # Tap shift: XLU lane rotate; zero padding: precomputed mask multiply.
            acc = None
            for t, (roll_amt, needs_mask) in enumerate(taps):
                v = a if roll_amt == 0 else pltpu.roll(a, roll_amt, axis=1)
                if needs_mask:
                    v = v * mask_ref[t]                    # (1, L) mask row
                y_t = jnp.dot(w_ref_[t], v, preferred_element_type=jnp.float32)
                acc = y_t if acc is None else acc + y_t
            return acc + b_ref_[...]                       # + (C, 1) bias

        y1 = conv(jnp.maximum(x, 0.0), w1_ref, b1_ref)     # ConvBlock 1
        y2 = conv(jnp.maximum(y1, 0.0), w2_ref, b2_ref)    # ConvBlock 2

        # --- SeBlock: GAP -> FC -> ReLU -> FC -> Sigmoid ---------------------
        # Per-batch global average pool as ONE MXU matmul against the lane-dense
        # (L, 128) pooling matrix (column b holds 1/DHW over batch b's lanes).
        gap = jnp.dot(y2, pool_ref[...],
                      preferred_element_type=jnp.float32)                  # (C, 128)
        z = jnp.dot(fc1w_ref[...], gap,
                    preferred_element_type=jnp.float32) + fc1b_ref[...]    # (rr, 128)
        z = jnp.maximum(z, 0.0)
        g = jnp.dot(fc2w_ref[...], z,
                    preferred_element_type=jnp.float32) + fc2b_ref[...]    # (C, 128)
        g = pl.reciprocal(1.0 + jnp.exp(-g), approx=False)                 # sigmoid

        # --- SE channel gating + residual, single lane-dense (C, L) store ----
        gate = jnp.concatenate(
            [jnp.broadcast_to(g[:, b:b + 1], (C, DHW)) for b in range(B)], axis=1)
        o_ref[...] = (y2 * gate + x).astype(o_ref.dtype)

    return kernel


def se_res_block(x, w1, b1, w2, b2, fc1_w, fc1_b, fc2_w, fc2_b):
    """Fused SeResBlock forward.  PyTorch parameter layouts:
       x: (B, C, D, H, W); conv weights (C, C, k, k, k); conv biases (C,);
       fc1_w: (rr, C); fc1_b: (rr,); fc2_w: (C, rr); fc2_b: (C,).
    """
    B, C, D, H, W = x.shape
    ksize = w1.shape[2]
    rr = fc1_w.shape[0]
    K3 = ksize ** 3
    p = (ksize - 1) // 2
    HW = H * W
    DHW = D * H * W
    L = B * DHW

    # Batch folded onto the lane axis: (B,C,D,H,W) -> (C, B*DHW).  Tiny
    # wrapper-side transpose; the kernel then runs in ONE grid step with a
    # fully lane-dense output slab.
    x2 = jnp.transpose(x, (1, 0, 2, 3, 4)).reshape(C, L)

    # Conv weights as (K3, Cout, Cin) per-tap slabs, tap index = kd*K*K + kh*K + kw.
    w1t = jnp.transpose(w1, (2, 3, 4, 0, 1)).reshape(K3, C, C)
    w2t = jnp.transpose(w2, (2, 3, 4, 0, 1)).reshape(K3, C, C)
    b1c = b1.reshape(C, 1)
    b2c = b2.reshape(C, 1)
    fc1b = fc1_b.reshape(rr, 1)
    fc2b = fc2_b.reshape(C, 1)

    # Host-precomputed 'same'-padding boundary masks, one (1, L) row per tap.
    n = np.arange(L)
    nn = n % DHW
    d_idx, h_idx, w_idx = nn // HW, (nn // W) % H, nn % W
    mask_np = np.empty((K3, 1, L), np.float32)
    t = 0
    for kd in range(ksize):
        for kh in range(ksize):
            for kw in range(ksize):
                dd, dh, dw = kd - p, kh - p, kw - p
                valid = ((d_idx + dd >= 0) & (d_idx + dd < D) &
                         (h_idx + dh >= 0) & (h_idx + dh < H) &
                         (w_idx + dw >= 0) & (w_idx + dw < W))
                mask_np[t, 0, :] = valid.astype(np.float32)
                t += 1
    mask = jnp.asarray(mask_np)

    # Lane-dense per-batch average-pool matrix (L, 128): column b (b < B) holds
    # 1/DHW over batch b's lanes; the remaining columns are zero so every SE
    # matmul keeps an N=128 lane-dense result.
    pool_np = np.zeros((L, 128), np.float32)
    for b in range(B):
        pool_np[b * DHW:(b + 1) * DHW, b] = 1.0 / DHW
    pool = jnp.asarray(pool_np)

    kernel = _make_se_res_block_kernel(B, C, D, H, W, ksize)

    def full(shape):
        return pl.BlockSpec(shape, lambda i, _n=len(shape): (0,) * _n)

    out = pl.pallas_call(
        kernel,
        out_shape=jax.ShapeDtypeStruct((C, L), x.dtype),
        grid_spec=pltpu.PrefetchScalarGridSpec(
            num_scalar_prefetch=0,
            grid=(1,),
            in_specs=[
                full((C, L)),          # x (batch on lanes)
                full((K3, 1, L)),      # boundary masks
                full((K3, C, C)),      # conv1 weight (per-tap)
                full((C, 1)),          # conv1 bias
                full((K3, C, C)),      # conv2 weight (per-tap)
                full((C, 1)),          # conv2 bias
                full((L, 128)),        # per-batch avg-pool matrix
                full((rr, C)),         # fc1 weight
                full((rr, 1)),         # fc1 bias
                full((C, rr)),         # fc2 weight
                full((C, 1)),          # fc2 bias
            ],
            out_specs=pl.BlockSpec((C, L), lambda i: (0, 0)),
        ),
        compiler_params=pltpu.CompilerParams(
            dimension_semantics=("arbitrary",)),
    )(x2, mask, w1t, b1c, w2t, b2c, pool, fc1_w, fc1b, fc2_w, fc2b)

    return jnp.transpose(out.reshape(C, B, D, H, W), (1, 0, 2, 3, 4))


def _ref_se_res_block(x, w1, b1, w2, b2, fc1_w, fc1_b, fc2_w, fc2_b):
    """Pure-JAX reference (lax conv + dense ops) for correctness checking."""
    hi = lax.Precision.HIGHEST

    def conv_block(a, w, b):
        a = jnp.maximum(a, 0.0)
        y = lax.conv_general_dilated(
            a, w, window_strides=(1, 1, 1), padding="SAME",
            dimension_numbers=("NCDHW", "OIDHW", "NCDHW"), precision=hi)
        return y + b[None, :, None, None, None]

    y = conv_block(conv_block(x, w1, b1), w2, b2)
    gap = jnp.mean(y, axis=(2, 3, 4))                                   # (B, C)
    z = jnp.maximum(jnp.dot(gap, fc1_w.T, precision=hi) + fc1_b, 0.0)   # (B, rr)
    g = jax.nn.sigmoid(jnp.dot(z, fc2_w.T, precision=hi) + fc2_b)       # (B, C)
    return y * g[:, :, None, None, None] + x


if __name__ == "__main__":
    # [batch, chans, depth, height, width] — small shapes consistent with the module.
    B, C, D, H, W = 2, 4, 4, 8, 8
    K = 3    # kernel_size
    RR = 2   # SE reduction channels

    key = jax.random.PRNGKey(0)
    ks = jax.random.split(key, 9)

    x = jax.random.normal(ks[0], (B, C, D, H, W), dtype=jnp.float32)

    # ~PyTorch default uniform init bounds (deterministic).
    cb = 1.0 / np.sqrt(C * K * K * K)
    w1 = jax.random.uniform(ks[1], (C, C, K, K, K), jnp.float32, -cb, cb)
    b1 = jax.random.uniform(ks[2], (C,), jnp.float32, -cb, cb)
    w2 = jax.random.uniform(ks[3], (C, C, K, K, K), jnp.float32, -cb, cb)
    b2 = jax.random.uniform(ks[4], (C,), jnp.float32, -cb, cb)

    f1 = 1.0 / np.sqrt(C)
    fc1_w = jax.random.uniform(ks[5], (RR, C), jnp.float32, -f1, f1)
    fc1_b = jax.random.uniform(ks[6], (RR,), jnp.float32, -f1, f1)
    f2 = 1.0 / np.sqrt(RR)
    fc2_w = jax.random.uniform(ks[7], (C, RR), jnp.float32, -f2, f2)
    fc2_b = jax.random.uniform(ks[8], (C,), jnp.float32, -f2, f2)

    out = jax.block_until_ready(
        se_res_block(x, w1, b1, w2, b2, fc1_w, fc1_b, fc2_w, fc2_b))
    ref = jax.block_until_ready(
        _ref_se_res_block(x, w1, b1, w2, b2, fc1_w, fc1_b, fc2_w, fc2_b))

    np.testing.assert_allclose(np.asarray(out), np.asarray(ref),
                               rtol=2e-4, atol=2e-4)
    print("KERNEL_OK")
</pallas_src>

<mosaic_0001>
module attributes {stable_mosaic.version = 11 : i64} {
  func.func @kernel(%arg0: i32, %arg1: memref<4x512xf32, #tpu.memory_space<vmem>>, %arg2: memref<27x1x512xf32, #tpu.memory_space<vmem>>, %arg3: memref<27x4x4xf32, #tpu.memory_space<vmem>>, %arg4: memref<4x1xf32, #tpu.memory_space<vmem>>, %arg5: memref<27x4x4xf32, #tpu.memory_space<vmem>>, %arg6: memref<4x1xf32, #tpu.memory_space<vmem>>, %arg7: memref<512x128xf32, #tpu.memory_space<vmem>>, %arg8: memref<2x4xf32, #tpu.memory_space<vmem>>, %arg9: memref<2x1xf32, #tpu.memory_space<vmem>>, %arg10: memref<4x2xf32, #tpu.memory_space<vmem>>, %arg11: memref<4x1xf32, #tpu.memory_space<vmem>>, %arg12: memref<4x512xf32, #tpu.memory_space<vmem>>) attributes {dimension_semantics = [#tpu.dimension_semantics<arbitrary>], iteration_bounds = array<i64: 1>, scalar_prefetch = 0 : i64, scratch_operands = 0 : i64, tpu.core_type = #tpu.core_type<tc>, window_params = [{pipeline_mode = #tpu.pipeline_mode<synchronous>, transform_indices = @transform_0, window_bounds = array<i64: 4, 512>}, {pipeline_mode = #tpu.pipeline_mode<synchronous>, transform_indices = @transform_1, window_bounds = array<i64: 27, 1, 512>}, {pipeline_mode = #tpu.pipeline_mode<synchronous>, transform_indices = @transform_2, window_bounds = array<i64: 27, 4, 4>}, {pipeline_mode = #tpu.pipeline_mode<synchronous>, transform_indices = @transform_3, window_bounds = array<i64: 4, 1>}, {pipeline_mode = #tpu.pipeline_mode<synchronous>, transform_indices = @transform_4, window_bounds = array<i64: 27, 4, 4>}, {pipeline_mode = #tpu.pipeline_mode<synchronous>, transform_indices = @transform_5, window_bounds = array<i64: 4, 1>}, {pipeline_mode = #tpu.pipeline_mode<synchronous>, transform_indices = @transform_6, window_bounds = array<i64: 512, 128>}, {pipeline_mode = #tpu.pipeline_mode<synchronous>, transform_indices = @transform_7, window_bounds = array<i64: 2, 4>}, {pipeline_mode = #tpu.pipeline_mode<synchronous>, transform_indices = @transform_8, window_bounds = array<i64: 2, 1>}, {pipeline_mode = #tpu.pipeline_mode<synchronous>, transform_indices = @transform_9, window_bounds = array<i64: 4, 2>}, {pipeline_mode = #tpu.pipeline_mode<synchronous>, transform_indices = @transform_10, window_bounds = array<i64: 4, 1>}, {pipeline_mode = #tpu.pipeline_mode<synchronous>, transform_indices = @transform_11, window_bounds = array<i64: 4, 512>}]} {
    %c0 = arith.constant 0 : index
    %c0_0 = arith.constant 0 : index
    %0 = vector.load %arg1[%c0, %c0_0] : memref<4x512xf32, #tpu.memory_space<vmem>>, vector<4x512xf32>
    %cst = arith.constant 0.000000e+00 : f32
    %1 = vector.broadcast %cst : f32 to vector<4x512xf32>
    %2 = arith.maximumf %0, %1 : vector<4x512xf32>
    %c73_i32 = arith.constant 73 : i32
    %3 = tpu.dynamic_rotate %2 by %c73_i32 dim 1 : vector<4x512xf32>, i32 -> vector<4x512xf32>
    %c0_1 = arith.constant 0 : index
    %c0_2 = arith.constant 0 : index
    %c0_3 = arith.constant 0 : index
    %4 = vector.load %arg2[%c0_1, %c0_2, %c0_3] : memref<27x1x512xf32, #tpu.memory_space<vmem>>, vector<1x1x512xf32>
    %5 = vector.shape_cast %4 : vector<1x1x512xf32> to vector<1x512xf32>
    %6 = vector.broadcast %5 : vector<1x512xf32> to vector<4x512xf32>
    %7 = arith.mulf %3, %6 : vector<4x512xf32>
    %c0_4 = arith.constant 0 : index
    %c0_5 = arith.constant 0 : index
    %c0_6 = arith.constant 0 : index
    %8 = vector.load %arg3[%c0_4, %c0_5, %c0_6] : memref<27x4x4xf32, #tpu.memory_space<vmem>>, vector<1x4x4xf32>
    %9 = vector.shape_cast %8 : vector<1x4x4xf32> to vector<4x4xf32>
    %cst_7 = arith.constant dense<0.000000e+00> : vector<4x512xf32>
    %10 = tpu.matmul %9, %7, %cst_7 {dimension_numbers = #tpu.dot_dimension_numbers<[1], [0], [0], [1], [0, 0, 1, 1], [], []>} : vector<4x4xf32>, vector<4x512xf32>, vector<4x512xf32> -> vector<4x512xf32>
    %c72_i32 = arith.constant 72 : i32
    %11 = tpu.dynamic_rotate %2 by %c72_i32 dim 1 : vector<4x512xf32>, i32 -> vector<4x512xf32>
    %c1 = arith.constant 1 : index
    %c0_8 = arith.constant 0 : index
    %c0_9 = arith.constant 0 : index
    %12 = vector.load %arg2[%c1, %c0_8, %c0_9] : memref<27x1x512xf32, #tpu.memory_space<vmem>>, vector<1x1x512xf32>
    %13 = vector.shape_cast %12 : vector<1x1x512xf32> to vector<1x512xf32>
    %14 = vector.broadcast %13 : vector<1x512xf32> to vector<4x512xf32>
    %15 = arith.mulf %11, %14 : vector<4x512xf32>
    %c1_10 = arith.constant 1 : index
    %c0_11 = arith.constant 0 : index
    %c0_12 = arith.constant 0 : index
    %16 = vector.load %arg3[%c1_10, %c0_11, %c0_12] : memref<27x4x4xf32, #tpu.memory_space<vmem>>, vector<1x4x4xf32>
    %17 = vector.shape_cast %16 : vector<1x4x4xf32> to vector<4x4xf32>
    %cst_13 = arith.constant dense<0.000000e+00> : vector<4x512xf32>
    %18 = tpu.matmul %17, %15, %cst_13 {dimension_numbers = #tpu.dot_dimension_numbers<[1], [0], [0], [1], [0, 0, 1, 1], [], []>} : vector<4x4xf32>, vector<4x512xf32>, vector<4x512xf32> -> vector<4x512xf32>
    %19 = arith.addf %10, %18 : vector<4x512xf32>
    %c71_i32 = arith.constant 71 : i32
    %20 = tpu.dynamic_rotate %2 by %c71_i32 dim 1 : vector<4x512xf32>, i32 -> vector<4x512xf32>
    %c2 = arith.constant 2 : index
    %c0_14 = arith.constant 0 : index
    %c0_15 = arith.constant 0 : index
    %21 = vector.load %arg2[%c2, %c0_14, %c0_15] : memref<27x1x512xf32, #tpu.memory_space<vmem>>, vector<1x1x512xf32>
    %22 = vector.shape_cast %21 : vector<1x1x512xf32> to vector<1x512xf32>
    %23 = vector.broadcast %22 : vector<1x512xf32> to vector<4x512xf32>
    %24 = arith.mulf %20, %23 : vector<4x512xf32>
    %c2_16 = arith.constant 2 : index
    %c0_17 = arith.constant 0 : index
    %c0_18 = arith.constant 0 : index
    %25 = vector.load %arg3[%c2_16, %c0_17, %c0_18] : memref<27x4x4xf32, #tpu.memory_space<vmem>>, vector<1x4x4xf32>
    %26 = vector.shape_cast %25 : vector<1x4x4xf32> to vector<4x4xf32>
    %cst_19 = arith.constant dense<0.000000e+00> : vector<4x512xf32>
    %27 = tpu.matmul %26, %24, %cst_19 {dimension_numbers = #tpu.dot_dimension_numbers<[1], [0], [0], [1], [0, 0, 1, 1], [], []>} : vector<4x4xf32>, vector<4x512xf32>, vector<4x512xf32> -> vector<4x512xf32>
    %28 = arith.addf %19, %27 : vector<4x512xf32>
    %c65_i32 = arith.constant 65 : i32
    %29 = tpu.dynamic_rotate %2 by %c65_i32 dim 1 : vector<4x512xf32>, i32 -> vector<4x512xf32>
    %c3 = arith.constant 3 : index
    %c0_20 = arith.constant 0 : index
    %c0_21 = arith.constant 0 : index
    %30 = vector.load %arg2[%c3, %c0_20, %c0_21] : memref<27x1x512xf32, #tpu.memory_space<vmem>>, vector<1x1x512xf32>
    %31 = vector.shape_cast %30 : vector<1x1x512xf32> to vector<1x512xf32>
    %32 = vector.broadcast %31 : vector<1x512xf32> to vector<4x512xf32>
    %33 = arith.mulf %29, %32 : vector<4x512xf32>
    %c3_22 = arith.constant 3 : index
    %c0_23 = arith.constant 0 : index
    %c0_24 = arith.constant 0 : index
    %34 = vector.load %arg3[%c3_22, %c0_23, %c0_24] : memref<27x4x4xf32, #tpu.memory_space<vmem>>, vector<1x4x4xf32>
    %35 = vector.shape_cast %34 : vector<1x4x4xf32> to vector<4x4xf32>
    %cst_25 = arith.constant dense<0.000000e+00> : vector<4x512xf32>
    %36 = tpu.matmul %35, %33, %cst_25 {dimension_numbers = #tpu.dot_dimension_numbers<[1], [0], [0], [1], [0, 0, 1, 1], [], []>} : vector<4x4xf32>, vector<4x512xf32>, vector<4x512xf32> -> vector<4x512xf32>
    %37 = arith.addf %28, %36 : vector<4x512xf32>
    %c64_i32 = arith.constant 64 : i32
    %38 = tpu.dynamic_rotate %2 by %c64_i32 dim 1 : vector<4x512xf32>, i32 -> vector<4x512xf32>
    %c4 = arith.constant 4 : index
    %c0_26 = arith.constant 0 : index
    %c0_27 = arith.constant 0 : index
    %39 = vector.load %arg2[%c4, %c0_26, %c0_27] : memref<27x1x512xf32, #tpu.memory_space<vmem>>, vector<1x1x512xf32>
    %40 = vector.shape_cast %39 : vector<1x1x512xf32> to vector<1x512xf32>
    %41 = vector.broadcast %40 : vector<1x512xf32> to vector<4x512xf32>
    %42 = arith.mulf %38, %41 : vector<4x512xf32>
    %c4_28 = arith.constant 4 : index
    %c0_29 = arith.constant 0 : index
    %c0_30 = arith.constant 0 : index
    %43 = vector.load %arg3[%c4_28, %c0_29, %c0_30] : memref<27x4x4xf32, #tpu.memory_space<vmem>>, vector<1x4x4xf32>
    %44 = vector.shape_cast %43 : vector<1x4x4xf32> to vector<4x4xf32>
    %cst_31 = arith.constant dense<0.000000e+00> : vector<4x512xf32>
    %45 = tpu.matmul %44, %42, %cst_31 {dimension_numbers = #tpu.dot_dimension_numbers<[1], [0], [0], [1], [0, 0, 1, 1], [], []>} : vector<4x4xf32>, vector<4x512xf32>, vector<4x512xf32> -> vector<4x512xf32>
    %46 = arith.addf %37, %45 : vector<4x512xf32>
    %c63_i32 = arith.constant 63 : i32
    %47 = tpu.dynamic_rotate %2 by %c63_i32 dim 1 : vector<4x512xf32>, i32 -> vector<4x512xf32>
    %c5 = arith.constant 5 : index
    %c0_32 = arith.constant 0 : index
    %c0_33 = arith.constant 0 : index
    %48 = vector.load %arg2[%c5, %c0_32, %c0_33] : memref<27x1x512xf32, #tpu.memory_space<vmem>>, vector<1x1x512xf32>
    %49 = vector.shape_cast %48 : vector<1x1x512xf32> to vector<1x512xf32>
    %50 = vector.broadcast %49 : vector<1x512xf32> to vector<4x512xf32>
    %51 = arith.mulf %47, %50 : vector<4x512xf32>
    %c5_34 = arith.constant 5 : index
    %c0_35 = arith.constant 0 : index
    %c0_36 = arith.constant 0 : index
    %52 = vector.load %arg3[%c5_34, %c0_35, %c0_36] : memref<27x4x4xf32, #tpu.memory_space<vmem>>, vector<1x4x4xf32>
    %53 = vector.shape_cast %52 : vector<1x4x4xf32> to vector<4x4xf32>
    %cst_37 = arith.constant dense<0.000000e+00> : vector<4x512xf32>
    %54 = tpu.matmul %53, %51, %cst_37 {dimension_numbers = #tpu.dot_dimension_numbers<[1], [0], [0], [1], [0, 0, 1, 1], [], []>} : vector<4x4xf32>, vector<4x512xf32>, vector<4x512xf32> -> vector<4x512xf32>
    %55 = arith.addf %46, %54 : vector<4x512xf32>
    %c57_i32 = arith.constant 57 : i32
    %56 = tpu.dynamic_rotate %2 by %c57_i32 dim 1 : vector<4x512xf32>, i32 -> vector<4x512xf32>
    %c6 = arith.constant 6 : index
    %c0_38 = arith.constant 0 : index
    %c0_39 = arith.constant 0 : index
    %57 = vector.load %arg2[%c6, %c0_38, %c0_39] : memref<27x1x512xf32, #tpu.memory_space<vmem>>, vector<1x1x512xf32>
    %58 = vector.shape_cast %57 : vector<1x1x512xf32> to vector<1x512xf32>
    %59 = vector.broadcast %58 : vector<1x512xf32> to vector<4x512xf32>
    %60 = arith.mulf %56, %59 : vector<4x512xf32>
    %c6_40 = arith.constant 6 : index
    %c0_41 = arith.constant 0 : index
    %c0_42 = arith.constant 0 : index
    %61 = vector.load %arg3[%c6_40, %c0_41, %c0_42] : memref<27x4x4xf32, #tpu.memory_space<vmem>>, vector<1x4x4xf32>
    %62 = vector.shape_cast %61 : vector<1x4x4xf32> to vector<4x4xf32>
    %cst_43 = arith.constant dense<0.000000e+00> : vector<4x512xf32>
    %63 = tpu.matmul %62, %60, %cst_43 {dimension_numbers = #tpu.dot_dimension_numbers<[1], [0], [0], [1], [0, 0, 1, 1], [], []>} : vector<4x4xf32>, vector<4x512xf32>, vector<4x512xf32> -> vector<4x512xf32>
    %64 = arith.addf %55, %63 : vector<4x512xf32>
    %c56_i32 = arith.constant 56 : i32
    %65 = tpu.dynamic_rotate %2 by %c56_i32 dim 1 : vector<4x512xf32>, i32 -> vector<4x512xf32>
    %c7 = arith.constant 7 : index
    %c0_44 = arith.constant 0 : index
    %c0_45 = arith.constant 0 : index
    %66 = vector.load %arg2[%c7, %c0_44, %c0_45] : memref<27x1x512xf32, #tpu.memory_space<vmem>>, vector<1x1x512xf32>
    %67 = vector.shape_cast %66 : vector<1x1x512xf32> to vector<1x512xf32>
    %68 = vector.broadcast %67 : vector<1x512xf32> to vector<4x512xf32>
    %69 = arith.mulf %65, %68 : vector<4x512xf32>
    %c7_46 = arith.constant 7 : index
    %c0_47 = arith.constant 0 : index
    %c0_48 = arith.constant 0 : index
    %70 = vector.load %arg3[%c7_46, %c0_47, %c0_48] : memref<27x4x4xf32, #tpu.memory_space<vmem>>, vector<1x4x4xf32>
    %71 = vector.shape_cast %70 : vector<1x4x4xf32> to vector<4x4xf32>
    %cst_49 = arith.constant dense<0.000000e+00> : vector<4x512xf32>
    %72 = tpu.matmul %71, %69, %cst_49 {dimension_numbers = #tpu.dot_dimension_numbers<[1], [0], [0], [1], [0, 0, 1, 1], [], []>} : vector<4x4xf32>, vector<4x512xf32>, vector<4x512xf32> -> vector<4x512xf32>
    %73 = arith.addf %64, %72 : vector<4x512xf32>
    %c55_i32 = arith.constant 55 : i32
    %74 = tpu.dynamic_rotate %2 by %c55_i32 dim 1 : vector<4x512xf32>, i32 -> vector<4x512xf32>
    %c8 = arith.constant 8 : index
    %c0_50 = arith.constant 0 : index
    %c0_51 = arith.constant 0 : index
    %75 = vector.load %arg2[%c8, %c0_50, %c0_51] : memref<27x1x512xf32, #tpu.memory_space<vmem>>, vector<1x1x512xf32>
    %76 = vector.shape_cast %75 : vector<1x1x512xf32> to vector<1x512xf32>
    %77 = vector.broadcast %76 : vector<1x512xf32> to vector<4x512xf32>
    %78 = arith.mulf %74, %77 : vector<4x512xf32>
    %c8_52 = arith.constant 8 : index
    %c0_53 = arith.constant 0 : index
    %c0_54 = arith.constant 0 : index
    %79 = vector.load %arg3[%c8_52, %c0_53, %c0_54] : memref<27x4x4xf32, #tpu.memory_space<vmem>>, vector<1x4x4xf32>
    %80 = vector.shape_cast %79 : vector<1x4x4xf32> to vector<4x4xf32>
    %cst_55 = arith.constant dense<0.000000e+00> : vector<4x512xf32>
    %81 = tpu.matmul %80, %78, %cst_55 {dimension_numbers = #tpu.dot_dimension_numbers<[1], [0], [0], [1], [0, 0, 1, 1], [], []>} : vector<4x4xf32>, vector<4x512xf32>, vector<4x512xf32> -> vector<4x512xf32>
    %82 = arith.addf %73, %81 : vector<4x512xf32>
    %c9_i32 = arith.constant 9 : i32
    %83 = tpu.dynamic_rotate %2 by %c9_i32 dim 1 : vector<4x512xf32>, i32 -> vector<4x512xf32>
    %c9 = arith.constant 9 : index
    %c0_56 = arith.constant 0 : index
    %c0_57 = arith.constant 0 : index
    %84 = vector.load %arg2[%c9, %c0_56, %c0_57] : memref<27x1x512xf32, #tpu.memory_space<vmem>>, vector<1x1x512xf32>
    %85 = vector.shape_cast %84 : vector<1x1x512xf32> to vector<1x512xf32>
    %86 = vector.broadcast %85 : vector<1x512xf32> to vector<4x512xf32>
    %87 = arith.mulf %83, %86 : vector<4x512xf32>
    %c9_58 = arith.constant 9 : index
    %c0_59 = arith.constant 0 : index
    %c0_60 = arith.constant 0 : index
    %88 = vector.load %arg3[%c9_58, %c0_59, %c0_60] : memref<27x4x4xf32, #tpu.memory_space<vmem>>, vector<1x4x4xf32>
    %89 = vector.shape_cast %88 : vector<1x4x4xf32> to vector<4x4xf32>
    %cst_61 = arith.constant dense<0.000000e+00> : vector<4x512xf32>
    %90 = tpu.matmul %89, %87, %cst_61 {dimension_numbers = #tpu.dot_dimension_numbers<[1], [0], [0], [1], [0, 0, 1, 1], [], []>} : vector<4x4xf32>, vector<4x512xf32>, vector<4x512xf32> -> vector<4x512xf32>
    %91 = arith.addf %82, %90 : vector<4x512xf32>
    %c8_i32 = arith.constant 8 : i32
    %92 = tpu.dynamic_rotate %2 by %c8_i32 dim 1 : vector<4x512xf32>, i32 -> vector<4x512xf32>
    %c10 = arith.constant 10 : index
    %c0_62 = arith.constant 0 : index
    %c0_63 = arith.constant 0 : index
    %93 = vector.load %arg2[%c10, %c0_62, %c0_63] : memref<27x1x512xf32, #tpu.memory_space<vmem>>, vector<1x1x512xf32>
    %94 = vector.shape_cast %93 : vector<1x1x512xf32> to vector<1x512xf32>
    %95 = vector.broadcast %94 : vector<1x512xf32> to vector<4x512xf32>
    %96 = arith.mulf %92, %95 : vector<4x512xf32>
    %c10_64 = arith.constant 10 : index
    %c0_65 = arith.constant 0 : index
    %c0_66 = arith.constant 0 : index
    %97 = vector.load %arg3[%c10_64, %c0_65, %c0_66] : memref<27x4x4xf32, #tpu.memory_space<vmem>>, vector<1x4x4xf32>
    %98 = vector.shape_cast %97 : vector<1x4x4xf32> to vector<4x4xf32>
    %cst_67 = arith.constant dense<0.000000e+00> : vector<4x512xf32>
    %99 = tpu.matmul %98, %96, %cst_67 {dimension_numbers = #tpu.dot_dimension_numbers<[1], [0], [0], [1], [0, 0, 1, 1], [], []>} : vector<4x4xf32>, vector<4x512xf32>, vector<4x512xf32> -> vector<4x512xf32>
    %100 = arith.addf %91, %99 : vector<4x512xf32>
    %c7_i32 = arith.constant 7 : i32
    %101 = tpu.dynamic_rotate %2 by %c7_i32 dim 1 : vector<4x512xf32>, i32 -> vector<4x512xf32>
    %c11 = arith.constant 11 : index
    %c0_68 = arith.constant 0 : index
    %c0_69 = arith.constant 0 : index
    %102 = vector.load %arg2[%c11, %c0_68, %c0_69] : memref<27x1x512xf32, #tpu.memory_space<vmem>>, vector<1x1x512xf32>
    %103 = vector.shape_cast %102 : vector<1x1x512xf32> to vector<1x512xf32>
    %104 = vector.broadcast %103 : vector<1x512xf32> to vector<4x512xf32>
    %105 = arith.mulf %101, %104 : vector<4x512xf32>
    %c11_70 = arith.constant 11 : index
    %c0_71 = arith.constant 0 : index
    %c0_72 = arith.constant 0 : index
    %106 = vector.load %arg3[%c11_70, %c0_71, %c0_72] : memref<27x4x4xf32, #tpu.memory_space<vmem>>, vector<1x4x4xf32>
    %107 = vector.shape_cast %106 : vector<1x4x4xf32> to vector<4x4xf32>
    %cst_73 = arith.constant dense<0.000000e+00> : vector<4x512xf32>
    %108 = tpu.matmul %107, %105, %cst_73 {dimension_numbers = #tpu.dot_dimension_numbers<[1], [0], [0], [1], [0, 0, 1, 1], [], []>} : vector<4x4xf32>, vector<4x512xf32>, vector<4x512xf32> -> vector<4x512xf32>
    %109 = arith.addf %100, %108 : vector<4x512xf32>
    %c1_i32 = arith.constant 1 : i32
    %110 = tpu.dynamic_rotate %2 by %c1_i32 dim 1 : vector<4x512xf32>, i32 -> vector<4x512xf32>
    %c12 = arith.constant 12 : index
    %c0_74 = arith.constant 0 : index
    %c0_75 = arith.constant 0 : index
    %111 = vector.load %arg2[%c12, %c0_74, %c0_75] : memref<27x1x512xf32, #tpu.memory_space<vmem>>, vector<1x1x512xf32>
    %112 = vector.shape_cast %111 : vector<1x1x512xf32> to vector<1x512xf32>
    %113 = vector.broadcast %112 : vector<1x512xf32> to vector<4x512xf32>
    %114 = arith.mulf %110, %113 : vector<4x512xf32>
    %c12_76 = arith.constant 12 : index
    %c0_77 = arith.constant 0 : index
    %c0_78 = arith.constant 0 : index
    %115 = vector.load %arg3[%c12_76, %c0_77, %c0_78] : memref<27x4x4xf32, #tpu.memory_space<vmem>>, vector<1x4x4xf32>
    %116 = vector.shape_cast %115 : vector<1x4x4xf32> to vector<4x4xf32>
    %cst_79 = arith.constant dense<0.000000e+00> : vector<4x512xf32>
    %117 = tpu.matmul %116, %114, %cst_79 {dimension_numbers = #tpu.dot_dimension_numbers<[1], [0], [0], [1], [0, 0, 1, 1], [], []>} : vector<4x4xf32>, vector<4x512xf32>, vector<4x512xf32> -> vector<4x512xf32>
    %118 = arith.addf %109, %117 : vector<4x512xf32>
    %c13 = arith.constant 13 : index
    %c0_80 = arith.constant 0 : index
    %c0_81 = arith.constant 0 : index
    %119 = vector.load %arg3[%c13, %c0_80, %c0_81] : memref<27x4x4xf32, #tpu.memory_space<vmem>>, vector<1x4x4xf32>
    %120 = vector.shape_cast %119 : vector<1x4x4xf32> to vector<4x4xf32>
    %cst_82 = arith.constant dense<0.000000e+00> : vector<4x512xf32>
    %121 = tpu.matmul %120, %2, %cst_82 {dimension_numbers = #tpu.dot_dimension_numbers<[1], [0], [0], [1], [0, 0, 1, 1], [], []>} : vector<4x4xf32>, vector<4x512xf32>, vector<4x512xf32> -> vector<4x512xf32>
    %122 = arith.addf %118, %121 : vector<4x512xf32>
    %c511_i32 = arith.constant 511 : i32
    %123 = tpu.dynamic_rotate %2 by %c511_i32 dim 1 : vector<4x512xf32>, i32 -> vector<4x512xf32>
    %c14 = arith.constant 14 : index
    %c0_83 = arith.constant 0 : index
    %c0_84 = arith.constant 0 : index
    %124 = vector.load %arg2[%c14, %c0_83, %c0_84] : memref<27x1x512xf32, #tpu.memory_space<vmem>>, vector<1x1x512xf32>
    %125 = vector.shape_cast %124 : vector<1x1x512xf32> to vector<1x512xf32>
    %126 = vector.broadcast %125 : vector<1x512xf32> to vector<4x512xf32>
    %127 = arith.mulf %123, %126 : vector<4x512xf32>
    %c14_85 = arith.constant 14 : index
    %c0_86 = arith.constant 0 : index
    %c0_87 = arith.constant 0 : index
    %128 = vector.load %arg3[%c14_85, %c0_86, %c0_87] : memref<27x4x4xf32, #tpu.memory_space<vmem>>, vector<1x4x4xf32>
    %129 = vector.shape_cast %128 : vector<1x4x4xf32> to vector<4x4xf32>
    %cst_88 = arith.constant dense<0.000000e+00> : vector<4x512xf32>
    %130 = tpu.matmul %129, %127, %cst_88 {dimension_numbers = #tpu.dot_dimension_numbers<[1], [0], [0], [1], [0, 0, 1, 1], [], []>} : vector<4x4xf32>, vector<4x512xf32>, vector<4x512xf32> -> vector<4x512xf32>
    %131 = arith.addf %122, %130 : vector<4x512xf32>
    %c505_i32 = arith.constant 505 : i32
    %132 = tpu.dynamic_rotate %2 by %c505_i32 dim 1 : vector<4x512xf32>, i32 -> vector<4x512xf32>
    %c15 = arith.constant 15 : index
    %c0_89 = arith.constant 0 : index
    %c0_90 = arith.constant 0 : index
    %133 = vector.load %arg2[%c15, %c0_89, %c0_90] : memref<27x1x512xf32, #tpu.memory_space<vmem>>, vector<1x1x512xf32>
    %134 = vector.shape_cast %133 : vector<1x1x512xf32> to vector<1x512xf32>
    %135 = vector.broadcast %134 : vector<1x512xf32> to vector<4x512xf32>
    %136 = arith.mulf %132, %135 : vector<4x512xf32>
    %c15_91 = arith.constant 15 : index
    %c0_92 = arith.constant 0 : index
    %c0_93 = arith.constant 0 : index
    %137 = vector.load %arg3[%c15_91, %c0_92, %c0_93] : memref<27x4x4xf32, #tpu.memory_space<vmem>>, vector<1x4x4xf32>
    %138 = vector.shape_cast %137 : vector<1x4x4xf32> to vector<4x4xf32>
    %cst_94 = arith.constant dense<0.000000e+00> : vector<4x512xf32>
    %139 = tpu.matmul %138, %136, %cst_94 {dimension_numbers = #tpu.dot_dimension_numbers<[1], [0], [0], [1], [0, 0, 1, 1], [], []>} : vector<4x4xf32>, vector<4x512xf32>, vector<4x512xf32> -> vector<4x512xf32>
    %140 = arith.addf %131, %139 : vector<4x512xf32>
    %c504_i32 = arith.constant 504 : i32
    %141 = tpu.dynamic_rotate %2 by %c504_i32 dim 1 : vector<4x512xf32>, i32 -> vector<4x512xf32>
    %c16 = arith.constant 16 : index
    %c0_95 = arith.constant 0 : index
    %c0_96 = arith.constant 0 : index
    %142 = vector.load %arg2[%c16, %c0_95, %c0_96] : memref<27x1x512xf32, #tpu.memory_space<vmem>>, vector<1x1x512xf32>
    %143 = vector.shape_cast %142 : vector<1x1x512xf32> to vector<1x512xf32>
    %144 = vector.broadcast %143 : vector<1x512xf32> to vector<4x512xf32>
    %145 = arith.mulf %141, %144 : vector<4x512xf32>
    %c16_97 = arith.constant 16 : index
    %c0_98 = arith.constant 0 : index
    %c0_99 = arith.constant 0 : index
    %146 = vector.load %arg3[%c16_97, %c0_98, %c0_99] : memref<27x4x4xf32, #tpu.memory_space<vmem>>, vector<1x4x4xf32>
    %147 = vector.shape_cast %146 : vector<1x4x4xf32> to vector<4x4xf32>
    %cst_100 = arith.constant dense<0.000000e+00> : vector<4x512xf32>
    %148 = tpu.matmul %147, %145, %cst_100 {dimension_numbers = #tpu.dot_dimension_numbers<[1], [0], [0], [1], [0, 0, 1, 1], [], []>} : vector<4x4xf32>, vector<4x512xf32>, vector<4x512xf32> -> vector<4x512xf32>
    %149 = arith.addf %140, %148 : vector<4x512xf32>
    %c503_i32 = arith.constant 503 : i32
    %150 = tpu.dynamic_rotate %2 by %c503_i32 dim 1 : vector<4x512xf32>, i32 -> vector<4x512xf32>
    %c17 = arith.constant 17 : index
    %c0_101 = arith.constant 0 : index
    %c0_102 = arith.constant 0 : index
    %151 = vector.load %arg2[%c17, %c0_101, %c0_102] : memref<27x1x512xf32, #tpu.memory_space<vmem>>, vector<1x1x512xf32>
    %152 = vector.shape_cast %151 : vector<1x1x512xf32> to vector<1x512xf32>
    %153 = vector.broadcast %152 : vector<1x512xf32> to vector<4x512xf32>
    %154 = arith.mulf %150, %153 : vector<4x512xf32>
    %c17_103 = arith.constant 17 : index
    %c0_104 = arith.constant 0 : index
    %c0_105 = arith.constant 0 : index
    %155 = vector.load %arg3[%c17_103, %c0_104, %c0_105] : memref<27x4x4xf32, #tpu.memory_space<vmem>>, vector<1x4x4xf32>
    %156 = vector.shape_cast %155 : vector<1x4x4xf32> to vector<4x4xf32>
    %cst_106 = arith.constant dense<0.000000e+00> : vector<4x512xf32>
    %157 = tpu.matmul %156, %154, %cst_106 {dimension_numbers = #tpu.dot_dimension_numbers<[1], [0], [0], [1], [0, 0, 1, 1], [], []>} : vector<4x4xf32>, vector<4x512xf32>, vector<4x512xf32> -> vector<4x512xf32>
    %158 = arith.addf %149, %157 : vector<4x512xf32>
    %c457_i32 = arith.constant 457 : i32
    %159 = tpu.dynamic_rotate %2 by %c457_i32 dim 1 : vector<4x512xf32>, i32 -> vector<4x512xf32>
    %c18 = arith.constant 18 : index
    %c0_107 = arith.constant 0 : index
    %c0_108 = arith.constant 0 : index
    %160 = vector.load %arg2[%c18, %c0_107, %c0_108] : memref<27x1x512xf32, #tpu.memory_space<vmem>>, vector<1x1x512xf32>
    %161 = vector.shape_cast %160 : vector<1x1x512xf32> to vector<1x512xf32>
    %162 = vector.broadcast %161 : vector<1x512xf32> to vector<4x512xf32>
    %163 = arith.mulf %159, %162 : vector<4x512xf32>
    %c18_109 = arith.constant 18 : index
    %c0_110 = arith.constant 0 : index
    %c0_111 = arith.constant 0 : index
    %164 = vector.load %arg3[%c18_109, %c0_110, %c0_111] : memref<27x4x4xf32, #tpu.memory_space<vmem>>, vector<1x4x4xf32>
    %165 = vector.shape_cast %164 : vector<1x4x4xf32> to vector<4x4xf32>
    %cst_112 = arith.constant dense<0.000000e+00> : vector<4x512xf32>
    %166 = tpu.matmul %165, %163, %cst_112 {dimension_numbers = #tpu.dot_dimension_numbers<[1], [0], [0], [1], [0, 0, 1, 1], [], []>} : vector<4x4xf32>, vector<4x512xf32>, vector<4x512xf32> -> vector<4x512xf32>
    %167 = arith.addf %158, %166 : vector<4x512xf32>
    %c456_i32 = arith.constant 456 : i32
    %168 = tpu.dynamic_rotate %2 by %c456_i32 dim 1 : vector<4x512xf32>, i32 -> vector<4x512xf32>
    %c19 = arith.constant 19 : index
    %c0_113 = arith.constant 0 : index
    %c0_114 = arith.constant 0 : index
    %169 = vector.load %arg2[%c19, %c0_113, %c0_114] : memref<27x1x512xf32, #tpu.memory_space<vmem>>, vector<1x1x512xf32>
    %170 = vector.shape_cast %169 : vector<1x1x512xf32> to vector<1x512xf32>
    %171 = vector.broadcast %170 : vector<1x512xf32> to vector<4x512xf32>
    %172 = arith.mulf %168, %171 : vector<4x512xf32>
    %c19_115 = arith.constant 19 : index
    %c0_116 = arith.constant 0 : index
    %c0_117 = arith.constant 0 : index
    %173 = vector.load %arg3[%c19_115, %c0_116, %c0_117] : memref<27x4x4xf32, #tpu.memory_space<vmem>>, vector<1x4x4xf32>
    %174 = vector.shape_cast %173 : vector<1x4x4xf32> to vector<4x4xf32>
    %cst_118 = arith.constant dense<0.000000e+00> : vector<4x512xf32>
    %175 = tpu.matmul %174, %172, %cst_118 {dimension_numbers = #tpu.dot_dimension_numbers<[1], [0], [0], [1], [0, 0, 1, 1], [], []>} : vector<4x4xf32>, vector<4x512xf32>, vector<4x512xf32> -> vector<4x512xf32>
    %176 = arith.addf %167, %175 : vector<4x512xf32>
    %c455_i32 = arith.constant 455 : i32
    %177 = tpu.dynamic_rotate %2 by %c455_i32 dim 1 : vector<4x512xf32>, i32 -> vector<4x512xf32>
    %c20 = arith.constant 20 : index
    %c0_119 = arith.constant 0 : index
    %c0_120 = arith.constant 0 : index
    %178 = vector.load %arg2[%c20, %c0_119, %c0_120] : memref<27x1x512xf32, #tpu.memory_space<vmem>>, vector<1x1x512xf32>
    %179 = vector.shape_cast %178 : vector<1x1x512xf32> to vector<1x512xf32>
    %180 = vector.broadcast %179 : vector<1x512xf32> to vector<4x512xf32>
    %181 = arith.mulf %177, %180 : vector<4x512xf32>
    %c20_121 = arith.constant 20 : index
    %c0_122 = arith.constant 0 : index
    %c0_123 = arith.constant 0 : index
    %182 = vector.load %arg3[%c20_121, %c0_122, %c0_123] : memref<27x4x4xf32, #tpu.memory_space<vmem>>, vector<1x4x4xf32>
    %183 = vector.shape_cast %182 : vector<1x4x4xf32> to vector<4x4xf32>
    %cst_124 = arith.constant dense<0.000000e+00> : vector<4x512xf32>
    %184 = tpu.matmul %183, %181, %cst_124 {dimension_numbers = #tpu.dot_dimension_numbers<[1], [0], [0], [1], [0, 0, 1, 1], [], []>} : vector<4x4xf32>, vector<4x512xf32>, vector<4x512xf32> -> vector<4x512xf32>
    %185 = arith.addf %176, %184 : vector<4x512xf32>
    %c449_i32 = arith.constant 449 : i32
    %186 = tpu.dynamic_rotate %2 by %c449_i32 dim 1 : vector<4x512xf32>, i32 -> vector<4x512xf32>
    %c21 = arith.constant 21 : index
    %c0_125 = arith.constant 0 : index
    %c0_126 = arith.constant 0 : index
    %187 = vector.load %arg2[%c21, %c0_125, %c0_126] : memref<27x1x512xf32, #tpu.memory_space<vmem>>, vector<1x1x512xf32>
    %188 = vector.shape_cast %187 : vector<1x1x512xf32> to vector<1x512xf32>
    %189 = vector.broadcast %188 : vector<1x512xf32> to vector<4x512xf32>
    %190 = arith.mulf %186, %189 : vector<4x512xf32>
    %c21_127 = arith.constant 21 : index
    %c0_128 = arith.constant 0 : index
    %c0_129 = arith.constant 0 : index
    %191 = vector.load %arg3[%c21_127, %c0_128, %c0_129] : memref<27x4x4xf32, #tpu.memory_space<vmem>>, vector<1x4x4xf32>
    %192 = vector.shape_cast %191 : vector<1x4x4xf32> to vector<4x4xf32>
    %cst_130 = arith.constant dense<0.000000e+00> : vector<4x512xf32>
    %193 = tpu.matmul %192, %190, %cst_130 {dimension_numbers = #tpu.dot_dimension_numbers<[1], [0], [0], [1], [0, 0, 1, 1], [], []>} : vector<4x4xf32>, vector<4x512xf32>, vector<4x512xf32> -> vector<4x512xf32>
    %194 = arith.addf %185, %193 : vector<4x512xf32>
    %c448_i32 = arith.constant 448 : i32
    %195 = tpu.dynamic_rotate %2 by %c448_i32 dim 1 : vector<4x512xf32>, i32 -> vector<4x512xf32>
    %c22 = arith.constant 22 : index
    %c0_131 = arith.constant 0 : index
    %c0_132 = arith.constant 0 : index
    %196 = vector.load %arg2[%c22, %c0_131, %c0_132] : memref<27x1x512xf32, #tpu.memory_space<vmem>>, vector<1x1x512xf32>
    %197 = vector.shape_cast %196 : vector<1x1x512xf32> to vector<1x512xf32>
    %198 = vector.broadcast %197 : vector<1x512xf32> to vector<4x512xf32>
    %199 = arith.mulf %195, %198 : vector<4x512xf32>
    %c22_133 = arith.constant 22 : index
    %c0_134 = arith.constant 0 : index
    %c0_135 = arith.constant 0 : index
    %200 = vector.load %arg3[%c22_133, %c0_134, %c0_135] : memref<27x4x4xf32, #tpu.memory_space<vmem>>, vector<1x4x4xf32>
    %201 = vector.shape_cast %200 : vector<1x4x4xf32> to vector<4x4xf32>
    %cst_136 = arith.constant dense<0.000000e+00> : vector<4x512xf32>
    %202 = tpu.matmul %201, %199, %cst_136 {dimension_numbers = #tpu.dot_dimension_numbers<[1], [0], [0], [1], [0, 0, 1, 1], [], []>} : vector<4x4xf32>, vector<4x512xf32>, vector<4x512xf32> -> vector<4x512xf32>
    %203 = arith.addf %194, %202 : vector<4x512xf32>
    %c447_i32 = arith.constant 447 : i32
    %204 = tpu.dynamic_rotate %2 by %c447_i32 dim 1 : vector<4x512xf32>, i32 -> vector<4x512xf32>
    %c23 = arith.constant 23 : index
    %c0_137 = arith.constant 0 : index
    %c0_138 = arith.constant 0 : index
    %205 = vector.load %arg2[%c23, %c0_137, %c0_138] : memref<27x1x512xf32, #tpu.memory_space<vmem>>, vector<1x1x512xf32>
    %206 = vector.shape_cast %205 : vector<1x1x512xf32> to vector<1x512xf32>
    %207 = vector.broadcast %206 : vector<1x512xf32> to vector<4x512xf32>
    %208 = arith.mulf %204, %207 : vector<4x512xf32>
    %c23_139 = arith.constant 23 : index
    %c0_140 = arith.constant 0 : index
    %c0_141 = arith.constant 0 : index
    %209 = vector.load %arg3[%c23_139, %c0_140, %c0_141] : memref<27x4x4xf32, #tpu.memory_space<vmem>>, vector<1x4x4xf32>
    %210 = vector.shape_cast %209 : vector<1x4x4xf32> to vector<4x4xf32>
    %cst_142 = arith.constant dense<0.000000e+00> : vector<4x512xf32>
    %211 = tpu.matmul %210, %208, %cst_142 {dimension_numbers = #tpu.dot_dimension_numbers<[1], [0], [0], [1], [0, 0, 1, 1], [], []>} : vector<4x4xf32>, vector<4x512xf32>, vector<4x512xf32> -> vector<4x512xf32>
    %212 = arith.addf %203, %211 : vector<4x512xf32>
    %c441_i32 = arith.constant 441 : i32
    %213 = tpu.dynamic_rotate %2 by %c441_i32 dim 1 : vector<4x512xf32>, i32 -> vector<4x512xf32>
    %c24 = arith.constant 24 : index
    %c0_143 = arith.constant 0 : index
    %c0_144 = arith.constant 0 : index
    %214 = vector.load %arg2[%c24, %c0_143, %c0_144] : memref<27x1x512xf32, #tpu.memory_space<vmem>>, vector<1x1x512xf32>
    %215 = vector.shape_cast %214 : vector<1x1x512xf32> to vector<1x512xf32>
    %216 = vector.broadcast %215 : vector<1x512xf32> to vector<4x512xf32>
    %217 = arith.mulf %213, %216 : vector<4x512xf32>
    %c24_145 = arith.constant 24 : index
    %c0_146 = arith.constant 0 : index
    %c0_147 = arith.constant 0 : index
    %218 = vector.load %arg3[%c24_145, %c0_146, %c0_147] : memref<27x4x4xf32, #tpu.memory_space<vmem>>, vector<1x4x4xf32>
    %219 = vector.shape_cast %218 : vector<1x4x4xf32> to vector<4x4xf32>
    %cst_148 = arith.constant dense<0.000000e+00> : vector<4x512xf32>
    %220 = tpu.matmul %219, %217, %cst_148 {dimension_numbers = #tpu.dot_dimension_numbers<[1], [0], [0], [1], [0, 0, 1, 1], [], []>} : vector<4x4xf32>, vector<4x512xf32>, vector<4x512xf32> -> vector<4x512xf32>
    %221 = arith.addf %212, %220 : vector<4x512xf32>
    %c440_i32 = arith.constant 440 : i32
    %222 = tpu.dynamic_rotate %2 by %c440_i32 dim 1 : vector<4x512xf32>, i32 -> vector<4x512xf32>
    %c25 = arith.constant 25 : index
    %c0_149 = arith.constant 0 : index
    %c0_150 = arith.constant 0 : index
    %223 = vector.load %arg2[%c25, %c0_149, %c0_150] : memref<27x1x512xf32, #tpu.memory_space<vmem>>, vector<1x1x512xf32>
    %224 = vector.shape_cast %223 : vector<1x1x512xf32> to vector<1x512xf32>
    %225 = vector.broadcast %224 : vector<1x512xf32> to vector<4x512xf32>
    %226 = arith.mulf %222, %225 : vector<4x512xf32>
    %c25_151 = arith.constant 25 : index
    %c0_152 = arith.constant 0 : index
    %c0_153 = arith.constant 0 : index
    %227 = vector.load %arg3[%c25_151, %c0_152, %c0_153] : memref<27x4x4xf32, #tpu.memory_space<vmem>>, vector<1x4x4xf32>
    %228 = vector.shape_cast %227 : vector<1x4x4xf32> to vector<4x4xf32>
    %cst_154 = arith.constant dense<0.000000e+00> : vector<4x512xf32>
    %229 = tpu.matmul %228, %226, %cst_154 {dimension_numbers = #tpu.dot_dimension_numbers<[1], [0], [0], [1], [0, 0, 1, 1], [], []>} : vector<4x4xf32>, vector<4x512xf32>, vector<4x512xf32> -> vector<4x512xf32>
    %230 = arith.addf %221, %229 : vector<4x512xf32>
    %c439_i32 = arith.constant 439 : i32
    %231 = tpu.dynamic_rotate %2 by %c439_i32 dim 1 : vector<4x512xf32>, i32 -> vector<4x512xf32>
    %c26 = arith.constant 26 : index
    %c0_155 = arith.constant 0 : index
    %c0_156 = arith.constant 0 : index
    %232 = vector.load %arg2[%c26, %c0_155, %c0_156] : memref<27x1x512xf32, #tpu.memory_space<vmem>>, vector<1x1x512xf32>
    %233 = vector.shape_cast %232 : vector<1x1x512xf32> to vector<1x512xf32>
    %234 = vector.broadcast %233 : vector<1x512xf32> to vector<4x512xf32>
    %235 = arith.mulf %231, %234 : vector<4x512xf32>
    %c26_157 = arith.constant 26 : index
    %c0_158 = arith.constant 0 : index
    %c0_159 = arith.constant 0 : index
    %236 = vector.load %arg3[%c26_157, %c0_158, %c0_159] : memref<27x4x4xf32, #tpu.memory_space<vmem>>, vector<1x4x4xf32>
    %237 = vector.shape_cast %236 : vector<1x4x4xf32> to vector<4x4xf32>
    %cst_160 = arith.constant dense<0.000000e+00> : vector<4x512xf32>
    %238 = tpu.matmul %237, %235, %cst_160 {dimension_numbers = #tpu.dot_dimension_numbers<[1], [0], [0], [1], [0, 0, 1, 1], [], []>} : vector<4x4xf32>, vector<4x512xf32>, vector<4x512xf32> -> vector<4x512xf32>
    %239 = arith.addf %230, %238 : vector<4x512xf32>
    %c0_161 = arith.constant 0 : index
    %c0_162 = arith.constant 0 : index
    %240 = vector.load %arg4[%c0_161, %c0_162] : memref<4x1xf32, #tpu.memory_space<vmem>>, vector<4x1xf32>
    %241 = vector.broadcast %240 : vector<4x1xf32> to vector<4x512xf32>
    %242 = arith.addf %239, %241 : vector<4x512xf32>
    %cst_163 = arith.constant 0.000000e+00 : f32
    %243 = vector.broadcast %cst_163 : f32 to vector<4x512xf32>
    %244 = arith.maximumf %242, %243 : vector<4x512xf32>
    %c73_i32_164 = arith.constant 73 : i32
    %245 = tpu.dynamic_rotate %244 by %c73_i32_164 dim 1 : vector<4x512xf32>, i32 -> vector<4x512xf32>
    %c0_165 = arith.constant 0 : index
    %c0_166 = arith.constant 0 : index
    %c0_167 = arith.constant 0 : index
    %246 = vector.load %arg2[%c0_165, %c0_166, %c0_167] : memref<27x1x512xf32, #tpu.memory_space<vmem>>, vector<1x1x512xf32>
    %247 = vector.shape_cast %246 : vector<1x1x512xf32> to vector<1x512xf32>
    %248 = vector.broadcast %247 : vector<1x512xf32> to vector<4x512xf32>
    %249 = arith.mulf %245, %248 : vector<4x512xf32>
    %c0_168 = arith.constant 0 : index
    %c0_169 = arith.constant 0 : index
    %c0_170 = arith.constant 0 : index
    %250 = vector.load %arg5[%c0_168, %c0_169, %c0_170] : memref<27x4x4xf32, #tpu.memory_space<vmem>>, vector<1x4x4xf32>
    %251 = vector.shape_cast %250 : vector<1x4x4xf32> to vector<4x4xf32>
    %cst_171 = arith.constant dense<0.000000e+00> : vector<4x512xf32>
    %252 = tpu.matmul %251, %249, %cst_171 {dimension_numbers = #tpu.dot_dimension_numbers<[1], [0], [0], [1], [0, 0, 1, 1], [], []>} : vector<4x4xf32>, vector<4x512xf32>, vector<4x512xf32> -> vector<4x512xf32>
    %c72_i32_172 = arith.constant 72 : i32
    %253 = tpu.dynamic_rotate %244 by %c72_i32_172 dim 1 : vector<4x512xf32>, i32 -> vector<4x512xf32>
    %c1_173 = arith.constant 1 : index
    %c0_174 = arith.constant 0 : index
    %c0_175 = arith.constant 0 : index
    %254 = vector.load %arg2[%c1_173, %c0_174, %c0_175] : memref<27x1x512xf32, #tpu.memory_space<vmem>>, vector<1x1x512xf32>
    %255 = vector.shape_cast %254 : vector<1x1x512xf32> to vector<1x512xf32>
    %256 = vector.broadcast %255 : vector<1x512xf32> to vector<4x512xf32>
    %257 = arith.mulf %253, %256 : vector<4x512xf32>
    %c1_176 = arith.constant 1 : index
    %c0_177 = arith.constant 0 : index
    %c0_178 = arith.constant 0 : index
    %258 = vector.load %arg5[%c1_176, %c0_177, %c0_178] : memref<27x4x4xf32, #tpu.memory_space<vmem>>, vector<1x4x4xf32>
    %259 = vector.shape_cast %258 : vector<1x4x4xf32> to vector<4x4xf32>
    %cst_179 = arith.constant dense<0.000000e+00> : vector<4x512xf32>
    %260 = tpu.matmul %259, %257, %cst_179 {dimension_numbers = #tpu.dot_dimension_numbers<[1], [0], [0], [1], [0, 0, 1, 1], [], []>} : vector<4x4xf32>, vector<4x512xf32>, vector<4x512xf32> -> vector<4x512xf32>
    %261 = arith.addf %252, %260 : vector<4x512xf32>
    %c71_i32_180 = arith.constant 71 : i32
    %262 = tpu.dynamic_rotate %244 by %c71_i32_180 dim 1 : vector<4x512xf32>, i32 -> vector<4x512xf32>
    %c2_181 = arith.constant 2 : index
    %c0_182 = arith.constant 0 : index
    %c0_183 = arith.constant 0 : index
    %263 = vector.load %arg2[%c2_181, %c0_182, %c0_183] : memref<27x1x512xf32, #tpu.memory_space<vmem>>, vector<1x1x512xf32>
    %264 = vector.shape_cast %263 : vector<1x1x512xf32> to vector<1x512xf32>
    %265 = vector.broadcast %264 : vector<1x512xf32> to vector<4x512xf32>
    %266 = arith.mulf %262, %265 : vector<4x512xf32>
    %c2_184 = arith.constant 2 : index
    %c0_185 = arith.constant 0 : index
    %c0_186 = arith.constant 0 : index
    %267 = vector.load %arg5[%c2_184, %c0_185, %c0_186] : memref<27x4x4xf32, #tpu.memory_space<vmem>>, vector<1x4x4xf32>
    %268 = vector.shape_cast %267 : vector<1x4x4xf32> to vector<4x4xf32>
    %cst_187 = arith.constant dense<0.000000e+00> : vector<4x512xf32>
    %269 = tpu.matmul %268, %266, %cst_187 {dimension_numbers = #tpu.dot_dimension_numbers<[1], [0], [0], [1], [0, 0, 1, 1], [], []>} : vector<4x4xf32>, vector<4x512xf32>, vector<4x512xf32> -> vector<4x512xf32>
    %270 = arith.addf %261, %269 : vector<4x512xf32>
    %c65_i32_188 = arith.constant 65 : i32
    %271 = tpu.dynamic_rotate %244 by %c65_i32_188 dim 1 : vector<4x512xf32>, i32 -> vector<4x512xf32>
    %c3_189 = arith.constant 3 : index
    %c0_190 = arith.constant 0 : index
    %c0_191 = arith.constant 0 : index
    %272 = vector.load %arg2[%c3_189, %c0_190, %c0_191] : memref<27x1x512xf32, #tpu.memory_space<vmem>>, vector<1x1x512xf32>
    %273 = vector.shape_cast %272 : vector<1x1x512xf32> to vector<1x512xf32>
    %274 = vector.broadcast %273 : vector<1x512xf32> to vector<4x512xf32>
    %275 = arith.mulf %271, %274 : vector<4x512xf32>
    %c3_192 = arith.constant 3 : index
    %c0_193 = arith.constant 0 : index
    %c0_194 = arith.constant 0 : index
    %276 = vector.load %arg5[%c3_192, %c0_193, %c0_194] : memref<27x4x4xf32, #tpu.memory_space<vmem>>, vector<1x4x4xf32>
    %277 = vector.shape_cast %276 : vector<1x4x4xf32> to vector<4x4xf32>
    %cst_195 = arith.constant dense<0.000000e+00> : vector<4x512xf32>
    %278 = tpu.matmul %277, %275, %cst_195 {dimension_numbers = #tpu.dot_dimension_numbers<[1], [0], [0], [1], [0, 0, 1, 1], [], []>} : vector<4x4xf32>, vector<4x512xf32>, vector<4x512xf32> -> vector<4x512xf32>
    %279 = arith.addf %270, %278 : vector<4x512xf32>
    %c64_i32_196 = arith.constant 64 : i32
    %280 = tpu.dynamic_rotate %244 by %c64_i32_196 dim 1 : vector<4x512xf32>, i32 -> vector<4x512xf32>
    %c4_197 = arith.constant 4 : index
    %c0_198 = arith.constant 0 : index
    %c0_199 = arith.constant 0 : index
    %281 = vector.load %arg2[%c4_197, %c0_198, %c0_199] : memref<27x1x512xf32, #tpu.memory_space<vmem>>, vector<1x1x512xf32>
    %282 = vector.shape_cast %281 : vector<1x1x512xf32> to vector<1x512xf32>
    %283 = vector.broadcast %282 : vector<1x512xf32> to vector<4x512xf32>
    %284 = arith.mulf %280, %283 : vector<4x512xf32>
    %c4_200 = arith.constant 4 : index
    %c0_201 = arith.constant 0 : index
    %c0_202 = arith.constant 0 : index
    %285 = vector.load %arg5[%c4_200, %c0_201, %c0_202] : memref<27x4x4xf32, #tpu.memory_space<vmem>>, vector<1x4x4xf32>
    %286 = vector.shape_cast %285 : vector<1x4x4xf32> to vector<4x4xf32>
    %cst_203 = arith.constant dense<0.000000e+00> : vector<4x512xf32>
    %287 = tpu.matmul %286, %284, %cst_203 {dimension_numbers = #tpu.dot_dimension_numbers<[1], [0], [0], [1], [0, 0, 1, 1], [], []>} : vector<4x4xf32>, vector<4x512xf32>, vector<4x512xf32> -> vector<4x512xf32>
    %288 = arith.addf %279, %287 : vector<4x512xf32>
    %c63_i32_204 = arith.constant 63 : i32
    %289 = tpu.dynamic_rotate %244 by %c63_i32_204 dim 1 : vector<4x512xf32>, i32 -> vector<4x512xf32>
    %c5_205 = arith.constant 5 : index
    %c0_206 = arith.constant 0 : index
    %c0_207 = arith.constant 0 : index
    %290 = vector.load %arg2[%c5_205, %c0_206, %c0_207] : memref<27x1x512xf32, #tpu.memory_space<vmem>>, vector<1x1x512xf32>
    %291 = vector.shape_cast %290 : vector<1x1x512xf32> to vector<1x512xf32>
    %292 = vector.broadcast %291 : vector<1x512xf32> to vector<4x512xf32>
    %293 = arith.mulf %289, %292 : vector<4x512xf32>
    %c5_208 = arith.constant 5 : index
    %c0_209 = arith.constant 0 : index
    %c0_210 = arith.constant 0 : index
    %294 = vector.load %arg5[%c5_208, %c0_209, %c0_210] : memref<27x4x4xf32, #tpu.memory_space<vmem>>, vector<1x4x4xf32>
    %295 = vector.shape_cast %294 : vector<1x4x4xf32> to vector<4x4xf32>
    %cst_211 = arith.constant dense<0.000000e+00> : vector<4x512xf32>
    %296 = tpu.matmul %295, %293, %cst_211 {dimension_numbers = #tpu.dot_dimension_numbers<[1], [0], [0], [1], [0, 0, 1, 1], [], []>} : vector<4x4xf32>, vector<4x512xf32>, vector<4x512xf32> -> vector<4x512xf32>
    %297 = arith.addf %288, %296 : vector<4x512xf32>
    %c57_i32_212 = arith.constant 57 : i32
    %298 = tpu.dynamic_rotate %244 by %c57_i32_212 dim 1 : vector<4x512xf32>, i32 -> vector<4x512xf32>
    %c6_213 = arith.constant 6 : index
    %c0_214 = arith.constant 0 : index
    %c0_215 = arith.constant 0 : index
    %299 = vector.load %arg2[%c6_213, %c0_214, %c0_215] : memref<27x1x512xf32, #tpu.memory_space<vmem>>, vector<1x1x512xf32>
    %300 = vector.shape_cast %299 : vector<1x1x512xf32> to vector<1x512xf32>
    %301 = vector.broadcast %300 : vector<1x512xf32> to vector<4x512xf32>
    %302 = arith.mulf %298, %301 : vector<4x512xf32>
    %c6_216 = arith.constant 6 : index
    %c0_217 = arith.constant 0 : index
    %c0_218 = arith.constant 0 : index
    %303 = vector.load %arg5[%c6_216, %c0_217, %c0_218] : memref<27x4x4xf32, #tpu.memory_space<vmem>>, vector<1x4x4xf32>
    %304 = vector.shape_cast %303 : vector<1x4x4xf32> to vector<4x4xf32>
    %cst_219 = arith.constant dense<0.000000e+00> : vector<4x512xf32>
    %305 = tpu.matmul %304, %302, %cst_219 {dimension_numbers = #tpu.dot_dimension_numbers<[1], [0], [0], [1], [0, 0, 1, 1], [], []>} : vector<4x4xf32>, vector<4x512xf32>, vector<4x512xf32> -> vector<4x512xf32>
    %306 = arith.addf %297, %305 : vector<4x512xf32>
    %c56_i32_220 = arith.constant 56 : i32
    %307 = tpu.dynamic_rotate %244 by %c56_i32_220 dim 1 : vector<4x512xf32>, i32 -> vector<4x512xf32>
    %c7_221 = arith.constant 7 : index
    %c0_222 = arith.constant 0 : index
    %c0_223 = arith.constant 0 : index
    %308 = vector.load %arg2[%c7_221, %c0_222, %c0_223] : memref<27x1x512xf32, #tpu.memory_space<vmem>>, vector<1x1x512xf32>
    %309 = vector.shape_cast %308 : vector<1x1x512xf32> to vector<1x512xf32>
    %310 = vector.broadcast %309 : vector<1x512xf32> to vector<4x512xf32>
    %311 = arith.mulf %307, %310 : vector<4x512xf32>
    %c7_224 = arith.constant 7 : index
    %c0_225 = arith.constant 0 : index
    %c0_226 = arith.constant 0 : index
    %312 = vector.load %arg5[%c7_224, %c0_225, %c0_226] : memref<27x4x4xf32, #tpu.memory_space<vmem>>, vector<1x4x4xf32>
    %313 = vector.shape_cast %312 : vector<1x4x4xf32> to vector<4x4xf32>
    %cst_227 = arith.constant dense<0.000000e+00> : vector<4x512xf32>
    %314 = tpu.matmul %313, %311, %cst_227 {dimension_numbers = #tpu.dot_dimension_numbers<[1], [0], [0], [1], [0, 0, 1, 1], [], []>} : vector<4x4xf32>, vector<4x512xf32>, vector<4x512xf32> -> vector<4x512xf32>
    %315 = arith.addf %306, %314 : vector<4x512xf32>
    %c55_i32_228 = arith.constant 55 : i32
    %316 = tpu.dynamic_rotate %244 by %c55_i32_228 dim 1 : vector<4x512xf32>, i32 -> vector<4x512xf32>
    %c8_229 = arith.constant 8 : index
    %c0_230 = arith.constant 0 : index
    %c0_231 = arith.constant 0 : index
    %317 = vector.load %arg2[%c8_229, %c0_230, %c0_231] : memref<27x1x512xf32, #tpu.memory_space<vmem>>, vector<1x1x512xf32>
    %318 = vector.shape_cast %317 : vector<1x1x512xf32> to vector<1x512xf32>
    %319 = vector.broadcast %318 : vector<1x512xf32> to vector<4x512xf32>
    %320 = arith.mulf %316, %319 : vector<4x512xf32>
    %c8_232 = arith.constant 8 : index
    %c0_233 = arith.constant 0 : index
    %c0_234 = arith.constant 0 : index
    %321 = vector.load %arg5[%c8_232, %c0_233, %c0_234] : memref<27x4x4xf32, #tpu.memory_space<vmem>>, vector<1x4x4xf32>
    %322 = vector.shape_cast %321 : vector<1x4x4xf32> to vector<4x4xf32>
    %cst_235 = arith.constant dense<0.000000e+00> : vector<4x512xf32>
    %323 = tpu.matmul %322, %320, %cst_235 {dimension_numbers = #tpu.dot_dimension_numbers<[1], [0], [0], [1], [0, 0, 1, 1], [], []>} : vector<4x4xf32>, vector<4x512xf32>, vector<4x512xf32> -> vector<4x512xf32>
    %324 = arith.addf %315, %323 : vector<4x512xf32>
    %c9_i32_236 = arith.constant 9 : i32
    %325 = tpu.dynamic_rotate %244 by %c9_i32_236 dim 1 : vector<4x512xf32>, i32 -> vector<4x512xf32>
    %c9_237 = arith.constant 9 : index
    %c0_238 = arith.constant 0 : index
    %c0_239 = arith.constant 0 : index
    %326 = vector.load %arg2[%c9_237, %c0_238, %c0_239] : memref<27x1x512xf32, #tpu.memory_space<vmem>>, vector<1x1x512xf32>
    %327 = vector.shape_cast %326 : vector<1x1x512xf32> to vector<1x512xf32>
    %328 = vector.broadcast %327 : vector<1x512xf32> to vector<4x512xf32>
    %329 = arith.mulf %325, %328 : vector<4x512xf32>
    %c9_240 = arith.constant 9 : index
    %c0_241 = arith.constant 0 : index
    %c0_242 = arith.constant 0 : index
    %330 = vector.load %arg5[%c9_240, %c0_241, %c0_242] : memref<27x4x4xf32, #tpu.memory_space<vmem>>, vector<1x4x4xf32>
    %331 = vector.shape_cast %330 : vector<1x4x4xf32> to vector<4x4xf32>
    %cst_243 = arith.constant dense<0.000000e+00> : vector<4x512xf32>
    %332 = tpu.matmul %331, %329, %cst_243 {dimension_numbers = #tpu.dot_dimension_numbers<[1], [0], [0], [1], [0, 0, 1, 1], [], []>} : vector<4x4xf32>, vector<4x512xf32>, vector<4x512xf32> -> vector<4x512xf32>
    %333 = arith.addf %324, %332 : vector<4x512xf32>
    %c8_i32_244 = arith.constant 8 : i32
    %334 = tpu.dynamic_rotate %244 by %c8_i32_244 dim 1 : vector<4x512xf32>, i32 -> vector<4x512xf32>
    %c10_245 = arith.constant 10 : index
    %c0_246 = arith.constant 0 : index
    %c0_247 = arith.constant 0 : index
    %335 = vector.load %arg2[%c10_245, %c0_246, %c0_247] : memref<27x1x512xf32, #tpu.memory_space<vmem>>, vector<1x1x512xf32>
    %336 = vector.shape_cast %335 : vector<1x1x512xf32> to vector<1x512xf32>
    %337 = vector.broadcast %336 : vector<1x512xf32> to vector<4x512xf32>
    %338 = arith.mulf %334, %337 : vector<4x512xf32>
    %c10_248 = arith.constant 10 : index
    %c0_249 = arith.constant 0 : index
    %c0_250 = arith.constant 0 : index
    %339 = vector.load %arg5[%c10_248, %c0_249, %c0_250] : memref<27x4x4xf32, #tpu.memory_space<vmem>>, vector<1x4x4xf32>
    %340 = vector.shape_cast %339 : vector<1x4x4xf32> to vector<4x4xf32>
    %cst_251 = arith.constant dense<0.000000e+00> : vector<4x512xf32>
    %341 = tpu.matmul %340, %338, %cst_251 {dimension_numbers = #tpu.dot_dimension_numbers<[1], [0], [0], [1], [0, 0, 1, 1], [], []>} : vector<4x4xf32>, vector<4x512xf32>, vector<4x512xf32> -> vector<4x512xf32>
    %342 = arith.addf %333, %341 : vector<4x512xf32>
    %c7_i32_252 = arith.constant 7 : i32
    %343 = tpu.dynamic_rotate %244 by %c7_i32_252 dim 1 : vector<4x512xf32>, i32 -> vector<4x512xf32>
    %c11_253 = arith.constant 11 : index
    %c0_254 = arith.constant 0 : index
    %c0_255 = arith.constant 0 : index
    %344 = vector.load %arg2[%c11_253, %c0_254, %c0_255] : memref<27x1x512xf32, #tpu.memory_space<vmem>>, vector<1x1x512xf32>
    %345 = vector.shape_cast %344 : vector<1x1x512xf32> to vector<1x512xf32>
    %346 = vector.broadcast %345 : vector<1x512xf32> to vector<4x512xf32>
    %347 = arith.mulf %343, %346 : vector<4x512xf32>
    %c11_256 = arith.constant 11 : index
    %c0_257 = arith.constant 0 : index
    %c0_258 = arith.constant 0 : index
    %348 = vector.load %arg5[%c11_256, %c0_257, %c0_258] : memref<27x4x4xf32, #tpu.memory_space<vmem>>, vector<1x4x4xf32>
    %349 = vector.shape_cast %348 : vector<1x4x4xf32> to vector<4x4xf32>
    %cst_259 = arith.constant dense<0.000000e+00> : vector<4x512xf32>
    %350 = tpu.matmul %349, %347, %cst_259 {dimension_numbers = #tpu.dot_dimension_numbers<[1], [0], [0], [1], [0, 0, 1, 1], [], []>} : vector<4x4xf32>, vector<4x512xf32>, vector<4x512xf32> -> vector<4x512xf32>
    %351 = arith.addf %342, %350 : vector<4x512xf32>
    %c1_i32_260 = arith.constant 1 : i32
    %352 = tpu.dynamic_rotate %244 by %c1_i32_260 dim 1 : vector<4x512xf32>, i32 -> vector<4x512xf32>
    %c12_261 = arith.constant 12 : index
    %c0_262 = arith.constant 0 : index
    %c0_263 = arith.constant 0 : index
    %353 = vector.load %arg2[%c12_261, %c0_262, %c0_263] : memref<27x1x512xf32, #tpu.memory_space<vmem>>, vector<1x1x512xf32>
    %354 = vector.shape_cast %353 : vector<1x1x512xf32> to vector<1x512xf32>
    %355 = vector.broadcast %354 : vector<1x512xf32> to vector<4x512xf32>
    %356 = arith.mulf %352, %355 : vector<4x512xf32>
    %c12_264 = arith.constant 12 : index
    %c0_265 = arith.constant 0 : index
    %c0_266 = arith.constant 0 : index
    %357 = vector.load %arg5[%c12_264, %c0_265, %c0_266] : memref<27x4x4xf32, #tpu.memory_space<vmem>>, vector<1x4x4xf32>
    %358 = vector.shape_cast %357 : vector<1x4x4xf32> to vector<4x4xf32>
    %cst_267 = arith.constant dense<0.000000e+00> : vector<4x512xf32>
    %359 = tpu.matmul %358, %356, %cst_267 {dimension_numbers = #tpu.dot_dimension_numbers<[1], [0], [0], [1], [0, 0, 1, 1], [], []>} : vector<4x4xf32>, vector<4x512xf32>, vector<4x512xf32> -> vector<4x512xf32>
    %360 = arith.addf %351, %359 : vector<4x512xf32>
    %c13_268 = arith.constant 13 : index
    %c0_269 = arith.constant 0 : index
    %c0_270 = arith.constant 0 : index
    %361 = vector.load %arg5[%c13_268, %c0_269, %c0_270] : memref<27x4x4xf32, #tpu.memory_space<vmem>>, vector<1x4x4xf32>
    %362 = vector.shape_cast %361 : vector<1x4x4xf32> to vector<4x4xf32>
    %cst_271 = arith.constant dense<0.000000e+00> : vector<4x512xf32>
    %363 = tpu.matmul %362, %244, %cst_271 {dimension_numbers = #tpu.dot_dimension_numbers<[1], [0], [0], [1], [0, 0, 1, 1], [], []>} : vector<4x4xf32>, vector<4x512xf32>, vector<4x512xf32> -> vector<4x512xf32>
    %364 = arith.addf %360, %363 : vector<4x512xf32>
    %c511_i32_272 = arith.constant 511 : i32
    %365 = tpu.dynamic_rotate %244 by %c511_i32_272 dim 1 : vector<4x512xf32>, i32 -> vector<4x512xf32>
    %c14_273 = arith.constant 14 : index
    %c0_274 = arith.constant 0 : index
    %c0_275 = arith.constant 0 : index
    %366 = vector.load %arg2[%c14_273, %c0_274, %c0_275] : memref<27x1x512xf32, #tpu.memory_space<vmem>>, vector<1x1x512xf32>
    %367 = vector.shape_cast %366 : vector<1x1x512xf32> to vector<1x512xf32>
    %368 = vector.broadcast %367 : vector<1x512xf32> to vector<4x512xf32>
    %369 = arith.mulf %365, %368 : vector<4x512xf32>
    %c14_276 = arith.constant 14 : index
    %c0_277 = arith.constant 0 : index
    %c0_278 = arith.constant 0 : index
    %370 = vector.load %arg5[%c14_276, %c0_277, %c0_278] : memref<27x4x4xf32, #tpu.memory_space<vmem>>, vector<1x4x4xf32>
    %371 = vector.shape_cast %370 : vector<1x4x4xf32> to vector<4x4xf32>
    %cst_279 = arith.constant dense<0.000000e+00> : vector<4x512xf32>
    %372 = tpu.matmul %371, %369, %cst_279 {dimension_numbers = #tpu.dot_dimension_numbers<[1], [0], [0], [1], [0, 0, 1, 1], [], []>} : vector<4x4xf32>, vector<4x512xf32>, vector<4x512xf32> -> vector<4x512xf32>
    %373 = arith.addf %364, %372 : vector<4x512xf32>
    %c505_i32_280 = arith.constant 505 : i32
    %374 = tpu.dynamic_rotate %244 by %c505_i32_280 dim 1 : vector<4x512xf32>, i32 -> vector<4x512xf32>
    %c15_281 = arith.constant 15 : index
    %c0_282 = arith.constant 0 : index
    %c0_283 = arith.constant 0 : index
    %375 = vector.load %arg2[%c15_281, %c0_282, %c0_283] : memref<27x1x512xf32, #tpu.memory_space<vmem>>, vector<1x1x512xf32>
    %376 = vector.shape_cast %375 : vector<1x1x512xf32> to vector<1x512xf32>
    %377 = vector.broadcast %376 : vector<1x512xf32> to vector<4x512xf32>
    %378 = arith.mulf %374, %377 : vector<4x512xf32>
    %c15_284 = arith.constant 15 : index
    %c0_285 = arith.constant 0 : index
    %c0_286 = arith.constant 0 : index
    %379 = vector.load %arg5[%c15_284, %c0_285, %c0_286] : memref<27x4x4xf32, #tpu.memory_space<vmem>>, vector<1x4x4xf32>
    %380 = vector.shape_cast %379 : vector<1x4x4xf32> to vector<4x4xf32>
    %cst_287 = arith.constant dense<0.000000e+00> : vector<4x512xf32>
    %381 = tpu.matmul %380, %378, %cst_287 {dimension_numbers = #tpu.dot_dimension_numbers<[1], [0], [0], [1], [0, 0, 1, 1], [], []>} : vector<4x4xf32>, vector<4x512xf32>, vector<4x512xf32> -> vector<4x512xf32>
    %382 = arith.addf %373, %381 : vector<4x512xf32>
    %c504_i32_288 = arith.constant 504 : i32
    %383 = tpu.dynamic_rotate %244 by %c504_i32_288 dim 1 : vector<4x512xf32>, i32 -> vector<4x512xf32>
    %c16_289 = arith.constant 16 : index
    %c0_290 = arith.constant 0 : index
    %c0_291 = arith.constant 0 : index
    %384 = vector.load %arg2[%c16_289, %c0_290, %c0_291] : memref<27x1x512xf32, #tpu.memory_space<vmem>>, vector<1x1x512xf32>
    %385 = vector.shape_cast %384 : vector<1x1x512xf32> to vector<1x512xf32>
    %386 = vector.broadcast %385 : vector<1x512xf32> to vector<4x512xf32>
    %387 = arith.mulf %383, %386 : vector<4x512xf32>
    %c16_292 = arith.constant 16 : index
    %c0_293 = arith.constant 0 : index
    %c0_294 = arith.constant 0 : index
    %388 = vector.load %arg5[%c16_292, %c0_293, %c0_294] : memref<27x4x4xf32, #tpu.memory_space<vmem>>, vector<1x4x4xf32>
    %389 = vector.shape_cast %388 : vector<1x4x4xf32> to vector<4x4xf32>
    %cst_295 = arith.constant dense<0.000000e+00> : vector<4x512xf32>
    %390 = tpu.matmul %389, %387, %cst_295 {dimension_numbers = #tpu.dot_dimension_numbers<[1], [0], [0], [1], [0, 0, 1, 1], [], []>} : vector<4x4xf32>, vector<4x512xf32>, vector<4x512xf32> -> vector<4x512xf32>
    %391 = arith.addf %382, %390 : vector<4x512xf32>
    %c503_i32_296 = arith.constant 503 : i32
    %392 = tpu.dynamic_rotate %244 by %c503_i32_296 dim 1 : vector<4x512xf32>, i32 -> vector<4x512xf32>
    %c17_297 = arith.constant 17 : index
    %c0_298 = arith.constant 0 : index
    %c0_299 = arith.constant 0 : index
    %393 = vector.load %arg2[%c17_297, %c0_298, %c0_299] : memref<27x1x512xf32, #tpu.memory_space<vmem>>, vector<1x1x512xf32>
    %394 = vector.shape_cast %393 : vector<1x1x512xf32> to vector<1x512xf32>
    %395 = vector.broadcast %394 : vector<1x512xf32> to vector<4x512xf32>
    %396 = arith.mulf %392, %395 : vector<4x512xf32>
    %c17_300 = arith.constant 17 : index
    %c0_301 = arith.constant 0 : index
    %c0_302 = arith.constant 0 : index
    %397 = vector.load %arg5[%c17_300, %c0_301, %c0_302] : memref<27x4x4xf32, #tpu.memory_space<vmem>>, vector<1x4x4xf32>
    %398 = vector.shape_cast %397 : vector<1x4x4xf32> to vector<4x4xf32>
    %cst_303 = arith.constant dense<0.000000e+00> : vector<4x512xf32>
    %399 = tpu.matmul %398, %396, %cst_303 {dimension_numbers = #tpu.dot_dimension_numbers<[1], [0], [0], [1], [0, 0, 1, 1], [], []>} : vector<4x4xf32>, vector<4x512xf32>, vector<4x512xf32> -> vector<4x512xf32>
    %400 = arith.addf %391, %399 : vector<4x512xf32>
    %c457_i32_304 = arith.constant 457 : i32
    %401 = tpu.dynamic_rotate %244 by %c457_i32_304 dim 1 : vector<4x512xf32>, i32 -> vector<4x512xf32>
    %c18_305 = arith.constant 18 : index
    %c0_306 = arith.constant 0 : index
    %c0_307 = arith.constant 0 : index
    %402 = vector.load %arg2[%c18_305, %c0_306, %c0_307] : memref<27x1x512xf32, #tpu.memory_space<vmem>>, vector<1x1x512xf32>
    %403 = vector.shape_cast %402 : vector<1x1x512xf32> to vector<1x512xf32>
    %404 = vector.broadcast %403 : vector<1x512xf32> to vector<4x512xf32>
    %405 = arith.mulf %401, %404 : vector<4x512xf32>
    %c18_308 = arith.constant 18 : index
    %c0_309 = arith.constant 0 : index
    %c0_310 = arith.constant 0 : index
    %406 = vector.load %arg5[%c18_308, %c0_309, %c0_310] : memref<27x4x4xf32, #tpu.memory_space<vmem>>, vector<1x4x4xf32>
    %407 = vector.shape_cast %406 : vector<1x4x4xf32> to vector<4x4xf32>
    %cst_311 = arith.constant dense<0.000000e+00> : vector<4x512xf32>
    %408 = tpu.matmul %407, %405, %cst_311 {dimension_numbers = #tpu.dot_dimension_numbers<[1], [0], [0], [1], [0, 0, 1, 1], [], []>} : vector<4x4xf32>, vector<4x512xf32>, vector<4x512xf32> -> vector<4x512xf32>
    %409 = arith.addf %400, %408 : vector<4x512xf32>
    %c456_i32_312 = arith.constant 456 : i32
    %410 = tpu.dynamic_rotate %244 by %c456_i32_312 dim 1 : vector<4x512xf32>, i32 -> vector<4x512xf32>
    %c19_313 = arith.constant 19 : index
    %c0_314 = arith.constant 0 : index
    %c0_315 = arith.constant 0 : index
    %411 = vector.load %arg2[%c19_313, %c0_314, %c0_315] : memref<27x1x512xf32, #tpu.memory_space<vmem>>, vector<1x1x512xf32>
    %412 = vector.shape_cast %411 : vector<1x1x512xf32> to vector<1x512xf32>
    %413 = vector.broadcast %412 : vector<1x512xf32> to vector<4x512xf32>
    %414 = arith.mulf %410, %413 : vector<4x512xf32>
    %c19_316 = arith.constant 19 : index
    %c0_317 = arith.constant 0 : index
    %c0_318 = arith.constant 0 : index
    %415 = vector.load %arg5[%c19_316, %c0_317, %c0_318] : memref<27x4x4xf32, #tpu.memory_space<vmem>>, vector<1x4x4xf32>
    %416 = vector.shape_cast %415 : vector<1x4x4xf32> to vector<4x4xf32>
    %cst_319 = arith.constant dense<0.000000e+00> : vector<4x512xf32>
    %417 = tpu.matmul %416, %414, %cst_319 {dimension_numbers = #tpu.dot_dimension_numbers<[1], [0], [0], [1], [0, 0, 1, 1], [], []>} : vector<4x4xf32>, vector<4x512xf32>, vector<4x512xf32> -> vector<4x512xf32>
    %418 = arith.addf %409, %417 : vector<4x512xf32>
    %c455_i32_320 = arith.constant 455 : i32
    %419 = tpu.dynamic_rotate %244 by %c455_i32_320 dim 1 : vector<4x512xf32>, i32 -> vector<4x512xf32>
    %c20_321 = arith.constant 20 : index
    %c0_322 = arith.constant 0 : index
    %c0_323 = arith.constant 0 : index
    %420 = vector.load %arg2[%c20_321, %c0_322, %c0_323] : memref<27x1x512xf32, #tpu.memory_space<vmem>>, vector<1x1x512xf32>
    %421 = vector.shape_cast %420 : vector<1x1x512xf32> to vector<1x512xf32>
    %422 = vector.broadcast %421 : vector<1x512xf32> to vector<4x512xf32>
    %423 = arith.mulf %419, %422 : vector<4x512xf32>
    %c20_324 = arith.constant 20 : index
    %c0_325 = arith.constant 0 : index
    %c0_326 = arith.constant 0 : index
    %424 = vector.load %arg5[%c20_324, %c0_325, %c0_326] : memref<27x4x4xf32, #tpu.memory_space<vmem>>, vector<1x4x4xf32>
    %425 = vector.shape_cast %424 : vector<1x4x4xf32> to vector<4x4xf32>
    %cst_327 = arith.constant dense<0.000000e+00> : vector<4x512xf32>
    %426 = tpu.matmul %425, %423, %cst_327 {dimension_numbers = #tpu.dot_dimension_numbers<[1], [0], [0], [1], [0, 0, 1, 1], [], []>} : vector<4x4xf32>, vector<4x512xf32>, vector<4x512xf32> -> vector<4x512xf32>
    %427 = arith.addf %418, %426 : vector<4x512xf32>
    %c449_i32_328 = arith.constant 449 : i32
    %428 = tpu.dynamic_rotate %244 by %c449_i32_328 dim 1 : vector<4x512xf32>, i32 -> vector<4x512xf32>
    %c21_329 = arith.constant 21 : index
    %c0_330 = arith.constant 0 : index
    %c0_331 = arith.constant 0 : index
    %429 = vector.load %arg2[%c21_329, %c0_330, %c0_331] : memref<27x1x512xf32, #tpu.memory_space<vmem>>, vector<1x1x512xf32>
    %430 = vector.shape_cast %429 : vector<1x1x512xf32> to vector<1x512xf32>
    %431 = vector.broadcast %430 : vector<1x512xf32> to vector<4x512xf32>
    %432 = arith.mulf %428, %431 : vector<4x512xf32>
    %c21_332 = arith.constant 21 : index
    %c0_333 = arith.constant 0 : index
    %c0_334 = arith.constant 0 : index
    %433 = vector.load %arg5[%c21_332, %c0_333, %c0_334] : memref<27x4x4xf32, #tpu.memory_space<vmem>>, vector<1x4x4xf32>
    %434 = vector.shape_cast %433 : vector<1x4x4xf32> to vector<4x4xf32>
    %cst_335 = arith.constant dense<0.000000e+00> : vector<4x512xf32>
    %435 = tpu.matmul %434, %432, %cst_335 {dimension_numbers = #tpu.dot_dimension_numbers<[1], [0], [0], [1], [0, 0, 1, 1], [], []>} : vector<4x4xf32>, vector<4x512xf32>, vector<4x512xf32> -> vector<4x512xf32>
    %436 = arith.addf %427, %435 : vector<4x512xf32>
    %c448_i32_336 = arith.constant 448 : i32
    %437 = tpu.dynamic_rotate %244 by %c448_i32_336 dim 1 : vector<4x512xf32>, i32 -> vector<4x512xf32>
    %c22_337 = arith.constant 22 : index
    %c0_338 = arith.constant 0 : index
    %c0_339 = arith.constant 0 : index
    %438 = vector.load %arg2[%c22_337, %c0_338, %c0_339] : memref<27x1x512xf32, #tpu.memory_space<vmem>>, vector<1x1x512xf32>
    %439 = vector.shape_cast %438 : vector<1x1x512xf32> to vector<1x512xf32>
    %440 = vector.broadcast %439 : vector<1x512xf32> to vector<4x512xf32>
    %441 = arith.mulf %437, %440 : vector<4x512xf32>
    %c22_340 = arith.constant 22 : index
    %c0_341 = arith.constant 0 : index
    %c0_342 = arith.constant 0 : index
    %442 = vector.load %arg5[%c22_340, %c0_341, %c0_342] : memref<27x4x4xf32, #tpu.memory_space<vmem>>, vector<1x4x4xf32>
    %443 = vector.shape_cast %442 : vector<1x4x4xf32> to vector<4x4xf32>
    %cst_343 = arith.constant dense<0.000000e+00> : vector<4x512xf32>
    %444 = tpu.matmul %443, %441, %cst_343 {dimension_numbers = #tpu.dot_dimension_numbers<[1], [0], [0], [1], [0, 0, 1, 1], [], []>} : vector<4x4xf32>, vector<4x512xf32>, vector<4x512xf32> -> vector<4x512xf32>
    %445 = arith.addf %436, %444 : vector<4x512xf32>
    %c447_i32_344 = arith.constant 447 : i32
    %446 = tpu.dynamic_rotate %244 by %c447_i32_344 dim 1 : vector<4x512xf32>, i32 -> vector<4x512xf32>
    %c23_345 = arith.constant 23 : index
    %c0_346 = arith.constant 0 : index
    %c0_347 = arith.constant 0 : index
    %447 = vector.load %arg2[%c23_345, %c0_346, %c0_347] : memref<27x1x512xf32, #tpu.memory_space<vmem>>, vector<1x1x512xf32>
    %448 = vector.shape_cast %447 : vector<1x1x512xf32> to vector<1x512xf32>
    %449 = vector.broadcast %448 : vector<1x512xf32> to vector<4x512xf32>
    %450 = arith.mulf %446, %449 : vector<4x512xf32>
    %c23_348 = arith.constant 23 : index
    %c0_349 = arith.constant 0 : index
    %c0_350 = arith.constant 0 : index
    %451 = vector.load %arg5[%c23_348, %c0_349, %c0_350] : memref<27x4x4xf32, #tpu.memory_space<vmem>>, vector<1x4x4xf32>
    %452 = vector.shape_cast %451 : vector<1x4x4xf32> to vector<4x4xf32>
    %cst_351 = arith.constant dense<0.000000e+00> : vector<4x512xf32>
    %453 = tpu.matmul %452, %450, %cst_351 {dimension_numbers = #tpu.dot_dimension_numbers<[1], [0], [0], [1], [0, 0, 1, 1], [], []>} : vector<4x4xf32>, vector<4x512xf32>, vector<4x512xf32> -> vector<4x512xf32>
    %454 = arith.addf %445, %453 : vector<4x512xf32>
    %c441_i32_352 = arith.constant 441 : i32
    %455 = tpu.dynamic_rotate %244 by %c441_i32_352 dim 1 : vector<4x512xf32>, i32 -> vector<4x512xf32>
    %c24_353 = arith.constant 24 : index
    %c0_354 = arith.constant 0 : index
    %c0_355 = arith.constant 0 : index
    %456 = vector.load %arg2[%c24_353, %c0_354, %c0_355] : memref<27x1x512xf32, #tpu.memory_space<vmem>>, vector<1x1x512xf32>
    %457 = vector.shape_cast %456 : vector<1x1x512xf32> to vector<1x512xf32>
    %458 = vector.broadcast %457 : vector<1x512xf32> to vector<4x512xf32>
    %459 = arith.mulf %455, %458 : vector<4x512xf32>
    %c24_356 = arith.constant 24 : index
    %c0_357 = arith.constant 0 : index
    %c0_358 = arith.constant 0 : index
    %460 = vector.load %arg5[%c24_356, %c0_357, %c0_358] : memref<27x4x4xf32, #tpu.memory_space<vmem>>, vector<1x4x4xf32>
    %461 = vector.shape_cast %460 : vector<1x4x4xf32> to vector<4x4xf32>
    %cst_359 = arith.constant dense<0.000000e+00> : vector<4x512xf32>
    %462 = tpu.matmul %461, %459, %cst_359 {dimension_numbers = #tpu.dot_dimension_numbers<[1], [0], [0], [1], [0, 0, 1, 1], [], []>} : vector<4x4xf32>, vector<4x512xf32>, vector<4x512xf32> -> vector<4x512xf32>
    %463 = arith.addf %454, %462 : vector<4x512xf32>
    %c440_i32_360 = arith.constant 440 : i32
    %464 = tpu.dynamic_rotate %244 by %c440_i32_360 dim 1 : vector<4x512xf32>, i32 -> vector<4x512xf32>
    %c25_361 = arith.constant 25 : index
    %c0_362 = arith.constant 0 : index
    %c0_363 = arith.constant 0 : index
    %465 = vector.load %arg2[%c25_361, %c0_362, %c0_363] : memref<27x1x512xf32, #tpu.memory_space<vmem>>, vector<1x1x512xf32>
    %466 = vector.shape_cast %465 : vector<1x1x512xf32> to vector<1x512xf32>
    %467 = vector.broadcast %466 : vector<1x512xf32> to vector<4x512xf32>
    %468 = arith.mulf %464, %467 : vector<4x512xf32>
    %c25_364 = arith.constant 25 : index
    %c0_365 = arith.constant 0 : index
    %c0_366 = arith.constant 0 : index
    %469 = vector.load %arg5[%c25_364, %c0_365, %c0_366] : memref<27x4x4xf32, #tpu.memory_space<vmem>>, vector<1x4x4xf32>
    %470 = vector.shape_cast %469 : vector<1x4x4xf32> to vector<4x4xf32>
    %cst_367 = arith.constant dense<0.000000e+00> : vector<4x512xf32>
    %471 = tpu.matmul %470, %468, %cst_367 {dimension_numbers = #tpu.dot_dimension_numbers<[1], [0], [0], [1], [0, 0, 1, 1], [], []>} : vector<4x4xf32>, vector<4x512xf32>, vector<4x512xf32> -> vector<4x512xf32>
    %472 = arith.addf %463, %471 : vector<4x512xf32>
    %c439_i32_368 = arith.constant 439 : i32
    %473 = tpu.dynamic_rotate %244 by %c439_i32_368 dim 1 : vector<4x512xf32>, i32 -> vector<4x512xf32>
    %c26_369 = arith.constant 26 : index
    %c0_370 = arith.constant 0 : index
    %c0_371 = arith.constant 0 : index
    %474 = vector.load %arg2[%c26_369, %c0_370, %c0_371] : memref<27x1x512xf32, #tpu.memory_space<vmem>>, vector<1x1x512xf32>
    %475 = vector.shape_cast %474 : vector<1x1x512xf32> to vector<1x512xf32>
    %476 = vector.broadcast %475 : vector<1x512xf32> to vector<4x512xf32>
    %477 = arith.mulf %473, %476 : vector<4x512xf32>
    %c26_372 = arith.constant 26 : index
    %c0_373 = arith.constant 0 : index
    %c0_374 = arith.constant 0 : index
    %478 = vector.load %arg5[%c26_372, %c0_373, %c0_374] : memref<27x4x4xf32, #tpu.memory_space<vmem>>, vector<1x4x4xf32>
    %479 = vector.shape_cast %478 : vector<1x4x4xf32> to vector<4x4xf32>
    %cst_375 = arith.constant dense<0.000000e+00> : vector<4x512xf32>
    %480 = tpu.matmul %479, %477, %cst_375 {dimension_numbers = #tpu.dot_dimension_numbers<[1], [0], [0], [1], [0, 0, 1, 1], [], []>} : vector<4x4xf32>, vector<4x512xf32>, vector<4x512xf32> -> vector<4x512xf32>
    %481 = arith.addf %472, %480 : vector<4x512xf32>
    %c0_376 = arith.constant 0 : index
    %c0_377 = arith.constant 0 : index
    %482 = vector.load %arg6[%c0_376, %c0_377] : memref<4x1xf32, #tpu.memory_space<vmem>>, vector<4x1xf32>
    %483 = vector.broadcast %482 : vector<4x1xf32> to vector<4x512xf32>
    %484 = arith.addf %481, %483 : vector<4x512xf32>
    %c0_378 = arith.constant 0 : index
    %c0_379 = arith.constant 0 : index
    %485 = vector.load %arg7[%c0_378, %c0_379] : memref<512x128xf32, #tpu.memory_space<vmem>>, vector<512x128xf32>
    %cst_380 = arith.constant dense<0.000000e+00> : vector<4x128xf32>
    %486 = tpu.matmul %484, %485, %cst_380 {dimension_numbers = #tpu.dot_dimension_numbers<[1], [0], [0], [1], [0, 0, 1, 1], [], []>} : vector<4x512xf32>, vector<512x128xf32>, vector<4x128xf32> -> vector<4x128xf32>
    %c0_381 = arith.constant 0 : index
    %c0_382 = arith.constant 0 : index
    %487 = vector.load %arg8[%c0_381, %c0_382] : memref<2x4xf32, #tpu.memory_space<vmem>>, vector<2x4xf32>
    %cst_383 = arith.constant dense<0.000000e+00> : vector<2x128xf32>
    %488 = tpu.matmul %487, %486, %cst_383 {dimension_numbers = #tpu.dot_dimension_numbers<[1], [0], [0], [1], [0, 0, 1, 1], [], []>} : vector<2x4xf32>, vector<4x128xf32>, vector<2x128xf32> -> vector<2x128xf32>
    %c0_384 = arith.constant 0 : index
    %c0_385 = arith.constant 0 : index
    %489 = vector.load %arg9[%c0_384, %c0_385] : memref<2x1xf32, #tpu.memory_space<vmem>>, vector<2x1xf32>
    %490 = vector.broadcast %489 : vector<2x1xf32> to vector<2x128xf32>
    %491 = arith.addf %488, %490 : vector<2x128xf32>
    %cst_386 = arith.constant 0.000000e+00 : f32
    %492 = vector.broadcast %cst_386 : f32 to vector<2x128xf32>
    %493 = arith.maximumf %491, %492 : vector<2x128xf32>
    %c0_387 = arith.constant 0 : index
    %c0_388 = arith.constant 0 : index
    %494 = vector.load %arg10[%c0_387, %c0_388] : memref<4x2xf32, #tpu.memory_space<vmem>>, vector<4x2xf32>
    %cst_389 = arith.constant dense<0.000000e+00> : vector<4x128xf32>
    %495 = tpu.matmul %494, %493, %cst_389 {dimension_numbers = #tpu.dot_dimension_numbers<[1], [0], [0], [1], [0, 0, 1, 1], [], []>} : vector<4x2xf32>, vector<2x128xf32>, vector<4x128xf32> -> vector<4x128xf32>
    %c0_390 = arith.constant 0 : index
    %c0_391 = arith.constant 0 : index
    %496 = vector.load %arg11[%c0_390, %c0_391] : memref<4x1xf32, #tpu.memory_space<vmem>>, vector<4x1xf32>
    %497 = vector.broadcast %496 : vector<4x1xf32> to vector<4x128xf32>
    %498 = arith.addf %495, %497 : vector<4x128xf32>
    %cst_392 = arith.constant 0.000000e+00 : f32
    %499 = vector.broadcast %cst_392 : f32 to vector<4x128xf32>
    %500 = arith.subf %499, %498 : vector<4x128xf32>
    %501 = math.exp %500 : vector<4x128xf32>
    %cst_393 = arith.constant 1.000000e+00 : f32
    %502 = vector.broadcast %cst_393 : f32 to vector<4x128xf32>
    %503 = arith.addf %502, %501 : vector<4x128xf32>
    %504 = tpu.reciprocal %503 : vector<4x128xf32> -> vector<4x128xf32>
    %505 = vector.extract_strided_slice %504 {offsets = [0, 0], sizes = [4, 1], strides = [1, 1]} : vector<4x128xf32> to vector<4x1xf32>
    %506 = vector.shape_cast %505 : vector<4x1xf32> to vector<4x1xf32>
    %507 = vector.broadcast %506 : vector<4x1xf32> to vector<4x256xf32>
    %508 = vector.extract_strided_slice %504 {offsets = [0, 1], sizes = [4, 1], strides = [1, 1]} : vector<4x128xf32> to vector<4x1xf32>
    %509 = vector.shape_cast %508 : vector<4x1xf32> to vector<4x1xf32>
    %510 = vector.broadcast %509 : vector<4x1xf32> to vector<4x256xf32>
    %511 = tpu.concatenate %507, %510 in 1 : vector<4x256xf32>, vector<4x256xf32> -> vector<4x512xf32>
    %512 = arith.mulf %484, %511 : vector<4x512xf32>
    %513 = arith.addf %512, %0 : vector<4x512xf32>
    %c0_394 = arith.constant 0 : index
    %c0_395 = arith.constant 0 : index
    %514 = vector.load %arg12[%c0_394, %c0_395] : memref<4x512xf32, #tpu.memory_space<vmem>>, vector<4x512xf32>
    tpu.vector_store %arg12[%c0_394, %c0_395], %513 {strides = array<i32>} : memref<4x512xf32, #tpu.memory_space<vmem>>, vector<4x512xf32>,
    return
  }
  func.func @transform_0(%arg0: i32) -> (i32, i32) {
    %c0_i32 = arith.constant 0 : i32
    %c0_i32_0 = arith.constant 0 : i32
    %c0_i32_1 = arith.constant 0 : i32
    return %c0_i32, %c0_i32_0 : i32, i32
  }
  func.func @transform_1(%arg0: i32) -> (i32, i32, i32) {
    %c0_i32 = arith.constant 0 : i32
    %c0_i32_0 = arith.constant 0 : i32
    %c0_i32_1 = arith.constant 0 : i32
    %c0_i32_2 = arith.constant 0 : i32
    return %c0_i32, %c0_i32_0, %c0_i32_1 : i32, i32, i32
  }
  func.func @transform_2(%arg0: i32) -> (i32, i32, i32) {
    %c0_i32 = arith.constant 0 : i32
    %c0_i32_0 = arith.constant 0 : i32
    %c0_i32_1 = arith.constant 0 : i32
    %c0_i32_2 = arith.constant 0 : i32
    return %c0_i32, %c0_i32_0, %c0_i32_1 : i32, i32, i32
  }
  func.func @transform_3(%arg0: i32) -> (i32, i32) {
    %c0_i32 = arith.constant 0 : i32
    %c0_i32_0 = arith.constant 0 : i32
    %c0_i32_1 = arith.constant 0 : i32
    return %c0_i32, %c0_i32_0 : i32, i32
  }
  func.func @transform_4(%arg0: i32) -> (i32, i32, i32) {
    %c0_i32 = arith.constant 0 : i32
    %c0_i32_0 = arith.constant 0 : i32
    %c0_i32_1 = arith.constant 0 : i32
    %c0_i32_2 = arith.constant 0 : i32
    return %c0_i32, %c0_i32_0, %c0_i32_1 : i32, i32, i32
  }
  func.func @transform_5(%arg0: i32) -> (i32, i32) {
    %c0_i32 = arith.constant 0 : i32
    %c0_i32_0 = arith.constant 0 : i32
    %c0_i32_1 = arith.constant 0 : i32
    return %c0_i32, %c0_i32_0 : i32, i32
  }
  func.func @transform_6(%arg0: i32) -> (i32, i32) {
    %c0_i32 = arith.constant 0 : i32
    %c0_i32_0 = arith.constant 0 : i32
    %c0_i32_1 = arith.constant 0 : i32
    return %c0_i32, %c0_i32_0 : i32, i32
  }
  func.func @transform_7(%arg0: i32) -> (i32, i32) {
    %c0_i32 = arith.constant 0 : i32
    %c0_i32_0 = arith.constant 0 : i32
    %c0_i32_1 = arith.constant 0 : i32
    return %c0_i32, %c0_i32_0 : i32, i32
  }
  func.func @transform_8(%arg0: i32) -> (i32, i32) {
    %c0_i32 = arith.constant 0 : i32
    %c0_i32_0 = arith.constant 0 : i32
    %c0_i32_1 = arith.constant 0 : i32
    return %c0_i32, %c0_i32_0 : i32, i32
  }
  func.func @transform_9(%arg0: i32) -> (i32, i32) {
    %c0_i32 = arith.constant 0 : i32
    %c0_i32_0 = arith.constant 0 : i32
    %c0_i32_1 = arith.constant 0 : i32
    return %c0_i32, %c0_i32_0 : i32, i32
  }
  func.func @transform_10(%arg0: i32) -> (i32, i32) {
    %c0_i32 = arith.constant 0 : i32
    %c0_i32_0 = arith.constant 0 : i32
    %c0_i32_1 = arith.constant 0 : i32
    return %c0_i32, %c0_i32_0 : i32, i32
  }
  func.func @transform_11(%arg0: i32) -> (i32, i32) {
    %c0_i32 = arith.constant 0 : i32
    %c0_i32_0 = arith.constant 0 : i32
    %c0_i32_1 = arith.constant 0 : i32
    return %c0_i32, %c0_i32_0 : i32, i32
  }
}

</mosaic_0001>

<llo_original>
// kernel: tpu_custom_call.1
$region0: #{tpu_custom_call.1}
  #allocation0 [shape = 'u32[]', space=smem, size = 0x4, offset = 0x4, fixed_abs, tag = 'smem constant byte address 0x4 - core index']
  #allocation1 [shape = 'u32[72,128]{1,0:T(1,128)}', space=vmem, size = 0x9000, scoped, tag = 'internal scratch']
  %s0 = inlined_call_operand.vmem [shape: f32[4,512], index: 0, kind: input, shape index: {}]
  %s1 = inlined_call_operand.vmem [shape: f32[27,1,512], index: 1, kind: input, shape index: {}]
  %s2 = inlined_call_operand.vmem [shape: f32[27,4,4], index: 2, kind: input, shape index: {}]
  %s3 = inlined_call_operand.vmem [shape: f32[4,1], index: 3, kind: input, shape index: {}]
  %s4 = inlined_call_operand.vmem [shape: f32[27,4,4], index: 4, kind: input, shape index: {}]
  %s5 = inlined_call_operand.vmem [shape: f32[4,1], index: 5, kind: input, shape index: {}]
  %s6 = inlined_call_operand.hbm [shape: f32[512,128], index: 6, kind: input, shape index: {}]
  %s7 = inlined_call_operand.vmem [shape: f32[2,4], index: 7, kind: input, shape index: {}]
  %s8 = inlined_call_operand.vmem [shape: f32[2,1], index: 8, kind: input, shape index: {}]
  %s9 = inlined_call_operand.vmem [shape: f32[4,2], index: 9, kind: input, shape index: {}]
  %s10 = inlined_call_operand.vmem [shape: f32[4,1], index: 10, kind: input, shape index: {}]
  %s11 = inlined_call_operand.hbm [shape: f32[4,512], index: 11, kind: output, shape index: {}]
  %s12 = sld [smem:[#allocation0]]
  $region58: #{tpu_custom_call.1} parent=0
    _
  %s14 = ssub.s32 1, %s12
  %s15 = scalar_select 0, %s14, %s12
  $region1: #{tpu_custom_call.1} parent=0
    #allocation2 [shape = 'u8[262144]{0}', space=vmem, size = 0x40000, scoped, tag = 'input window, operand 6, single buffered']
    #allocation3 [shape = 's32[1]{0}', space=sflag, size = 0x4, scoped, tag = 'scoped memory for tpu_custom_call.1']
    #allocation4 [shape = 's32[1]{0}', space=sflag, size = 0x4, scoped, tag = 'scoped memory for tpu_custom_call.1']
    #allocation5 [shape = 'u8[8192]{0}', space=vmem, size = 0x2000, scoped, tag = 'output window, operand 0, single buffered']
    %16 = vsyncpa [#allocation3], 0
    %17 = vsyncpa [#allocation4], 0
    // Predicated region
    $region2: #{tpu_custom_call.1} parent=1 // pred_check
      _
    $region3: #{tpu_custom_call.1} parent=1 // pred_check_branch
      %19 = sbr.rel (0) target = $region5
    $region4: #{tpu_custom_call.1} parent=1 // pred_region
      _
    $region5: #{tpu_custom_call.1} parent=1 // pred_fallthru
      _
    // Predicated region
    $region6: #{tpu_custom_call.1} parent=1 // pred_check
      _
    $region7: #{tpu_custom_call.1} parent=1 // pred_check_branch
      %21 = sbr.rel (0) target = $region9
    $region8: #{tpu_custom_call.1} parent=1 // pred_region
      _
    $region9: #{tpu_custom_call.1} parent=1 // pred_fallthru
      _
    // Predicated region
    $region10: #{tpu_custom_call.1} parent=1 // pred_check
      _
    $region11: #{tpu_custom_call.1} parent=1 // pred_check_branch
      %23 = sbr.rel (0) target = $region13
    $region12: #{tpu_custom_call.1} parent=1 // pred_region
      _
    $region13: #{tpu_custom_call.1} parent=1 // pred_fallthru
      _
    // Predicated region
    $region14: #{tpu_custom_call.1} parent=1 // pred_check
      _
    $region15: #{tpu_custom_call.1} parent=1 // pred_check_branch
      %25 = sbr.rel (0) target = $region17
    $region16: #{tpu_custom_call.1} parent=1 // pred_region
      _
    $region17: #{tpu_custom_call.1} parent=1 // pred_fallthru
      _
    // Predicated region
    $region18: #{tpu_custom_call.1} parent=1 // pred_check
      _
    $region19: #{tpu_custom_call.1} parent=1 // pred_check_branch
      %27 = sbr.rel (0) target = $region21
    $region20: #{tpu_custom_call.1} parent=1 // pred_region
      _
    $region21: #{tpu_custom_call.1} parent=1 // pred_fallthru
      _
    // Predicated region
    $region22: #{tpu_custom_call.1} parent=1 // pred_check
      _
    $region23: #{tpu_custom_call.1} parent=1 // pred_check_branch
      %29 = sbr.rel (0) target = $region25
    $region24: #{tpu_custom_call.1} parent=1 // pred_region
      _
    $region25: #{tpu_custom_call.1} parent=1 // pred_fallthru
      _
    // Predicated region
    $region26: #{tpu_custom_call.1} parent=1 // pred_check
      _
    $region27: #{tpu_custom_call.1} parent=1 // pred_check_branch
      %31 = sbr.rel (0) target = $region29
    $region28: #{tpu_custom_call.1} parent=1 // pred_region
      %33 = vsyncadd [#allocation3], 0
      %s34 = sshll.u32 %s6, 4
      %s35 = int_to_ptr.hbm [resolvable:$true] %s34
      %s36 = sshll.u32 [#allocation2], 4
      %s37 = int_to_ptr.vmem [resolvable:$true] %s36
      %42 = dma.hbm_to_vmem [thread:$0]  %s35, 8192, %s37, [#allocation3], 128, 128, 8
    $region29: #{tpu_custom_call.1} parent=1 // pred_fallthru
      _
    // Predicated region
    $region30: #{tpu_custom_call.1} parent=1 // pred_check
      _
    $region31: #{tpu_custom_call.1} parent=1 // pred_check_branch
      %44 = sbr.rel (0) target = $region33
    $region32: #{tpu_custom_call.1} parent=1 // pred_region
      _
    $region33: #{tpu_custom_call.1} parent=1 // pred_fallthru
      _
    // Predicated region
    $region34: #{tpu_custom_call.1} parent=1 // pred_check
      _
    $region35: #{tpu_custom_call.1} parent=1 // pred_check_branch
      %46 = sbr.rel (0) target = $region37
    $region36: #{tpu_custom_call.1} parent=1 // pred_region
      _
    $region37: #{tpu_custom_call.1} parent=1 // pred_fallthru
      _
    // Predicated region
    $region38: #{tpu_custom_call.1} parent=1 // pred_check
      _
    $region39: #{tpu_custom_call.1} parent=1 // pred_check_branch
      %48 = sbr.rel (0) target = $region41
    $region40: #{tpu_custom_call.1} parent=1 // pred_region
      _
    $region41: #{tpu_custom_call.1} parent=1 // pred_fallthru
      _
    // Predicated region
    $region42: #{tpu_custom_call.1} parent=1 // pred_check
      _
    $region43: #{tpu_custom_call.1} parent=1 // pred_check_branch
      %50 = sbr.rel (0) target = $region45
    $region44: #{tpu_custom_call.1} parent=1 // pred_region
      _
    $region45: #{tpu_custom_call.1} parent=1 // pred_fallthru
      _
    // Predicated region
    $region46: #{tpu_custom_call.1} parent=1 // pred_check
      _
    $region47: #{tpu_custom_call.1} parent=1 // pred_check_branch
      %52 = sbr.rel (0) target = $region49
    $region48: #{tpu_custom_call.1} parent=1 // pred_region
      %54 = dma.done [#allocation3], 8192
    $region49: #{tpu_custom_call.1} parent=1 // pred_fallthru
      _
    %v55 = vld [vmem:[%s0] sm:$0xff]
    %v56 = vld [vmem:[%s0 + $0x8] sm:$0xff]
    %v57 = vmax.f32 %v55, 0.0
    %v58 = vmax.f32 %v56, 0.0
    %61 = vst [vmem:[#allocation1] ss:$2 sm:$0xff] %v57
    %s62 = scalar_lea.vmem [#allocation1], 16
    %63 = vst [vmem:[%s62] ss:$2 sm:$0xff] %v58
    %v64 = vld.sshfl [vmem:[#allocation1] sm:$0xff pattern:$0x75316420]
    %v65 = vld.sshfl [vmem:[#allocation1 + $0x8] sm:$0xff pattern:$0x75316420]
    %v66 = vld.sshfl [vmem:[#allocation1 + $0x10] sm:$0xff pattern:$0x75316420]
    %v67 = vld.sshfl [vmem:[#allocation1 + $0x18] sm:$0xff pattern:$0x75316420]
    %72 = vrot.lane.b32.xlu0 %v64, 73
    %v73 = vpop.permute.xlu0 %72
    %74 = vrot.lane.b32.xlu0 %v65, 73
    %v75 = vpop.permute.xlu0 %74
    %76 = vrot.lane.b32.xlu0 %v66, 73
    %v77 = vpop.permute.xlu0 %76
    %78 = vrot.lane.b32.xlu0 %v67, 73
    %v79 = vpop.permute.xlu0 %78
    %v80 = vlaneseq
    %v81 = vand.u32 %v80, 127
    %vm82 = vcmp.lt.s32.totalorder %v81, 73
    %v83 = vsel %vm82, %v77, %v79
    %v84 = vsel %vm82, %v75, %v77
    %v85 = vsel %vm82, %v73, %v75
    %v86 = vsel %vm82, %v79, %v73
    %v87 = vld [vmem:[%s1] sm:$0xf]
    %v89 = vperm.slane %v87, 0
    %v90 = vperm.slane %v87, 1
    %v91 = vperm.slane %v87, 2
    %v92 = vperm.slane %v87, 3
    %v97 = vmul.f32 %v86, %v89
    %v98 = vmul.f32 %v85, %v90
    %v99 = vmul.f32 %v84, %v91
    %v100 = vmul.f32 %v83, %v92
    %v101 = vld [vmem:[%s2] sm:$0xf]
    %102 = vst [vmem:[#allocation1] ss:$2 sm:$0xff] %v57
    %s103 = scalar_lea.vmem [#allocation1], 16
    %104 = vst [vmem:[%s103] ss:$2 sm:$0xff] %v58
    %v105 = vld.sshfl [vmem:[#allocation1] sm:$0xff pattern:$0x75316420]
    %v106 = vld.sshfl [vmem:[#allocation1 + $0x8] sm:$0xff pattern:$0x75316420]
    %v107 = vld.sshfl [vmem:[#allocation1 + $0x10] sm:$0xff pattern:$0x75316420]
    %v108 = vld.sshfl [vmem:[#allocation1 + $0x18] sm:$0xff pattern:$0x75316420]
    %113 = vrot.lane.b32.xlu0 %v105, 72
    %v114 = vpop.permute.xlu0 %113
    %115 = vrot.lane.b32.xlu0 %v106, 72
    %v116 = vpop.permute.xlu0 %115
    %117 = vrot.lane.b32.xlu0 %v107, 72
    %v118 = vpop.permute.xlu0 %117
    %119 = vrot.lane.b32.xlu0 %v108, 72
    %v120 = vpop.permute.xlu0 %119
    %vm121 = vcmp.lt.s32.totalorder %v81, 72
    %v122 = vsel %vm121, %v118, %v120
    %v123 = vsel %vm121, %v116, %v118
    %v124 = vsel %vm121, %v114, %v116
    %v125 = vsel %vm121, %v120, %v114
    %s126 = scalar_lea.vmem %s1, 4
    %v127 = vld [vmem:[%s126] sm:$0xf]
    %v129 = vperm.slane %v127, 0
    %v130 = vperm.slane %v127, 1
    %v131 = vperm.slane %v127, 2
    %v132 = vperm.slane %v127, 3
    %v137 = vmul.f32 %v125, %v129
    %v138 = vmul.f32 %v124, %v130
    %v139 = vmul.f32 %v123, %v131
    %v140 = vmul.f32 %v122, %v132
    %s141 = scalar_lea.vmem %s2, 4
    %v142 = vld [vmem:[%s141] sm:$0xf]
    %vm143 = vcmask 31744
    %v145 = vsel %vm143, %v142, 0
    %vm147 = vcmask 1043456
    %v149 = vsel %vm147, %v137, 0
    %v152 = vsel %vm147, %v138, 0
    %v155 = vsel %vm147, %v139, 0
    %v158 = vsel %vm147, %v140, 0
    %160 = vmatpush.msra.mxu0 0.0
    %161 = vmatpush.msra.mxu0 0.0
    %162 = vmatpush.msra.mxu0 0.0
    %163 = vmatpush.msra.mxu0 0.0
    %164 = vmatpush.msra.mxu0 0.0
    %165 = vmatpush.msra.mxu0 0.0
    %166 = vmatpush.msra.mxu0 0.0
    %167 = vmatpush.msra.mxu0 0.0
    %168 = vmatpush.msra.mxu0 0.0
    %169 = vmatpush.msra.mxu0 0.0
    %170 = vmatpush.msra.mxu0 0.0
    %171 = vmatpush.msra.mxu0 0.0
    %172 = vmatpush.msra.mxu0 0.0
    %173 = vmatpush.msra.mxu0 0.0
    %174 = vmatpush.msra.mxu0 0.0
    %175 = vmatpush.msra.mxu0 %v149
    %176 = vmatmul.f32.gmra.mxu0 %v145
    %v177 = vpop.f32.mrf.mxu0
    %v178 = vadd.f32 0.0, %v177
    %179 = vdwg.mxu0
    %180 = vmatpush.msra.mxu0 0.0
    %181 = vmatpush.msra.mxu0 0.0
    %182 = vmatpush.msra.mxu0 0.0
    %183 = vmatpush.msra.mxu0 0.0
    %184 = vmatpush.msra.mxu0 0.0
    %185 = vmatpush.msra.mxu0 0.0
    %186 = vmatpush.msra.mxu0 0.0
    %187 = vmatpush.msra.mxu0 0.0
    %188 = vmatpush.msra.mxu0 0.0
    %189 = vmatpush.msra.mxu0 0.0
    %190 = vmatpush.msra.mxu0 0.0
    %191 = vmatpush.msra.mxu0 0.0
    %192 = vmatpush.msra.mxu0 0.0
    %193 = vmatpush.msra.mxu0 0.0
    %194 = vmatpush.msra.mxu0 0.0
    %195 = vmatpush.msra.mxu0 %v152
    %196 = vmatmul.f32.gmra.mxu0 %v145
    %v197 = vpop.f32.mrf.mxu0
    %v198 = vadd.f32 0.0, %v197
    %199 = vdwg.mxu0
    %200 = vmatpush.msra.mxu0 0.0
    %201 = vmatpush.msra.mxu0 0.0
    %202 = vmatpush.msra.mxu0 0.0
    %203 = vmatpush.msra.mxu0 0.0
    %204 = vmatpush.msra.mxu0 0.0
    %205 = vmatpush.msra.mxu0 0.0
    %206 = vmatpush.msra.mxu0 0.0
    %207 = vmatpush.msra.mxu0 0.0
    %208 = vmatpush.msra.mxu0 0.0
    %209 = vmatpush.msra.mxu0 0.0
    %210 = vmatpush.msra.mxu0 0.0
    %211 = vmatpush.msra.mxu0 0.0
    %212 = vmatpush.msra.mxu0 0.0
    %213 = vmatpush.msra.mxu0 0.0
    %214 = vmatpush.msra.mxu0 0.0
    %215 = vmatpush.msra.mxu0 %v155
    %216 = vmatmul.f32.gmra.mxu0 %v145
    %v217 = vpop.f32.mrf.mxu0
    %v218 = vadd.f32 0.0, %v217
    %219 = vdwg.mxu0
    %220 = vmatpush.msra.mxu0 0.0
    %221 = vmatpush.msra.mxu0 0.0
    %222 = vmatpush.msra.mxu0 0.0
    %223 = vmatpush.msra.mxu0 0.0
    %224 = vmatpush.msra.mxu0 0.0
    %225 = vmatpush.msra.mxu0 0.0
    %226 = vmatpush.msra.mxu0 0.0
    %227 = vmatpush.msra.mxu0 0.0
    %228 = vmatpush.msra.mxu0 0.0
    %229 = vmatpush.msra.mxu0 0.0
    %230 = vmatpush.msra.mxu0 0.0
    %231 = vmatpush.msra.mxu0 0.0
    %232 = vmatpush.msra.mxu0 0.0
    %233 = vmatpush.msra.mxu0 0.0
    %234 = vmatpush.msra.mxu0 0.0
    %235 = vmatpush.msra.mxu0 %v158
    %236 = vmatmul.f32.gmra.mxu0 %v145
    %v237 = vpop.f32.mrf.mxu0
    %v238 = vadd.f32 0.0, %v237
    %239 = vdwg.mxu0
    %v241 = vsel %vm143, %v101, 0
    %v244 = vsel %vm147, %v97, 0
    %v247 = vsel %vm147, %v98, 0
    %v250 = vsel %vm147, %v99, 0
    %v253 = vsel %vm147, %v100, 0
    %255 = vmatpush.msra.mxu0 0.0
    %256 = vmatpush.msra.mxu0 0.0
    %257 = vmatpush.msra.mxu0 0.0
    %258 = vmatpush.msra.mxu0 0.0
    %259 = vmatpush.msra.mxu0 0.0
    %260 = vmatpush.msra.mxu0 0.0
    %261 = vmatpush.msra.mxu0 0.0
    %262 = vmatpush.msra.mxu0 0.0
    %263 = vmatpush.msra.mxu0 0.0
    %264 = vmatpush.msra.mxu0 0.0
    %265 = vmatpush.msra.mxu0 0.0
    %266 = vmatpush.msra.mxu0 0.0
    %267 = vmatpush.msra.mxu0 0.0
    %268 = vmatpush.msra.mxu0 0.0
    %269 = vmatpush.msra.mxu0 0.0
    %270 = vmatpush.msra.mxu0 %v244
    %271 = vmatmul.f32.gmra.mxu0 %v241
    %v272 = vpop.f32.mrf.mxu0
    %v273 = vadd.f32 %v178, %v272
    %274 = vdwg.mxu0
    %275 = vmatpush.msra.mxu0 0.0
    %276 = vmatpush.msra.mxu0 0.0
    %277 = vmatpush.msra.mxu0 0.0
    %278 = vmatpush.msra.mxu0 0.0
    %279 = vmatpush.msra.mxu0 0.0
    %280 = vmatpush.msra.mxu0 0.0
    %281 = vmatpush.msra.mxu0 0.0
    %282 = vmatpush.msra.mxu0 0.0
    %283 = vmatpush.msra.mxu0 0.0
    %284 = vmatpush.msra.mxu0 0.0
    %285 = vmatpush.msra.mxu0 0.0
    %286 = vmatpush.msra.mxu0 0.0
    %287 = vmatpush.msra.mxu0 0.0
    %288 = vmatpush.msra.mxu0 0.0
    %289 = vmatpush.msra.mxu0 0.0
    %290 = vmatpush.msra.mxu0 %v247
    %291 = vmatmul.f32.gmra.mxu0 %v241
    %v292 = vpop.f32.mrf.mxu0
    %v293 = vadd.f32 %v198, %v292
    %294 = vdwg.mxu0
    %295 = vmatpush.msra.mxu0 0.0
    %296 = vmatpush.msra.mxu0 0.0
    %297 = vmatpush.msra.mxu0 0.0
    %298 = vmatpush.msra.mxu0 0.0
    %299 = vmatpush.msra.mxu0 0.0
    %300 = vmatpush.msra.mxu0 0.0
    %301 = vmatpush.msra.mxu0 0.0
    %302 = vmatpush.msra.mxu0 0.0
    %303 = vmatpush.msra.mxu0 0.0
    %304 = vmatpush.msra.mxu0 0.0
    %305 = vmatpush.msra.mxu0 0.0
    %306 = vmatpush.msra.mxu0 0.0
    %307 = vmatpush.msra.mxu0 0.0
    %308 = vmatpush.msra.mxu0 0.0
    %309 = vmatpush.msra.mxu0 0.0
    %310 = vmatpush.msra.mxu0 %v250
    %311 = vmatmul.f32.gmra.mxu0 %v241
    %v312 = vpop.f32.mrf.mxu0
    %v313 = vadd.f32 %v218, %v312
    %314 = vdwg.mxu0
    %315 = vmatpush.msra.mxu0 0.0
    %316 = vmatpush.msra.mxu0 0.0
    %317 = vmatpush.msra.mxu0 0.0
    %318 = vmatpush.msra.mxu0 0.0
    %319 = vmatpush.msra.mxu0 0.0
    %320 = vmatpush.msra.mxu0 0.0
    %321 = vmatpush.msra.mxu0 0.0
    %322 = vmatpush.msra.mxu0 0.0
    %323 = vmatpush.msra.mxu0 0.0
    %324 = vmatpush.msra.mxu0 0.0
    %325 = vmatpush.msra.mxu0 0.0
    %326 = vmatpush.msra.mxu0 0.0
    %327 = vmatpush.msra.mxu0 0.0
    %328 = vmatpush.msra.mxu0 0.0
    %329 = vmatpush.msra.mxu0 0.0
    %330 = vmatpush.msra.mxu0 %v253
    %331 = vmatmul.f32.gmra.mxu0 %v241
    %v332 = vpop.f32.mrf.mxu0
    %v333 = vadd.f32 %v238, %v332
    %334 = vdwg.mxu0
    %335 = vst [vmem:[#allocation1] ss:$2 sm:$0xff] %v57
    %s336 = scalar_lea.vmem [#allocation1], 16
    %337 = vst [vmem:[%s336] ss:$2 sm:$0xff] %v58
    %v338 = vld.sshfl [vmem:[#allocation1] sm:$0xff pattern:$0x75316420]
    %v339 = vld.sshfl [vmem:[#allocation1 + $0x8] sm:$0xff pattern:$0x75316420]
    %v340 = vld.sshfl [vmem:[#allocation1 + $0x10] sm:$0xff pattern:$0x75316420]
    %v341 = vld.sshfl [vmem:[#allocation1 + $0x18] sm:$0xff pattern:$0x75316420]
    %346 = vrot.lane.b32.xlu0 %v338, 71
    %v347 = vpop.permute.xlu0 %346
    %348 = vrot.lane.b32.xlu0 %v339, 71
    %v349 = vpop.permute.xlu0 %348
    %350 = vrot.lane.b32.xlu0 %v340, 71
    %v351 = vpop.permute.xlu0 %350
    %352 = vrot.lane.b32.xlu0 %v341, 71
    %v353 = vpop.permute.xlu0 %352
    %vm354 = vcmp.lt.s32.totalorder %v81, 71
    %v355 = vsel %vm354, %v351, %v353
    %v356 = vsel %vm354, %v349, %v351
    %v357 = vsel %vm354, %v347, %v349
    %v358 = vsel %vm354, %v353, %v347
    %s359 = scalar_lea.vmem %s1, 8
    %v360 = vld [vmem:[%s359] sm:$0xf]
    %v362 = vperm.slane %v360, 0
    %v363 = vperm.slane %v360, 1
    %v364 = vperm.slane %v360, 2
    %v365 = vperm.slane %v360, 3
    %v370 = vmul.f32 %v358, %v362
    %v371 = vmul.f32 %v357, %v363
    %v372 = vmul.f32 %v356, %v364
    %v373 = vmul.f32 %v355, %v365
    %s374 = scalar_lea.vmem %s2, 8
    %v375 = vld [vmem:[%s374] sm:$0xf]
    %v377 = vsel %vm143, %v375, 0
    %v380 = vsel %vm147, %v370, 0
    %v383 = vsel %vm147, %v371, 0
    %v386 = vsel %vm147, %v372, 0
    %v389 = vsel %vm147, %v373, 0
    %391 = vmatpush.msra.mxu0 0.0
    %392 = vmatpush.msra.mxu0 0.0
    %393 = vmatpush.msra.mxu0 0.0
    %394 = vmatpush.msra.mxu0 0.0
    %395 = vmatpush.msra.mxu0 0.0
    %396 = vmatpush.msra.mxu0 0.0
    %397 = vmatpush.msra.mxu0 0.0
    %398 = vmatpush.msra.mxu0 0.0
    %399 = vmatpush.msra.mxu0 0.0
    %400 = vmatpush.msra.mxu0 0.0
    %401 = vmatpush.msra.mxu0 0.0
    %402 = vmatpush.msra.mxu0 0.0
    %403 = vmatpush.msra.mxu0 0.0
    %404 = vmatpush.msra.mxu0 0.0
    %405 = vmatpush.msra.mxu0 0.0
    %406 = vmatpush.msra.mxu0 %v380
    %407 = vmatmul.f32.gmra.mxu0 %v377
    %v408 = vpop.f32.mrf.mxu0
    %v409 = vadd.f32 0.0, %v408
    %410 = vdwg.mxu0
    %411 = vmatpush.msra.mxu0 0.0
    %412 = vmatpush.msra.mxu0 0.0
    %413 = vmatpush.msra.mxu0 0.0
    %414 = vmatpush.msra.mxu0 0.0
    %415 = vmatpush.msra.mxu0 0.0
    %416 = vmatpush.msra.mxu0 0.0
    %417 = vmatpush.msra.mxu0 0.0
    %418 = vmatpush.msra.mxu0 0.0
    %419 = vmatpush.msra.mxu0 0.0
    %420 = vmatpush.msra.mxu0 0.0
    %421 = vmatpush.msra.mxu0 0.0
    %422 = vmatpush.msra.mxu0 0.0
    %423 = vmatpush.msra.mxu0 0.0
    %424 = vmatpush.msra.mxu0 0.0
    %425 = vmatpush.msra.mxu0 0.0
    %426 = vmatpush.msra.mxu0 %v383
    %427 = vmatmul.f32.gmra.mxu0 %v377
    %v428 = vpop.f32.mrf.mxu0
    %v429 = vadd.f32 0.0, %v428
    %430 = vdwg.mxu0
    %431 = vmatpush.msra.mxu0 0.0
    %432 = vmatpush.msra.mxu0 0.0
    %433 = vmatpush.msra.mxu0 0.0
    %434 = vmatpush.msra.mxu0 0.0
    %435 = vmatpush.msra.mxu0 0.0
    %436 = vmatpush.msra.mxu0 0.0
    %437 = vmatpush.msra.mxu0 0.0
    %438 = vmatpush.msra.mxu0 0.0
    %439 = vmatpush.msra.mxu0 0.0
    %440 = vmatpush.msra.mxu0 0.0
    %441 = vmatpush.msra.mxu0 0.0
    %442 = vmatpush.msra.mxu0 0.0
    %443 = vmatpush.msra.mxu0 0.0
    %444 = vmatpush.msra.mxu0 0.0
    %445 = vmatpush.msra.mxu0 0.0
    %446 = vmatpush.msra.mxu0 %v386
    %447 = vmatmul.f32.gmra.mxu0 %v377
    %v448 = vpop.f32.mrf.mxu0
    %v449 = vadd.f32 0.0, %v448
    %450 = vdwg.mxu0
    %451 = vmatpush.msra.mxu0 0.0
    %452 = vmatpush.msra.mxu0 0.0
    %453 = vmatpush.msra.mxu0 0.0
    %454 = vmatpush.msra.mxu0 0.0
    %455 = vmatpush.msra.mxu0 0.0
    %456 = vmatpush.msra.mxu0 0.0
    %457 = vmatpush.msra.mxu0 0.0
    %458 = vmatpush.msra.mxu0 0.0
    %459 = vmatpush.msra.mxu0 0.0
    %460 = vmatpush.msra.mxu0 0.0
    %461 = vmatpush.msra.mxu0 0.0
    %462 = vmatpush.msra.mxu0 0.0
    %463 = vmatpush.msra.mxu0 0.0
    %464 = vmatpush.msra.mxu0 0.0
    %465 = vmatpush.msra.mxu0 0.0
    %466 = vmatpush.msra.mxu0 %v389
    %467 = vmatmul.f32.gmra.mxu0 %v377
    %v468 = vpop.f32.mrf.mxu0
    %v469 = vadd.f32 0.0, %v468
    %470 = vdwg.mxu0
    %v471 = vadd.f32 %v273, %v409
    %v472 = vadd.f32 %v293, %v429
    %v473 = vadd.f32 %v313, %v449
    %v474 = vadd.f32 %v333, %v469
    %475 = vst [vmem:[#allocation1] ss:$2 sm:$0xff] %v57
    %s476 = scalar_lea.vmem [#allocation1], 16
    %477 = vst [vmem:[%s476] ss:$2 sm:$0xff] %v58
    %v478 = vld.sshfl [vmem:[#allocation1] sm:$0xff pattern:$0x75316420]
    %v479 = vld.sshfl [vmem:[#allocation1 + $0x8] sm:$0xff pattern:$0x75316420]
    %v480 = vld.sshfl [vmem:[#allocation1 + $0x10] sm:$0xff pattern:$0x75316420]
    %v481 = vld.sshfl [vmem:[#allocation1 + $0x18] sm:$0xff pattern:$0x75316420]
    %486 = vrot.lane.b32.xlu0 %v478, 65
    %v487 = vpop.permute.xlu0 %486
    %488 = vrot.lane.b32.xlu0 %v479, 65
    %v489 = vpop.permute.xlu0 %488
    %490 = vrot.lane.b32.xlu0 %v480, 65
    %v491 = vpop.permute.xlu0 %490
    %492 = vrot.lane.b32.xlu0 %v481, 65
    %v493 = vpop.permute.xlu0 %492
    %vm494 = vcmp.lt.s32.totalorder %v81, 65
    %v495 = vsel %vm494, %v491, %v493
    %v496 = vsel %vm494, %v489, %v491
    %v497 = vsel %vm494, %v487, %v489
    %v498 = vsel %vm494, %v493, %v487
    %s499 = scalar_lea.vmem %s1, 12
    %v500 = vld [vmem:[%s499] sm:$0xf]
    %v502 = vperm.slane %v500, 0
    %v503 = vperm.slane %v500, 1
    %v504 = vperm.slane %v500, 2
    %v505 = vperm.slane %v500, 3
    %v510 = vmul.f32 %v498, %v502
    %v511 = vmul.f32 %v497, %v503
    %v512 = vmul.f32 %v496, %v504
    %v513 = vmul.f32 %v495, %v505
    %s514 = scalar_lea.vmem %s2, 12
    %v515 = vld [vmem:[%s514] sm:$0xf]
    %v517 = vsel %vm143, %v515, 0
    %v520 = vsel %vm147, %v510, 0
    %v523 = vsel %vm147, %v511, 0
    %v526 = vsel %vm147, %v512, 0
    %v529 = vsel %vm147, %v513, 0
    %531 = vmatpush.msra.mxu0 0.0
    %532 = vmatpush.msra.mxu0 0.0
    %533 = vmatpush.msra.mxu0 0.0
    %534 = vmatpush.msra.mxu0 0.0
    %535 = vmatpush.msra.mxu0 0.0
    %536 = vmatpush.msra.mxu0 0.0
    %537 = vmatpush.msra.mxu0 0.0
    %538 = vmatpush.msra.mxu0 0.0
    %539 = vmatpush.msra.mxu0 0.0
    %540 = vmatpush.msra.mxu0 0.0
    %541 = vmatpush.msra.mxu0 0.0
    %542 = vmatpush.msra.mxu0 0.0
    %543 = vmatpush.msra.mxu0 0.0
    %544 = vmatpush.msra.mxu0 0.0
    %545 = vmatpush.msra.mxu0 0.0
    %546 = vmatpush.msra.mxu0 %v520
    %547 = vmatmul.f32.gmra.mxu0 %v517
    %v548 = vpop.f32.mrf.mxu0
    %v549 = vadd.f32 0.0, %v548
    %550 = vdwg.mxu0
    %551 = vmatpush.msra.mxu0 0.0
    %552 = vmatpush.msra.mxu0 0.0
    %553 = vmatpush.msra.mxu0 0.0
    %554 = vmatpush.msra.mxu0 0.0
    %555 = vmatpush.msra.mxu0 0.0
    %556 = vmatpush.msra.mxu0 0.0
    %557 = vmatpush.msra.mxu0 0.0
    %558 = vmatpush.msra.mxu0 0.0
    %559 = vmatpush.msra.mxu0 0.0
    %560 = vmatpush.msra.mxu0 0.0
    %561 = vmatpush.msra.mxu0 0.0
    %562 = vmatpush.msra.mxu0 0.0
    %563 = vmatpush.msra.mxu0 0.0
    %564 = vmatpush.msra.mxu0 0.0
    %565 = vmatpush.msra.mxu0 0.0
    %566 = vmatpush.msra.mxu0 %v523
    %567 = vmatmul.f32.gmra.mxu0 %v517
    %v568 = vpop.f32.mrf.mxu0
    %v569 = vadd.f32 0.0, %v568
    %570 = vdwg.mxu0
    %571 = vmatpush.msra.mxu0 0.0
    %572 = vmatpush.msra.mxu0 0.0
    %573 = vmatpush.msra.mxu0 0.0
    %574 = vmatpush.msra.mxu0 0.0
    %575 = vmatpush.msra.mxu0 0.0
    %576 = vmatpush.msra.mxu0 0.0
    %577 = vmatpush.msra.mxu0 0.0
    %578 = vmatpush.msra.mxu0 0.0
    %579 = vmatpush.msra.mxu0 0.0
    %580 = vmatpush.msra.mxu0 0.0
    %581 = vmatpush.msra.mxu0 0.0
    %582 = vmatpush.msra.mxu0 0.0
    %583 = vmatpush.msra.mxu0 0.0
    %584 = vmatpush.msra.mxu0 0.0
    %585 = vmatpush.msra.mxu0 0.0
    %586 = vmatpush.msra.mxu0 %v526
    %587 = vmatmul.f32.gmra.mxu0 %v517
    %v588 = vpop.f32.mrf.mxu0
    %v589 = vadd.f32 0.0, %v588
    %590 = vdwg.mxu0
    %591 = vmatpush.msra.mxu0 0.0
    %592 = vmatpush.msra.mxu0 0.0
    %593 = vmatpush.msra.mxu0 0.0
    %594 = vmatpush.msra.mxu0 0.0
    %595 = vmatpush.msra.mxu0 0.0
    %596 = vmatpush.msra.mxu0 0.0
    %597 = vmatpush.msra.mxu0 0.0
    %598 = vmatpush.msra.mxu0 0.0
    %599 = vmatpush.msra.mxu0 0.0
    %600 = vmatpush.msra.mxu0 0.0
    %601 = vmatpush.msra.mxu0 0.0
    %602 = vmatpush.msra.mxu0 0.0
    %603 = vmatpush.msra.mxu0 0.0
    %604 = vmatpush.msra.mxu0 0.0
    %605 = vmatpush.msra.mxu0 0.0
    %606 = vmatpush.msra.mxu0 %v529
    %607 = vmatmul.f32.gmra.mxu0 %v517
    %v608 = vpop.f32.mrf.mxu0
    %v609 = vadd.f32 0.0, %v608
    %610 = vdwg.mxu0
    %v611 = vadd.f32 %v471, %v549
    %v612 = vadd.f32 %v472, %v569
    %v613 = vadd.f32 %v473, %v589
    %v614 = vadd.f32 %v474, %v609
    %615 = vst [vmem:[#allocation1] ss:$2 sm:$0xff] %v57
    %s616 = scalar_lea.vmem [#allocation1], 16
    %617 = vst [vmem:[%s616] ss:$2 sm:$0xff] %v58
    %v618 = vld.sshfl [vmem:[#allocation1] sm:$0xff pattern:$0x75316420]
    %v619 = vld.sshfl [vmem:[#allocation1 + $0x8] sm:$0xff pattern:$0x75316420]
    %v620 = vld.sshfl [vmem:[#allocation1 + $0x10] sm:$0xff pattern:$0x75316420]
    %v621 = vld.sshfl [vmem:[#allocation1 + $0x18] sm:$0xff pattern:$0x75316420]
    %626 = vrot.lane.b32.xlu0 %v618, 64
    %v627 = vpop.permute.xlu0 %626
    %628 = vrot.lane.b32.xlu0 %v619, 64
    %v629 = vpop.permute.xlu0 %628
    %630 = vrot.lane.b32.xlu0 %v620, 64
    %v631 = vpop.permute.xlu0 %630
    %632 = vrot.lane.b32.xlu0 %v621, 64
    %v633 = vpop.permute.xlu0 %632
    %vm634 = vcmp.lt.s32.totalorder %v81, 64
    %v635 = vsel %vm634, %v631, %v633
    %v636 = vsel %vm634, %v629, %v631
    %v637 = vsel %vm634, %v627, %v629
    %v638 = vsel %vm634, %v633, %v627
    %s639 = scalar_lea.vmem %s1, 16
    %v640 = vld [vmem:[%s639] sm:$0xf]
    %v642 = vperm.slane %v640, 0
    %v643 = vperm.slane %v640, 1
    %v644 = vperm.slane %v640, 2
    %v645 = vperm.slane %v640, 3
    %v650 = vmul.f32 %v638, %v642
    %v651 = vmul.f32 %v637, %v643
    %v652 = vmul.f32 %v636, %v644
    %v653 = vmul.f32 %v635, %v645
    %s654 = scalar_lea.vmem %s2, 16
    %v655 = vld [vmem:[%s654] sm:$0xf]
    %v657 = vsel %vm143, %v655, 0
    %v660 = vsel %vm147, %v650, 0
    %v663 = vsel %vm147, %v651, 0
    %v666 = vsel %vm147, %v652, 0
    %v669 = vsel %vm147, %v653, 0
    %671 = vmatpush.msra.mxu0 0.0
    %672 = vmatpush.msra.mxu0 0.0
    %673 = vmatpush.msra.mxu0 0.0
    %674 = vmatpush.msra.mxu0 0.0
    %675 = vmatpush.msra.mxu0 0.0
    %676 = vmatpush.msra.mxu0 0.0
    %677 = vmatpush.msra.mxu0 0.0
    %678 = vmatpush.msra.mxu0 0.0
    %679 = vmatpush.msra.mxu0 0.0
    %680 = vmatpush.msra.mxu0 0.0
    %681 = vmatpush.msra.mxu0 0.0
    %682 = vmatpush.msra.mxu0 0.0
    %683 = vmatpush.msra.mxu0 0.0
    %684 = vmatpush.msra.mxu0 0.0
    %685 = vmatpush.msra.mxu0 0.0
    %686 = vmatpush.msra.mxu0 %v660
    %687 = vmatmul.f32.gmra.mxu0 %v657
    %v688 = vpop.f32.mrf.mxu0
    %v689 = vadd.f32 0.0, %v688
    %690 = vdwg.mxu0
    %691 = vmatpush.msra.mxu0 0.0
    %692 = vmatpush.msra.mxu0 0.0
    %693 = vmatpush.msra.mxu0 0.0
    %694 = vmatpush.msra.mxu0 0.0
    %695 = vmatpush.msra.mxu0 0.0
    %696 = vmatpush.msra.mxu0 0.0
    %697 = vmatpush.msra.mxu0 0.0
    %698 = vmatpush.msra.mxu0 0.0
    %699 = vmatpush.msra.mxu0 0.0
    %700 = vmatpush.msra.mxu0 0.0
    %701 = vmatpush.msra.mxu0 0.0
    %702 = vmatpush.msra.mxu0 0.0
    %703 = vmatpush.msra.mxu0 0.0
    %704 = vmatpush.msra.mxu0 0.0
    %705 = vmatpush.msra.mxu0 0.0
    %706 = vmatpush.msra.mxu0 %v663
    %707 = vmatmul.f32.gmra.mxu0 %v657
    %v708 = vpop.f32.mrf.mxu0
    %v709 = vadd.f32 0.0, %v708
    %710 = vdwg.mxu0
    %711 = vmatpush.msra.mxu0 0.0
    %712 = vmatpush.msra.mxu0 0.0
    %713 = vmatpush.msra.mxu0 0.0
    %714 = vmatpush.msra.mxu0 0.0
    %715 = vmatpush.msra.mxu0 0.0
    %716 = vmatpush.msra.mxu0 0.0
    %717 = vmatpush.msra.mxu0 0.0
    %718 = vmatpush.msra.mxu0 0.0
    %719 = vmatpush.msra.mxu0 0.0
    %720 = vmatpush.msra.mxu0 0.0
    %721 = vmatpush.msra.mxu0 0.0
    %722 = vmatpush.msra.mxu0 0.0
    %723 = vmatpush.msra.mxu0 0.0
    %724 = vmatpush.msra.mxu0 0.0
    %725 = vmatpush.msra.mxu0 0.0
    %726 = vmatpush.msra.mxu0 %v666
    %727 = vmatmul.f32.gmra.mxu0 %v657
    %v728 = vpop.f32.mrf.mxu0
    %v729 = vadd.f32 0.0, %v728
    %730 = vdwg.mxu0
    %731 = vmatpush.msra.mxu0 0.0
    %732 = vmatpush.msra.mxu0 0.0
    %733 = vmatpush.msra.mxu0 0.0
    %734 = vmatpush.msra.mxu0 0.0
    %735 = vmatpush.msra.mxu0 0.0
    %736 = vmatpush.msra.mxu0 0.0
    %737 = vmatpush.msra.mxu0 0.0
    %738 = vmatpush.msra.mxu0 0.0
    %739 = vmatpush.msra.mxu0 0.0
    %740 = vmatpush.msra.mxu0 0.0
    %741 = vmatpush.msra.mxu0 0.0
    %742 = vmatpush.msra.mxu0 0.0
    %743 = vmatpush.msra.mxu0 0.0
    %744 = vmatpush.msra.mxu0 0.0
    %745 = vmatpush.msra.mxu0 0.0
    %746 = vmatpush.msra.mxu0 %v669
    %747 = vmatmul.f32.gmra.mxu0 %v657
    %v748 = vpop.f32.mrf.mxu0
    %v749 = vadd.f32 0.0, %v748
    %750 = vdwg.mxu0
    %v751 = vadd.f32 %v611, %v689
    %v752 = vadd.f32 %v612, %v709
    %v753 = vadd.f32 %v613, %v729
    %v754 = vadd.f32 %v614, %v749
    %755 = vst [vmem:[#allocation1] ss:$2 sm:$0xff] %v57
    %s756 = scalar_lea.vmem [#allocation1], 16
    %757 = vst [vmem:[%s756] ss:$2 sm:$0xff] %v58
    %v758 = vld.sshfl [vmem:[#allocation1] sm:$0xff pattern:$0x75316420]
    %v759 = vld.sshfl [vmem:[#allocation1 + $0x8] sm:$0xff pattern:$0x75316420]
    %v760 = vld.sshfl [vmem:[#allocation1 + $0x10] sm:$0xff pattern:$0x75316420]
    %v761 = vld.sshfl [vmem:[#allocation1 + $0x18] sm:$0xff pattern:$0x75316420]
    %766 = vrot.lane.b32.xlu0 %v758, 63
    %v767 = vpop.permute.xlu0 %766
    %768 = vrot.lane.b32.xlu0 %v759, 63
    %v769 = vpop.permute.xlu0 %768
    %770 = vrot.lane.b32.xlu0 %v760, 63
    %v771 = vpop.permute.xlu0 %770
    %772 = vrot.lane.b32.xlu0 %v761, 63
    %v773 = vpop.permute.xlu0 %772
    %vm774 = vcmp.lt.s32.totalorder %v81, 63
    %v775 = vsel %vm774, %v771, %v773
    %v776 = vsel %vm774, %v769, %v771
    %v777 = vsel %vm774, %v767, %v769
    %v778 = vsel %vm774, %v773, %v767
    %s779 = scalar_lea.vmem %s1, 20
    %v780 = vld [vmem:[%s779] sm:$0xf]
    %v782 = vperm.slane %v780, 0
    %v783 = vperm.slane %v780, 1
    %v784 = vperm.slane %v780, 2
    %v785 = vperm.slane %v780, 3
    %v790 = vmul.f32 %v778, %v782
    %v791 = vmul.f32 %v777, %v783
    %v792 = vmul.f32 %v776, %v784
    %v793 = vmul.f32 %v775, %v785
    %s794 = scalar_lea.vmem %s2, 20
    %v795 = vld [vmem:[%s794] sm:$0xf]
    %v797 = vsel %vm143, %v795, 0
    %v800 = vsel %vm147, %v790, 0
    %v803 = vsel %vm147, %v791, 0
    %v806 = vsel %vm147, %v792, 0
    %v809 = vsel %vm147, %v793, 0
    %811 = vmatpush.msra.mxu0 0.0
    %812 = vmatpush.msra.mxu0 0.0
    %813 = vmatpush.msra.mxu0 0.0
    %814 = vmatpush.msra.mxu0 0.0
    %815 = vmatpush.msra.mxu0 0.0
    %816 = vmatpush.msra.mxu0 0.0
    %817 = vmatpush.msra.mxu0 0.0
    %818 = vmatpush.msra.mxu0 0.0
    %819 = vmatpush.msra.mxu0 0.0
    %820 = vmatpush.msra.mxu0 0.0
    %821 = vmatpush.msra.mxu0 0.0
    %822 = vmatpush.msra.mxu0 0.0
    %823 = vmatpush.msra.mxu0 0.0
    %824 = vmatpush.msra.mxu0 0.0
    %825 = vmatpush.msra.mxu0 0.0
    %826 = vmatpush.msra.mxu0 %v800
    %827 = vmatmul.f32.gmra.mxu0 %v797
    %v828 = vpop.f32.mrf.mxu0
    %v829 = vadd.f32 0.0, %v828
    %830 = vdwg.mxu0
    %831 = vmatpush.msra.mxu0 0.0
    %832 = vmatpush.msra.mxu0 0.0
    %833 = vmatpush.msra.mxu0 0.0
    %834 = vmatpush.msra.mxu0 0.0
    %835 = vmatpush.msra.mxu0 0.0
    %836 = vmatpush.msra.mxu0 0.0
    %837 = vmatpush.msra.mxu0 0.0
    %838 = vmatpush.msra.mxu0 0.0
    %839 = vmatpush.msra.mxu0 0.0
    %840 = vmatpush.msra.mxu0 0.0
    %841 = vmatpush.msra.mxu0 0.0
    %842 = vmatpush.msra.mxu0 0.0
    %843 = vmatpush.msra.mxu0 0.0
    %844 = vmatpush.msra.mxu0 0.0
    %845 = vmatpush.msra.mxu0 0.0
    %846 = vmatpush.msra.mxu0 %v803
    %847 = vmatmul.f32.gmra.mxu0 %v797
    %v848 = vpop.f32.mrf.mxu0
    %v849 = vadd.f32 0.0, %v848
    %850 = vdwg.mxu0
    %851 = vmatpush.msra.mxu0 0.0
    %852 = vmatpush.msra.mxu0 0.0
    %853 = vmatpush.msra.mxu0 0.0
    %854 = vmatpush.msra.mxu0 0.0
    %855 = vmatpush.msra.mxu0 0.0
    %856 = vmatpush.msra.mxu0 0.0
    %857 = vmatpush.msra.mxu0 0.0
    %858 = vmatpush.msra.mxu0 0.0
    %859 = vmatpush.msra.mxu0 0.0
    %860 = vmatpush.msra.mxu0 0.0
    %861 = vmatpush.msra.mxu0 0.0
    %862 = vmatpush.msra.mxu0 0.0
    %863 = vmatpush.msra.mxu0 0.0
    %864 = vmatpush.msra.mxu0 0.0
    %865 = vmatpush.msra.mxu0 0.0
    %866 = vmatpush.msra.mxu0 %v806
    %867 = vmatmul.f32.gmra.mxu0 %v797
    %v868 = vpop.f32.mrf.mxu0
    %v869 = vadd.f32 0.0, %v868
    %870 = vdwg.mxu0
    %871 = vmatpush.msra.mxu0 0.0
    %872 = vmatpush.msra.mxu0 0.0
    %873 = vmatpush.msra.mxu0 0.0
    %874 = vmatpush.msra.mxu0 0.0
    %875 = vmatpush.msra.mxu0 0.0
    %876 = vmatpush.msra.mxu0 0.0
    %877 = vmatpush.msra.mxu0 0.0
    %878 = vmatpush.msra.mxu0 0.0
    %879 = vmatpush.msra.mxu0 0.0
    %880 = vmatpush.msra.mxu0 0.0
    %881 = vmatpush.msra.mxu0 0.0
    %882 = vmatpush.msra.mxu0 0.0
    %883 = vmatpush.msra.mxu0 0.0
    %884 = vmatpush.msra.mxu0 0.0
    %885 = vmatpush.msra.mxu0 0.0
    %886 = vmatpush.msra.mxu0 %v809
    %887 = vmatmul.f32.gmra.mxu0 %v797
    %v888 = vpop.f32.mrf.mxu0
    %v889 = vadd.f32 0.0, %v888
    %890 = vdwg.mxu0
    %v891 = vadd.f32 %v751, %v829
    %v892 = vadd.f32 %v752, %v849
    %v893 = vadd.f32 %v753, %v869
    %v894 = vadd.f32 %v754, %v889
    %895 = vst [vmem:[#allocation1] ss:$2 sm:$0xff] %v57
    %s896 = scalar_lea.vmem [#allocation1], 16
    %897 = vst [vmem:[%s896] ss:$2 sm:$0xff] %v58
    %v898 = vld.sshfl [vmem:[#allocation1] sm:$0xff pattern:$0x75316420]
    %v899 = vld.sshfl [vmem:[#allocation1 + $0x8] sm:$0xff pattern:$0x75316420]
    %v900 = vld.sshfl [vmem:[#allocation1 + $0x10] sm:$0xff pattern:$0x75316420]
    %v901 = vld.sshfl [vmem:[#allocation1 + $0x18] sm:$0xff pattern:$0x75316420]
    %906 = vrot.lane.b32.xlu0 %v898, 57
    %v907 = vpop.permute.xlu0 %906
    %908 = vrot.lane.b32.xlu0 %v899, 57
    %v909 = vpop.permute.xlu0 %908
    %910 = vrot.lane.b32.xlu0 %v900, 57
    %v911 = vpop.permute.xlu0 %910
    %912 = vrot.lane.b32.xlu0 %v901, 57
    %v913 = vpop.permute.xlu0 %912
    %vm914 = vcmp.lt.s32.totalorder %v81, 57
    %v915 = vsel %vm914, %v911, %v913
    %v916 = vsel %vm914, %v909, %v911
    %v917 = vsel %vm914, %v907, %v909
    %v918 = vsel %vm914, %v913, %v907
    %s919 = scalar_lea.vmem %s1, 24
    %v920 = vld [vmem:[%s919] sm:$0xf]
    %v922 = vperm.slane %v920, 0
    %v923 = vperm.slane %v920, 1
    %v924 = vperm.slane %v920, 2
    %v925 = vperm.slane %v920, 3
    %v930 = vmul.f32 %v918, %v922
    %v931 = vmul.f32 %v917, %v923
    %v932 = vmul.f32 %v916, %v924
    %v933 = vmul.f32 %v915, %v925
    %s934 = scalar_lea.vmem %s2, 24
    %v935 = vld [vmem:[%s934] sm:$0xf]
    %v937 = vsel %vm143, %v935, 0
    %v940 = vsel %vm147, %v930, 0
    %v943 = vsel %vm147, %v931, 0
    %v946 = vsel %vm147, %v932, 0
    %v949 = vsel %vm147, %v933, 0
    %951 = vmatpush.msra.mxu0 0.0
    %952 = vmatpush.msra.mxu0 0.0
    %953 = vmatpush.msra.mxu0 0.0
    %954 = vmatpush.msra.mxu0 0.0
    %955 = vmatpush.msra.mxu0 0.0
    %956 = vmatpush.msra.mxu0 0.0
    %957 = vmatpush.msra.mxu0 0.0
    %958 = vmatpush.msra.mxu0 0.0
    %959 = vmatpush.msra.mxu0 0.0
    %960 = vmatpush.msra.mxu0 0.0
    %961 = vmatpush.msra.mxu0 0.0
    %962 = vmatpush.msra.mxu0 0.0
    %963 = vmatpush.msra.mxu0 0.0
    %964 = vmatpush.msra.mxu0 0.0
    %965 = vmatpush.msra.mxu0 0.0
    %966 = vmatpush.msra.mxu0 %v940
    %967 = vmatmul.f32.gmra.mxu0 %v937
    %v968 = vpop.f32.mrf.mxu0
    %v969 = vadd.f32 0.0, %v968
    %970 = vdwg.mxu0
    %971 = vmatpush.msra.mxu0 0.0
    %972 = vmatpush.msra.mxu0 0.0
    %973 = vmatpush.msra.mxu0 0.0
    %974 = vmatpush.msra.mxu0 0.0
    %975 = vmatpush.msra.mxu0 0.0
    %976 = vmatpush.msra.mxu0 0.0
    %977 = vmatpush.msra.mxu0 0.0
    %978 = vmatpush.msra.mxu0 0.0
    %979 = vmatpush.msra.mxu0 0.0
    %980 = vmatpush.msra.mxu0 0.0
    %981 = vmatpush.msra.mxu0 0.0
    %982 = vmatpush.msra.mxu0 0.0
    %983 = vmatpush.msra.mxu0 0.0
    %984 = vmatpush.msra.mxu0 0.0
    %985 = vmatpush.msra.mxu0 0.0
    %986 = vmatpush.msra.mxu0 %v943
    %987 = vmatmul.f32.gmra.mxu0 %v937
    %v988 = vpop.f32.mrf.mxu0
    %v989 = vadd.f32 0.0, %v988
    %990 = vdwg.mxu0
    %991 = vmatpush.msra.mxu0 0.0
    %992 = vmatpush.msra.mxu0 0.0
    %993 = vmatpush.msra.mxu0 0.0
    %994 = vmatpush.msra.mxu0 0.0
    %995 = vmatpush.msra.mxu0 0.0
    %996 = vmatpush.msra.mxu0 0.0
    %997 = vmatpush.msra.mxu0 0.0
    %998 = vmatpush.msra.mxu0 0.0
    %999 = vmatpush.msra.mxu0 0.0
    %1000 = vmatpush.msra.mxu0 0.0
    %1001 = vmatpush.msra.mxu0 0.0
    %1002 = vmatpush.msra.mxu0 0.0
    %1003 = vmatpush.msra.mxu0 0.0
    %1004 = vmatpush.msra.mxu0 0.0
    %1005 = vmatpush.msra.mxu0 0.0
    %1006 = vmatpush.msra.mxu0 %v946
    %1007 = vmatmul.f32.gmra.mxu0 %v937
    %v1008 = vpop.f32.mrf.mxu0
    %v1009 = vadd.f32 0.0, %v1008
    %1010 = vdwg.mxu0
    %1011 = vmatpush.msra.mxu0 0.0
    %1012 = vmatpush.msra.mxu0 0.0
    %1013 = vmatpush.msra.mxu0 0.0
    %1014 = vmatpush.msra.mxu0 0.0
    %1015 = vmatpush.msra.mxu0 0.0
    %1016 = vmatpush.msra.mxu0 0.0
    %1017 = vmatpush.msra.mxu0 0.0
    %1018 = vmatpush.msra.mxu0 0.0
    %1019 = vmatpush.msra.mxu0 0.0
    %1020 = vmatpush.msra.mxu0 0.0
    %1021 = vmatpush.msra.mxu0 0.0
    %1022 = vmatpush.msra.mxu0 0.0
    %1023 = vmatpush.msra.mxu0 0.0
    %1024 = vmatpush.msra.mxu0 0.0
    %1025 = vmatpush.msra.mxu0 0.0
    %1026 = vmatpush.msra.mxu0 %v949
    %1027 = vmatmul.f32.gmra.mxu0 %v937
    %v1028 = vpop.f32.mrf.mxu0
    %v1029 = vadd.f32 0.0, %v1028
    %1030 = vdwg.mxu0
    %v1031 = vadd.f32 %v891, %v969
    %v1032 = vadd.f32 %v892, %v989
    %v1033 = vadd.f32 %v893, %v1009
    %v1034 = vadd.f32 %v894, %v1029
    %1035 = vst [vmem:[#allocation1] ss:$2 sm:$0xff] %v57
    %s1036 = scalar_lea.vmem [#allocation1], 16
    %1037 = vst [vmem:[%s1036] ss:$2 sm:$0xff] %v58
    %v1038 = vld.sshfl [vmem:[#allocation1] sm:$0xff pattern:$0x75316420]
    %v1039 = vld.sshfl [vmem:[#allocation1 + $0x8] sm:$0xff pattern:$0x75316420]
    %v1040 = vld.sshfl [vmem:[#allocation1 + $0x10] sm:$0xff pattern:$0x75316420]
    %v1041 = vld.sshfl [vmem:[#allocation1 + $0x18] sm:$0xff pattern:$0x75316420]
    %1046 = vrot.lane.b32.xlu0 %v1038, 56
    %v1047 = vpop.permute.xlu0 %1046
    %1048 = vrot.lane.b32.xlu0 %v1039, 56
    %v1049 = vpop.permute.xlu0 %1048
    %1050 = vrot.lane.b32.xlu0 %v1040, 56
    %v1051 = vpop.permute.xlu0 %1050
    %1052 = vrot.lane.b32.xlu0 %v1041, 56
    %v1053 = vpop.permute.xlu0 %1052
    %vm1054 = vcmp.lt.s32.totalorder %v81, 56
    %v1055 = vsel %vm1054, %v1051, %v1053
    %v1056 = vsel %vm1054, %v1049, %v1051
    %v1057 = vsel %vm1054, %v1047, %v1049
    %v1058 = vsel %vm1054, %v1053, %v1047
    %s1059 = scalar_lea.vmem %s1, 28
    %v1060 = vld [vmem:[%s1059] sm:$0xf]
    %v1062 = vperm.slane %v1060, 0
    %v1063 = vperm.slane %v1060, 1
    %v1064 = vperm.slane %v1060, 2
    %v1065 = vperm.slane %v1060, 3
    %v1070 = vmul.f32 %v1058, %v1062
    %v1071 = vmul.f32 %v1057, %v1063
    %v1072 = vmul.f32 %v1056, %v1064
    %v1073 = vmul.f32 %v1055, %v1065
    %s1074 = scalar_lea.vmem %s2, 28
    %v1075 = vld [vmem:[%s1074] sm:$0xf]
    %v1077 = vsel %vm143, %v1075, 0
    %v1080 = vsel %vm147, %v1070, 0
    %v1083 = vsel %vm147, %v1071, 0
    %v1086 = vsel %vm147, %v1072, 0
    %v1089 = vsel %vm147, %v1073, 0
    %1091 = vmatpush.msra.mxu0 0.0
    %1092 = vmatpush.msra.mxu0 0.0
    %1093 = vmatpush.msra.mxu0 0.0
    %1094 = vmatpush.msra.mxu0 0.0
    %1095 = vmatpush.msra.mxu0 0.0
    %1096 = vmatpush.msra.mxu0 0.0
    %1097 = vmatpush.msra.mxu0 0.0
    %1098 = vmatpush.msra.mxu0 0.0
    %1099 = vmatpush.msra.mxu0 0.0
    %1100 = vmatpush.msra.mxu0 0.0
    %1101 = vmatpush.msra.mxu0 0.0
    %1102 = vmatpush.msra.mxu0 0.0
    %1103 = vmatpush.msra.mxu0 0.0
    %1104 = vmatpush.msra.mxu0 0.0
    %1105 = vmatpush.msra.mxu0 0.0
    %1106 = vmatpush.msra.mxu0 %v1080
    %1107 = vmatmul.f32.gmra.mxu0 %v1077
    %v1108 = vpop.f32.mrf.mxu0
    %v1109 = vadd.f32 0.0, %v1108
    %1110 = vdwg.mxu0
    %1111 = vmatpush.msra.mxu0 0.0
    %1112 = vmatpush.msra.mxu0 0.0
    %1113 = vmatpush.msra.mxu0 0.0
    %1114 = vmatpush.msra.mxu0 0.0
    %1115 = vmatpush.msra.mxu0 0.0
    %1116 = vmatpush.msra.mxu0 0.0
    %1117 = vmatpush.msra.mxu0 0.0
    %1118 = vmatpush.msra.mxu0 0.0
    %1119 = vmatpush.msra.mxu0 0.0
    %1120 = vmatpush.msra.mxu0 0.0
    %1121 = vmatpush.msra.mxu0 0.0
    %1122 = vmatpush.msra.mxu0 0.0
    %1123 = vmatpush.msra.mxu0 0.0
    %1124 = vmatpush.msra.mxu0 0.0
    %1125 = vmatpush.msra.mxu0 0.0
    %1126 = vmatpush.msra.mxu0 %v1083
    %1127 = vmatmul.f32.gmra.mxu0 %v1077
    %v1128 = vpop.f32.mrf.mxu0
    %v1129 = vadd.f32 0.0, %v1128
    %1130 = vdwg.mxu0
    %1131 = vmatpush.msra.mxu0 0.0
    %1132 = vmatpush.msra.mxu0 0.0
    %1133 = vmatpush.msra.mxu0 0.0
    %1134 = vmatpush.msra.mxu0 0.0
    %1135 = vmatpush.msra.mxu0 0.0
    %1136 = vmatpush.msra.mxu0 0.0
    %1137 = vmatpush.msra.mxu0 0.0
    %1138 = vmatpush.msra.mxu0 0.0
    %1139 = vmatpush.msra.mxu0 0.0
    %1140 = vmatpush.msra.mxu0 0.0
    %1141 = vmatpush.msra.mxu0 0.0
    %1142 = vmatpush.msra.mxu0 0.0
    %1143 = vmatpush.msra.mxu0 0.0
    %1144 = vmatpush.msra.mxu0 0.0
    %1145 = vmatpush.msra.mxu0 0.0
    %1146 = vmatpush.msra.mxu0 %v1086
    %1147 = vmatmul.f32.gmra.mxu0 %v1077
    %v1148 = vpop.f32.mrf.mxu0
    %v1149 = vadd.f32 0.0, %v1148
    %1150 = vdwg.mxu0
    %1151 = vmatpush.msra.mxu0 0.0
    %1152 = vmatpush.msra.mxu0 0.0
    %1153 = vmatpush.msra.mxu0 0.0
    %1154 = vmatpush.msra.mxu0 0.0
    %1155 = vmatpush.msra.mxu0 0.0
    %1156 = vmatpush.msra.mxu0 0.0
    %1157 = vmatpush.msra.mxu0 0.0
    %1158 = vmatpush.msra.mxu0 0.0
    %1159 = vmatpush.msra.mxu0 0.0
    %1160 = vmatpush.msra.mxu0 0.0
    %1161 = vmatpush.msra.mxu0 0.0
    %1162 = vmatpush.msra.mxu0 0.0
    %1163 = vmatpush.msra.mxu0 0.0
    %1164 = vmatpush.msra.mxu0 0.0
    %1165 = vmatpush.msra.mxu0 0.0
    %1166 = vmatpush.msra.mxu0 %v1089
    %1167 = vmatmul.f32.gmra.mxu0 %v1077
    %v1168 = vpop.f32.mrf.mxu0
    %v1169 = vadd.f32 0.0, %v1168
    %1170 = vdwg.mxu0
    %v1171 = vadd.f32 %v1031, %v1109
    %v1172 = vadd.f32 %v1032, %v1129
    %v1173 = vadd.f32 %v1033, %v1149
    %v1174 = vadd.f32 %v1034, %v1169
    %1175 = vst [vmem:[#allocation1] ss:$2 sm:$0xff] %v57
    %s1176 = scalar_lea.vmem [#allocation1], 16
    %1177 = vst [vmem:[%s1176] ss:$2 sm:$0xff] %v58
    %v1178 = vld.sshfl [vmem:[#allocation1] sm:$0xff pattern:$0x75316420]
    %v1179 = vld.sshfl [vmem:[#allocation1 + $0x8] sm:$0xff pattern:$0x75316420]
    %v1180 = vld.sshfl [vmem:[#allocation1 + $0x10] sm:$0xff pattern:$0x75316420]
    %v1181 = vld.sshfl [vmem:[#allocation1 + $0x18] sm:$0xff pattern:$0x75316420]
    %1186 = vrot.lane.b32.xlu0 %v1178, 55
    %v1187 = vpop.permute.xlu0 %1186
    %1188 = vrot.lane.b32.xlu0 %v1179, 55
    %v1189 = vpop.permute.xlu0 %1188
    %1190 = vrot.lane.b32.xlu0 %v1180, 55
    %v1191 = vpop.permute.xlu0 %1190
    %1192 = vrot.lane.b32.xlu0 %v1181, 55
    %v1193 = vpop.permute.xlu0 %1192
    %vm1194 = vcmp.lt.s32.totalorder %v81, 55
    %v1195 = vsel %vm1194, %v1191, %v1193
    %v1196 = vsel %vm1194, %v1189, %v1191
    %v1197 = vsel %vm1194, %v1187, %v1189
    %v1198 = vsel %vm1194, %v1193, %v1187
    %s1199 = scalar_lea.vmem %s1, 32
    %v1200 = vld [vmem:[%s1199] sm:$0xf]
    %v1202 = vperm.slane %v1200, 0
    %v1203 = vperm.slane %v1200, 1
    %v1204 = vperm.slane %v1200, 2
    %v1205 = vperm.slane %v1200, 3
    %v1210 = vmul.f32 %v1198, %v1202
    %v1211 = vmul.f32 %v1197, %v1203
    %v1212 = vmul.f32 %v1196, %v1204
    %v1213 = vmul.f32 %v1195, %v1205
    %s1214 = scalar_lea.vmem %s2, 32
    %v1215 = vld [vmem:[%s1214] sm:$0xf]
    %v1217 = vsel %vm143, %v1215, 0
    %v1220 = vsel %vm147, %v1210, 0
    %v1223 = vsel %vm147, %v1211, 0
    %v1226 = vsel %vm147, %v1212, 0
    %v1229 = vsel %vm147, %v1213, 0
    %1231 = vmatpush.msra.mxu0 0.0
    %1232 = vmatpush.msra.mxu0 0.0
    %1233 = vmatpush.msra.mxu0 0.0
    %1234 = vmatpush.msra.mxu0 0.0
    %1235 = vmatpush.msra.mxu0 0.0
    %1236 = vmatpush.msra.mxu0 0.0
    %1237 = vmatpush.msra.mxu0 0.0
    %1238 = vmatpush.msra.mxu0 0.0
    %1239 = vmatpush.msra.mxu0 0.0
    %1240 = vmatpush.msra.mxu0 0.0
    %1241 = vmatpush.msra.mxu0 0.0
    %1242 = vmatpush.msra.mxu0 0.0
    %1243 = vmatpush.msra.mxu0 0.0
    %1244 = vmatpush.msra.mxu0 0.0
    %1245 = vmatpush.msra.mxu0 0.0
    %1246 = vmatpush.msra.mxu0 %v1220
    %1247 = vmatmul.f32.gmra.mxu0 %v1217
    %v1248 = vpop.f32.mrf.mxu0
    %v1249 = vadd.f32 0.0, %v1248
    %1250 = vdwg.mxu0
    %1251 = vmatpush.msra.mxu0 0.0
    %1252 = vmatpush.msra.mxu0 0.0
    %1253 = vmatpush.msra.mxu0 0.0
    %1254 = vmatpush.msra.mxu0 0.0
    %1255 = vmatpush.msra.mxu0 0.0
    %1256 = vmatpush.msra.mxu0 0.0
    %1257 = vmatpush.msra.mxu0 0.0
    %1258 = vmatpush.msra.mxu0 0.0
    %1259 = vmatpush.msra.mxu0 0.0
    %1260 = vmatpush.msra.mxu0 0.0
    %1261 = vmatpush.msra.mxu0 0.0
    %1262 = vmatpush.msra.mxu0 0.0
    %1263 = vmatpush.msra.mxu0 0.0
    %1264 = vmatpush.msra.mxu0 0.0
    %1265 = vmatpush.msra.mxu0 0.0
    %1266 = vmatpush.msra.mxu0 %v1223
    %1267 = vmatmul.f32.gmra.mxu0 %v1217
    %v1268 = vpop.f32.mrf.mxu0
    %v1269 = vadd.f32 0.0, %v1268
    %1270 = vdwg.mxu0
    %1271 = vmatpush.msra.mxu0 0.0
    %1272 = vmatpush.msra.mxu0 0.0
    %1273 = vmatpush.msra.mxu0 0.0
    %1274 = vmatpush.msra.mxu0 0.0
    %1275 = vmatpush.msra.mxu0 0.0
    %1276 = vmatpush.msra.mxu0 0.0
    %1277 = vmatpush.msra.mxu0 0.0
    %1278 = vmatpush.msra.mxu0 0.0
    %1279 = vmatpush.msra.mxu0 0.0
    %1280 = vmatpush.msra.mxu0 0.0
    %1281 = vmatpush.msra.mxu0 0.0
    %1282 = vmatpush.msra.mxu0 0.0
    %1283 = vmatpush.msra.mxu0 0.0
    %1284 = vmatpush.msra.mxu0 0.0
    %1285 = vmatpush.msra.mxu0 0.0
    %1286 = vmatpush.msra.mxu0 %v1226
    %1287 = vmatmul.f32.gmra.mxu0 %v1217
    %v1288 = vpop.f32.mrf.mxu0
    %v1289 = vadd.f32 0.0, %v1288
    %1290 = vdwg.mxu0
    %1291 = vmatpush.msra.mxu0 0.0
    %1292 = vmatpush.msra.mxu0 0.0
    %1293 = vmatpush.msra.mxu0 0.0
    %1294 = vmatpush.msra.mxu0 0.0
    %1295 = vmatpush.msra.mxu0 0.0
    %1296 = vmatpush.msra.mxu0 0.0
    %1297 = vmatpush.msra.mxu0 0.0
    %1298 = vmatpush.msra.mxu0 0.0
    %1299 = vmatpush.msra.mxu0 0.0
    %1300 = vmatpush.msra.mxu0 0.0
    %1301 = vmatpush.msra.mxu0 0.0
    %1302 = vmatpush.msra.mxu0 0.0
    %1303 = vmatpush.msra.mxu0 0.0
    %1304 = vmatpush.msra.mxu0 0.0
    %1305 = vmatpush.msra.mxu0 0.0
    %1306 = vmatpush.msra.mxu0 %v1229
    %1307 = vmatmul.f32.gmra.mxu0 %v1217
    %v1308 = vpop.f32.mrf.mxu0
    %v1309 = vadd.f32 0.0, %v1308
    %1310 = vdwg.mxu0
    %v1311 = vadd.f32 %v1171, %v1249
    %v1312 = vadd.f32 %v1172, %v1269
    %v1313 = vadd.f32 %v1173, %v1289
    %v1314 = vadd.f32 %v1174, %v1309
    %1315 = vst [vmem:[#allocation1] ss:$2 sm:$0xff] %v57
    %s1316 = scalar_lea.vmem [#allocation1], 16
    %1317 = vst [vmem:[%s1316] ss:$2 sm:$0xff] %v58
    %v1318 = vld.sshfl [vmem:[#allocation1] sm:$0xff pattern:$0x75316420]
    %v1319 = vld.sshfl [vmem:[#allocation1 + $0x8] sm:$0xff pattern:$0x75316420]
    %v1320 = vld.sshfl [vmem:[#allocation1 + $0x10] sm:$0xff pattern:$0x75316420]
    %v1321 = vld.sshfl [vmem:[#allocation1 + $0x18] sm:$0xff pattern:$0x75316420]
    %1326 = vrot.lane.b32.xlu0 %v1318, 9
    %v1327 = vpop.permute.xlu0 %1326
    %1328 = vrot.lane.b32.xlu0 %v1319, 9
    %v1329 = vpop.permute.xlu0 %1328
    %1330 = vrot.lane.b32.xlu0 %v1320, 9
    %v1331 = vpop.permute.xlu0 %1330
    %1332 = vrot.lane.b32.xlu0 %v1321, 9
    %v1333 = vpop.permute.xlu0 %1332
    %vm1334 = vcmp.lt.s32.totalorder %v81, 9
    %v1335 = vsel %vm1334, %v1331, %v1333
    %v1336 = vsel %vm1334, %v1329, %v1331
    %v1337 = vsel %vm1334, %v1327, %v1329
    %v1338 = vsel %vm1334, %v1333, %v1327
    %s1339 = scalar_lea.vmem %s1, 36
    %v1340 = vld [vmem:[%s1339] sm:$0xf]
    %v1342 = vperm.slane %v1340, 0
    %v1343 = vperm.slane %v1340, 1
    %v1344 = vperm.slane %v1340, 2
    %v1345 = vperm.slane %v1340, 3
    %v1350 = vmul.f32 %v1338, %v1342
    %v1351 = vmul.f32 %v1337, %v1343
    %v1352 = vmul.f32 %v1336, %v1344
    %v1353 = vmul.f32 %v1335, %v1345
    %s1354 = scalar_lea.vmem %s2, 36
    %v1355 = vld [vmem:[%s1354] sm:$0xf]
    %v1357 = vsel %vm143, %v1355, 0
    %v1360 = vsel %vm147, %v1350, 0
    %v1363 = vsel %vm147, %v1351, 0
    %v1366 = vsel %vm147, %v1352, 0
    %v1369 = vsel %vm147, %v1353, 0
    %1371 = vmatpush.msra.mxu0 0.0
    %1372 = vmatpush.msra.mxu0 0.0
    %1373 = vmatpush.msra.mxu0 0.0
    %1374 = vmatpush.msra.mxu0 0.0
    %1375 = vmatpush.msra.mxu0 0.0
    %1376 = vmatpush.msra.mxu0 0.0
    %1377 = vmatpush.msra.mxu0 0.0
    %1378 = vmatpush.msra.mxu0 0.0
    %1379 = vmatpush.msra.mxu0 0.0
    %1380 = vmatpush.msra.mxu0 0.0
    %1381 = vmatpush.msra.mxu0 0.0
    %1382 = vmatpush.msra.mxu0 0.0
    %1383 = vmatpush.msra.mxu0 0.0
    %1384 = vmatpush.msra.mxu0 0.0
    %1385 = vmatpush.msra.mxu0 0.0
    %1386 = vmatpush.msra.mxu0 %v1360
    %1387 = vmatmul.f32.gmra.mxu0 %v1357
    %v1388 = vpop.f32.mrf.mxu0
    %v1389 = vadd.f32 0.0, %v1388
    %1390 = vdwg.mxu0
    %1391 = vmatpush.msra.mxu0 0.0
    %1392 = vmatpush.msra.mxu0 0.0
    %1393 = vmatpush.msra.mxu0 0.0
    %1394 = vmatpush.msra.mxu0 0.0
    %1395 = vmatpush.msra.mxu0 0.0
    %1396 = vmatpush.msra.mxu0 0.0
    %1397 = vmatpush.msra.mxu0 0.0
    %1398 = vmatpush.msra.mxu0 0.0
    %1399 = vmatpush.msra.mxu0 0.0
    %1400 = vmatpush.msra.mxu0 0.0
    %1401 = vmatpush.msra.mxu0 0.0
    %1402 = vmatpush.msra.mxu0 0.0
    %1403 = vmatpush.msra.mxu0 0.0
    %1404 = vmatpush.msra.mxu0 0.0
    %1405 = vmatpush.msra.mxu0 0.0
    %1406 = vmatpush.msra.mxu0 %v1363
    %1407 = vmatmul.f32.gmra.mxu0 %v1357
    %v1408 = vpop.f32.mrf.mxu0
    %v1409 = vadd.f32 0.0, %v1408
    %1410 = vdwg.mxu0
    %1411 = vmatpush.msra.mxu0 0.0
    %1412 = vmatpush.msra.mxu0 0.0
    %1413 = vmatpush.msra.mxu0 0.0
    %1414 = vmatpush.msra.mxu0 0.0
    %1415 = vmatpush.msra.mxu0 0.0
    %1416 = vmatpush.msra.mxu0 0.0
    %1417 = vmatpush.msra.mxu0 0.0
    %1418 = vmatpush.msra.mxu0 0.0
    %1419 = vmatpush.msra.mxu0 0.0
    %1420 = vmatpush.msra.mxu0 0.0
    %1421 = vmatpush.msra.mxu0 0.0
    %1422 = vmatpush.msra.mxu0 0.0
    %1423 = vmatpush.msra.mxu0 0.0
    %1424 = vmatpush.msra.mxu0 0.0
    %1425 = vmatpush.msra.mxu0 0.0
    %1426 = vmatpush.msra.mxu0 %v1366
    %1427 = vmatmul.f32.gmra.mxu0 %v1357
    %v1428 = vpop.f32.mrf.mxu0
    %v1429 = vadd.f32 0.0, %v1428
    %1430 = vdwg.mxu0
    %1431 = vmatpush.msra.mxu0 0.0
    %1432 = vmatpush.msra.mxu0 0.0
    %1433 = vmatpush.msra.mxu0 0.0
    %1434 = vmatpush.msra.mxu0 0.0
    %1435 = vmatpush.msra.mxu0 0.0
    %1436 = vmatpush.msra.mxu0 0.0
    %1437 = vmatpush.msra.mxu0 0.0
    %1438 = vmatpush.msra.mxu0 0.0
    %1439 = vmatpush.msra.mxu0 0.0
    %1440 = vmatpush.msra.mxu0 0.0
    %1441 = vmatpush.msra.mxu0 0.0
    %1442 = vmatpush.msra.mxu0 0.0
    %1443 = vmatpush.msra.mxu0 0.0
    %1444 = vmatpush.msra.mxu0 0.0
    %1445 = vmatpush.msra.mxu0 0.0
    %1446 = vmatpush.msra.mxu0 %v1369
    %1447 = vmatmul.f32.gmra.mxu0 %v1357
    %v1448 = vpop.f32.mrf.mxu0
    %v1449 = vadd.f32 0.0, %v1448
    %1450 = vdwg.mxu0
    %v1451 = vadd.f32 %v1311, %v1389
    %v1452 = vadd.f32 %v1312, %v1409
    %v1453 = vadd.f32 %v1313, %v1429
    %v1454 = vadd.f32 %v1314, %v1449
    %1455 = vst [vmem:[#allocation1] ss:$2 sm:$0xff] %v57
    %s1456 = scalar_lea.vmem [#allocation1], 16
    %1457 = vst [vmem:[%s1456] ss:$2 sm:$0xff] %v58
    %v1458 = vld.sshfl [vmem:[#allocation1] sm:$0xff pattern:$0x75316420]
    %v1459 = vld.sshfl [vmem:[#allocation1 + $0x8] sm:$0xff pattern:$0x75316420]
    %v1460 = vld.sshfl [vmem:[#allocation1 + $0x10] sm:$0xff pattern:$0x75316420]
    %v1461 = vld.sshfl [vmem:[#allocation1 + $0x18] sm:$0xff pattern:$0x75316420]
    %1466 = vrot.lane.b32.xlu0 %v1458, 8
    %v1467 = vpop.permute.xlu0 %1466
    %1468 = vrot.lane.b32.xlu0 %v1459, 8
    %v1469 = vpop.permute.xlu0 %1468
    %1470 = vrot.lane.b32.xlu0 %v1460, 8
    %v1471 = vpop.permute.xlu0 %1470
    %1472 = vrot.lane.b32.xlu0 %v1461, 8
    %v1473 = vpop.permute.xlu0 %1472
    %vm1474 = vcmp.lt.s32.totalorder %v81, 8
    %v1475 = vsel %vm1474, %v1471, %v1473
    %v1476 = vsel %vm1474, %v1469, %v1471
    %v1477 = vsel %vm1474, %v1467, %v1469
    %v1478 = vsel %vm1474, %v1473, %v1467
    %s1479 = scalar_lea.vmem %s1, 40
    %v1480 = vld [vmem:[%s1479] sm:$0xf]
    %v1482 = vperm.slane %v1480, 0
    %v1483 = vperm.slane %v1480, 1
    %v1484 = vperm.slane %v1480, 2
    %v1485 = vperm.slane %v1480, 3
    %v1490 = vmul.f32 %v1478, %v1482
    %v1491 = vmul.f32 %v1477, %v1483
    %v1492 = vmul.f32 %v1476, %v1484
    %v1493 = vmul.f32 %v1475, %v1485
    %s1494 = scalar_lea.vmem %s2, 40
    %v1495 = vld [vmem:[%s1494] sm:$0xf]
    %v1497 = vsel %vm143, %v1495, 0
    %v1500 = vsel %vm147, %v1490, 0
    %v1503 = vsel %vm147, %v1491, 0
    %v1506 = vsel %vm147, %v1492, 0
    %v1509 = vsel %vm147, %v1493, 0
    %1511 = vmatpush.msra.mxu0 0.0
    %1512 = vmatpush.msra.mxu0 0.0
    %1513 = vmatpush.msra.mxu0 0.0
    %1514 = vmatpush.msra.mxu0 0.0
    %1515 = vmatpush.msra.mxu0 0.0
    %1516 = vmatpush.msra.mxu0 0.0
    %1517 = vmatpush.msra.mxu0 0.0
    %1518 = vmatpush.msra.mxu0 0.0
    %1519 = vmatpush.msra.mxu0 0.0
    %1520 = vmatpush.msra.mxu0 0.0
    %1521 = vmatpush.msra.mxu0 0.0
    %1522 = vmatpush.msra.mxu0 0.0
    %1523 = vmatpush.msra.mxu0 0.0
    %1524 = vmatpush.msra.mxu0 0.0
    %1525 = vmatpush.msra.mxu0 0.0
    %1526 = vmatpush.msra.mxu0 %v1500
    %1527 = vmatmul.f32.gmra.mxu0 %v1497
    %v1528 = vpop.f32.mrf.mxu0
    %v1529 = vadd.f32 0.0, %v1528
    %1530 = vdwg.mxu0
    %1531 = vmatpush.msra.mxu0 0.0
    %1532 = vmatpush.msra.mxu0 0.0
    %1533 = vmatpush.msra.mxu0 0.0
    %1534 = vmatpush.msra.mxu0 0.0
    %1535 = vmatpush.msra.mxu0 0.0
    %1536 = vmatpush.msra.mxu0 0.0
    %1537 = vmatpush.msra.mxu0 0.0
    %1538 = vmatpush.msra.mxu0 0.0
    %1539 = vmatpush.msra.mxu0 0.0
    %1540 = vmatpush.msra.mxu0 0.0
    %1541 = vmatpush.msra.mxu0 0.0
    %1542 = vmatpush.msra.mxu0 0.0
    %1543 = vmatpush.msra.mxu0 0.0
    %1544 = vmatpush.msra.mxu0 0.0
    %1545 = vmatpush.msra.mxu0 0.0
    %1546 = vmatpush.msra.mxu0 %v1503
    %1547 = vmatmul.f32.gmra.mxu0 %v1497
    %v1548 = vpop.f32.mrf.mxu0
    %v1549 = vadd.f32 0.0, %v1548
    %1550 = vdwg.mxu0
    %1551 = vmatpush.msra.mxu0 0.0
    %1552 = vmatpush.msra.mxu0 0.0
    %1553 = vmatpush.msra.mxu0 0.0
    %1554 = vmatpush.msra.mxu0 0.0
    %1555 = vmatpush.msra.mxu0 0.0
    %1556 = vmatpush.msra.mxu0 0.0
    %1557 = vmatpush.msra.mxu0 0.0
    %1558 = vmatpush.msra.mxu0 0.0
    %1559 = vmatpush.msra.mxu0 0.0
    %1560 = vmatpush.msra.mxu0 0.0
    %1561 = vmatpush.msra.mxu0 0.0
    %1562 = vmatpush.msra.mxu0 0.0
    %1563 = vmatpush.msra.mxu0 0.0
    %1564 = vmatpush.msra.mxu0 0.0
    %1565 = vmatpush.msra.mxu0 0.0
    %1566 = vmatpush.msra.mxu0 %v1506
    %1567 = vmatmul.f32.gmra.mxu0 %v1497
    %v1568 = vpop.f32.mrf.mxu0
    %v1569 = vadd.f32 0.0, %v1568
    %1570 = vdwg.mxu0
    %1571 = vmatpush.msra.mxu0 0.0
    %1572 = vmatpush.msra.mxu0 0.0
    %1573 = vmatpush.msra.mxu0 0.0
    %1574 = vmatpush.msra.mxu0 0.0
    %1575 = vmatpush.msra.mxu0 0.0
    %1576 = vmatpush.msra.mxu0 0.0
    %1577 = vmatpush.msra.mxu0 0.0
    %1578 = vmatpush.msra.mxu0 0.0
    %1579 = vmatpush.msra.mxu0 0.0
    %1580 = vmatpush.msra.mxu0 0.0
    %1581 = vmatpush.msra.mxu0 0.0
    %1582 = vmatpush.msra.mxu0 0.0
    %1583 = vmatpush.msra.mxu0 0.0
    %1584 = vmatpush.msra.mxu0 0.0
    %1585 = vmatpush.msra.mxu0 0.0
    %1586 = vmatpush.msra.mxu0 %v1509
    %1587 = vmatmul.f32.gmra.mxu0 %v1497
    %v1588 = vpop.f32.mrf.mxu0
    %v1589 = vadd.f32 0.0, %v1588
    %1590 = vdwg.mxu0
    %v1591 = vadd.f32 %v1451, %v1529
    %v1592 = vadd.f32 %v1452, %v1549
    %v1593 = vadd.f32 %v1453, %v1569
    %v1594 = vadd.f32 %v1454, %v1589
    %1595 = vst [vmem:[#allocation1] ss:$2 sm:$0xff] %v57
    %s1596 = scalar_lea.vmem [#allocation1], 16
    %1597 = vst [vmem:[%s1596] ss:$2 sm:$0xff] %v58
    %v1598 = vld.sshfl [vmem:[#allocation1] sm:$0xff pattern:$0x75316420]
    %v1599 = vld.sshfl [vmem:[#allocation1 + $0x8] sm:$0xff pattern:$0x75316420]
    %v1600 = vld.sshfl [vmem:[#allocation1 + $0x10] sm:$0xff pattern:$0x75316420]
    %v1601 = vld.sshfl [vmem:[#allocation1 + $0x18] sm:$0xff pattern:$0x75316420]
    %1606 = vrot.lane.b32.xlu0 %v1598, 7
    %v1607 = vpop.permute.xlu0 %1606
    %1608 = vrot.lane.b32.xlu0 %v1599, 7
    %v1609 = vpop.permute.xlu0 %1608
    %1610 = vrot.lane.b32.xlu0 %v1600, 7
    %v1611 = vpop.permute.xlu0 %1610
    %1612 = vrot.lane.b32.xlu0 %v1601, 7
    %v1613 = vpop.permute.xlu0 %1612
    %vm1614 = vcmp.lt.s32.totalorder %v81, 7
    %v1615 = vsel %vm1614, %v1611, %v1613
    %v1616 = vsel %vm1614, %v1609, %v1611
    %v1617 = vsel %vm1614, %v1607, %v1609
    %v1618 = vsel %vm1614, %v1613, %v1607
    %s1619 = scalar_lea.vmem %s1, 44
    %v1620 = vld [vmem:[%s1619] sm:$0xf]
    %v1622 = vperm.slane %v1620, 0
    %v1623 = vperm.slane %v1620, 1
    %v1624 = vperm.slane %v1620, 2
    %v1625 = vperm.slane %v1620, 3
    %v1630 = vmul.f32 %v1618, %v1622
    %v1631 = vmul.f32 %v1617, %v1623
    %v1632 = vmul.f32 %v1616, %v1624
    %v1633 = vmul.f32 %v1615, %v1625
    %s1634 = scalar_lea.vmem %s2, 44
    %v1635 = vld [vmem:[%s1634] sm:$0xf]
    %v1637 = vsel %vm143, %v1635, 0
    %v1640 = vsel %vm147, %v1630, 0
    %v1643 = vsel %vm147, %v1631, 0
    %v1646 = vsel %vm147, %v1632, 0
    %v1649 = vsel %vm147, %v1633, 0
    %1651 = vmatpush.msra.mxu0 0.0
    %1652 = vmatpush.msra.mxu0 0.0
    %1653 = vmatpush.msra.mxu0 0.0
    %1654 = vmatpush.msra.mxu0 0.0
    %1655 = vmatpush.msra.mxu0 0.0
    %1656 = vmatpush.msra.mxu0 0.0
    %1657 = vmatpush.msra.mxu0 0.0
    %1658 = vmatpush.msra.mxu0 0.0
    %1659 = vmatpush.msra.mxu0 0.0
    %1660 = vmatpush.msra.mxu0 0.0
    %1661 = vmatpush.msra.mxu0 0.0
    %1662 = vmatpush.msra.mxu0 0.0
    %1663 = vmatpush.msra.mxu0 0.0
    %1664 = vmatpush.msra.mxu0 0.0
    %1665 = vmatpush.msra.mxu0 0.0
    %1666 = vmatpush.msra.mxu0 %v1640
    %1667 = vmatmul.f32.gmra.mxu0 %v1637
    %v1668 = vpop.f32.mrf.mxu0
    %v1669 = vadd.f32 0.0, %v1668
    %1670 = vdwg.mxu0
    %1671 = vmatpush.msra.mxu0 0.0
    %1672 = vmatpush.msra.mxu0 0.0
    %1673 = vmatpush.msra.mxu0 0.0
    %1674 = vmatpush.msra.mxu0 0.0
    %1675 = vmatpush.msra.mxu0 0.0
    %1676 = vmatpush.msra.mxu0 0.0
    %1677 = vmatpush.msra.mxu0 0.0
    %1678 = vmatpush.msra.mxu0 0.0
    %1679 = vmatpush.msra.mxu0 0.0
    %1680 = vmatpush.msra.mxu0 0.0
    %1681 = vmatpush.msra.mxu0 0.0
    %1682 = vmatpush.msra.mxu0 0.0
    %1683 = vmatpush.msra.mxu0 0.0
    %1684 = vmatpush.msra.mxu0 0.0
    %1685 = vmatpush.msra.mxu0 0.0
    %1686 = vmatpush.msra.mxu0 %v1643
    %1687 = vmatmul.f32.gmra.mxu0 %v1637
    %v1688 = vpop.f32.mrf.mxu0
    %v1689 = vadd.f32 0.0, %v1688
    %1690 = vdwg.mxu0
    %1691 = vmatpush.msra.mxu0 0.0
    %1692 = vmatpush.msra.mxu0 0.0
    %1693 = vmatpush.msra.mxu0 0.0
    %1694 = vmatpush.msra.mxu0 0.0
    %1695 = vmatpush.msra.mxu0 0.0
    %1696 = vmatpush.msra.mxu0 0.0
    %1697 = vmatpush.msra.mxu0 0.0
    %1698 = vmatpush.msra.mxu0 0.0
    %1699 = vmatpush.msra.mxu0 0.0
    %1700 = vmatpush.msra.mxu0 0.0
    %1701 = vmatpush.msra.mxu0 0.0
    %1702 = vmatpush.msra.mxu0 0.0
    %1703 = vmatpush.msra.mxu0 0.0
    %1704 = vmatpush.msra.mxu0 0.0
    %1705 = vmatpush.msra.mxu0 0.0
    %1706 = vmatpush.msra.mxu0 %v1646
    %1707 = vmatmul.f32.gmra.mxu0 %v1637
    %v1708 = vpop.f32.mrf.mxu0
    %v1709 = vadd.f32 0.0, %v1708
    %1710 = vdwg.mxu0
    %1711 = vmatpush.msra.mxu0 0.0
    %1712 = vmatpush.msra.mxu0 0.0
    %1713 = vmatpush.msra.mxu0 0.0
    %1714 = vmatpush.msra.mxu0 0.0
    %1715 = vmatpush.msra.mxu0 0.0
    %1716 = vmatpush.msra.mxu0 0.0
    %1717 = vmatpush.msra.mxu0 0.0
    %1718 = vmatpush.msra.mxu0 0.0
    %1719 = vmatpush.msra.mxu0 0.0
    %1720 = vmatpush.msra.mxu0 0.0
    %1721 = vmatpush.msra.mxu0 0.0
    %1722 = vmatpush.msra.mxu0 0.0
    %1723 = vmatpush.msra.mxu0 0.0
    %1724 = vmatpush.msra.mxu0 0.0
    %1725 = vmatpush.msra.mxu0 0.0
    %1726 = vmatpush.msra.mxu0 %v1649
    %1727 = vmatmul.f32.gmra.mxu0 %v1637
    %v1728 = vpop.f32.mrf.mxu0
    %v1729 = vadd.f32 0.0, %v1728
    %1730 = vdwg.mxu0
    %v1731 = vadd.f32 %v1591, %v1669
    %v1732 = vadd.f32 %v1592, %v1689
    %v1733 = vadd.f32 %v1593, %v1709
    %v1734 = vadd.f32 %v1594, %v1729
    %1735 = vst [vmem:[#allocation1] ss:$2 sm:$0xff] %v57
    %s1736 = scalar_lea.vmem [#allocation1], 16
    %1737 = vst [vmem:[%s1736] ss:$2 sm:$0xff] %v58
    %v1738 = vld.sshfl [vmem:[#allocation1] sm:$0xff pattern:$0x75316420]
    %v1739 = vld.sshfl [vmem:[#allocation1 + $0x8] sm:$0xff pattern:$0x75316420]
    %v1740 = vld.sshfl [vmem:[#allocation1 + $0x10] sm:$0xff pattern:$0x75316420]
    %v1741 = vld.sshfl [vmem:[#allocation1 + $0x18] sm:$0xff pattern:$0x75316420]
    %1746 = vrot.lane.b32.xlu0 %v1738, 1
    %v1747 = vpop.permute.xlu0 %1746
    %1748 = vrot.lane.b32.xlu0 %v1739, 1
    %v1749 = vpop.permute.xlu0 %1748
    %1750 = vrot.lane.b32.xlu0 %v1740, 1
    %v1751 = vpop.permute.xlu0 %1750
    %1752 = vrot.lane.b32.xlu0 %v1741, 1
    %v1753 = vpop.permute.xlu0 %1752
    %vm1754 = vcmp.lt.s32.totalorder %v81, 1
    %v1755 = vsel %vm1754, %v1751, %v1753
    %v1756 = vsel %vm1754, %v1749, %v1751
    %v1757 = vsel %vm1754, %v1747, %v1749
    %v1758 = vsel %vm1754, %v1753, %v1747
    %s1759 = scalar_lea.vmem %s1, 48
    %v1760 = vld [vmem:[%s1759] sm:$0xf]
    %v1762 = vperm.slane %v1760, 0
    %v1763 = vperm.slane %v1760, 1
    %v1764 = vperm.slane %v1760, 2
    %v1765 = vperm.slane %v1760, 3
    %v1770 = vmul.f32 %v1758, %v1762
    %v1771 = vmul.f32 %v1757, %v1763
    %v1772 = vmul.f32 %v1756, %v1764
    %v1773 = vmul.f32 %v1755, %v1765
    %s1774 = scalar_lea.vmem %s2, 48
    %v1775 = vld [vmem:[%s1774] sm:$0xf]
    %v1777 = vsel %vm143, %v1775, 0
    %v1780 = vsel %vm147, %v1770, 0
    %v1783 = vsel %vm147, %v1771, 0
    %v1786 = vsel %vm147, %v1772, 0
    %v1789 = vsel %vm147, %v1773, 0
    %1791 = vmatpush.msra.mxu0 0.0
    %1792 = vmatpush.msra.mxu0 0.0
    %1793 = vmatpush.msra.mxu0 0.0
    %1794 = vmatpush.msra.mxu0 0.0
    %1795 = vmatpush.msra.mxu0 0.0
    %1796 = vmatpush.msra.mxu0 0.0
    %1797 = vmatpush.msra.mxu0 0.0
    %1798 = vmatpush.msra.mxu0 0.0
    %1799 = vmatpush.msra.mxu0 0.0
    %1800 = vmatpush.msra.mxu0 0.0
    %1801 = vmatpush.msra.mxu0 0.0
    %1802 = vmatpush.msra.mxu0 0.0
    %1803 = vmatpush.msra.mxu0 0.0
    %1804 = vmatpush.msra.mxu0 0.0
    %1805 = vmatpush.msra.mxu0 0.0
    %1806 = vmatpush.msra.mxu0 %v1780
    %1807 = vmatmul.f32.gmra.mxu0 %v1777
    %v1808 = vpop.f32.mrf.mxu0
    %v1809 = vadd.f32 0.0, %v1808
    %1810 = vdwg.mxu0
    %1811 = vmatpush.msra.mxu0 0.0
    %1812 = vmatpush.msra.mxu0 0.0
    %1813 = vmatpush.msra.mxu0 0.0
    %1814 = vmatpush.msra.mxu0 0.0
    %1815 = vmatpush.msra.mxu0 0.0
    %1816 = vmatpush.msra.mxu0 0.0
    %1817 = vmatpush.msra.mxu0 0.0
    %1818 = vmatpush.msra.mxu0 0.0
    %1819 = vmatpush.msra.mxu0 0.0
    %1820 = vmatpush.msra.mxu0 0.0
    %1821 = vmatpush.msra.mxu0 0.0
    %1822 = vmatpush.msra.mxu0 0.0
    %1823 = vmatpush.msra.mxu0 0.0
    %1824 = vmatpush.msra.mxu0 0.0
    %1825 = vmatpush.msra.mxu0 0.0
    %1826 = vmatpush.msra.mxu0 %v1783
    %1827 = vmatmul.f32.gmra.mxu0 %v1777
    %v1828 = vpop.f32.mrf.mxu0
    %v1829 = vadd.f32 0.0, %v1828
    %1830 = vdwg.mxu0
    %1831 = vmatpush.msra.mxu0 0.0
    %1832 = vmatpush.msra.mxu0 0.0
    %1833 = vmatpush.msra.mxu0 0.0
    %1834 = vmatpush.msra.mxu0 0.0
    %1835 = vmatpush.msra.mxu0 0.0
    %1836 = vmatpush.msra.mxu0 0.0
    %1837 = vmatpush.msra.mxu0 0.0
    %1838 = vmatpush.msra.mxu0 0.0
    %1839 = vmatpush.msra.mxu0 0.0
    %1840 = vmatpush.msra.mxu0 0.0
    %1841 = vmatpush.msra.mxu0 0.0
    %1842 = vmatpush.msra.mxu0 0.0
    %1843 = vmatpush.msra.mxu0 0.0
    %1844 = vmatpush.msra.mxu0 0.0
    %1845 = vmatpush.msra.mxu0 0.0
    %1846 = vmatpush.msra.mxu0 %v1786
    %1847 = vmatmul.f32.gmra.mxu0 %v1777
    %v1848 = vpop.f32.mrf.mxu0
    %v1849 = vadd.f32 0.0, %v1848
    %1850 = vdwg.mxu0
    %1851 = vmatpush.msra.mxu0 0.0
    %1852 = vmatpush.msra.mxu0 0.0
    %1853 = vmatpush.msra.mxu0 0.0
    %1854 = vmatpush.msra.mxu0 0.0
    %1855 = vmatpush.msra.mxu0 0.0
    %1856 = vmatpush.msra.mxu0 0.0
    %1857 = vmatpush.msra.mxu0 0.0
    %1858 = vmatpush.msra.mxu0 0.0
    %1859 = vmatpush.msra.mxu0 0.0
    %1860 = vmatpush.msra.mxu0 0.0
    %1861 = vmatpush.msra.mxu0 0.0
    %1862 = vmatpush.msra.mxu0 0.0
    %1863 = vmatpush.msra.mxu0 0.0
    %1864 = vmatpush.msra.mxu0 0.0
    %1865 = vmatpush.msra.mxu0 0.0
    %1866 = vmatpush.msra.mxu0 %v1789
    %1867 = vmatmul.f32.gmra.mxu0 %v1777
    %v1868 = vpop.f32.mrf.mxu0
    %v1869 = vadd.f32 0.0, %v1868
    %1870 = vdwg.mxu0
    %v1871 = vadd.f32 %v1731, %v1809
    %v1872 = vadd.f32 %v1732, %v1829
    %v1873 = vadd.f32 %v1733, %v1849
    %v1874 = vadd.f32 %v1734, %v1869
    %s1875 = scalar_lea.vmem %s2, 52
    %v1876 = vld [vmem:[%s1875] sm:$0xf]
    %1877 = vst [vmem:[#allocation1] ss:$2 sm:$0xff] %v57
    %s1878 = scalar_lea.vmem [#allocation1], 16
    %1879 = vst [vmem:[%s1878] ss:$2 sm:$0xff] %v58
    %v1880 = vld.sshfl [vmem:[#allocation1] sm:$0xff pattern:$0x75316420]
    %v1881 = vld.sshfl [vmem:[#allocation1 + $0x8] sm:$0xff pattern:$0x75316420]
    %v1882 = vld.sshfl [vmem:[#allocation1 + $0x10] sm:$0xff pattern:$0x75316420]
    %v1883 = vld.sshfl [vmem:[#allocation1 + $0x18] sm:$0xff pattern:$0x75316420]
    %v1885 = vsel %vm143, %v1876, 0
    %v1887 = vsel %vm147, %v1880, 0
    %v1889 = vsel %vm147, %v1881, 0
    %v1891 = vsel %vm147, %v1882, 0
    %v1893 = vsel %vm147, %v1883, 0
    %1895 = vmatpush.msra.mxu0 0.0
    %1896 = vmatpush.msra.mxu0 0.0
    %1897 = vmatpush.msra.mxu0 0.0
    %1898 = vmatpush.msra.mxu0 0.0
    %1899 = vmatpush.msra.mxu0 0.0
    %1900 = vmatpush.msra.mxu0 0.0
    %1901 = vmatpush.msra.mxu0 0.0
    %1902 = vmatpush.msra.mxu0 0.0
    %1903 = vmatpush.msra.mxu0 0.0
    %1904 = vmatpush.msra.mxu0 0.0
    %1905 = vmatpush.msra.mxu0 0.0
    %1906 = vmatpush.msra.mxu0 0.0
    %1907 = vmatpush.msra.mxu0 0.0
    %1908 = vmatpush.msra.mxu0 0.0
    %1909 = vmatpush.msra.mxu0 0.0
    %1910 = vmatpush.msra.mxu0 %v1887
    %1911 = vmatmul.f32.gmra.mxu0 %v1885
    %v1912 = vpop.f32.mrf.mxu0
    %v1913 = vadd.f32 0.0, %v1912
    %1914 = vdwg.mxu0
    %1915 = vmatpush.msra.mxu0 0.0
    %1916 = vmatpush.msra.mxu0 0.0
    %1917 = vmatpush.msra.mxu0 0.0
    %1918 = vmatpush.msra.mxu0 0.0
    %1919 = vmatpush.msra.mxu0 0.0
    %1920 = vmatpush.msra.mxu0 0.0
    %1921 = vmatpush.msra.mxu0 0.0
    %1922 = vmatpush.msra.mxu0 0.0
    %1923 = vmatpush.msra.mxu0 0.0
    %1924 = vmatpush.msra.mxu0 0.0
    %1925 = vmatpush.msra.mxu0 0.0
    %1926 = vmatpush.msra.mxu0 0.0
    %1927 = vmatpush.msra.mxu0 0.0
    %1928 = vmatpush.msra.mxu0 0.0
    %1929 = vmatpush.msra.mxu0 0.0
    %1930 = vmatpush.msra.mxu0 %v1889
    %1931 = vmatmul.f32.gmra.mxu0 %v1885
    %v1932 = vpop.f32.mrf.mxu0
    %v1933 = vadd.f32 0.0, %v1932
    %1934 = vdwg.mxu0
    %1935 = vmatpush.msra.mxu0 0.0
    %1936 = vmatpush.msra.mxu0 0.0
    %1937 = vmatpush.msra.mxu0 0.0
    %1938 = vmatpush.msra.mxu0 0.0
    %1939 = vmatpush.msra.mxu0 0.0
    %1940 = vmatpush.msra.mxu0 0.0
    %1941 = vmatpush.msra.mxu0 0.0
    %1942 = vmatpush.msra.mxu0 0.0
    %1943 = vmatpush.msra.mxu0 0.0
    %1944 = vmatpush.msra.mxu0 0.0
    %1945 = vmatpush.msra.mxu0 0.0
    %1946 = vmatpush.msra.mxu0 0.0
    %1947 = vmatpush.msra.mxu0 0.0
    %1948 = vmatpush.msra.mxu0 0.0
    %1949 = vmatpush.msra.mxu0 0.0
    %1950 = vmatpush.msra.mxu0 %v1891
    %1951 = vmatmul.f32.gmra.mxu0 %v1885
    %v1952 = vpop.f32.mrf.mxu0
    %v1953 = vadd.f32 0.0, %v1952
    %1954 = vdwg.mxu0
    %1955 = vmatpush.msra.mxu0 0.0
    %1956 = vmatpush.msra.mxu0 0.0
    %1957 = vmatpush.msra.mxu0 0.0
    %1958 = vmatpush.msra.mxu0 0.0
    %1959 = vmatpush.msra.mxu0 0.0
    %1960 = vmatpush.msra.mxu0 0.0
    %1961 = vmatpush.msra.mxu0 0.0
    %1962 = vmatpush.msra.mxu0 0.0
    %1963 = vmatpush.msra.mxu0 0.0
    %1964 = vmatpush.msra.mxu0 0.0
    %1965 = vmatpush.msra.mxu0 0.0
    %1966 = vmatpush.msra.mxu0 0.0
    %1967 = vmatpush.msra.mxu0 0.0
    %1968 = vmatpush.msra.mxu0 0.0
    %1969 = vmatpush.msra.mxu0 0.0
    %1970 = vmatpush.msra.mxu0 %v1893
    %1971 = vmatmul.f32.gmra.mxu0 %v1885
    %v1972 = vpop.f32.mrf.mxu0
    %v1973 = vadd.f32 0.0, %v1972
    %1974 = vdwg.mxu0
    %v1975 = vadd.f32 %v1871, %v1913
    %v1976 = vadd.f32 %v1872, %v1933
    %v1977 = vadd.f32 %v1873, %v1953
    %v1978 = vadd.f32 %v1874, %v1973
    %1979 = vst [vmem:[#allocation1] ss:$2 sm:$0xff] %v57
    %s1980 = scalar_lea.vmem [#allocation1], 16
    %1981 = vst [vmem:[%s1980] ss:$2 sm:$0xff] %v58
    %v1982 = vld.sshfl [vmem:[#allocation1] sm:$0xff pattern:$0x75316420]
    %v1983 = vld.sshfl [vmem:[#allocation1 + $0x8] sm:$0xff pattern:$0x75316420]
    %v1984 = vld.sshfl [vmem:[#allocation1 + $0x10] sm:$0xff pattern:$0x75316420]
    %v1985 = vld.sshfl [vmem:[#allocation1 + $0x18] sm:$0xff pattern:$0x75316420]
    %1990 = vrot.lane.b32.xlu0 %v1982, 127
    %v1991 = vpop.permute.xlu0 %1990
    %1992 = vrot.lane.b32.xlu0 %v1983, 127
    %v1993 = vpop.permute.xlu0 %1992
    %1994 = vrot.lane.b32.xlu0 %v1984, 127
    %v1995 = vpop.permute.xlu0 %1994
    %1996 = vrot.lane.b32.xlu0 %v1985, 127
    %v1997 = vpop.permute.xlu0 %1996
    %vm1998 = vcmp.lt.s32.totalorder %v81, 127
    %v1999 = vsel %vm1998, %v1995, %v1997
    %v2000 = vsel %vm1998, %v1993, %v1995
    %v2001 = vsel %vm1998, %v1991, %v1993
    %v2002 = vsel %vm1998, %v1997, %v1991
    %s2003 = scalar_lea.vmem %s1, 56
    %v2004 = vld [vmem:[%s2003] sm:$0xf]
    %v2006 = vperm.slane %v2004, 0
    %v2007 = vperm.slane %v2004, 1
    %v2008 = vperm.slane %v2004, 2
    %v2009 = vperm.slane %v2004, 3
    %v2014 = vmul.f32 %v2001, %v2006
    %v2015 = vmul.f32 %v2000, %v2007
    %v2016 = vmul.f32 %v1999, %v2008
    %v2017 = vmul.f32 %v2002, %v2009
    %s2018 = scalar_lea.vmem %s2, 56
    %v2019 = vld [vmem:[%s2018] sm:$0xf]
    %v2021 = vsel %vm143, %v2019, 0
    %v2024 = vsel %vm147, %v2014, 0
    %v2027 = vsel %vm147, %v2015, 0
    %v2030 = vsel %vm147, %v2016, 0
    %v2033 = vsel %vm147, %v2017, 0
    %2035 = vmatpush.msra.mxu0 0.0
    %2036 = vmatpush.msra.mxu0 0.0
    %2037 = vmatpush.msra.mxu0 0.0
    %2038 = vmatpush.msra.mxu0 0.0
    %2039 = vmatpush.msra.mxu0 0.0
    %2040 = vmatpush.msra.mxu0 0.0
    %2041 = vmatpush.msra.mxu0 0.0
    %2042 = vmatpush.msra.mxu0 0.0
    %2043 = vmatpush.msra.mxu0 0.0
    %2044 = vmatpush.msra.mxu0 0.0
    %2045 = vmatpush.msra.mxu0 0.0
    %2046 = vmatpush.msra.mxu0 0.0
    %2047 = vmatpush.msra.mxu0 0.0
    %2048 = vmatpush.msra.mxu0 0.0
    %2049 = vmatpush.msra.mxu0 0.0
    %2050 = vmatpush.msra.mxu0 %v2024
    %2051 = vmatmul.f32.gmra.mxu0 %v2021
    %v2052 = vpop.f32.mrf.mxu0
    %v2053 = vadd.f32 0.0, %v2052
    %2054 = vdwg.mxu0
    %2055 = vmatpush.msra.mxu0 0.0
    %2056 = vmatpush.msra.mxu0 0.0
    %2057 = vmatpush.msra.mxu0 0.0
    %2058 = vmatpush.msra.mxu0 0.0
    %2059 = vmatpush.msra.mxu0 0.0
    %2060 = vmatpush.msra.mxu0 0.0
    %2061 = vmatpush.msra.mxu0 0.0
    %2062 = vmatpush.msra.mxu0 0.0
    %2063 = vmatpush.msra.mxu0 0.0
    %2064 = vmatpush.msra.mxu0 0.0
    %2065 = vmatpush.msra.mxu0 0.0
    %2066 = vmatpush.msra.mxu0 0.0
    %2067 = vmatpush.msra.mxu0 0.0
    %2068 = vmatpush.msra.mxu0 0.0
    %2069 = vmatpush.msra.mxu0 0.0
    %2070 = vmatpush.msra.mxu0 %v2027
    %2071 = vmatmul.f32.gmra.mxu0 %v2021
    %v2072 = vpop.f32.mrf.mxu0
    %v2073 = vadd.f32 0.0, %v2072
    %2074 = vdwg.mxu0
    %2075 = vmatpush.msra.mxu0 0.0
    %2076 = vmatpush.msra.mxu0 0.0
    %2077 = vmatpush.msra.mxu0 0.0
    %2078 = vmatpush.msra.mxu0 0.0
    %2079 = vmatpush.msra.mxu0 0.0
    %2080 = vmatpush.msra.mxu0 0.0
    %2081 = vmatpush.msra.mxu0 0.0
    %2082 = vmatpush.msra.mxu0 0.0
    %2083 = vmatpush.msra.mxu0 0.0
    %2084 = vmatpush.msra.mxu0 0.0
    %2085 = vmatpush.msra.mxu0 0.0
    %2086 = vmatpush.msra.mxu0 0.0
    %2087 = vmatpush.msra.mxu0 0.0
    %2088 = vmatpush.msra.mxu0 0.0
    %2089 = vmatpush.msra.mxu0 0.0
    %2090 = vmatpush.msra.mxu0 %v2030
    %2091 = vmatmul.f32.gmra.mxu0 %v2021
    %v2092 = vpop.f32.mrf.mxu0
    %v2093 = vadd.f32 0.0, %v2092
    %2094 = vdwg.mxu0
    %2095 = vmatpush.msra.mxu0 0.0
    %2096 = vmatpush.msra.mxu0 0.0
    %2097 = vmatpush.msra.mxu0 0.0
    %2098 = vmatpush.msra.mxu0 0.0
    %2099 = vmatpush.msra.mxu0 0.0
    %2100 = vmatpush.msra.mxu0 0.0
    %2101 = vmatpush.msra.mxu0 0.0
    %2102 = vmatpush.msra.mxu0 0.0
    %2103 = vmatpush.msra.mxu0 0.0
    %2104 = vmatpush.msra.mxu0 0.0
    %2105 = vmatpush.msra.mxu0 0.0
    %2106 = vmatpush.msra.mxu0 0.0
    %2107 = vmatpush.msra.mxu0 0.0
    %2108 = vmatpush.msra.mxu0 0.0
    %2109 = vmatpush.msra.mxu0 0.0
    %2110 = vmatpush.msra.mxu0 %v2033
    %2111 = vmatmul.f32.gmra.mxu0 %v2021
    %v2112 = vpop.f32.mrf.mxu0
    %v2113 = vadd.f32 0.0, %v2112
    %2114 = vdwg.mxu0
    %v2115 = vadd.f32 %v1975, %v2053
    %v2116 = vadd.f32 %v1976, %v2073
    %v2117 = vadd.f32 %v1977, %v2093
    %v2118 = vadd.f32 %v1978, %v2113
    %2119 = vst [vmem:[#allocation1] ss:$2 sm:$0xff] %v57
    %s2120 = scalar_lea.vmem [#allocation1], 16
    %2121 = vst [vmem:[%s2120] ss:$2 sm:$0xff] %v58
    %v2122 = vld.sshfl [vmem:[#allocation1] sm:$0xff pattern:$0x75316420]
    %v2123 = vld.sshfl [vmem:[#allocation1 + $0x8] sm:$0xff pattern:$0x75316420]
    %v2124 = vld.sshfl [vmem:[#allocation1 + $0x10] sm:$0xff pattern:$0x75316420]
    %v2125 = vld.sshfl [vmem:[#allocation1 + $0x18] sm:$0xff pattern:$0x75316420]
    %2130 = vrot.lane.b32.xlu0 %v2122, 121
    %v2131 = vpop.permute.xlu0 %2130
    %2132 = vrot.lane.b32.xlu0 %v2123, 121
    %v2133 = vpop.permute.xlu0 %2132
    %2134 = vrot.lane.b32.xlu0 %v2124, 121
    %v2135 = vpop.permute.xlu0 %2134
    %2136 = vrot.lane.b32.xlu0 %v2125, 121
    %v2137 = vpop.permute.xlu0 %2136
    %vm2138 = vcmp.lt.s32.totalorder %v81, 121
    %v2139 = vsel %vm2138, %v2135, %v2137
    %v2140 = vsel %vm2138, %v2133, %v2135
    %v2141 = vsel %vm2138, %v2131, %v2133
    %v2142 = vsel %vm2138, %v2137, %v2131
    %s2143 = scalar_lea.vmem %s1, 60
    %v2144 = vld [vmem:[%s2143] sm:$0xf]
    %v2146 = vperm.slane %v2144, 0
    %v2147 = vperm.slane %v2144, 1
    %v2148 = vperm.slane %v2144, 2
    %v2149 = vperm.slane %v2144, 3
    %v2154 = vmul.f32 %v2141, %v2146
    %v2155 = vmul.f32 %v2140, %v2147
    %v2156 = vmul.f32 %v2139, %v2148
    %v2157 = vmul.f32 %v2142, %v2149
    %s2158 = scalar_lea.vmem %s2, 60
    %v2159 = vld [vmem:[%s2158] sm:$0xf]
    %v2161 = vsel %vm143, %v2159, 0
    %v2164 = vsel %vm147, %v2154, 0
    %v2167 = vsel %vm147, %v2155, 0
    %v2170 = vsel %vm147, %v2156, 0
    %v2173 = vsel %vm147, %v2157, 0
    %2175 = vmatpush.msra.mxu0 0.0
    %2176 = vmatpush.msra.mxu0 0.0
    %2177 = vmatpush.msra.mxu0 0.0
    %2178 = vmatpush.msra.mxu0 0.0
    %2179 = vmatpush.msra.mxu0 0.0
    %2180 = vmatpush.msra.mxu0 0.0
    %2181 = vmatpush.msra.mxu0 0.0
    %2182 = vmatpush.msra.mxu0 0.0
    %2183 = vmatpush.msra.mxu0 0.0
    %2184 = vmatpush.msra.mxu0 0.0
    %2185 = vmatpush.msra.mxu0 0.0
    %2186 = vmatpush.msra.mxu0 0.0
    %2187 = vmatpush.msra.mxu0 0.0
    %2188 = vmatpush.msra.mxu0 0.0
    %2189 = vmatpush.msra.mxu0 0.0
    %2190 = vmatpush.msra.mxu0 %v2164
    %2191 = vmatmul.f32.gmra.mxu0 %v2161
    %v2192 = vpop.f32.mrf.mxu0
    %v2193 = vadd.f32 0.0, %v2192
    %2194 = vdwg.mxu0
    %2195 = vmatpush.msra.mxu0 0.0
    %2196 = vmatpush.msra.mxu0 0.0
    %2197 = vmatpush.msra.mxu0 0.0
    %2198 = vmatpush.msra.mxu0 0.0
    %2199 = vmatpush.msra.mxu0 0.0
    %2200 = vmatpush.msra.mxu0 0.0
    %2201 = vmatpush.msra.mxu0 0.0
    %2202 = vmatpush.msra.mxu0 0.0
    %2203 = vmatpush.msra.mxu0 0.0
    %2204 = vmatpush.msra.mxu0 0.0
    %2205 = vmatpush.msra.mxu0 0.0
    %2206 = vmatpush.msra.mxu0 0.0
    %2207 = vmatpush.msra.mxu0 0.0
    %2208 = vmatpush.msra.mxu0 0.0
    %2209 = vmatpush.msra.mxu0 0.0
    %2210 = vmatpush.msra.mxu0 %v2167
    %2211 = vmatmul.f32.gmra.mxu0 %v2161
    %v2212 = vpop.f32.mrf.mxu0
    %v2213 = vadd.f32 0.0, %v2212
    %2214 = vdwg.mxu0
    %2215 = vmatpush.msra.mxu0 0.0
    %2216 = vmatpush.msra.mxu0 0.0
    %2217 = vmatpush.msra.mxu0 0.0
    %2218 = vmatpush.msra.mxu0 0.0
    %2219 = vmatpush.msra.mxu0 0.0
    %2220 = vmatpush.msra.mxu0 0.0
    %2221 = vmatpush.msra.mxu0 0.0
    %2222 = vmatpush.msra.mxu0 0.0
    %2223 = vmatpush.msra.mxu0 0.0
    %2224 = vmatpush.msra.mxu0 0.0
    %2225 = vmatpush.msra.mxu0 0.0
    %2226 = vmatpush.msra.mxu0 0.0
    %2227 = vmatpush.msra.mxu0 0.0
    %2228 = vmatpush.msra.mxu0 0.0
    %2229 = vmatpush.msra.mxu0 0.0
    %2230 = vmatpush.msra.mxu0 %v2170
    %2231 = vmatmul.f32.gmra.mxu0 %v2161
    %v2232 = vpop.f32.mrf.mxu0
    %v2233 = vadd.f32 0.0, %v2232
    %2234 = vdwg.mxu0
    %2235 = vmatpush.msra.mxu0 0.0
    %2236 = vmatpush.msra.mxu0 0.0
    %2237 = vmatpush.msra.mxu0 0.0
    %2238 = vmatpush.msra.mxu0 0.0
    %2239 = vmatpush.msra.mxu0 0.0
    %2240 = vmatpush.msra.mxu0 0.0
    %2241 = vmatpush.msra.mxu0 0.0
    %2242 = vmatpush.msra.mxu0 0.0
    %2243 = vmatpush.msra.mxu0 0.0
    %2244 = vmatpush.msra.mxu0 0.0
    %2245 = vmatpush.msra.mxu0 0.0
    %2246 = vmatpush.msra.mxu0 0.0
    %2247 = vmatpush.msra.mxu0 0.0
    %2248 = vmatpush.msra.mxu0 0.0
    %2249 = vmatpush.msra.mxu0 0.0
    %2250 = vmatpush.msra.mxu0 %v2173
    %2251 = vmatmul.f32.gmra.mxu0 %v2161
    %v2252 = vpop.f32.mrf.mxu0
    %v2253 = vadd.f32 0.0, %v2252
    %2254 = vdwg.mxu0
    %v2255 = vadd.f32 %v2115, %v2193
    %v2256 = vadd.f32 %v2116, %v2213
    %v2257 = vadd.f32 %v2117, %v2233
    %v2258 = vadd.f32 %v2118, %v2253
    %2259 = vst [vmem:[#allocation1] ss:$2 sm:$0xff] %v57
    %s2260 = scalar_lea.vmem [#allocation1], 16
    %2261 = vst [vmem:[%s2260] ss:$2 sm:$0xff] %v58
    %v2262 = vld.sshfl [vmem:[#allocation1] sm:$0xff pattern:$0x75316420]
    %v2263 = vld.sshfl [vmem:[#allocation1 + $0x8] sm:$0xff pattern:$0x75316420]
    %v2264 = vld.sshfl [vmem:[#allocation1 + $0x10] sm:$0xff pattern:$0x75316420]
    %v2265 = vld.sshfl [vmem:[#allocation1 + $0x18] sm:$0xff pattern:$0x75316420]
    %2270 = vrot.lane.b32.xlu0 %v2262, 120
    %v2271 = vpop.permute.xlu0 %2270
    %2272 = vrot.lane.b32.xlu0 %v2263, 120
    %v2273 = vpop.permute.xlu0 %2272
    %2274 = vrot.lane.b32.xlu0 %v2264, 120
    %v2275 = vpop.permute.xlu0 %2274
    %2276 = vrot.lane.b32.xlu0 %v2265, 120
    %v2277 = vpop.permute.xlu0 %2276
    %vm2278 = vcmp.lt.s32.totalorder %v81, 120
    %v2279 = vsel %vm2278, %v2275, %v2277
    %v2280 = vsel %vm2278, %v2273, %v2275
    %v2281 = vsel %vm2278, %v2271, %v2273
    %v2282 = vsel %vm2278, %v2277, %v2271
    %s2283 = scalar_lea.vmem %s1, 64
    %v2284 = vld [vmem:[%s2283] sm:$0xf]
    %v2286 = vperm.slane %v2284, 0
    %v2287 = vperm.slane %v2284, 1
    %v2288 = vperm.slane %v2284, 2
    %v2289 = vperm.slane %v2284, 3
    %v2294 = vmul.f32 %v2281, %v2286
    %v2295 = vmul.f32 %v2280, %v2287
    %v2296 = vmul.f32 %v2279, %v2288
    %v2297 = vmul.f32 %v2282, %v2289
    %s2298 = scalar_lea.vmem %s2, 64
    %v2299 = vld [vmem:[%s2298] sm:$0xf]
    %v2301 = vsel %vm143, %v2299, 0
    %v2304 = vsel %vm147, %v2294, 0
    %v2307 = vsel %vm147, %v2295, 0
    %v2310 = vsel %vm147, %v2296, 0
    %v2313 = vsel %vm147, %v2297, 0
    %2315 = vmatpush.msra.mxu0 0.0
    %2316 = vmatpush.msra.mxu0 0.0
    %2317 = vmatpush.msra.mxu0 0.0
    %2318 = vmatpush.msra.mxu0 0.0
    %2319 = vmatpush.msra.mxu0 0.0
    %2320 = vmatpush.msra.mxu0 0.0
    %2321 = vmatpush.msra.mxu0 0.0
    %2322 = vmatpush.msra.mxu0 0.0
    %2323 = vmatpush.msra.mxu0 0.0
    %2324 = vmatpush.msra.mxu0 0.0
    %2325 = vmatpush.msra.mxu0 0.0
    %2326 = vmatpush.msra.mxu0 0.0
    %2327 = vmatpush.msra.mxu0 0.0
    %2328 = vmatpush.msra.mxu0 0.0
    %2329 = vmatpush.msra.mxu0 0.0
    %2330 = vmatpush.msra.mxu0 %v2304
    %2331 = vmatmul.f32.gmra.mxu0 %v2301
    %v2332 = vpop.f32.mrf.mxu0
    %v2333 = vadd.f32 0.0, %v2332
    %2334 = vdwg.mxu0
    %2335 = vmatpush.msra.mxu0 0.0
    %2336 = vmatpush.msra.mxu0 0.0
    %2337 = vmatpush.msra.mxu0 0.0
    %2338 = vmatpush.msra.mxu0 0.0
    %2339 = vmatpush.msra.mxu0 0.0
    %2340 = vmatpush.msra.mxu0 0.0
    %2341 = vmatpush.msra.mxu0 0.0
    %2342 = vmatpush.msra.mxu0 0.0
    %2343 = vmatpush.msra.mxu0 0.0
    %2344 = vmatpush.msra.mxu0 0.0
    %2345 = vmatpush.msra.mxu0 0.0
    %2346 = vmatpush.msra.mxu0 0.0
    %2347 = vmatpush.msra.mxu0 0.0
    %2348 = vmatpush.msra.mxu0 0.0
    %2349 = vmatpush.msra.mxu0 0.0
    %2350 = vmatpush.msra.mxu0 %v2307
    %2351 = vmatmul.f32.gmra.mxu0 %v2301
    %v2352 = vpop.f32.mrf.mxu0
    %v2353 = vadd.f32 0.0, %v2352
    %2354 = vdwg.mxu0
    %2355 = vmatpush.msra.mxu0 0.0
    %2356 = vmatpush.msra.mxu0 0.0
    %2357 = vmatpush.msra.mxu0 0.0
    %2358 = vmatpush.msra.mxu0 0.0
    %2359 = vmatpush.msra.mxu0 0.0
    %2360 = vmatpush.msra.mxu0 0.0
    %2361 = vmatpush.msra.mxu0 0.0
    %2362 = vmatpush.msra.mxu0 0.0
    %2363 = vmatpush.msra.mxu0 0.0
    %2364 = vmatpush.msra.mxu0 0.0
    %2365 = vmatpush.msra.mxu0 0.0
    %2366 = vmatpush.msra.mxu0 0.0
    %2367 = vmatpush.msra.mxu0 0.0
    %2368 = vmatpush.msra.mxu0 0.0
    %2369 = vmatpush.msra.mxu0 0.0
    %2370 = vmatpush.msra.mxu0 %v2310
    %2371 = vmatmul.f32.gmra.mxu0 %v2301
    %v2372 = vpop.f32.mrf.mxu0
    %v2373 = vadd.f32 0.0, %v2372
    %2374 = vdwg.mxu0
    %2375 = vmatpush.msra.mxu0 0.0
    %2376 = vmatpush.msra.mxu0 0.0
    %2377 = vmatpush.msra.mxu0 0.0
    %2378 = vmatpush.msra.mxu0 0.0
    %2379 = vmatpush.msra.mxu0 0.0
    %2380 = vmatpush.msra.mxu0 0.0
    %2381 = vmatpush.msra.mxu0 0.0
    %2382 = vmatpush.msra.mxu0 0.0
    %2383 = vmatpush.msra.mxu0 0.0
    %2384 = vmatpush.msra.mxu0 0.0
    %2385 = vmatpush.msra.mxu0 0.0
    %2386 = vmatpush.msra.mxu0 0.0
    %2387 = vmatpush.msra.mxu0 0.0
    %2388 = vmatpush.msra.mxu0 0.0
    %2389 = vmatpush.msra.mxu0 0.0
    %2390 = vmatpush.msra.mxu0 %v2313
    %2391 = vmatmul.f32.gmra.mxu0 %v2301
    %v2392 = vpop.f32.mrf.mxu0
    %v2393 = vadd.f32 0.0, %v2392
    %2394 = vdwg.mxu0
    %v2395 = vadd.f32 %v2255, %v2333
    %v2396 = vadd.f32 %v2256, %v2353
    %v2397 = vadd.f32 %v2257, %v2373
    %v2398 = vadd.f32 %v2258, %v2393
    %2399 = vst [vmem:[#allocation1] ss:$2 sm:$0xff] %v57
    %s2400 = scalar_lea.vmem [#allocation1], 16
    %2401 = vst [vmem:[%s2400] ss:$2 sm:$0xff] %v58
    %v2402 = vld.sshfl [vmem:[#allocation1] sm:$0xff pattern:$0x75316420]
    %v2403 = vld.sshfl [vmem:[#allocation1 + $0x8] sm:$0xff pattern:$0x75316420]
    %v2404 = vld.sshfl [vmem:[#allocation1 + $0x10] sm:$0xff pattern:$0x75316420]
    %v2405 = vld.sshfl [vmem:[#allocation1 + $0x18] sm:$0xff pattern:$0x75316420]
    %2410 = vrot.lane.b32.xlu0 %v2402, 119
    %v2411 = vpop.permute.xlu0 %2410
    %2412 = vrot.lane.b32.xlu0 %v2403, 119
    %v2413 = vpop.permute.xlu0 %2412
    %2414 = vrot.lane.b32.xlu0 %v2404, 119
    %v2415 = vpop.permute.xlu0 %2414
    %2416 = vrot.lane.b32.xlu0 %v2405, 119
    %v2417 = vpop.permute.xlu0 %2416
    %vm2418 = vcmp.lt.s32.totalorder %v81, 119
    %v2419 = vsel %vm2418, %v2415, %v2417
    %v2420 = vsel %vm2418, %v2413, %v2415
    %v2421 = vsel %vm2418, %v2411, %v2413
    %v2422 = vsel %vm2418, %v2417, %v2411
    %s2423 = scalar_lea.vmem %s1, 68
    %v2424 = vld [vmem:[%s2423] sm:$0xf]
    %v2426 = vperm.slane %v2424, 0
    %v2427 = vperm.slane %v2424, 1
    %v2428 = vperm.slane %v2424, 2
    %v2429 = vperm.slane %v2424, 3
    %v2434 = vmul.f32 %v2421, %v2426
    %v2435 = vmul.f32 %v2420, %v2427
    %v2436 = vmul.f32 %v2419, %v2428
    %v2437 = vmul.f32 %v2422, %v2429
    %s2438 = scalar_lea.vmem %s2, 68
    %v2439 = vld [vmem:[%s2438] sm:$0xf]
    %v2441 = vsel %vm143, %v2439, 0
    %v2444 = vsel %vm147, %v2434, 0
    %v2447 = vsel %vm147, %v2435, 0
    %v2450 = vsel %vm147, %v2436, 0
    %v2453 = vsel %vm147, %v2437, 0
    %2455 = vmatpush.msra.mxu0 0.0
    %2456 = vmatpush.msra.mxu0 0.0
    %2457 = vmatpush.msra.mxu0 0.0
    %2458 = vmatpush.msra.mxu0 0.0
    %2459 = vmatpush.msra.mxu0 0.0
    %2460 = vmatpush.msra.mxu0 0.0
    %2461 = vmatpush.msra.mxu0 0.0
    %2462 = vmatpush.msra.mxu0 0.0
    %2463 = vmatpush.msra.mxu0 0.0
    %2464 = vmatpush.msra.mxu0 0.0
    %2465 = vmatpush.msra.mxu0 0.0
    %2466 = vmatpush.msra.mxu0 0.0
    %2467 = vmatpush.msra.mxu0 0.0
    %2468 = vmatpush.msra.mxu0 0.0
    %2469 = vmatpush.msra.mxu0 0.0
    %2470 = vmatpush.msra.mxu0 %v2444
    %2471 = vmatmul.f32.gmra.mxu0 %v2441
    %v2472 = vpop.f32.mrf.mxu0
    %v2473 = vadd.f32 0.0, %v2472
    %2474 = vdwg.mxu0
    %2475 = vmatpush.msra.mxu0 0.0
    %2476 = vmatpush.msra.mxu0 0.0
    %2477 = vmatpush.msra.mxu0 0.0
    %2478 = vmatpush.msra.mxu0 0.0
    %2479 = vmatpush.msra.mxu0 0.0
    %2480 = vmatpush.msra.mxu0 0.0
    %2481 = vmatpush.msra.mxu0 0.0
    %2482 = vmatpush.msra.mxu0 0.0
    %2483 = vmatpush.msra.mxu0 0.0
    %2484 = vmatpush.msra.mxu0 0.0
    %2485 = vmatpush.msra.mxu0 0.0
    %2486 = vmatpush.msra.mxu0 0.0
    %2487 = vmatpush.msra.mxu0 0.0
    %2488 = vmatpush.msra.mxu0 0.0
    %2489 = vmatpush.msra.mxu0 0.0
    %2490 = vmatpush.msra.mxu0 %v2447
    %2491 = vmatmul.f32.gmra.mxu0 %v2441
    %v2492 = vpop.f32.mrf.mxu0
    %v2493 = vadd.f32 0.0, %v2492
    %2494 = vdwg.mxu0
    %2495 = vmatpush.msra.mxu0 0.0
    %2496 = vmatpush.msra.mxu0 0.0
    %2497 = vmatpush.msra.mxu0 0.0
    %2498 = vmatpush.msra.mxu0 0.0
    %2499 = vmatpush.msra.mxu0 0.0
    %2500 = vmatpush.msra.mxu0 0.0
    %2501 = vmatpush.msra.mxu0 0.0
    %2502 = vmatpush.msra.mxu0 0.0
    %2503 = vmatpush.msra.mxu0 0.0
    %2504 = vmatpush.msra.mxu0 0.0
    %2505 = vmatpush.msra.mxu0 0.0
    %2506 = vmatpush.msra.mxu0 0.0
    %2507 = vmatpush.msra.mxu0 0.0
    %2508 = vmatpush.msra.mxu0 0.0
    %2509 = vmatpush.msra.mxu0 0.0
    %2510 = vmatpush.msra.mxu0 %v2450
    %2511 = vmatmul.f32.gmra.mxu0 %v2441
    %v2512 = vpop.f32.mrf.mxu0
    %v2513 = vadd.f32 0.0, %v2512
    %2514 = vdwg.mxu0
    %2515 = vmatpush.msra.mxu0 0.0
    %2516 = vmatpush.msra.mxu0 0.0
    %2517 = vmatpush.msra.mxu0 0.0
    %2518 = vmatpush.msra.mxu0 0.0
    %2519 = vmatpush.msra.mxu0 0.0
    %2520 = vmatpush.msra.mxu0 0.0
    %2521 = vmatpush.msra.mxu0 0.0
    %2522 = vmatpush.msra.mxu0 0.0
    %2523 = vmatpush.msra.mxu0 0.0
    %2524 = vmatpush.msra.mxu0 0.0
    %2525 = vmatpush.msra.mxu0 0.0
    %2526 = vmatpush.msra.mxu0 0.0
    %2527 = vmatpush.msra.mxu0 0.0
    %2528 = vmatpush.msra.mxu0 0.0
    %2529 = vmatpush.msra.mxu0 0.0
    %2530 = vmatpush.msra.mxu0 %v2453
    %2531 = vmatmul.f32.gmra.mxu0 %v2441
    %v2532 = vpop.f32.mrf.mxu0
    %v2533 = vadd.f32 0.0, %v2532
    %2534 = vdwg.mxu0
    %v2535 = vadd.f32 %v2395, %v2473
    %v2536 = vadd.f32 %v2396, %v2493
    %v2537 = vadd.f32 %v2397, %v2513
    %v2538 = vadd.f32 %v2398, %v2533
    %2539 = vst [vmem:[#allocation1] ss:$2 sm:$0xff] %v57
    %s2540 = scalar_lea.vmem [#allocation1], 16
    %2541 = vst [vmem:[%s2540] ss:$2 sm:$0xff] %v58
    %v2542 = vld.sshfl [vmem:[#allocation1] sm:$0xff pattern:$0x75316420]
    %v2543 = vld.sshfl [vmem:[#allocation1 + $0x8] sm:$0xff pattern:$0x75316420]
    %v2544 = vld.sshfl [vmem:[#allocation1 + $0x10] sm:$0xff pattern:$0x75316420]
    %v2545 = vld.sshfl [vmem:[#allocation1 + $0x18] sm:$0xff pattern:$0x75316420]
    %2550 = vrot.lane.b32.xlu0 %v2542, 73
    %v2551 = vpop.permute.xlu0 %2550
    %2552 = vrot.lane.b32.xlu0 %v2543, 73
    %v2553 = vpop.permute.xlu0 %2552
    %2554 = vrot.lane.b32.xlu0 %v2544, 73
    %v2555 = vpop.permute.xlu0 %2554
    %2556 = vrot.lane.b32.xlu0 %v2545, 73
    %v2557 = vpop.permute.xlu0 %2556
    %v2558 = vsel %vm82, %v2555, %v2557
    %v2559 = vsel %vm82, %v2553, %v2555
    %v2560 = vsel %vm82, %v2551, %v2553
    %v2561 = vsel %vm82, %v2557, %v2551
    %s2562 = scalar_lea.vmem %s1, 72
    %v2563 = vld [vmem:[%s2562] sm:$0xf]
    %v2565 = vperm.slane %v2563, 0
    %v2566 = vperm.slane %v2563, 1
    %v2567 = vperm.slane %v2563, 2
    %v2568 = vperm.slane %v2563, 3
    %v2573 = vmul.f32 %v2560, %v2565
    %v2574 = vmul.f32 %v2559, %v2566
    %v2575 = vmul.f32 %v2558, %v2567
    %v2576 = vmul.f32 %v2561, %v2568
    %s2577 = scalar_lea.vmem %s2, 72
    %v2578 = vld [vmem:[%s2577] sm:$0xf]
    %v2580 = vsel %vm143, %v2578, 0
    %v2583 = vsel %vm147, %v2573, 0
    %v2586 = vsel %vm147, %v2574, 0
    %v2589 = vsel %vm147, %v2575, 0
    %v2592 = vsel %vm147, %v2576, 0
    %2594 = vmatpush.msra.mxu0 0.0
    %2595 = vmatpush.msra.mxu0 0.0
    %2596 = vmatpush.msra.mxu0 0.0
    %2597 = vmatpush.msra.mxu0 0.0
    %2598 = vmatpush.msra.mxu0 0.0
    %2599 = vmatpush.msra.mxu0 0.0
    %2600 = vmatpush.msra.mxu0 0.0
    %2601 = vmatpush.msra.mxu0 0.0
    %2602 = vmatpush.msra.mxu0 0.0
    %2603 = vmatpush.msra.mxu0 0.0
    %2604 = vmatpush.msra.mxu0 0.0
    %2605 = vmatpush.msra.mxu0 0.0
    %2606 = vmatpush.msra.mxu0 0.0
    %2607 = vmatpush.msra.mxu0 0.0
    %2608 = vmatpush.msra.mxu0 0.0
    %2609 = vmatpush.msra.mxu0 %v2583
    %2610 = vmatmul.f32.gmra.mxu0 %v2580
    %v2611 = vpop.f32.mrf.mxu0
    %v2612 = vadd.f32 0.0, %v2611
    %2613 = vdwg.mxu0
    %2614 = vmatpush.msra.mxu0 0.0
    %2615 = vmatpush.msra.mxu0 0.0
    %2616 = vmatpush.msra.mxu0 0.0
    %2617 = vmatpush.msra.mxu0 0.0
    %2618 = vmatpush.msra.mxu0 0.0
    %2619 = vmatpush.msra.mxu0 0.0
    %2620 = vmatpush.msra.mxu0 0.0
    %2621 = vmatpush.msra.mxu0 0.0
    %2622 = vmatpush.msra.mxu0 0.0
    %2623 = vmatpush.msra.mxu0 0.0
    %2624 = vmatpush.msra.mxu0 0.0
    %2625 = vmatpush.msra.mxu0 0.0
    %2626 = vmatpush.msra.mxu0 0.0
    %2627 = vmatpush.msra.mxu0 0.0
    %2628 = vmatpush.msra.mxu0 0.0
    %2629 = vmatpush.msra.mxu0 %v2586
    %2630 = vmatmul.f32.gmra.mxu0 %v2580
    %v2631 = vpop.f32.mrf.mxu0
    %v2632 = vadd.f32 0.0, %v2631
    %2633 = vdwg.mxu0
    %2634 = vmatpush.msra.mxu0 0.0
    %2635 = vmatpush.msra.mxu0 0.0
    %2636 = vmatpush.msra.mxu0 0.0
    %2637 = vmatpush.msra.mxu0 0.0
    %2638 = vmatpush.msra.mxu0 0.0
    %2639 = vmatpush.msra.mxu0 0.0
    %2640 = vmatpush.msra.mxu0 0.0
    %2641 = vmatpush.msra.mxu0 0.0
    %2642 = vmatpush.msra.mxu0 0.0
    %2643 = vmatpush.msra.mxu0 0.0
    %2644 = vmatpush.msra.mxu0 0.0
    %2645 = vmatpush.msra.mxu0 0.0
    %2646 = vmatpush.msra.mxu0 0.0
    %2647 = vmatpush.msra.mxu0 0.0
    %2648 = vmatpush.msra.mxu0 0.0
    %2649 = vmatpush.msra.mxu0 %v2589
    %2650 = vmatmul.f32.gmra.mxu0 %v2580
    %v2651 = vpop.f32.mrf.mxu0
    %v2652 = vadd.f32 0.0, %v2651
    %2653 = vdwg.mxu0
    %2654 = vmatpush.msra.mxu0 0.0
    %2655 = vmatpush.msra.mxu0 0.0
    %2656 = vmatpush.msra.mxu0 0.0
    %2657 = vmatpush.msra.mxu0 0.0
    %2658 = vmatpush.msra.mxu0 0.0
    %2659 = vmatpush.msra.mxu0 0.0
    %2660 = vmatpush.msra.mxu0 0.0
    %2661 = vmatpush.msra.mxu0 0.0
    %2662 = vmatpush.msra.mxu0 0.0
    %2663 = vmatpush.msra.mxu0 0.0
    %2664 = vmatpush.msra.mxu0 0.0
    %2665 = vmatpush.msra.mxu0 0.0
    %2666 = vmatpush.msra.mxu0 0.0
    %2667 = vmatpush.msra.mxu0 0.0
    %2668 = vmatpush.msra.mxu0 0.0
    %2669 = vmatpush.msra.mxu0 %v2592
    %2670 = vmatmul.f32.gmra.mxu0 %v2580
    %v2671 = vpop.f32.mrf.mxu0
    %v2672 = vadd.f32 0.0, %v2671
    %2673 = vdwg.mxu0
    %v2674 = vadd.f32 %v2535, %v2612
    %v2675 = vadd.f32 %v2536, %v2632
    %v2676 = vadd.f32 %v2537, %v2652
    %v2677 = vadd.f32 %v2538, %v2672
    %2678 = vst [vmem:[#allocation1] ss:$2 sm:$0xff] %v57
    %s2679 = scalar_lea.vmem [#allocation1], 16
    %2680 = vst [vmem:[%s2679] ss:$2 sm:$0xff] %v58
    %v2681 = vld.sshfl [vmem:[#allocation1] sm:$0xff pattern:$0x75316420]
    %v2682 = vld.sshfl [vmem:[#allocation1 + $0x8] sm:$0xff pattern:$0x75316420]
    %v2683 = vld.sshfl [vmem:[#allocation1 + $0x10] sm:$0xff pattern:$0x75316420]
    %v2684 = vld.sshfl [vmem:[#allocation1 + $0x18] sm:$0xff pattern:$0x75316420]
    %2689 = vrot.lane.b32.xlu0 %v2681, 72
    %v2690 = vpop.permute.xlu0 %2689
    %2691 = vrot.lane.b32.xlu0 %v2682, 72
    %v2692 = vpop.permute.xlu0 %2691
    %2693 = vrot.lane.b32.xlu0 %v2683, 72
    %v2694 = vpop.permute.xlu0 %2693
    %2695 = vrot.lane.b32.xlu0 %v2684, 72
    %v2696 = vpop.permute.xlu0 %2695
    %v2697 = vsel %vm121, %v2694, %v2696
    %v2698 = vsel %vm121, %v2692, %v2694
    %v2699 = vsel %vm121, %v2690, %v2692
    %v2700 = vsel %vm121, %v2696, %v2690
    %s2701 = scalar_lea.vmem %s1, 76
    %v2702 = vld [vmem:[%s2701] sm:$0xf]
    %v2704 = vperm.slane %v2702, 0
    %v2705 = vperm.slane %v2702, 1
    %v2706 = vperm.slane %v2702, 2
    %v2707 = vperm.slane %v2702, 3
    %v2712 = vmul.f32 %v2699, %v2704
    %v2713 = vmul.f32 %v2698, %v2705
    %v2714 = vmul.f32 %v2697, %v2706
    %v2715 = vmul.f32 %v2700, %v2707
    %s2716 = scalar_lea.vmem %s2, 76
    %v2717 = vld [vmem:[%s2716] sm:$0xf]
    %v2719 = vsel %vm143, %v2717, 0
    %v2722 = vsel %vm147, %v2712, 0
    %v2725 = vsel %vm147, %v2713, 0
    %v2728 = vsel %vm147, %v2714, 0
    %v2731 = vsel %vm147, %v2715, 0
    %2733 = vmatpush.msra.mxu0 0.0
    %2734 = vmatpush.msra.mxu0 0.0
    %2735 = vmatpush.msra.mxu0 0.0
    %2736 = vmatpush.msra.mxu0 0.0
    %2737 = vmatpush.msra.mxu0 0.0
    %2738 = vmatpush.msra.mxu0 0.0
    %2739 = vmatpush.msra.mxu0 0.0
    %2740 = vmatpush.msra.mxu0 0.0
    %2741 = vmatpush.msra.mxu0 0.0
    %2742 = vmatpush.msra.mxu0 0.0
    %2743 = vmatpush.msra.mxu0 0.0
    %2744 = vmatpush.msra.mxu0 0.0
    %2745 = vmatpush.msra.mxu0 0.0
    %2746 = vmatpush.msra.mxu0 0.0
    %2747 = vmatpush.msra.mxu0 0.0
    %2748 = vmatpush.msra.mxu0 %v2722
    %2749 = vmatmul.f32.gmra.mxu0 %v2719
    %v2750 = vpop.f32.mrf.mxu0
    %v2751 = vadd.f32 0.0, %v2750
    %2752 = vdwg.mxu0
    %2753 = vmatpush.msra.mxu0 0.0
    %2754 = vmatpush.msra.mxu0 0.0
    %2755 = vmatpush.msra.mxu0 0.0
    %2756 = vmatpush.msra.mxu0 0.0
    %2757 = vmatpush.msra.mxu0 0.0
    %2758 = vmatpush.msra.mxu0 0.0
    %2759 = vmatpush.msra.mxu0 0.0
    %2760 = vmatpush.msra.mxu0 0.0
    %2761 = vmatpush.msra.mxu0 0.0
    %2762 = vmatpush.msra.mxu0 0.0
    %2763 = vmatpush.msra.mxu0 0.0
    %2764 = vmatpush.msra.mxu0 0.0
    %2765 = vmatpush.msra.mxu0 0.0
    %2766 = vmatpush.msra.mxu0 0.0
    %2767 = vmatpush.msra.mxu0 0.0
    %2768 = vmatpush.msra.mxu0 %v2725
    %2769 = vmatmul.f32.gmra.mxu0 %v2719
    %v2770 = vpop.f32.mrf.mxu0
    %v2771 = vadd.f32 0.0, %v2770
    %2772 = vdwg.mxu0
    %2773 = vmatpush.msra.mxu0 0.0
    %2774 = vmatpush.msra.mxu0 0.0
    %2775 = vmatpush.msra.mxu0 0.0
    %2776 = vmatpush.msra.mxu0 0.0
    %2777 = vmatpush.msra.mxu0 0.0
    %2778 = vmatpush.msra.mxu0 0.0
    %2779 = vmatpush.msra.mxu0 0.0
    %2780 = vmatpush.msra.mxu0 0.0
    %2781 = vmatpush.msra.mxu0 0.0
    %2782 = vmatpush.msra.mxu0 0.0
    %2783 = vmatpush.msra.mxu0 0.0
    %2784 = vmatpush.msra.mxu0 0.0
    %2785 = vmatpush.msra.mxu0 0.0
    %2786 = vmatpush.msra.mxu0 0.0
    %2787 = vmatpush.msra.mxu0 0.0
    %2788 = vmatpush.msra.mxu0 %v2728
    %2789 = vmatmul.f32.gmra.mxu0 %v2719
    %v2790 = vpop.f32.mrf.mxu0
    %v2791 = vadd.f32 0.0, %v2790
    %2792 = vdwg.mxu0
    %2793 = vmatpush.msra.mxu0 0.0
    %2794 = vmatpush.msra.mxu0 0.0
    %2795 = vmatpush.msra.mxu0 0.0
    %2796 = vmatpush.msra.mxu0 0.0
    %2797 = vmatpush.msra.mxu0 0.0
    %2798 = vmatpush.msra.mxu0 0.0
    %2799 = vmatpush.msra.mxu0 0.0
    %2800 = vmatpush.msra.mxu0 0.0
    %2801 = vmatpush.msra.mxu0 0.0
    %2802 = vmatpush.msra.mxu0 0.0
    %2803 = vmatpush.msra.mxu0 0.0
    %2804 = vmatpush.msra.mxu0 0.0
    %2805 = vmatpush.msra.mxu0 0.0
    %2806 = vmatpush.msra.mxu0 0.0
    %2807 = vmatpush.msra.mxu0 0.0
    %2808 = vmatpush.msra.mxu0 %v2731
    %2809 = vmatmul.f32.gmra.mxu0 %v2719
    %v2810 = vpop.f32.mrf.mxu0
    %v2811 = vadd.f32 0.0, %v2810
    %2812 = vdwg.mxu0
    %v2813 = vadd.f32 %v2674, %v2751
    %v2814 = vadd.f32 %v2675, %v2771
    %v2815 = vadd.f32 %v2676, %v2791
    %v2816 = vadd.f32 %v2677, %v2811
    %2817 = vst [vmem:[#allocation1] ss:$2 sm:$0xff] %v57
    %s2818 = scalar_lea.vmem [#allocation1], 16
    %2819 = vst [vmem:[%s2818] ss:$2 sm:$0xff] %v58
    %v2820 = vld.sshfl [vmem:[#allocation1] sm:$0xff pattern:$0x75316420]
    %v2821 = vld.sshfl [vmem:[#allocation1 + $0x8] sm:$0xff pattern:$0x75316420]
    %v2822 = vld.sshfl [vmem:[#allocation1 + $0x10] sm:$0xff pattern:$0x75316420]
    %v2823 = vld.sshfl [vmem:[#allocation1 + $0x18] sm:$0xff pattern:$0x75316420]
    %2828 = vrot.lane.b32.xlu0 %v2820, 71
    %v2829 = vpop.permute.xlu0 %2828
    %2830 = vrot.lane.b32.xlu0 %v2821, 71
    %v2831 = vpop.permute.xlu0 %2830
    %2832 = vrot.lane.b32.xlu0 %v2822, 71
    %v2833 = vpop.permute.xlu0 %2832
    %2834 = vrot.lane.b32.xlu0 %v2823, 71
    %v2835 = vpop.permute.xlu0 %2834
    %v2836 = vsel %vm354, %v2833, %v2835
    %v2837 = vsel %vm354, %v2831, %v2833
    %v2838 = vsel %vm354, %v2829, %v2831
    %v2839 = vsel %vm354, %v2835, %v2829
    %s2840 = scalar_lea.vmem %s1, 80
    %v2841 = vld [vmem:[%s2840] sm:$0xf]
    %v2843 = vperm.slane %v2841, 0
    %v2844 = vperm.slane %v2841, 1
    %v2845 = vperm.slane %v2841, 2
    %v2846 = vperm.slane %v2841, 3
    %v2851 = vmul.f32 %v2838, %v2843
    %v2852 = vmul.f32 %v2837, %v2844
    %v2853 = vmul.f32 %v2836, %v2845
    %v2854 = vmul.f32 %v2839, %v2846
    %s2855 = scalar_lea.vmem %s2, 80
    %v2856 = vld [vmem:[%s2855] sm:$0xf]
    %v2858 = vsel %vm143, %v2856, 0
    %v2861 = vsel %vm147, %v2851, 0
    %v2864 = vsel %vm147, %v2852, 0
    %v2867 = vsel %vm147, %v2853, 0
    %v2870 = vsel %vm147, %v2854, 0
    %2872 = vmatpush.msra.mxu0 0.0
    %2873 = vmatpush.msra.mxu0 0.0
    %2874 = vmatpush.msra.mxu0 0.0
    %2875 = vmatpush.msra.mxu0 0.0
    %2876 = vmatpush.msra.mxu0 0.0
    %2877 = vmatpush.msra.mxu0 0.0
    %2878 = vmatpush.msra.mxu0 0.0
    %2879 = vmatpush.msra.mxu0 0.0
    %2880 = vmatpush.msra.mxu0 0.0
    %2881 = vmatpush.msra.mxu0 0.0
    %2882 = vmatpush.msra.mxu0 0.0
    %2883 = vmatpush.msra.mxu0 0.0
    %2884 = vmatpush.msra.mxu0 0.0
    %2885 = vmatpush.msra.mxu0 0.0
    %2886 = vmatpush.msra.mxu0 0.0
    %2887 = vmatpush.msra.mxu0 %v2861
    %2888 = vmatmul.f32.gmra.mxu0 %v2858
    %v2889 = vpop.f32.mrf.mxu0
    %v2890 = vadd.f32 0.0, %v2889
    %2891 = vdwg.mxu0
    %2892 = vmatpush.msra.mxu0 0.0
    %2893 = vmatpush.msra.mxu0 0.0
    %2894 = vmatpush.msra.mxu0 0.0
    %2895 = vmatpush.msra.mxu0 0.0
    %2896 = vmatpush.msra.mxu0 0.0
    %2897 = vmatpush.msra.mxu0 0.0
    %2898 = vmatpush.msra.mxu0 0.0
    %2899 = vmatpush.msra.mxu0 0.0
    %2900 = vmatpush.msra.mxu0 0.0
    %2901 = vmatpush.msra.mxu0 0.0
    %2902 = vmatpush.msra.mxu0 0.0
    %2903 = vmatpush.msra.mxu0 0.0
    %2904 = vmatpush.msra.mxu0 0.0
    %2905 = vmatpush.msra.mxu0 0.0
    %2906 = vmatpush.msra.mxu0 0.0
    %2907 = vmatpush.msra.mxu0 %v2864
    %2908 = vmatmul.f32.gmra.mxu0 %v2858
    %v2909 = vpop.f32.mrf.mxu0
    %v2910 = vadd.f32 0.0, %v2909
    %2911 = vdwg.mxu0
    %2912 = vmatpush.msra.mxu0 0.0
    %2913 = vmatpush.msra.mxu0 0.0
    %2914 = vmatpush.msra.mxu0 0.0
    %2915 = vmatpush.msra.mxu0 0.0
    %2916 = vmatpush.msra.mxu0 0.0
    %2917 = vmatpush.msra.mxu0 0.0
    %2918 = vmatpush.msra.mxu0 0.0
    %2919 = vmatpush.msra.mxu0 0.0
    %2920 = vmatpush.msra.mxu0 0.0
    %2921 = vmatpush.msra.mxu0 0.0
    %2922 = vmatpush.msra.mxu0 0.0
    %2923 = vmatpush.msra.mxu0 0.0
    %2924 = vmatpush.msra.mxu0 0.0
    %2925 = vmatpush.msra.mxu0 0.0
    %2926 = vmatpush.msra.mxu0 0.0
    %2927 = vmatpush.msra.mxu0 %v2867
    %2928 = vmatmul.f32.gmra.mxu0 %v2858
    %v2929 = vpop.f32.mrf.mxu0
    %v2930 = vadd.f32 0.0, %v2929
    %2931 = vdwg.mxu0
    %2932 = vmatpush.msra.mxu0 0.0
    %2933 = vmatpush.msra.mxu0 0.0
    %2934 = vmatpush.msra.mxu0 0.0
    %2935 = vmatpush.msra.mxu0 0.0
    %2936 = vmatpush.msra.mxu0 0.0
    %2937 = vmatpush.msra.mxu0 0.0
    %2938 = vmatpush.msra.mxu0 0.0
    %2939 = vmatpush.msra.mxu0 0.0
    %2940 = vmatpush.msra.mxu0 0.0
    %2941 = vmatpush.msra.mxu0 0.0
    %2942 = vmatpush.msra.mxu0 0.0
    %2943 = vmatpush.msra.mxu0 0.0
    %2944 = vmatpush.msra.mxu0 0.0
    %2945 = vmatpush.msra.mxu0 0.0
    %2946 = vmatpush.msra.mxu0 0.0
    %2947 = vmatpush.msra.mxu0 %v2870
    %2948 = vmatmul.f32.gmra.mxu0 %v2858
    %v2949 = vpop.f32.mrf.mxu0
    %v2950 = vadd.f32 0.0, %v2949
    %2951 = vdwg.mxu0
    %v2952 = vadd.f32 %v2813, %v2890
    %v2953 = vadd.f32 %v2814, %v2910
    %v2954 = vadd.f32 %v2815, %v2930
    %v2955 = vadd.f32 %v2816, %v2950
    %2956 = vst [vmem:[#allocation1] ss:$2 sm:$0xff] %v57
    %s2957 = scalar_lea.vmem [#allocation1], 16
    %2958 = vst [vmem:[%s2957] ss:$2 sm:$0xff] %v58
    %v2959 = vld.sshfl [vmem:[#allocation1] sm:$0xff pattern:$0x75316420]
    %v2960 = vld.sshfl [vmem:[#allocation1 + $0x8] sm:$0xff pattern:$0x75316420]
    %v2961 = vld.sshfl [vmem:[#allocation1 + $0x10] sm:$0xff pattern:$0x75316420]
    %v2962 = vld.sshfl [vmem:[#allocation1 + $0x18] sm:$0xff pattern:$0x75316420]
    %2967 = vrot.lane.b32.xlu0 %v2959, 65
    %v2968 = vpop.permute.xlu0 %2967
    %2969 = vrot.lane.b32.xlu0 %v2960, 65
    %v2970 = vpop.permute.xlu0 %2969
    %2971 = vrot.lane.b32.xlu0 %v2961, 65
    %v2972 = vpop.permute.xlu0 %2971
    %2973 = vrot.lane.b32.xlu0 %v2962, 65
    %v2974 = vpop.permute.xlu0 %2973
    %v2975 = vsel %vm494, %v2972, %v2974
    %v2976 = vsel %vm494, %v2970, %v2972
    %v2977 = vsel %vm494, %v2968, %v2970
    %v2978 = vsel %vm494, %v2974, %v2968
    %s2979 = scalar_lea.vmem %s1, 84
    %v2980 = vld [vmem:[%s2979] sm:$0xf]
    %v2982 = vperm.slane %v2980, 0
    %v2983 = vperm.slane %v2980, 1
    %v2984 = vperm.slane %v2980, 2
    %v2985 = vperm.slane %v2980, 3
    %v2990 = vmul.f32 %v2977, %v2982
    %v2991 = vmul.f32 %v2976, %v2983
    %v2992 = vmul.f32 %v2975, %v2984
    %v2993 = vmul.f32 %v2978, %v2985
    %s2994 = scalar_lea.vmem %s2, 84
    %v2995 = vld [vmem:[%s2994] sm:$0xf]
    %v2997 = vsel %vm143, %v2995, 0
    %v3000 = vsel %vm147, %v2990, 0
    %v3003 = vsel %vm147, %v2991, 0
    %v3006 = vsel %vm147, %v2992, 0
    %v3009 = vsel %vm147, %v2993, 0
    %3011 = vmatpush.msra.mxu0 0.0
    %3012 = vmatpush.msra.mxu0 0.0
    %3013 = vmatpush.msra.mxu0 0.0
    %3014 = vmatpush.msra.mxu0 0.0
    %3015 = vmatpush.msra.mxu0 0.0
    %3016 = vmatpush.msra.mxu0 0.0
    %3017 = vmatpush.msra.mxu0 0.0
    %3018 = vmatpush.msra.mxu0 0.0
    %3019 = vmatpush.msra.mxu0 0.0
    %3020 = vmatpush.msra.mxu0 0.0
    %3021 = vmatpush.msra.mxu0 0.0
    %3022 = vmatpush.msra.mxu0 0.0
    %3023 = vmatpush.msra.mxu0 0.0
    %3024 = vmatpush.msra.mxu0 0.0
    %3025 = vmatpush.msra.mxu0 0.0
    %3026 = vmatpush.msra.mxu0 %v3000
    %3027 = vmatmul.f32.gmra.mxu0 %v2997
    %v3028 = vpop.f32.mrf.mxu0
    %v3029 = vadd.f32 0.0, %v3028
    %3030 = vdwg.mxu0
    %3031 = vmatpush.msra.mxu0 0.0
    %3032 = vmatpush.msra.mxu0 0.0
    %3033 = vmatpush.msra.mxu0 0.0
    %3034 = vmatpush.msra.mxu0 0.0
    %3035 = vmatpush.msra.mxu0 0.0
    %3036 = vmatpush.msra.mxu0 0.0
    %3037 = vmatpush.msra.mxu0 0.0
    %3038 = vmatpush.msra.mxu0 0.0
    %3039 = vmatpush.msra.mxu0 0.0
    %3040 = vmatpush.msra.mxu0 0.0
    %3041 = vmatpush.msra.mxu0 0.0
    %3042 = vmatpush.msra.mxu0 0.0
    %3043 = vmatpush.msra.mxu0 0.0
    %3044 = vmatpush.msra.mxu0 0.0
    %3045 = vmatpush.msra.mxu0 0.0
    %3046 = vmatpush.msra.mxu0 %v3003
    %3047 = vmatmul.f32.gmra.mxu0 %v2997
    %v3048 = vpop.f32.mrf.mxu0
    %v3049 = vadd.f32 0.0, %v3048
    %3050 = vdwg.mxu0
    %3051 = vmatpush.msra.mxu0 0.0
    %3052 = vmatpush.msra.mxu0 0.0
    %3053 = vmatpush.msra.mxu0 0.0
    %3054 = vmatpush.msra.mxu0 0.0
    %3055 = vmatpush.msra.mxu0 0.0
    %3056 = vmatpush.msra.mxu0 0.0
    %3057 = vmatpush.msra.mxu0 0.0
    %3058 = vmatpush.msra.mxu0 0.0
    %3059 = vmatpush.msra.mxu0 0.0
    %3060 = vmatpush.msra.mxu0 0.0
    %3061 = vmatpush.msra.mxu0 0.0
    %3062 = vmatpush.msra.mxu0 0.0
    %3063 = vmatpush.msra.mxu0 0.0
    %3064 = vmatpush.msra.mxu0 0.0
    %3065 = vmatpush.msra.mxu0 0.0
    %3066 = vmatpush.msra.mxu0 %v3006
    %3067 = vmatmul.f32.gmra.mxu0 %v2997
    %v3068 = vpop.f32.mrf.mxu0
    %v3069 = vadd.f32 0.0, %v3068
    %3070 = vdwg.mxu0
    %3071 = vmatpush.msra.mxu0 0.0
    %3072 = vmatpush.msra.mxu0 0.0
    %3073 = vmatpush.msra.mxu0 0.0
    %3074 = vmatpush.msra.mxu0 0.0
    %3075 = vmatpush.msra.mxu0 0.0
    %3076 = vmatpush.msra.mxu0 0.0
    %3077 = vmatpush.msra.mxu0 0.0
    %3078 = vmatpush.msra.mxu0 0.0
    %3079 = vmatpush.msra.mxu0 0.0
    %3080 = vmatpush.msra.mxu0 0.0
    %3081 = vmatpush.msra.mxu0 0.0
    %3082 = vmatpush.msra.mxu0 0.0
    %3083 = vmatpush.msra.mxu0 0.0
    %3084 = vmatpush.msra.mxu0 0.0
    %3085 = vmatpush.msra.mxu0 0.0
    %3086 = vmatpush.msra.mxu0 %v3009
    %3087 = vmatmul.f32.gmra.mxu0 %v2997
    %v3088 = vpop.f32.mrf.mxu0
    %v3089 = vadd.f32 0.0, %v3088
    %3090 = vdwg.mxu0
    %v3091 = vadd.f32 %v2952, %v3029
    %v3092 = vadd.f32 %v2953, %v3049
    %v3093 = vadd.f32 %v2954, %v3069
    %v3094 = vadd.f32 %v2955, %v3089
    %3095 = vst [vmem:[#allocation1] ss:$2 sm:$0xff] %v57
    %s3096 = scalar_lea.vmem [#allocation1], 16
    %3097 = vst [vmem:[%s3096] ss:$2 sm:$0xff] %v58
    %v3098 = vld.sshfl [vmem:[#allocation1] sm:$0xff pattern:$0x75316420]
    %v3099 = vld.sshfl [vmem:[#allocation1 + $0x8] sm:$0xff pattern:$0x75316420]
    %v3100 = vld.sshfl [vmem:[#allocation1 + $0x10] sm:$0xff pattern:$0x75316420]
    %v3101 = vld.sshfl [vmem:[#allocation1 + $0x18] sm:$0xff pattern:$0x75316420]
    %3106 = vrot.lane.b32.xlu0 %v3098, 64
    %v3107 = vpop.permute.xlu0 %3106
    %3108 = vrot.lane.b32.xlu0 %v3099, 64
    %v3109 = vpop.permute.xlu0 %3108
    %3110 = vrot.lane.b32.xlu0 %v3100, 64
    %v3111 = vpop.permute.xlu0 %3110
    %3112 = vrot.lane.b32.xlu0 %v3101, 64
    %v3113 = vpop.permute.xlu0 %3112
    %v3114 = vsel %vm634, %v3111, %v3113
    %v3115 = vsel %vm634, %v3109, %v3111
    %v3116 = vsel %vm634, %v3107, %v3109
    %v3117 = vsel %vm634, %v3113, %v3107
    %s3118 = scalar_lea.vmem %s1, 88
    %v3119 = vld [vmem:[%s3118] sm:$0xf]
    %v3121 = vperm.slane %v3119, 0
    %v3122 = vperm.slane %v3119, 1
    %v3123 = vperm.slane %v3119, 2
    %v3124 = vperm.slane %v3119, 3
    %v3129 = vmul.f32 %v3116, %v3121
    %v3130 = vmul.f32 %v3115, %v3122
    %v3131 = vmul.f32 %v3114, %v3123
    %v3132 = vmul.f32 %v3117, %v3124
    %s3133 = scalar_lea.vmem %s2, 88
    %v3134 = vld [vmem:[%s3133] sm:$0xf]
    %v3136 = vsel %vm143, %v3134, 0
    %v3139 = vsel %vm147, %v3129, 0
    %v3142 = vsel %vm147, %v3130, 0
    %v3145 = vsel %vm147, %v3131, 0
    %v3148 = vsel %vm147, %v3132, 0
    %3150 = vmatpush.msra.mxu0 0.0
    %3151 = vmatpush.msra.mxu0 0.0
    %3152 = vmatpush.msra.mxu0 0.0
    %3153 = vmatpush.msra.mxu0 0.0
    %3154 = vmatpush.msra.mxu0 0.0
    %3155 = vmatpush.msra.mxu0 0.0
    %3156 = vmatpush.msra.mxu0 0.0
    %3157 = vmatpush.msra.mxu0 0.0
    %3158 = vmatpush.msra.mxu0 0.0
    %3159 = vmatpush.msra.mxu0 0.0
    %3160 = vmatpush.msra.mxu0 0.0
    %3161 = vmatpush.msra.mxu0 0.0
    %3162 = vmatpush.msra.mxu0 0.0
    %3163 = vmatpush.msra.mxu0 0.0
    %3164 = vmatpush.msra.mxu0 0.0
    %3165 = vmatpush.msra.mxu0 %v3139
    %3166 = vmatmul.f32.gmra.mxu0 %v3136
    %v3167 = vpop.f32.mrf.mxu0
    %v3168 = vadd.f32 0.0, %v3167
    %3169 = vdwg.mxu0
    %3170 = vmatpush.msra.mxu0 0.0
    %3171 = vmatpush.msra.mxu0 0.0
    %3172 = vmatpush.msra.mxu0 0.0
    %3173 = vmatpush.msra.mxu0 0.0
    %3174 = vmatpush.msra.mxu0 0.0
    %3175 = vmatpush.msra.mxu0 0.0
    %3176 = vmatpush.msra.mxu0 0.0
    %3177 = vmatpush.msra.mxu0 0.0
    %3178 = vmatpush.msra.mxu0 0.0
    %3179 = vmatpush.msra.mxu0 0.0
    %3180 = vmatpush.msra.mxu0 0.0
    %3181 = vmatpush.msra.mxu0 0.0
    %3182 = vmatpush.msra.mxu0 0.0
    %3183 = vmatpush.msra.mxu0 0.0
    %3184 = vmatpush.msra.mxu0 0.0
    %3185 = vmatpush.msra.mxu0 %v3142
    %3186 = vmatmul.f32.gmra.mxu0 %v3136
    %v3187 = vpop.f32.mrf.mxu0
    %v3188 = vadd.f32 0.0, %v3187
    %3189 = vdwg.mxu0
    %3190 = vmatpush.msra.mxu0 0.0
    %3191 = vmatpush.msra.mxu0 0.0
    %3192 = vmatpush.msra.mxu0 0.0
    %3193 = vmatpush.msra.mxu0 0.0
    %3194 = vmatpush.msra.mxu0 0.0
    %3195 = vmatpush.msra.mxu0 0.0
    %3196 = vmatpush.msra.mxu0 0.0
    %3197 = vmatpush.msra.mxu0 0.0
    %3198 = vmatpush.msra.mxu0 0.0
    %3199 = vmatpush.msra.mxu0 0.0
    %3200 = vmatpush.msra.mxu0 0.0
    %3201 = vmatpush.msra.mxu0 0.0
    %3202 = vmatpush.msra.mxu0 0.0
    %3203 = vmatpush.msra.mxu0 0.0
    %3204 = vmatpush.msra.mxu0 0.0
    %3205 = vmatpush.msra.mxu0 %v3145
    %3206 = vmatmul.f32.gmra.mxu0 %v3136
    %v3207 = vpop.f32.mrf.mxu0
    %v3208 = vadd.f32 0.0, %v3207
    %3209 = vdwg.mxu0
    %3210 = vmatpush.msra.mxu0 0.0
    %3211 = vmatpush.msra.mxu0 0.0
    %3212 = vmatpush.msra.mxu0 0.0
    %3213 = vmatpush.msra.mxu0 0.0
    %3214 = vmatpush.msra.mxu0 0.0
    %3215 = vmatpush.msra.mxu0 0.0
    %3216 = vmatpush.msra.mxu0 0.0
    %3217 = vmatpush.msra.mxu0 0.0
    %3218 = vmatpush.msra.mxu0 0.0
    %3219 = vmatpush.msra.mxu0 0.0
    %3220 = vmatpush.msra.mxu0 0.0
    %3221 = vmatpush.msra.mxu0 0.0
    %3222 = vmatpush.msra.mxu0 0.0
    %3223 = vmatpush.msra.mxu0 0.0
    %3224 = vmatpush.msra.mxu0 0.0
    %3225 = vmatpush.msra.mxu0 %v3148
    %3226 = vmatmul.f32.gmra.mxu0 %v3136
    %v3227 = vpop.f32.mrf.mxu0
    %v3228 = vadd.f32 0.0, %v3227
    %3229 = vdwg.mxu0
    %v3230 = vadd.f32 %v3091, %v3168
    %v3231 = vadd.f32 %v3092, %v3188
    %v3232 = vadd.f32 %v3093, %v3208
    %v3233 = vadd.f32 %v3094, %v3228
    %3234 = vst [vmem:[#allocation1] ss:$2 sm:$0xff] %v57
    %s3235 = scalar_lea.vmem [#allocation1], 16
    %3236 = vst [vmem:[%s3235] ss:$2 sm:$0xff] %v58
    %v3237 = vld.sshfl [vmem:[#allocation1] sm:$0xff pattern:$0x75316420]
    %v3238 = vld.sshfl [vmem:[#allocation1 + $0x8] sm:$0xff pattern:$0x75316420]
    %v3239 = vld.sshfl [vmem:[#allocation1 + $0x10] sm:$0xff pattern:$0x75316420]
    %v3240 = vld.sshfl [vmem:[#allocation1 + $0x18] sm:$0xff pattern:$0x75316420]
    %3245 = vrot.lane.b32.xlu0 %v3237, 63
    %v3246 = vpop.permute.xlu0 %3245
    %3247 = vrot.lane.b32.xlu0 %v3238, 63
    %v3248 = vpop.permute.xlu0 %3247
    %3249 = vrot.lane.b32.xlu0 %v3239, 63
    %v3250 = vpop.permute.xlu0 %3249
    %3251 = vrot.lane.b32.xlu0 %v3240, 63
    %v3252 = vpop.permute.xlu0 %3251
    %v3253 = vsel %vm774, %v3250, %v3252
    %v3254 = vsel %vm774, %v3248, %v3250
    %v3255 = vsel %vm774, %v3246, %v3248
    %v3256 = vsel %vm774, %v3252, %v3246
    %s3257 = scalar_lea.vmem %s1, 92
    %v3258 = vld [vmem:[%s3257] sm:$0xf]
    %v3260 = vperm.slane %v3258, 0
    %v3261 = vperm.slane %v3258, 1
    %v3262 = vperm.slane %v3258, 2
    %v3263 = vperm.slane %v3258, 3
    %v3268 = vmul.f32 %v3255, %v3260
    %v3269 = vmul.f32 %v3254, %v3261
    %v3270 = vmul.f32 %v3253, %v3262
    %v3271 = vmul.f32 %v3256, %v3263
    %s3272 = scalar_lea.vmem %s2, 92
    %v3273 = vld [vmem:[%s3272] sm:$0xf]
    %v3275 = vsel %vm143, %v3273, 0
    %v3278 = vsel %vm147, %v3268, 0
    %v3281 = vsel %vm147, %v3269, 0
    %v3284 = vsel %vm147, %v3270, 0
    %v3287 = vsel %vm147, %v3271, 0
    %3289 = vmatpush.msra.mxu0 0.0
    %3290 = vmatpush.msra.mxu0 0.0
    %3291 = vmatpush.msra.mxu0 0.0
    %3292 = vmatpush.msra.mxu0 0.0
    %3293 = vmatpush.msra.mxu0 0.0
    %3294 = vmatpush.msra.mxu0 0.0
    %3295 = vmatpush.msra.mxu0 0.0
    %3296 = vmatpush.msra.mxu0 0.0
    %3297 = vmatpush.msra.mxu0 0.0
    %3298 = vmatpush.msra.mxu0 0.0
    %3299 = vmatpush.msra.mxu0 0.0
    %3300 = vmatpush.msra.mxu0 0.0
    %3301 = vmatpush.msra.mxu0 0.0
    %3302 = vmatpush.msra.mxu0 0.0
    %3303 = vmatpush.msra.mxu0 0.0
    %3304 = vmatpush.msra.mxu0 %v3278
    %3305 = vmatmul.f32.gmra.mxu0 %v3275
    %v3306 = vpop.f32.mrf.mxu0
    %v3307 = vadd.f32 0.0, %v3306
    %3308 = vdwg.mxu0
    %3309 = vmatpush.msra.mxu0 0.0
    %3310 = vmatpush.msra.mxu0 0.0
    %3311 = vmatpush.msra.mxu0 0.0
    %3312 = vmatpush.msra.mxu0 0.0
    %3313 = vmatpush.msra.mxu0 0.0
    %3314 = vmatpush.msra.mxu0 0.0
    %3315 = vmatpush.msra.mxu0 0.0
    %3316 = vmatpush.msra.mxu0 0.0
    %3317 = vmatpush.msra.mxu0 0.0
    %3318 = vmatpush.msra.mxu0 0.0
    %3319 = vmatpush.msra.mxu0 0.0
    %3320 = vmatpush.msra.mxu0 0.0
    %3321 = vmatpush.msra.mxu0 0.0
    %3322 = vmatpush.msra.mxu0 0.0
    %3323 = vmatpush.msra.mxu0 0.0
    %3324 = vmatpush.msra.mxu0 %v3281
    %3325 = vmatmul.f32.gmra.mxu0 %v3275
    %v3326 = vpop.f32.mrf.mxu0
    %v3327 = vadd.f32 0.0, %v3326
    %3328 = vdwg.mxu0
    %3329 = vmatpush.msra.mxu0 0.0
    %3330 = vmatpush.msra.mxu0 0.0
    %3331 = vmatpush.msra.mxu0 0.0
    %3332 = vmatpush.msra.mxu0 0.0
    %3333 = vmatpush.msra.mxu0 0.0
    %3334 = vmatpush.msra.mxu0 0.0
    %3335 = vmatpush.msra.mxu0 0.0
    %3336 = vmatpush.msra.mxu0 0.0
    %3337 = vmatpush.msra.mxu0 0.0
    %3338 = vmatpush.msra.mxu0 0.0
    %3339 = vmatpush.msra.mxu0 0.0
    %3340 = vmatpush.msra.mxu0 0.0
    %3341 = vmatpush.msra.mxu0 0.0
    %3342 = vmatpush.msra.mxu0 0.0
    %3343 = vmatpush.msra.mxu0 0.0
    %3344 = vmatpush.msra.mxu0 %v3284
    %3345 = vmatmul.f32.gmra.mxu0 %v3275
    %v3346 = vpop.f32.mrf.mxu0
    %v3347 = vadd.f32 0.0, %v3346
    %3348 = vdwg.mxu0
    %3349 = vmatpush.msra.mxu0 0.0
    %3350 = vmatpush.msra.mxu0 0.0
    %3351 = vmatpush.msra.mxu0 0.0
    %3352 = vmatpush.msra.mxu0 0.0
    %3353 = vmatpush.msra.mxu0 0.0
    %3354 = vmatpush.msra.mxu0 0.0
    %3355 = vmatpush.msra.mxu0 0.0
    %3356 = vmatpush.msra.mxu0 0.0
    %3357 = vmatpush.msra.mxu0 0.0
    %3358 = vmatpush.msra.mxu0 0.0
    %3359 = vmatpush.msra.mxu0 0.0
    %3360 = vmatpush.msra.mxu0 0.0
    %3361 = vmatpush.msra.mxu0 0.0
    %3362 = vmatpush.msra.mxu0 0.0
    %3363 = vmatpush.msra.mxu0 0.0
    %3364 = vmatpush.msra.mxu0 %v3287
    %3365 = vmatmul.f32.gmra.mxu0 %v3275
    %v3366 = vpop.f32.mrf.mxu0
    %v3367 = vadd.f32 0.0, %v3366
    %3368 = vdwg.mxu0
    %v3369 = vadd.f32 %v3230, %v3307
    %v3370 = vadd.f32 %v3231, %v3327
    %v3371 = vadd.f32 %v3232, %v3347
    %v3372 = vadd.f32 %v3233, %v3367
    %3373 = vst [vmem:[#allocation1] ss:$2 sm:$0xff] %v57
    %s3374 = scalar_lea.vmem [#allocation1], 16
    %3375 = vst [vmem:[%s3374] ss:$2 sm:$0xff] %v58
    %v3376 = vld.sshfl [vmem:[#allocation1] sm:$0xff pattern:$0x75316420]
    %v3377 = vld.sshfl [vmem:[#allocation1 + $0x8] sm:$0xff pattern:$0x75316420]
    %v3378 = vld.sshfl [vmem:[#allocation1 + $0x10] sm:$0xff pattern:$0x75316420]
    %v3379 = vld.sshfl [vmem:[#allocation1 + $0x18] sm:$0xff pattern:$0x75316420]
    %3384 = vrot.lane.b32.xlu0 %v3376, 57
    %v3385 = vpop.permute.xlu0 %3384
    %3386 = vrot.lane.b32.xlu0 %v3377, 57
    %v3387 = vpop.permute.xlu0 %3386
    %3388 = vrot.lane.b32.xlu0 %v3378, 57
    %v3389 = vpop.permute.xlu0 %3388
    %3390 = vrot.lane.b32.xlu0 %v3379, 57
    %v3391 = vpop.permute.xlu0 %3390
    %v3392 = vsel %vm914, %v3389, %v3391
    %v3393 = vsel %vm914, %v3387, %v3389
    %v3394 = vsel %vm914, %v3385, %v3387
    %v3395 = vsel %vm914, %v3391, %v3385
    %s3396 = scalar_lea.vmem %s1, 96
    %v3397 = vld [vmem:[%s3396] sm:$0xf]
    %v3399 = vperm.slane %v3397, 0
    %v3400 = vperm.slane %v3397, 1
    %v3401 = vperm.slane %v3397, 2
    %v3402 = vperm.slane %v3397, 3
    %v3407 = vmul.f32 %v3394, %v3399
    %v3408 = vmul.f32 %v3393, %v3400
    %v3409 = vmul.f32 %v3392, %v3401
    %v3410 = vmul.f32 %v3395, %v3402
    %s3411 = scalar_lea.vmem %s2, 96
    %v3412 = vld [vmem:[%s3411] sm:$0xf]
    %v3414 = vsel %vm143, %v3412, 0
    %v3417 = vsel %vm147, %v3407, 0
    %v3420 = vsel %vm147, %v3408, 0
    %v3423 = vsel %vm147, %v3409, 0
    %v3426 = vsel %vm147, %v3410, 0
    %3428 = vmatpush.msra.mxu0 0.0
    %3429 = vmatpush.msra.mxu0 0.0
    %3430 = vmatpush.msra.mxu0 0.0
    %3431 = vmatpush.msra.mxu0 0.0
    %3432 = vmatpush.msra.mxu0 0.0
    %3433 = vmatpush.msra.mxu0 0.0
    %3434 = vmatpush.msra.mxu0 0.0
    %3435 = vmatpush.msra.mxu0 0.0
    %3436 = vmatpush.msra.mxu0 0.0
    %3437 = vmatpush.msra.mxu0 0.0
    %3438 = vmatpush.msra.mxu0 0.0
    %3439 = vmatpush.msra.mxu0 0.0
    %3440 = vmatpush.msra.mxu0 0.0
    %3441 = vmatpush.msra.mxu0 0.0
    %3442 = vmatpush.msra.mxu0 0.0
    %3443 = vmatpush.msra.mxu0 %v3417
    %3444 = vmatmul.f32.gmra.mxu0 %v3414
    %v3445 = vpop.f32.mrf.mxu0
    %v3446 = vadd.f32 0.0, %v3445
    %3447 = vdwg.mxu0
    %3448 = vmatpush.msra.mxu0 0.0
    %3449 = vmatpush.msra.mxu0 0.0
    %3450 = vmatpush.msra.mxu0 0.0
    %3451 = vmatpush.msra.mxu0 0.0
    %3452 = vmatpush.msra.mxu0 0.0
    %3453 = vmatpush.msra.mxu0 0.0
    %3454 = vmatpush.msra.mxu0 0.0
    %3455 = vmatpush.msra.mxu0 0.0
    %3456 = vmatpush.msra.mxu0 0.0
    %3457 = vmatpush.msra.mxu0 0.0
    %3458 = vmatpush.msra.mxu0 0.0
    %3459 = vmatpush.msra.mxu0 0.0
    %3460 = vmatpush.msra.mxu0 0.0
    %3461 = vmatpush.msra.mxu0 0.0
    %3462 = vmatpush.msra.mxu0 0.0
    %3463 = vmatpush.msra.mxu0 %v3420
    %3464 = vmatmul.f32.gmra.mxu0 %v3414
    %v3465 = vpop.f32.mrf.mxu0
    %v3466 = vadd.f32 0.0, %v3465
    %3467 = vdwg.mxu0
    %3468 = vmatpush.msra.mxu0 0.0
    %3469 = vmatpush.msra.mxu0 0.0
    %3470 = vmatpush.msra.mxu0 0.0
    %3471 = vmatpush.msra.mxu0 0.0
    %3472 = vmatpush.msra.mxu0 0.0
    %3473 = vmatpush.msra.mxu0 0.0
    %3474 = vmatpush.msra.mxu0 0.0
    %3475 = vmatpush.msra.mxu0 0.0
    %3476 = vmatpush.msra.mxu0 0.0
    %3477 = vmatpush.msra.mxu0 0.0
    %3478 = vmatpush.msra.mxu0 0.0
    %3479 = vmatpush.msra.mxu0 0.0
    %3480 = vmatpush.msra.mxu0 0.0
    %3481 = vmatpush.msra.mxu0 0.0
    %3482 = vmatpush.msra.mxu0 0.0
    %3483 = vmatpush.msra.mxu0 %v3423
    %3484 = vmatmul.f32.gmra.mxu0 %v3414
    %v3485 = vpop.f32.mrf.mxu0
    %v3486 = vadd.f32 0.0, %v3485
    %3487 = vdwg.mxu0
    %3488 = vmatpush.msra.mxu0 0.0
    %3489 = vmatpush.msra.mxu0 0.0
    %3490 = vmatpush.msra.mxu0 0.0
    %3491 = vmatpush.msra.mxu0 0.0
    %3492 = vmatpush.msra.mxu0 0.0
    %3493 = vmatpush.msra.mxu0 0.0
    %3494 = vmatpush.msra.mxu0 0.0
    %3495 = vmatpush.msra.mxu0 0.0
    %3496 = vmatpush.msra.mxu0 0.0
    %3497 = vmatpush.msra.mxu0 0.0
    %3498 = vmatpush.msra.mxu0 0.0
    %3499 = vmatpush.msra.mxu0 0.0
    %3500 = vmatpush.msra.mxu0 0.0
    %3501 = vmatpush.msra.mxu0 0.0
    %3502 = vmatpush.msra.mxu0 0.0
    %3503 = vmatpush.msra.mxu0 %v3426
    %3504 = vmatmul.f32.gmra.mxu0 %v3414
    %v3505 = vpop.f32.mrf.mxu0
    %v3506 = vadd.f32 0.0, %v3505
    %3507 = vdwg.mxu0
    %v3508 = vadd.f32 %v3369, %v3446
    %v3509 = vadd.f32 %v3370, %v3466
    %v3510 = vadd.f32 %v3371, %v3486
    %v3511 = vadd.f32 %v3372, %v3506
    %3512 = vst [vmem:[#allocation1] ss:$2 sm:$0xff] %v57
    %s3513 = scalar_lea.vmem [#allocation1], 16
    %3514 = vst [vmem:[%s3513] ss:$2 sm:$0xff] %v58
    %v3515 = vld.sshfl [vmem:[#allocation1] sm:$0xff pattern:$0x75316420]
    %v3516 = vld.sshfl [vmem:[#allocation1 + $0x8] sm:$0xff pattern:$0x75316420]
    %v3517 = vld.sshfl [vmem:[#allocation1 + $0x10] sm:$0xff pattern:$0x75316420]
    %v3518 = vld.sshfl [vmem:[#allocation1 + $0x18] sm:$0xff pattern:$0x75316420]
    %3523 = vrot.lane.b32.xlu0 %v3515, 56
    %v3524 = vpop.permute.xlu0 %3523
    %3525 = vrot.lane.b32.xlu0 %v3516, 56
    %v3526 = vpop.permute.xlu0 %3525
    %3527 = vrot.lane.b32.xlu0 %v3517, 56
    %v3528 = vpop.permute.xlu0 %3527
    %3529 = vrot.lane.b32.xlu0 %v3518, 56
    %v3530 = vpop.permute.xlu0 %3529
    %v3531 = vsel %vm1054, %v3528, %v3530
    %v3532 = vsel %vm1054, %v3526, %v3528
    %v3533 = vsel %vm1054, %v3524, %v3526
    %v3534 = vsel %vm1054, %v3530, %v3524
    %s3535 = scalar_lea.vmem %s1, 100
    %v3536 = vld [vmem:[%s3535] sm:$0xf]
    %v3538 = vperm.slane %v3536, 0
    %v3539 = vperm.slane %v3536, 1
    %v3540 = vperm.slane %v3536, 2
    %v3541 = vperm.slane %v3536, 3
    %v3546 = vmul.f32 %v3533, %v3538
    %v3547 = vmul.f32 %v3532, %v3539
    %v3548 = vmul.f32 %v3531, %v3540
    %v3549 = vmul.f32 %v3534, %v3541
    %s3550 = scalar_lea.vmem %s2, 100
    %v3551 = vld [vmem:[%s3550] sm:$0xf]
    %v3553 = vsel %vm143, %v3551, 0
    %v3556 = vsel %vm147, %v3546, 0
    %v3559 = vsel %vm147, %v3547, 0
    %v3562 = vsel %vm147, %v3548, 0
    %v3565 = vsel %vm147, %v3549, 0
    %3567 = vmatpush.msra.mxu0 0.0
    %3568 = vmatpush.msra.mxu0 0.0
    %3569 = vmatpush.msra.mxu0 0.0
    %3570 = vmatpush.msra.mxu0 0.0
    %3571 = vmatpush.msra.mxu0 0.0
    %3572 = vmatpush.msra.mxu0 0.0
    %3573 = vmatpush.msra.mxu0 0.0
    %3574 = vmatpush.msra.mxu0 0.0
    %3575 = vmatpush.msra.mxu0 0.0
    %3576 = vmatpush.msra.mxu0 0.0
    %3577 = vmatpush.msra.mxu0 0.0
    %3578 = vmatpush.msra.mxu0 0.0
    %3579 = vmatpush.msra.mxu0 0.0
    %3580 = vmatpush.msra.mxu0 0.0
    %3581 = vmatpush.msra.mxu0 0.0
    %3582 = vmatpush.msra.mxu0 %v3556
    %3583 = vmatmul.f32.gmra.mxu0 %v3553
    %v3584 = vpop.f32.mrf.mxu0
    %v3585 = vadd.f32 0.0, %v3584
    %3586 = vdwg.mxu0
    %3587 = vmatpush.msra.mxu0 0.0
    %3588 = vmatpush.msra.mxu0 0.0
    %3589 = vmatpush.msra.mxu0 0.0
    %3590 = vmatpush.msra.mxu0 0.0
    %3591 = vmatpush.msra.mxu0 0.0
    %3592 = vmatpush.msra.mxu0 0.0
    %3593 = vmatpush.msra.mxu0 0.0
    %3594 = vmatpush.msra.mxu0 0.0
    %3595 = vmatpush.msra.mxu0 0.0
    %3596 = vmatpush.msra.mxu0 0.0
    %3597 = vmatpush.msra.mxu0 0.0
    %3598 = vmatpush.msra.mxu0 0.0
    %3599 = vmatpush.msra.mxu0 0.0
    %3600 = vmatpush.msra.mxu0 0.0
    %3601 = vmatpush.msra.mxu0 0.0
    %3602 = vmatpush.msra.mxu0 %v3559
    %3603 = vmatmul.f32.gmra.mxu0 %v3553
    %v3604 = vpop.f32.mrf.mxu0
    %v3605 = vadd.f32 0.0, %v3604
    %3606 = vdwg.mxu0
    %3607 = vmatpush.msra.mxu0 0.0
    %3608 = vmatpush.msra.mxu0 0.0
    %3609 = vmatpush.msra.mxu0 0.0
    %3610 = vmatpush.msra.mxu0 0.0
    %3611 = vmatpush.msra.mxu0 0.0
    %3612 = vmatpush.msra.mxu0 0.0
    %3613 = vmatpush.msra.mxu0 0.0
    %3614 = vmatpush.msra.mxu0 0.0
    %3615 = vmatpush.msra.mxu0 0.0
    %3616 = vmatpush.msra.mxu0 0.0
    %3617 = vmatpush.msra.mxu0 0.0
    %3618 = vmatpush.msra.mxu0 0.0
    %3619 = vmatpush.msra.mxu0 0.0
    %3620 = vmatpush.msra.mxu0 0.0
    %3621 = vmatpush.msra.mxu0 0.0
    %3622 = vmatpush.msra.mxu0 %v3562
    %3623 = vmatmul.f32.gmra.mxu0 %v3553
    %v3624 = vpop.f32.mrf.mxu0
    %v3625 = vadd.f32 0.0, %v3624
    %3626 = vdwg.mxu0
    %3627 = vmatpush.msra.mxu0 0.0
    %3628 = vmatpush.msra.mxu0 0.0
    %3629 = vmatpush.msra.mxu0 0.0
    %3630 = vmatpush.msra.mxu0 0.0
    %3631 = vmatpush.msra.mxu0 0.0
    %3632 = vmatpush.msra.mxu0 0.0
    %3633 = vmatpush.msra.mxu0 0.0
    %3634 = vmatpush.msra.mxu0 0.0
    %3635 = vmatpush.msra.mxu0 0.0
    %3636 = vmatpush.msra.mxu0 0.0
    %3637 = vmatpush.msra.mxu0 0.0
    %3638 = vmatpush.msra.mxu0 0.0
    %3639 = vmatpush.msra.mxu0 0.0
    %3640 = vmatpush.msra.mxu0 0.0
    %3641 = vmatpush.msra.mxu0 0.0
    %3642 = vmatpush.msra.mxu0 %v3565
    %3643 = vmatmul.f32.gmra.mxu0 %v3553
    %v3644 = vpop.f32.mrf.mxu0
    %v3645 = vadd.f32 0.0, %v3644
    %3646 = vdwg.mxu0
    %v3647 = vadd.f32 %v3508, %v3585
    %v3648 = vadd.f32 %v3509, %v3605
    %v3649 = vadd.f32 %v3510, %v3625
    %v3650 = vadd.f32 %v3511, %v3645
    %3651 = vst [vmem:[#allocation1] ss:$2 sm:$0xff] %v57
    %s3652 = scalar_lea.vmem [#allocation1], 16
    %3653 = vst [vmem:[%s3652] ss:$2 sm:$0xff] %v58
    %v3654 = vld.sshfl [vmem:[#allocation1] sm:$0xff pattern:$0x75316420]
    %v3655 = vld.sshfl [vmem:[#allocation1 + $0x8] sm:$0xff pattern:$0x75316420]
    %v3656 = vld.sshfl [vmem:[#allocation1 + $0x10] sm:$0xff pattern:$0x75316420]
    %v3657 = vld.sshfl [vmem:[#allocation1 + $0x18] sm:$0xff pattern:$0x75316420]
    %3662 = vrot.lane.b32.xlu0 %v3654, 55
    %v3663 = vpop.permute.xlu0 %3662
    %3664 = vrot.lane.b32.xlu0 %v3655, 55
    %v3665 = vpop.permute.xlu0 %3664
    %3666 = vrot.lane.b32.xlu0 %v3656, 55
    %v3667 = vpop.permute.xlu0 %3666
    %3668 = vrot.lane.b32.xlu0 %v3657, 55
    %v3669 = vpop.permute.xlu0 %3668
    %v3670 = vsel %vm1194, %v3667, %v3669
    %v3671 = vsel %vm1194, %v3665, %v3667
    %v3672 = vsel %vm1194, %v3663, %v3665
    %v3673 = vsel %vm1194, %v3669, %v3663
    %s3674 = scalar_lea.vmem %s1, 104
    %v3675 = vld [vmem:[%s3674] sm:$0xf]
    %v3677 = vperm.slane %v3675, 0
    %v3678 = vperm.slane %v3675, 1
    %v3679 = vperm.slane %v3675, 2
    %v3680 = vperm.slane %v3675, 3
    %v3685 = vmul.f32 %v3672, %v3677
    %v3686 = vmul.f32 %v3671, %v3678
    %v3687 = vmul.f32 %v3670, %v3679
    %v3688 = vmul.f32 %v3673, %v3680
    %s3689 = scalar_lea.vmem %s2, 104
    %v3690 = vld [vmem:[%s3689] sm:$0xf]
    %v3692 = vsel %vm143, %v3690, 0
    %v3695 = vsel %vm147, %v3685, 0
    %v3698 = vsel %vm147, %v3686, 0
    %v3701 = vsel %vm147, %v3687, 0
    %v3704 = vsel %vm147, %v3688, 0
    %3706 = vmatpush.msra.mxu0 0.0
    %3707 = vmatpush.msra.mxu0 0.0
    %3708 = vmatpush.msra.mxu0 0.0
    %3709 = vmatpush.msra.mxu0 0.0
    %3710 = vmatpush.msra.mxu0 0.0
    %3711 = vmatpush.msra.mxu0 0.0
    %3712 = vmatpush.msra.mxu0 0.0
    %3713 = vmatpush.msra.mxu0 0.0
    %3714 = vmatpush.msra.mxu0 0.0
    %3715 = vmatpush.msra.mxu0 0.0
    %3716 = vmatpush.msra.mxu0 0.0
    %3717 = vmatpush.msra.mxu0 0.0
    %3718 = vmatpush.msra.mxu0 0.0
    %3719 = vmatpush.msra.mxu0 0.0
    %3720 = vmatpush.msra.mxu0 0.0
    %3721 = vmatpush.msra.mxu0 %v3695
    %3722 = vmatmul.f32.gmra.mxu0 %v3692
    %v3723 = vpop.f32.mrf.mxu0
    %v3724 = vadd.f32 0.0, %v3723
    %3725 = vdwg.mxu0
    %3726 = vmatpush.msra.mxu0 0.0
    %3727 = vmatpush.msra.mxu0 0.0
    %3728 = vmatpush.msra.mxu0 0.0
    %3729 = vmatpush.msra.mxu0 0.0
    %3730 = vmatpush.msra.mxu0 0.0
    %3731 = vmatpush.msra.mxu0 0.0
    %3732 = vmatpush.msra.mxu0 0.0
    %3733 = vmatpush.msra.mxu0 0.0
    %3734 = vmatpush.msra.mxu0 0.0
    %3735 = vmatpush.msra.mxu0 0.0
    %3736 = vmatpush.msra.mxu0 0.0
    %3737 = vmatpush.msra.mxu0 0.0
    %3738 = vmatpush.msra.mxu0 0.0
    %3739 = vmatpush.msra.mxu0 0.0
    %3740 = vmatpush.msra.mxu0 0.0
    %3741 = vmatpush.msra.mxu0 %v3698
    %3742 = vmatmul.f32.gmra.mxu0 %v3692
    %v3743 = vpop.f32.mrf.mxu0
    %v3744 = vadd.f32 0.0, %v3743
    %3745 = vdwg.mxu0
    %3746 = vmatpush.msra.mxu0 0.0
    %3747 = vmatpush.msra.mxu0 0.0
    %3748 = vmatpush.msra.mxu0 0.0
    %3749 = vmatpush.msra.mxu0 0.0
    %3750 = vmatpush.msra.mxu0 0.0
    %3751 = vmatpush.msra.mxu0 0.0
    %3752 = vmatpush.msra.mxu0 0.0
    %3753 = vmatpush.msra.mxu0 0.0
    %3754 = vmatpush.msra.mxu0 0.0
    %3755 = vmatpush.msra.mxu0 0.0
    %3756 = vmatpush.msra.mxu0 0.0
    %3757 = vmatpush.msra.mxu0 0.0
    %3758 = vmatpush.msra.mxu0 0.0
    %3759 = vmatpush.msra.mxu0 0.0
    %3760 = vmatpush.msra.mxu0 0.0
    %3761 = vmatpush.msra.mxu0 %v3701
    %3762 = vmatmul.f32.gmra.mxu0 %v3692
    %v3763 = vpop.f32.mrf.mxu0
    %v3764 = vadd.f32 0.0, %v3763
    %3765 = vdwg.mxu0
    %3766 = vmatpush.msra.mxu0 0.0
    %3767 = vmatpush.msra.mxu0 0.0
    %3768 = vmatpush.msra.mxu0 0.0
    %3769 = vmatpush.msra.mxu0 0.0
    %3770 = vmatpush.msra.mxu0 0.0
    %3771 = vmatpush.msra.mxu0 0.0
    %3772 = vmatpush.msra.mxu0 0.0
    %3773 = vmatpush.msra.mxu0 0.0
    %3774 = vmatpush.msra.mxu0 0.0
    %3775 = vmatpush.msra.mxu0 0.0
    %3776 = vmatpush.msra.mxu0 0.0
    %3777 = vmatpush.msra.mxu0 0.0
    %3778 = vmatpush.msra.mxu0 0.0
    %3779 = vmatpush.msra.mxu0 0.0
    %3780 = vmatpush.msra.mxu0 0.0
    %3781 = vmatpush.msra.mxu0 %v3704
    %3782 = vmatmul.f32.gmra.mxu0 %v3692
    %v3783 = vpop.f32.mrf.mxu0
    %v3784 = vadd.f32 0.0, %v3783
    %3785 = vdwg.mxu0
    %v3786 = vadd.f32 %v3647, %v3724
    %v3787 = vadd.f32 %v3648, %v3744
    %v3788 = vadd.f32 %v3649, %v3764
    %v3789 = vadd.f32 %v3650, %v3784
    %v3790 = vld [vmem:[%s3] sm:$0xf]
    %3792 = vset.pattern.permute.xlu0 0
    %3793 = vperm.xlu0 %3792, %v3790
    %v3794 = vpop.permute.xlu0 %3793
    %v3796 = vadd.f32 %v3786, %v3794
    %v3797 = vadd.f32 %v3787, %v3794
    %v3798 = vadd.f32 %v3788, %v3794
    %v3799 = vadd.f32 %v3789, %v3794
    %v3800 = vmax.f32 %v3796, 0.0
    %v3801 = vmax.f32 %v3797, 0.0
    %v3802 = vmax.f32 %v3798, 0.0
    %v3803 = vmax.f32 %v3799, 0.0
    %3804 = vrot.lane.b32.xlu0 %v3800, 73
    %v3805 = vpop.permute.xlu0 %3804
    %3806 = vrot.lane.b32.xlu0 %v3801, 73
    %v3807 = vpop.permute.xlu0 %3806
    %3808 = vrot.lane.b32.xlu0 %v3802, 73
    %v3809 = vpop.permute.xlu0 %3808
    %3810 = vrot.lane.b32.xlu0 %v3803, 73
    %v3811 = vpop.permute.xlu0 %3810
    %v3812 = vsel %vm82, %v3809, %v3811
    %v3813 = vsel %vm82, %v3807, %v3809
    %v3814 = vsel %vm82, %v3805, %v3807
    %v3815 = vsel %vm82, %v3811, %v3805
    %v3816 = vmul.f32 %v3815, %v89
    %v3817 = vmul.f32 %v3814, %v90
    %v3818 = vmul.f32 %v3813, %v91
    %v3819 = vmul.f32 %v3812, %v92
    %v3820 = vld [vmem:[%s4] sm:$0xf]
    %3821 = vrot.lane.b32.xlu0 %v3800, 72
    %v3822 = vpop.permute.xlu0 %3821
    %3823 = vrot.lane.b32.xlu0 %v3801, 72
    %v3824 = vpop.permute.xlu0 %3823
    %3825 = vrot.lane.b32.xlu0 %v3802, 72
    %v3826 = vpop.permute.xlu0 %3825
    %3827 = vrot.lane.b32.xlu0 %v3803, 72
    %v3828 = vpop.permute.xlu0 %3827
    %v3829 = vsel %vm121, %v3826, %v3828
    %v3830 = vsel %vm121, %v3824, %v3826
    %v3831 = vsel %vm121, %v3822, %v3824
    %v3832 = vsel %vm121, %v3828, %v3822
    %v3833 = vmul.f32 %v3832, %v129
    %v3834 = vmul.f32 %v3831, %v130
    %v3835 = vmul.f32 %v3830, %v131
    %v3836 = vmul.f32 %v3829, %v132
    %s3837 = scalar_lea.vmem %s4, 4
    %v3838 = vld [vmem:[%s3837] sm:$0xf]
    %v3840 = vsel %vm143, %v3838, 0
    %v3843 = vsel %vm147, %v3833, 0
    %v3846 = vsel %vm147, %v3834, 0
    %v3849 = vsel %vm147, %v3835, 0
    %v3852 = vsel %vm147, %v3836, 0
    %3854 = vmatpush.msra.mxu0 0.0
    %3855 = vmatpush.msra.mxu0 0.0
    %3856 = vmatpush.msra.mxu0 0.0
    %3857 = vmatpush.msra.mxu0 0.0
    %3858 = vmatpush.msra.mxu0 0.0
    %3859 = vmatpush.msra.mxu0 0.0
    %3860 = vmatpush.msra.mxu0 0.0
    %3861 = vmatpush.msra.mxu0 0.0
    %3862 = vmatpush.msra.mxu0 0.0
    %3863 = vmatpush.msra.mxu0 0.0
    %3864 = vmatpush.msra.mxu0 0.0
    %3865 = vmatpush.msra.mxu0 0.0
    %3866 = vmatpush.msra.mxu0 0.0
    %3867 = vmatpush.msra.mxu0 0.0
    %3868 = vmatpush.msra.mxu0 0.0
    %3869 = vmatpush.msra.mxu0 %v3843
    %3870 = vmatmul.f32.gmra.mxu0 %v3840
    %v3871 = vpop.f32.mrf.mxu0
    %v3872 = vadd.f32 0.0, %v3871
    %3873 = vdwg.mxu0
    %3874 = vmatpush.msra.mxu0 0.0
    %3875 = vmatpush.msra.mxu0 0.0
    %3876 = vmatpush.msra.mxu0 0.0
    %3877 = vmatpush.msra.mxu0 0.0
    %3878 = vmatpush.msra.mxu0 0.0
    %3879 = vmatpush.msra.mxu0 0.0
    %3880 = vmatpush.msra.mxu0 0.0
    %3881 = vmatpush.msra.mxu0 0.0
    %3882 = vmatpush.msra.mxu0 0.0
    %3883 = vmatpush.msra.mxu0 0.0
    %3884 = vmatpush.msra.mxu0 0.0
    %3885 = vmatpush.msra.mxu0 0.0
    %3886 = vmatpush.msra.mxu0 0.0
    %3887 = vmatpush.msra.mxu0 0.0
    %3888 = vmatpush.msra.mxu0 0.0
    %3889 = vmatpush.msra.mxu0 %v3846
    %3890 = vmatmul.f32.gmra.mxu0 %v3840
    %v3891 = vpop.f32.mrf.mxu0
    %v3892 = vadd.f32 0.0, %v3891
    %3893 = vdwg.mxu0
    %3894 = vmatpush.msra.mxu0 0.0
    %3895 = vmatpush.msra.mxu0 0.0
    %3896 = vmatpush.msra.mxu0 0.0
    %3897 = vmatpush.msra.mxu0 0.0
    %3898 = vmatpush.msra.mxu0 0.0
    %3899 = vmatpush.msra.mxu0 0.0
    %3900 = vmatpush.msra.mxu0 0.0
    %3901 = vmatpush.msra.mxu0 0.0
    %3902 = vmatpush.msra.mxu0 0.0
    %3903 = vmatpush.msra.mxu0 0.0
    %3904 = vmatpush.msra.mxu0 0.0
    %3905 = vmatpush.msra.mxu0 0.0
    %3906 = vmatpush.msra.mxu0 0.0
    %3907 = vmatpush.msra.mxu0 0.0
    %3908 = vmatpush.msra.mxu0 0.0
    %3909 = vmatpush.msra.mxu0 %v3849
    %3910 = vmatmul.f32.gmra.mxu0 %v3840
    %v3911 = vpop.f32.mrf.mxu0
    %v3912 = vadd.f32 0.0, %v3911
    %3913 = vdwg.mxu0
    %3914 = vmatpush.msra.mxu0 0.0
    %3915 = vmatpush.msra.mxu0 0.0
    %3916 = vmatpush.msra.mxu0 0.0
    %3917 = vmatpush.msra.mxu0 0.0
    %3918 = vmatpush.msra.mxu0 0.0
    %3919 = vmatpush.msra.mxu0 0.0
    %3920 = vmatpush.msra.mxu0 0.0
    %3921 = vmatpush.msra.mxu0 0.0
    %3922 = vmatpush.msra.mxu0 0.0
    %3923 = vmatpush.msra.mxu0 0.0
    %3924 = vmatpush.msra.mxu0 0.0
    %3925 = vmatpush.msra.mxu0 0.0
    %3926 = vmatpush.msra.mxu0 0.0
    %3927 = vmatpush.msra.mxu0 0.0
    %3928 = vmatpush.msra.mxu0 0.0
    %3929 = vmatpush.msra.mxu0 %v3852
    %3930 = vmatmul.f32.gmra.mxu0 %v3840
    %v3931 = vpop.f32.mrf.mxu0
    %v3932 = vadd.f32 0.0, %v3931
    %3933 = vdwg.mxu0
    %v3935 = vsel %vm143, %v3820, 0
    %v3938 = vsel %vm147, %v3816, 0
    %v3941 = vsel %vm147, %v3817, 0
    %v3944 = vsel %vm147, %v3818, 0
    %v3947 = vsel %vm147, %v3819, 0
    %3949 = vmatpush.msra.mxu0 0.0
    %3950 = vmatpush.msra.mxu0 0.0
    %3951 = vmatpush.msra.mxu0 0.0
    %3952 = vmatpush.msra.mxu0 0.0
    %3953 = vmatpush.msra.mxu0 0.0
    %3954 = vmatpush.msra.mxu0 0.0
    %3955 = vmatpush.msra.mxu0 0.0
    %3956 = vmatpush.msra.mxu0 0.0
    %3957 = vmatpush.msra.mxu0 0.0
    %3958 = vmatpush.msra.mxu0 0.0
    %3959 = vmatpush.msra.mxu0 0.0
    %3960 = vmatpush.msra.mxu0 0.0
    %3961 = vmatpush.msra.mxu0 0.0
    %3962 = vmatpush.msra.mxu0 0.0
    %3963 = vmatpush.msra.mxu0 0.0
    %3964 = vmatpush.msra.mxu0 %v3938
    %3965 = vmatmul.f32.gmra.mxu0 %v3935
    %v3966 = vpop.f32.mrf.mxu0
    %v3967 = vadd.f32 %v3872, %v3966
    %3968 = vdwg.mxu0
    %3969 = vmatpush.msra.mxu0 0.0
    %3970 = vmatpush.msra.mxu0 0.0
    %3971 = vmatpush.msra.mxu0 0.0
    %3972 = vmatpush.msra.mxu0 0.0
    %3973 = vmatpush.msra.mxu0 0.0
    %3974 = vmatpush.msra.mxu0 0.0
    %3975 = vmatpush.msra.mxu0 0.0
    %3976 = vmatpush.msra.mxu0 0.0
    %3977 = vmatpush.msra.mxu0 0.0
    %3978 = vmatpush.msra.mxu0 0.0
    %3979 = vmatpush.msra.mxu0 0.0
    %3980 = vmatpush.msra.mxu0 0.0
    %3981 = vmatpush.msra.mxu0 0.0
    %3982 = vmatpush.msra.mxu0 0.0
    %3983 = vmatpush.msra.mxu0 0.0
    %3984 = vmatpush.msra.mxu0 %v3941
    %3985 = vmatmul.f32.gmra.mxu0 %v3935
    %v3986 = vpop.f32.mrf.mxu0
    %v3987 = vadd.f32 %v3892, %v3986
    %3988 = vdwg.mxu0
    %3989 = vmatpush.msra.mxu0 0.0
    %3990 = vmatpush.msra.mxu0 0.0
    %3991 = vmatpush.msra.mxu0 0.0
    %3992 = vmatpush.msra.mxu0 0.0
    %3993 = vmatpush.msra.mxu0 0.0
    %3994 = vmatpush.msra.mxu0 0.0
    %3995 = vmatpush.msra.mxu0 0.0
    %3996 = vmatpush.msra.mxu0 0.0
    %3997 = vmatpush.msra.mxu0 0.0
    %3998 = vmatpush.msra.mxu0 0.0
    %3999 = vmatpush.msra.mxu0 0.0
    %4000 = vmatpush.msra.mxu0 0.0
    %4001 = vmatpush.msra.mxu0 0.0
    %4002 = vmatpush.msra.mxu0 0.0
    %4003 = vmatpush.msra.mxu0 0.0
    %4004 = vmatpush.msra.mxu0 %v3944
    %4005 = vmatmul.f32.gmra.mxu0 %v3935
    %v4006 = vpop.f32.mrf.mxu0
    %v4007 = vadd.f32 %v3912, %v4006
    %4008 = vdwg.mxu0
    %4009 = vmatpush.msra.mxu0 0.0
    %4010 = vmatpush.msra.mxu0 0.0
    %4011 = vmatpush.msra.mxu0 0.0
    %4012 = vmatpush.msra.mxu0 0.0
    %4013 = vmatpush.msra.mxu0 0.0
    %4014 = vmatpush.msra.mxu0 0.0
    %4015 = vmatpush.msra.mxu0 0.0
    %4016 = vmatpush.msra.mxu0 0.0
    %4017 = vmatpush.msra.mxu0 0.0
    %4018 = vmatpush.msra.mxu0 0.0
    %4019 = vmatpush.msra.mxu0 0.0
    %4020 = vmatpush.msra.mxu0 0.0
    %4021 = vmatpush.msra.mxu0 0.0
    %4022 = vmatpush.msra.mxu0 0.0
    %4023 = vmatpush.msra.mxu0 0.0
    %4024 = vmatpush.msra.mxu0 %v3947
    %4025 = vmatmul.f32.gmra.mxu0 %v3935
    %v4026 = vpop.f32.mrf.mxu0
    %v4027 = vadd.f32 %v3932, %v4026
    %4028 = vdwg.mxu0
    %4029 = vrot.lane.b32.xlu0 %v3800, 71
    %v4030 = vpop.permute.xlu0 %4029
    %4031 = vrot.lane.b32.xlu0 %v3801, 71
    %v4032 = vpop.permute.xlu0 %4031
    %4033 = vrot.lane.b32.xlu0 %v3802, 71
    %v4034 = vpop.permute.xlu0 %4033
    %4035 = vrot.lane.b32.xlu0 %v3803, 71
    %v4036 = vpop.permute.xlu0 %4035
    %v4037 = vsel %vm354, %v4034, %v4036
    %v4038 = vsel %vm354, %v4032, %v4034
    %v4039 = vsel %vm354, %v4030, %v4032
    %v4040 = vsel %vm354, %v4036, %v4030
    %v4041 = vmul.f32 %v4040, %v362
    %v4042 = vmul.f32 %v4039, %v363
    %v4043 = vmul.f32 %v4038, %v364
    %v4044 = vmul.f32 %v4037, %v365
    %s4045 = scalar_lea.vmem %s4, 8
    %v4046 = vld [vmem:[%s4045] sm:$0xf]
    %v4048 = vsel %vm143, %v4046, 0
    %v4051 = vsel %vm147, %v4041, 0
    %v4054 = vsel %vm147, %v4042, 0
    %v4057 = vsel %vm147, %v4043, 0
    %v4060 = vsel %vm147, %v4044, 0
    %4062 = vmatpush.msra.mxu0 0.0
    %4063 = vmatpush.msra.mxu0 0.0
    %4064 = vmatpush.msra.mxu0 0.0
    %4065 = vmatpush.msra.mxu0 0.0
    %4066 = vmatpush.msra.mxu0 0.0
    %4067 = vmatpush.msra.mxu0 0.0
    %4068 = vmatpush.msra.mxu0 0.0
    %4069 = vmatpush.msra.mxu0 0.0
    %4070 = vmatpush.msra.mxu0 0.0
    %4071 = vmatpush.msra.mxu0 0.0
    %4072 = vmatpush.msra.mxu0 0.0
    %4073 = vmatpush.msra.mxu0 0.0
    %4074 = vmatpush.msra.mxu0 0.0
    %4075 = vmatpush.msra.mxu0 0.0
    %4076 = vmatpush.msra.mxu0 0.0
    %4077 = vmatpush.msra.mxu0 %v4051
    %4078 = vmatmul.f32.gmra.mxu0 %v4048
    %v4079 = vpop.f32.mrf.mxu0
    %v4080 = vadd.f32 0.0, %v4079
    %4081 = vdwg.mxu0
    %4082 = vmatpush.msra.mxu0 0.0
    %4083 = vmatpush.msra.mxu0 0.0
    %4084 = vmatpush.msra.mxu0 0.0
    %4085 = vmatpush.msra.mxu0 0.0
    %4086 = vmatpush.msra.mxu0 0.0
    %4087 = vmatpush.msra.mxu0 0.0
    %4088 = vmatpush.msra.mxu0 0.0
    %4089 = vmatpush.msra.mxu0 0.0
    %4090 = vmatpush.msra.mxu0 0.0
    %4091 = vmatpush.msra.mxu0 0.0
    %4092 = vmatpush.msra.mxu0 0.0
    %4093 = vmatpush.msra.mxu0 0.0
    %4094 = vmatpush.msra.mxu0 0.0
    %4095 = vmatpush.msra.mxu0 0.0
    %4096 = vmatpush.msra.mxu0 0.0
    %4097 = vmatpush.msra.mxu0 %v4054
    %4098 = vmatmul.f32.gmra.mxu0 %v4048
    %v4099 = vpop.f32.mrf.mxu0
    %v4100 = vadd.f32 0.0, %v4099
    %4101 = vdwg.mxu0
    %4102 = vmatpush.msra.mxu0 0.0
    %4103 = vmatpush.msra.mxu0 0.0
    %4104 = vmatpush.msra.mxu0 0.0
    %4105 = vmatpush.msra.mxu0 0.0
    %4106 = vmatpush.msra.mxu0 0.0
    %4107 = vmatpush.msra.mxu0 0.0
    %4108 = vmatpush.msra.mxu0 0.0
    %4109 = vmatpush.msra.mxu0 0.0
    %4110 = vmatpush.msra.mxu0 0.0
    %4111 = vmatpush.msra.mxu0 0.0
    %4112 = vmatpush.msra.mxu0 0.0
    %4113 = vmatpush.msra.mxu0 0.0
    %4114 = vmatpush.msra.mxu0 0.0
    %4115 = vmatpush.msra.mxu0 0.0
    %4116 = vmatpush.msra.mxu0 0.0
    %4117 = vmatpush.msra.mxu0 %v4057
    %4118 = vmatmul.f32.gmra.mxu0 %v4048
    %v4119 = vpop.f32.mrf.mxu0
    %v4120 = vadd.f32 0.0, %v4119
    %4121 = vdwg.mxu0
    %4122 = vmatpush.msra.mxu0 0.0
    %4123 = vmatpush.msra.mxu0 0.0
    %4124 = vmatpush.msra.mxu0 0.0
    %4125 = vmatpush.msra.mxu0 0.0
    %4126 = vmatpush.msra.mxu0 0.0
    %4127 = vmatpush.msra.mxu0 0.0
    %4128 = vmatpush.msra.mxu0 0.0
    %4129 = vmatpush.msra.mxu0 0.0
    %4130 = vmatpush.msra.mxu0 0.0
    %4131 = vmatpush.msra.mxu0 0.0
    %4132 = vmatpush.msra.mxu0 0.0
    %4133 = vmatpush.msra.mxu0 0.0
    %4134 = vmatpush.msra.mxu0 0.0
    %4135 = vmatpush.msra.mxu0 0.0
    %4136 = vmatpush.msra.mxu0 0.0
    %4137 = vmatpush.msra.mxu0 %v4060
    %4138 = vmatmul.f32.gmra.mxu0 %v4048
    %v4139 = vpop.f32.mrf.mxu0
    %v4140 = vadd.f32 0.0, %v4139
    %4141 = vdwg.mxu0
    %v4142 = vadd.f32 %v3967, %v4080
    %v4143 = vadd.f32 %v3987, %v4100
    %v4144 = vadd.f32 %v4007, %v4120
    %v4145 = vadd.f32 %v4027, %v4140
    %4146 = vrot.lane.b32.xlu0 %v3800, 65
    %v4147 = vpop.permute.xlu0 %4146
    %4148 = vrot.lane.b32.xlu0 %v3801, 65
    %v4149 = vpop.permute.xlu0 %4148
    %4150 = vrot.lane.b32.xlu0 %v3802, 65
    %v4151 = vpop.permute.xlu0 %4150
    %4152 = vrot.lane.b32.xlu0 %v3803, 65
    %v4153 = vpop.permute.xlu0 %4152
    %v4154 = vsel %vm494, %v4151, %v4153
    %v4155 = vsel %vm494, %v4149, %v4151
    %v4156 = vsel %vm494, %v4147, %v4149
    %v4157 = vsel %vm494, %v4153, %v4147
    %v4158 = vmul.f32 %v4157, %v502
    %v4159 = vmul.f32 %v4156, %v503
    %v4160 = vmul.f32 %v4155, %v504
    %v4161 = vmul.f32 %v4154, %v505
    %s4162 = scalar_lea.vmem %s4, 12
    %v4163 = vld [vmem:[%s4162] sm:$0xf]
    %v4165 = vsel %vm143, %v4163, 0
    %v4168 = vsel %vm147, %v4158, 0
    %v4171 = vsel %vm147, %v4159, 0
    %v4174 = vsel %vm147, %v4160, 0
    %v4177 = vsel %vm147, %v4161, 0
    %4179 = vmatpush.msra.mxu0 0.0
    %4180 = vmatpush.msra.mxu0 0.0
    %4181 = vmatpush.msra.mxu0 0.0
    %4182 = vmatpush.msra.mxu0 0.0
    %4183 = vmatpush.msra.mxu0 0.0
    %4184 = vmatpush.msra.mxu0 0.0
    %4185 = vmatpush.msra.mxu0 0.0
    %4186 = vmatpush.msra.mxu0 0.0
    %4187 = vmatpush.msra.mxu0 0.0
    %4188 = vmatpush.msra.mxu0 0.0
    %4189 = vmatpush.msra.mxu0 0.0
    %4190 = vmatpush.msra.mxu0 0.0
    %4191 = vmatpush.msra.mxu0 0.0
    %4192 = vmatpush.msra.mxu0 0.0
    %4193 = vmatpush.msra.mxu0 0.0
    %4194 = vmatpush.msra.mxu0 %v4168
    %4195 = vmatmul.f32.gmra.mxu0 %v4165
    %v4196 = vpop.f32.mrf.mxu0
    %v4197 = vadd.f32 0.0, %v4196
    %4198 = vdwg.mxu0
    %4199 = vmatpush.msra.mxu0 0.0
    %4200 = vmatpush.msra.mxu0 0.0
    %4201 = vmatpush.msra.mxu0 0.0
    %4202 = vmatpush.msra.mxu0 0.0
    %4203 = vmatpush.msra.mxu0 0.0
    %4204 = vmatpush.msra.mxu0 0.0
    %4205 = vmatpush.msra.mxu0 0.0
    %4206 = vmatpush.msra.mxu0 0.0
    %4207 = vmatpush.msra.mxu0 0.0
    %4208 = vmatpush.msra.mxu0 0.0
    %4209 = vmatpush.msra.mxu0 0.0
    %4210 = vmatpush.msra.mxu0 0.0
    %4211 = vmatpush.msra.mxu0 0.0
    %4212 = vmatpush.msra.mxu0 0.0
    %4213 = vmatpush.msra.mxu0 0.0
    %4214 = vmatpush.msra.mxu0 %v4171
    %4215 = vmatmul.f32.gmra.mxu0 %v4165
    %v4216 = vpop.f32.mrf.mxu0
    %v4217 = vadd.f32 0.0, %v4216
    %4218 = vdwg.mxu0
    %4219 = vmatpush.msra.mxu0 0.0
    %4220 = vmatpush.msra.mxu0 0.0
    %4221 = vmatpush.msra.mxu0 0.0
    %4222 = vmatpush.msra.mxu0 0.0
    %4223 = vmatpush.msra.mxu0 0.0
    %4224 = vmatpush.msra.mxu0 0.0
    %4225 = vmatpush.msra.mxu0 0.0
    %4226 = vmatpush.msra.mxu0 0.0
    %4227 = vmatpush.msra.mxu0 0.0
    %4228 = vmatpush.msra.mxu0 0.0
    %4229 = vmatpush.msra.mxu0 0.0
    %4230 = vmatpush.msra.mxu0 0.0
    %4231 = vmatpush.msra.mxu0 0.0
    %4232 = vmatpush.msra.mxu0 0.0
    %4233 = vmatpush.msra.mxu0 0.0
    %4234 = vmatpush.msra.mxu0 %v4174
    %4235 = vmatmul.f32.gmra.mxu0 %v4165
    %v4236 = vpop.f32.mrf.mxu0
    %v4237 = vadd.f32 0.0, %v4236
    %4238 = vdwg.mxu0
    %4239 = vmatpush.msra.mxu0 0.0
    %4240 = vmatpush.msra.mxu0 0.0
    %4241 = vmatpush.msra.mxu0 0.0
    %4242 = vmatpush.msra.mxu0 0.0
    %4243 = vmatpush.msra.mxu0 0.0
    %4244 = vmatpush.msra.mxu0 0.0
    %4245 = vmatpush.msra.mxu0 0.0
    %4246 = vmatpush.msra.mxu0 0.0
    %4247 = vmatpush.msra.mxu0 0.0
    %4248 = vmatpush.msra.mxu0 0.0
    %4249 = vmatpush.msra.mxu0 0.0
    %4250 = vmatpush.msra.mxu0 0.0
    %4251 = vmatpush.msra.mxu0 0.0
    %4252 = vmatpush.msra.mxu0 0.0
    %4253 = vmatpush.msra.mxu0 0.0
    %4254 = vmatpush.msra.mxu0 %v4177
    %4255 = vmatmul.f32.gmra.mxu0 %v4165
    %v4256 = vpop.f32.mrf.mxu0
    %v4257 = vadd.f32 0.0, %v4256
    %4258 = vdwg.mxu0
    %v4259 = vadd.f32 %v4142, %v4197
    %v4260 = vadd.f32 %v4143, %v4217
    %v4261 = vadd.f32 %v4144, %v4237
    %v4262 = vadd.f32 %v4145, %v4257
    %4263 = vrot.lane.b32.xlu0 %v3800, 64
    %v4264 = vpop.permute.xlu0 %4263
    %4265 = vrot.lane.b32.xlu0 %v3801, 64
    %v4266 = vpop.permute.xlu0 %4265
    %4267 = vrot.lane.b32.xlu0 %v3802, 64
    %v4268 = vpop.permute.xlu0 %4267
    %4269 = vrot.lane.b32.xlu0 %v3803, 64
    %v4270 = vpop.permute.xlu0 %4269
    %v4271 = vsel %vm634, %v4268, %v4270
    %v4272 = vsel %vm634, %v4266, %v4268
    %v4273 = vsel %vm634, %v4264, %v4266
    %v4274 = vsel %vm634, %v4270, %v4264
    %v4275 = vmul.f32 %v4274, %v642
    %v4276 = vmul.f32 %v4273, %v643
    %v4277 = vmul.f32 %v4272, %v644
    %v4278 = vmul.f32 %v4271, %v645
    %s4279 = scalar_lea.vmem %s4, 16
    %v4280 = vld [vmem:[%s4279] sm:$0xf]
    %v4282 = vsel %vm143, %v4280, 0
    %v4285 = vsel %vm147, %v4275, 0
    %v4288 = vsel %vm147, %v4276, 0
    %v4291 = vsel %vm147, %v4277, 0
    %v4294 = vsel %vm147, %v4278, 0
    %4296 = vmatpush.msra.mxu0 0.0
    %4297 = vmatpush.msra.mxu0 0.0
    %4298 = vmatpush.msra.mxu0 0.0
    %4299 = vmatpush.msra.mxu0 0.0
    %4300 = vmatpush.msra.mxu0 0.0
    %4301 = vmatpush.msra.mxu0 0.0
    %4302 = vmatpush.msra.mxu0 0.0
    %4303 = vmatpush.msra.mxu0 0.0
    %4304 = vmatpush.msra.mxu0 0.0
    %4305 = vmatpush.msra.mxu0 0.0
    %4306 = vmatpush.msra.mxu0 0.0
    %4307 = vmatpush.msra.mxu0 0.0
    %4308 = vmatpush.msra.mxu0 0.0
    %4309 = vmatpush.msra.mxu0 0.0
    %4310 = vmatpush.msra.mxu0 0.0
    %4311 = vmatpush.msra.mxu0 %v4285
    %4312 = vmatmul.f32.gmra.mxu0 %v4282
    %v4313 = vpop.f32.mrf.mxu0
    %v4314 = vadd.f32 0.0, %v4313
    %4315 = vdwg.mxu0
    %4316 = vmatpush.msra.mxu0 0.0
    %4317 = vmatpush.msra.mxu0 0.0
    %4318 = vmatpush.msra.mxu0 0.0
    %4319 = vmatpush.msra.mxu0 0.0
    %4320 = vmatpush.msra.mxu0 0.0
    %4321 = vmatpush.msra.mxu0 0.0
    %4322 = vmatpush.msra.mxu0 0.0
    %4323 = vmatpush.msra.mxu0 0.0
    %4324 = vmatpush.msra.mxu0 0.0
    %4325 = vmatpush.msra.mxu0 0.0
    %4326 = vmatpush.msra.mxu0 0.0
    %4327 = vmatpush.msra.mxu0 0.0
    %4328 = vmatpush.msra.mxu0 0.0
    %4329 = vmatpush.msra.mxu0 0.0
    %4330 = vmatpush.msra.mxu0 0.0
    %4331 = vmatpush.msra.mxu0 %v4288
    %4332 = vmatmul.f32.gmra.mxu0 %v4282
    %v4333 = vpop.f32.mrf.mxu0
    %v4334 = vadd.f32 0.0, %v4333
    %4335 = vdwg.mxu0
    %4336 = vmatpush.msra.mxu0 0.0
    %4337 = vmatpush.msra.mxu0 0.0
    %4338 = vmatpush.msra.mxu0 0.0
    %4339 = vmatpush.msra.mxu0 0.0
    %4340 = vmatpush.msra.mxu0 0.0
    %4341 = vmatpush.msra.mxu0 0.0
    %4342 = vmatpush.msra.mxu0 0.0
    %4343 = vmatpush.msra.mxu0 0.0
    %4344 = vmatpush.msra.mxu0 0.0
    %4345 = vmatpush.msra.mxu0 0.0
    %4346 = vmatpush.msra.mxu0 0.0
    %4347 = vmatpush.msra.mxu0 0.0
    %4348 = vmatpush.msra.mxu0 0.0
    %4349 = vmatpush.msra.mxu0 0.0
    %4350 = vmatpush.msra.mxu0 0.0
    %4351 = vmatpush.msra.mxu0 %v4291
    %4352 = vmatmul.f32.gmra.mxu0 %v4282
    %v4353 = vpop.f32.mrf.mxu0
    %v4354 = vadd.f32 0.0, %v4353
    %4355 = vdwg.mxu0
    %4356 = vmatpush.msra.mxu0 0.0
    %4357 = vmatpush.msra.mxu0 0.0
    %4358 = vmatpush.msra.mxu0 0.0
    %4359 = vmatpush.msra.mxu0 0.0
    %4360 = vmatpush.msra.mxu0 0.0
    %4361 = vmatpush.msra.mxu0 0.0
    %4362 = vmatpush.msra.mxu0 0.0
    %4363 = vmatpush.msra.mxu0 0.0
    %4364 = vmatpush.msra.mxu0 0.0
    %4365 = vmatpush.msra.mxu0 0.0
    %4366 = vmatpush.msra.mxu0 0.0
    %4367 = vmatpush.msra.mxu0 0.0
    %4368 = vmatpush.msra.mxu0 0.0
    %4369 = vmatpush.msra.mxu0 0.0
    %4370 = vmatpush.msra.mxu0 0.0
    %4371 = vmatpush.msra.mxu0 %v4294
    %4372 = vmatmul.f32.gmra.mxu0 %v4282
    %v4373 = vpop.f32.mrf.mxu0
    %v4374 = vadd.f32 0.0, %v4373
    %4375 = vdwg.mxu0
    %v4376 = vadd.f32 %v4259, %v4314
    %v4377 = vadd.f32 %v4260, %v4334
    %v4378 = vadd.f32 %v4261, %v4354
    %v4379 = vadd.f32 %v4262, %v4374
    %4380 = vrot.lane.b32.xlu0 %v3800, 63
    %v4381 = vpop.permute.xlu0 %4380
    %4382 = vrot.lane.b32.xlu0 %v3801, 63
    %v4383 = vpop.permute.xlu0 %4382
    %4384 = vrot.lane.b32.xlu0 %v3802, 63
    %v4385 = vpop.permute.xlu0 %4384
    %4386 = vrot.lane.b32.xlu0 %v3803, 63
    %v4387 = vpop.permute.xlu0 %4386
    %v4388 = vsel %vm774, %v4385, %v4387
    %v4389 = vsel %vm774, %v4383, %v4385
    %v4390 = vsel %vm774, %v4381, %v4383
    %v4391 = vsel %vm774, %v4387, %v4381
    %v4392 = vmul.f32 %v4391, %v782
    %v4393 = vmul.f32 %v4390, %v783
    %v4394 = vmul.f32 %v4389, %v784
    %v4395 = vmul.f32 %v4388, %v785
    %s4396 = scalar_lea.vmem %s4, 20
    %v4397 = vld [vmem:[%s4396] sm:$0xf]
    %v4399 = vsel %vm143, %v4397, 0
    %v4402 = vsel %vm147, %v4392, 0
    %v4405 = vsel %vm147, %v4393, 0
    %v4408 = vsel %vm147, %v4394, 0
    %v4411 = vsel %vm147, %v4395, 0
    %4413 = vmatpush.msra.mxu0 0.0
    %4414 = vmatpush.msra.mxu0 0.0
    %4415 = vmatpush.msra.mxu0 0.0
    %4416 = vmatpush.msra.mxu0 0.0
    %4417 = vmatpush.msra.mxu0 0.0
    %4418 = vmatpush.msra.mxu0 0.0
    %4419 = vmatpush.msra.mxu0 0.0
    %4420 = vmatpush.msra.mxu0 0.0
    %4421 = vmatpush.msra.mxu0 0.0
    %4422 = vmatpush.msra.mxu0 0.0
    %4423 = vmatpush.msra.mxu0 0.0
    %4424 = vmatpush.msra.mxu0 0.0
    %4425 = vmatpush.msra.mxu0 0.0
    %4426 = vmatpush.msra.mxu0 0.0
    %4427 = vmatpush.msra.mxu0 0.0
    %4428 = vmatpush.msra.mxu0 %v4402
    %4429 = vmatmul.f32.gmra.mxu0 %v4399
    %v4430 = vpop.f32.mrf.mxu0
    %v4431 = vadd.f32 0.0, %v4430
    %4432 = vdwg.mxu0
    %4433 = vmatpush.msra.mxu0 0.0
    %4434 = vmatpush.msra.mxu0 0.0
    %4435 = vmatpush.msra.mxu0 0.0
    %4436 = vmatpush.msra.mxu0 0.0
    %4437 = vmatpush.msra.mxu0 0.0
    %4438 = vmatpush.msra.mxu0 0.0
    %4439 = vmatpush.msra.mxu0 0.0
    %4440 = vmatpush.msra.mxu0 0.0
    %4441 = vmatpush.msra.mxu0 0.0
    %4442 = vmatpush.msra.mxu0 0.0
    %4443 = vmatpush.msra.mxu0 0.0
    %4444 = vmatpush.msra.mxu0 0.0
    %4445 = vmatpush.msra.mxu0 0.0
    %4446 = vmatpush.msra.mxu0 0.0
    %4447 = vmatpush.msra.mxu0 0.0
    %4448 = vmatpush.msra.mxu0 %v4405
    %4449 = vmatmul.f32.gmra.mxu0 %v4399
    %v4450 = vpop.f32.mrf.mxu0
    %v4451 = vadd.f32 0.0, %v4450
    %4452 = vdwg.mxu0
    %4453 = vmatpush.msra.mxu0 0.0
    %4454 = vmatpush.msra.mxu0 0.0
    %4455 = vmatpush.msra.mxu0 0.0
    %4456 = vmatpush.msra.mxu0 0.0
    %4457 = vmatpush.msra.mxu0 0.0
    %4458 = vmatpush.msra.mxu0 0.0
    %4459 = vmatpush.msra.mxu0 0.0
    %4460 = vmatpush.msra.mxu0 0.0
    %4461 = vmatpush.msra.mxu0 0.0
    %4462 = vmatpush.msra.mxu0 0.0
    %4463 = vmatpush.msra.mxu0 0.0
    %4464 = vmatpush.msra.mxu0 0.0
    %4465 = vmatpush.msra.mxu0 0.0
    %4466 = vmatpush.msra.mxu0 0.0
    %4467 = vmatpush.msra.mxu0 0.0
    %4468 = vmatpush.msra.mxu0 %v4408
    %4469 = vmatmul.f32.gmra.mxu0 %v4399
    %v4470 = vpop.f32.mrf.mxu0
    %v4471 = vadd.f32 0.0, %v4470
    %4472 = vdwg.mxu0
    %4473 = vmatpush.msra.mxu0 0.0
    %4474 = vmatpush.msra.mxu0 0.0
    %4475 = vmatpush.msra.mxu0 0.0
    %4476 = vmatpush.msra.mxu0 0.0
    %4477 = vmatpush.msra.mxu0 0.0
    %4478 = vmatpush.msra.mxu0 0.0
    %4479 = vmatpush.msra.mxu0 0.0
    %4480 = vmatpush.msra.mxu0 0.0
    %4481 = vmatpush.msra.mxu0 0.0
    %4482 = vmatpush.msra.mxu0 0.0
    %4483 = vmatpush.msra.mxu0 0.0
    %4484 = vmatpush.msra.mxu0 0.0
    %4485 = vmatpush.msra.mxu0 0.0
    %4486 = vmatpush.msra.mxu0 0.0
    %4487 = vmatpush.msra.mxu0 0.0
    %4488 = vmatpush.msra.mxu0 %v4411
    %4489 = vmatmul.f32.gmra.mxu0 %v4399
    %v4490 = vpop.f32.mrf.mxu0
    %v4491 = vadd.f32 0.0, %v4490
    %4492 = vdwg.mxu0
    %v4493 = vadd.f32 %v4376, %v4431
    %v4494 = vadd.f32 %v4377, %v4451
    %v4495 = vadd.f32 %v4378, %v4471
    %v4496 = vadd.f32 %v4379, %v4491
    %4497 = vrot.lane.b32.xlu0 %v3800, 57
    %v4498 = vpop.permute.xlu0 %4497
    %4499 = vrot.lane.b32.xlu0 %v3801, 57
    %v4500 = vpop.permute.xlu0 %4499
    %4501 = vrot.lane.b32.xlu0 %v3802, 57
    %v4502 = vpop.permute.xlu0 %4501
    %4503 = vrot.lane.b32.xlu0 %v3803, 57
    %v4504 = vpop.permute.xlu0 %4503
    %v4505 = vsel %vm914, %v4502, %v4504
    %v4506 = vsel %vm914, %v4500, %v4502
    %v4507 = vsel %vm914, %v4498, %v4500
    %v4508 = vsel %vm914, %v4504, %v4498
    %v4509 = vmul.f32 %v4508, %v922
    %v4510 = vmul.f32 %v4507, %v923
    %v4511 = vmul.f32 %v4506, %v924
    %v4512 = vmul.f32 %v4505, %v925
    %s4513 = scalar_lea.vmem %s4, 24
    %v4514 = vld [vmem:[%s4513] sm:$0xf]
    %v4516 = vsel %vm143, %v4514, 0
    %v4519 = vsel %vm147, %v4509, 0
    %v4522 = vsel %vm147, %v4510, 0
    %v4525 = vsel %vm147, %v4511, 0
    %v4528 = vsel %vm147, %v4512, 0
    %4530 = vmatpush.msra.mxu0 0.0
    %4531 = vmatpush.msra.mxu0 0.0
    %4532 = vmatpush.msra.mxu0 0.0
    %4533 = vmatpush.msra.mxu0 0.0
    %4534 = vmatpush.msra.mxu0 0.0
    %4535 = vmatpush.msra.mxu0 0.0
    %4536 = vmatpush.msra.mxu0 0.0
    %4537 = vmatpush.msra.mxu0 0.0
    %4538 = vmatpush.msra.mxu0 0.0
    %4539 = vmatpush.msra.mxu0 0.0
    %4540 = vmatpush.msra.mxu0 0.0
    %4541 = vmatpush.msra.mxu0 0.0
    %4542 = vmatpush.msra.mxu0 0.0
    %4543 = vmatpush.msra.mxu0 0.0
    %4544 = vmatpush.msra.mxu0 0.0
    %4545 = vmatpush.msra.mxu0 %v4519
    %4546 = vmatmul.f32.gmra.mxu0 %v4516
    %v4547 = vpop.f32.mrf.mxu0
    %v4548 = vadd.f32 0.0, %v4547
    %4549 = vdwg.mxu0
    %4550 = vmatpush.msra.mxu0 0.0
    %4551 = vmatpush.msra.mxu0 0.0
    %4552 = vmatpush.msra.mxu0 0.0
    %4553 = vmatpush.msra.mxu0 0.0
    %4554 = vmatpush.msra.mxu0 0.0
    %4555 = vmatpush.msra.mxu0 0.0
    %4556 = vmatpush.msra.mxu0 0.0
    %4557 = vmatpush.msra.mxu0 0.0
    %4558 = vmatpush.msra.mxu0 0.0
    %4559 = vmatpush.msra.mxu0 0.0
    %4560 = vmatpush.msra.mxu0 0.0
    %4561 = vmatpush.msra.mxu0 0.0
    %4562 = vmatpush.msra.mxu0 0.0
    %4563 = vmatpush.msra.mxu0 0.0
    %4564 = vmatpush.msra.mxu0 0.0
    %4565 = vmatpush.msra.mxu0 %v4522
    %4566 = vmatmul.f32.gmra.mxu0 %v4516
    %v4567 = vpop.f32.mrf.mxu0
    %v4568 = vadd.f32 0.0, %v4567
    %4569 = vdwg.mxu0
    %4570 = vmatpush.msra.mxu0 0.0
    %4571 = vmatpush.msra.mxu0 0.0
    %4572 = vmatpush.msra.mxu0 0.0
    %4573 = vmatpush.msra.mxu0 0.0
    %4574 = vmatpush.msra.mxu0 0.0
    %4575 = vmatpush.msra.mxu0 0.0
    %4576 = vmatpush.msra.mxu0 0.0
    %4577 = vmatpush.msra.mxu0 0.0
    %4578 = vmatpush.msra.mxu0 0.0
    %4579 = vmatpush.msra.mxu0 0.0
    %4580 = vmatpush.msra.mxu0 0.0
    %4581 = vmatpush.msra.mxu0 0.0
    %4582 = vmatpush.msra.mxu0 0.0
    %4583 = vmatpush.msra.mxu0 0.0
    %4584 = vmatpush.msra.mxu0 0.0
    %4585 = vmatpush.msra.mxu0 %v4525
    %4586 = vmatmul.f32.gmra.mxu0 %v4516
    %v4587 = vpop.f32.mrf.mxu0
    %v4588 = vadd.f32 0.0, %v4587
    %4589 = vdwg.mxu0
    %4590 = vmatpush.msra.mxu0 0.0
    %4591 = vmatpush.msra.mxu0 0.0
    %4592 = vmatpush.msra.mxu0 0.0
    %4593 = vmatpush.msra.mxu0 0.0
    %4594 = vmatpush.msra.mxu0 0.0
    %4595 = vmatpush.msra.mxu0 0.0
    %4596 = vmatpush.msra.mxu0 0.0
    %4597 = vmatpush.msra.mxu0 0.0
    %4598 = vmatpush.msra.mxu0 0.0
    %4599 = vmatpush.msra.mxu0 0.0
    %4600 = vmatpush.msra.mxu0 0.0
    %4601 = vmatpush.msra.mxu0 0.0
    %4602 = vmatpush.msra.mxu0 0.0
    %4603 = vmatpush.msra.mxu0 0.0
    %4604 = vmatpush.msra.mxu0 0.0
    %4605 = vmatpush.msra.mxu0 %v4528
    %4606 = vmatmul.f32.gmra.mxu0 %v4516
    %v4607 = vpop.f32.mrf.mxu0
    %v4608 = vadd.f32 0.0, %v4607
    %4609 = vdwg.mxu0
    %v4610 = vadd.f32 %v4493, %v4548
    %v4611 = vadd.f32 %v4494, %v4568
    %v4612 = vadd.f32 %v4495, %v4588
    %v4613 = vadd.f32 %v4496, %v4608
    %4614 = vrot.lane.b32.xlu0 %v3800, 56
    %v4615 = vpop.permute.xlu0 %4614
    %4616 = vrot.lane.b32.xlu0 %v3801, 56
    %v4617 = vpop.permute.xlu0 %4616
    %4618 = vrot.lane.b32.xlu0 %v3802, 56
    %v4619 = vpop.permute.xlu0 %4618
    %4620 = vrot.lane.b32.xlu0 %v3803, 56
    %v4621 = vpop.permute.xlu0 %4620
    %v4622 = vsel %vm1054, %v4619, %v4621
    %v4623 = vsel %vm1054, %v4617, %v4619
    %v4624 = vsel %vm1054, %v4615, %v4617
    %v4625 = vsel %vm1054, %v4621, %v4615
    %v4626 = vmul.f32 %v4625, %v1062
    %v4627 = vmul.f32 %v4624, %v1063
    %v4628 = vmul.f32 %v4623, %v1064
    %v4629 = vmul.f32 %v4622, %v1065
    %s4630 = scalar_lea.vmem %s4, 28
    %v4631 = vld [vmem:[%s4630] sm:$0xf]
    %v4633 = vsel %vm143, %v4631, 0
    %v4636 = vsel %vm147, %v4626, 0
    %v4639 = vsel %vm147, %v4627, 0
    %v4642 = vsel %vm147, %v4628, 0
    %v4645 = vsel %vm147, %v4629, 0
    %4647 = vmatpush.msra.mxu0 0.0
    %4648 = vmatpush.msra.mxu0 0.0
    %4649 = vmatpush.msra.mxu0 0.0
    %4650 = vmatpush.msra.mxu0 0.0
    %4651 = vmatpush.msra.mxu0 0.0
    %4652 = vmatpush.msra.mxu0 0.0
    %4653 = vmatpush.msra.mxu0 0.0
    %4654 = vmatpush.msra.mxu0 0.0
    %4655 = vmatpush.msra.mxu0 0.0
    %4656 = vmatpush.msra.mxu0 0.0
    %4657 = vmatpush.msra.mxu0 0.0
    %4658 = vmatpush.msra.mxu0 0.0
    %4659 = vmatpush.msra.mxu0 0.0
    %4660 = vmatpush.msra.mxu0 0.0
    %4661 = vmatpush.msra.mxu0 0.0
    %4662 = vmatpush.msra.mxu0 %v4636
    %4663 = vmatmul.f32.gmra.mxu0 %v4633
    %v4664 = vpop.f32.mrf.mxu0
    %v4665 = vadd.f32 0.0, %v4664
    %4666 = vdwg.mxu0
    %4667 = vmatpush.msra.mxu0 0.0
    %4668 = vmatpush.msra.mxu0 0.0
    %4669 = vmatpush.msra.mxu0 0.0
    %4670 = vmatpush.msra.mxu0 0.0
    %4671 = vmatpush.msra.mxu0 0.0
    %4672 = vmatpush.msra.mxu0 0.0
    %4673 = vmatpush.msra.mxu0 0.0
    %4674 = vmatpush.msra.mxu0 0.0
    %4675 = vmatpush.msra.mxu0 0.0
    %4676 = vmatpush.msra.mxu0 0.0
    %4677 = vmatpush.msra.mxu0 0.0
    %4678 = vmatpush.msra.mxu0 0.0
    %4679 = vmatpush.msra.mxu0 0.0
    %4680 = vmatpush.msra.mxu0 0.0
    %4681 = vmatpush.msra.mxu0 0.0
    %4682 = vmatpush.msra.mxu0 %v4639
    %4683 = vmatmul.f32.gmra.mxu0 %v4633
    %v4684 = vpop.f32.mrf.mxu0
    %v4685 = vadd.f32 0.0, %v4684
    %4686 = vdwg.mxu0
    %4687 = vmatpush.msra.mxu0 0.0
    %4688 = vmatpush.msra.mxu0 0.0
    %4689 = vmatpush.msra.mxu0 0.0
    %4690 = vmatpush.msra.mxu0 0.0
    %4691 = vmatpush.msra.mxu0 0.0
    %4692 = vmatpush.msra.mxu0 0.0
    %4693 = vmatpush.msra.mxu0 0.0
    %4694 = vmatpush.msra.mxu0 0.0
    %4695 = vmatpush.msra.mxu0 0.0
    %4696 = vmatpush.msra.mxu0 0.0
    %4697 = vmatpush.msra.mxu0 0.0
    %4698 = vmatpush.msra.mxu0 0.0
    %4699 = vmatpush.msra.mxu0 0.0
    %4700 = vmatpush.msra.mxu0 0.0
    %4701 = vmatpush.msra.mxu0 0.0
    %4702 = vmatpush.msra.mxu0 %v4642
    %4703 = vmatmul.f32.gmra.mxu0 %v4633
    %v4704 = vpop.f32.mrf.mxu0
    %v4705 = vadd.f32 0.0, %v4704
    %4706 = vdwg.mxu0
    %4707 = vmatpush.msra.mxu0 0.0
    %4708 = vmatpush.msra.mxu0 0.0
    %4709 = vmatpush.msra.mxu0 0.0
    %4710 = vmatpush.msra.mxu0 0.0
    %4711 = vmatpush.msra.mxu0 0.0
    %4712 = vmatpush.msra.mxu0 0.0
    %4713 = vmatpush.msra.mxu0 0.0
    %4714 = vmatpush.msra.mxu0 0.0
    %4715 = vmatpush.msra.mxu0 0.0
    %4716 = vmatpush.msra.mxu0 0.0
    %4717 = vmatpush.msra.mxu0 0.0
    %4718 = vmatpush.msra.mxu0 0.0
    %4719 = vmatpush.msra.mxu0 0.0
    %4720 = vmatpush.msra.mxu0 0.0
    %4721 = vmatpush.msra.mxu0 0.0
    %4722 = vmatpush.msra.mxu0 %v4645
    %4723 = vmatmul.f32.gmra.mxu0 %v4633
    %v4724 = vpop.f32.mrf.mxu0
    %v4725 = vadd.f32 0.0, %v4724
    %4726 = vdwg.mxu0
    %v4727 = vadd.f32 %v4610, %v4665
    %v4728 = vadd.f32 %v4611, %v4685
    %v4729 = vadd.f32 %v4612, %v4705
    %v4730 = vadd.f32 %v4613, %v4725
    %4731 = vrot.lane.b32.xlu0 %v3800, 55
    %v4732 = vpop.permute.xlu0 %4731
    %4733 = vrot.lane.b32.xlu0 %v3801, 55
    %v4734 = vpop.permute.xlu0 %4733
    %4735 = vrot.lane.b32.xlu0 %v3802, 55
    %v4736 = vpop.permute.xlu0 %4735
    %4737 = vrot.lane.b32.xlu0 %v3803, 55
    %v4738 = vpop.permute.xlu0 %4737
    %v4739 = vsel %vm1194, %v4736, %v4738
    %v4740 = vsel %vm1194, %v4734, %v4736
    %v4741 = vsel %vm1194, %v4732, %v4734
    %v4742 = vsel %vm1194, %v4738, %v4732
    %v4743 = vmul.f32 %v4742, %v1202
    %v4744 = vmul.f32 %v4741, %v1203
    %v4745 = vmul.f32 %v4740, %v1204
    %v4746 = vmul.f32 %v4739, %v1205
    %s4747 = scalar_lea.vmem %s4, 32
    %v4748 = vld [vmem:[%s4747] sm:$0xf]
    %v4750 = vsel %vm143, %v4748, 0
    %v4753 = vsel %vm147, %v4743, 0
    %v4756 = vsel %vm147, %v4744, 0
    %v4759 = vsel %vm147, %v4745, 0
    %v4762 = vsel %vm147, %v4746, 0
    %4764 = vmatpush.msra.mxu0 0.0
    %4765 = vmatpush.msra.mxu0 0.0
    %4766 = vmatpush.msra.mxu0 0.0
    %4767 = vmatpush.msra.mxu0 0.0
    %4768 = vmatpush.msra.mxu0 0.0
    %4769 = vmatpush.msra.mxu0 0.0
    %4770 = vmatpush.msra.mxu0 0.0
    %4771 = vmatpush.msra.mxu0 0.0
    %4772 = vmatpush.msra.mxu0 0.0
    %4773 = vmatpush.msra.mxu0 0.0
    %4774 = vmatpush.msra.mxu0 0.0
    %4775 = vmatpush.msra.mxu0 0.0
    %4776 = vmatpush.msra.mxu0 0.0
    %4777 = vmatpush.msra.mxu0 0.0
    %4778 = vmatpush.msra.mxu0 0.0
    %4779 = vmatpush.msra.mxu0 %v4753
    %4780 = vmatmul.f32.gmra.mxu0 %v4750
    %v4781 = vpop.f32.mrf.mxu0
    %v4782 = vadd.f32 0.0, %v4781
    %4783 = vdwg.mxu0
    %4784 = vmatpush.msra.mxu0 0.0
    %4785 = vmatpush.msra.mxu0 0.0
    %4786 = vmatpush.msra.mxu0 0.0
    %4787 = vmatpush.msra.mxu0 0.0
    %4788 = vmatpush.msra.mxu0 0.0
    %4789 = vmatpush.msra.mxu0 0.0
    %4790 = vmatpush.msra.mxu0 0.0
    %4791 = vmatpush.msra.mxu0 0.0
    %4792 = vmatpush.msra.mxu0 0.0
    %4793 = vmatpush.msra.mxu0 0.0
    %4794 = vmatpush.msra.mxu0 0.0
    %4795 = vmatpush.msra.mxu0 0.0
    %4796 = vmatpush.msra.mxu0 0.0
    %4797 = vmatpush.msra.mxu0 0.0
    %4798 = vmatpush.msra.mxu0 0.0
    %4799 = vmatpush.msra.mxu0 %v4756
    %4800 = vmatmul.f32.gmra.mxu0 %v4750
    %v4801 = vpop.f32.mrf.mxu0
    %v4802 = vadd.f32 0.0, %v4801
    %4803 = vdwg.mxu0
    %4804 = vmatpush.msra.mxu0 0.0
    %4805 = vmatpush.msra.mxu0 0.0
    %4806 = vmatpush.msra.mxu0 0.0
    %4807 = vmatpush.msra.mxu0 0.0
    %4808 = vmatpush.msra.mxu0 0.0
    %4809 = vmatpush.msra.mxu0 0.0
    %4810 = vmatpush.msra.mxu0 0.0
    %4811 = vmatpush.msra.mxu0 0.0
    %4812 = vmatpush.msra.mxu0 0.0
    %4813 = vmatpush.msra.mxu0 0.0
    %4814 = vmatpush.msra.mxu0 0.0
    %4815 = vmatpush.msra.mxu0 0.0
    %4816 = vmatpush.msra.mxu0 0.0
    %4817 = vmatpush.msra.mxu0 0.0
    %4818 = vmatpush.msra.mxu0 0.0
    %4819 = vmatpush.msra.mxu0 %v4759
    %4820 = vmatmul.f32.gmra.mxu0 %v4750
    %v4821 = vpop.f32.mrf.mxu0
    %v4822 = vadd.f32 0.0, %v4821
    %4823 = vdwg.mxu0
    %4824 = vmatpush.msra.mxu0 0.0
    %4825 = vmatpush.msra.mxu0 0.0
    %4826 = vmatpush.msra.mxu0 0.0
    %4827 = vmatpush.msra.mxu0 0.0
    %4828 = vmatpush.msra.mxu0 0.0
    %4829 = vmatpush.msra.mxu0 0.0
    %4830 = vmatpush.msra.mxu0 0.0
    %4831 = vmatpush.msra.mxu0 0.0
    %4832 = vmatpush.msra.mxu0 0.0
    %4833 = vmatpush.msra.mxu0 0.0
    %4834 = vmatpush.msra.mxu0 0.0
    %4835 = vmatpush.msra.mxu0 0.0
    %4836 = vmatpush.msra.mxu0 0.0
    %4837 = vmatpush.msra.mxu0 0.0
    %4838 = vmatpush.msra.mxu0 0.0
    %4839 = vmatpush.msra.mxu0 %v4762
    %4840 = vmatmul.f32.gmra.mxu0 %v4750
    %v4841 = vpop.f32.mrf.mxu0
    %v4842 = vadd.f32 0.0, %v4841
    %4843 = vdwg.mxu0
    %v4844 = vadd.f32 %v4727, %v4782
    %v4845 = vadd.f32 %v4728, %v4802
    %v4846 = vadd.f32 %v4729, %v4822
    %v4847 = vadd.f32 %v4730, %v4842
    %4848 = vrot.lane.b32.xlu0 %v3800, 9
    %v4849 = vpop.permute.xlu0 %4848
    %4850 = vrot.lane.b32.xlu0 %v3801, 9
    %v4851 = vpop.permute.xlu0 %4850
    %4852 = vrot.lane.b32.xlu0 %v3802, 9
    %v4853 = vpop.permute.xlu0 %4852
    %4854 = vrot.lane.b32.xlu0 %v3803, 9
    %v4855 = vpop.permute.xlu0 %4854
    %v4856 = vsel %vm1334, %v4853, %v4855
    %v4857 = vsel %vm1334, %v4851, %v4853
    %v4858 = vsel %vm1334, %v4849, %v4851
    %v4859 = vsel %vm1334, %v4855, %v4849
    %v4860 = vmul.f32 %v4859, %v1342
    %v4861 = vmul.f32 %v4858, %v1343
    %v4862 = vmul.f32 %v4857, %v1344
    %v4863 = vmul.f32 %v4856, %v1345
    %s4864 = scalar_lea.vmem %s4, 36
    %v4865 = vld [vmem:[%s4864] sm:$0xf]
    %v4867 = vsel %vm143, %v4865, 0
    %v4870 = vsel %vm147, %v4860, 0
    %v4873 = vsel %vm147, %v4861, 0
    %v4876 = vsel %vm147, %v4862, 0
    %v4879 = vsel %vm147, %v4863, 0
    %4881 = vmatpush.msra.mxu0 0.0
    %4882 = vmatpush.msra.mxu0 0.0
    %4883 = vmatpush.msra.mxu0 0.0
    %4884 = vmatpush.msra.mxu0 0.0
    %4885 = vmatpush.msra.mxu0 0.0
    %4886 = vmatpush.msra.mxu0 0.0
    %4887 = vmatpush.msra.mxu0 0.0
    %4888 = vmatpush.msra.mxu0 0.0
    %4889 = vmatpush.msra.mxu0 0.0
    %4890 = vmatpush.msra.mxu0 0.0
    %4891 = vmatpush.msra.mxu0 0.0
    %4892 = vmatpush.msra.mxu0 0.0
    %4893 = vmatpush.msra.mxu0 0.0
    %4894 = vmatpush.msra.mxu0 0.0
    %4895 = vmatpush.msra.mxu0 0.0
    %4896 = vmatpush.msra.mxu0 %v4870
    %4897 = vmatmul.f32.gmra.mxu0 %v4867
    %v4898 = vpop.f32.mrf.mxu0
    %v4899 = vadd.f32 0.0, %v4898
    %4900 = vdwg.mxu0
    %4901 = vmatpush.msra.mxu0 0.0
    %4902 = vmatpush.msra.mxu0 0.0
    %4903 = vmatpush.msra.mxu0 0.0
    %4904 = vmatpush.msra.mxu0 0.0
    %4905 = vmatpush.msra.mxu0 0.0
    %4906 = vmatpush.msra.mxu0 0.0
    %4907 = vmatpush.msra.mxu0 0.0
    %4908 = vmatpush.msra.mxu0 0.0
    %4909 = vmatpush.msra.mxu0 0.0
    %4910 = vmatpush.msra.mxu0 0.0
    %4911 = vmatpush.msra.mxu0 0.0
    %4912 = vmatpush.msra.mxu0 0.0
    %4913 = vmatpush.msra.mxu0 0.0
    %4914 = vmatpush.msra.mxu0 0.0
    %4915 = vmatpush.msra.mxu0 0.0
    %4916 = vmatpush.msra.mxu0 %v4873
    %4917 = vmatmul.f32.gmra.mxu0 %v4867
    %v4918 = vpop.f32.mrf.mxu0
    %v4919 = vadd.f32 0.0, %v4918
    %4920 = vdwg.mxu0
    %4921 = vmatpush.msra.mxu0 0.0
    %4922 = vmatpush.msra.mxu0 0.0
    %4923 = vmatpush.msra.mxu0 0.0
    %4924 = vmatpush.msra.mxu0 0.0
    %4925 = vmatpush.msra.mxu0 0.0
    %4926 = vmatpush.msra.mxu0 0.0
    %4927 = vmatpush.msra.mxu0 0.0
    %4928 = vmatpush.msra.mxu0 0.0
    %4929 = vmatpush.msra.mxu0 0.0
    %4930 = vmatpush.msra.mxu0 0.0
    %4931 = vmatpush.msra.mxu0 0.0
    %4932 = vmatpush.msra.mxu0 0.0
    %4933 = vmatpush.msra.mxu0 0.0
    %4934 = vmatpush.msra.mxu0 0.0
    %4935 = vmatpush.msra.mxu0 0.0
    %4936 = vmatpush.msra.mxu0 %v4876
    %4937 = vmatmul.f32.gmra.mxu0 %v4867
    %v4938 = vpop.f32.mrf.mxu0
    %v4939 = vadd.f32 0.0, %v4938
    %4940 = vdwg.mxu0
    %4941 = vmatpush.msra.mxu0 0.0
    %4942 = vmatpush.msra.mxu0 0.0
    %4943 = vmatpush.msra.mxu0 0.0
    %4944 = vmatpush.msra.mxu0 0.0
    %4945 = vmatpush.msra.mxu0 0.0
    %4946 = vmatpush.msra.mxu0 0.0
    %4947 = vmatpush.msra.mxu0 0.0
    %4948 = vmatpush.msra.mxu0 0.0
    %4949 = vmatpush.msra.mxu0 0.0
    %4950 = vmatpush.msra.mxu0 0.0
    %4951 = vmatpush.msra.mxu0 0.0
    %4952 = vmatpush.msra.mxu0 0.0
    %4953 = vmatpush.msra.mxu0 0.0
    %4954 = vmatpush.msra.mxu0 0.0
    %4955 = vmatpush.msra.mxu0 0.0
    %4956 = vmatpush.msra.mxu0 %v4879
    %4957 = vmatmul.f32.gmra.mxu0 %v4867
    %v4958 = vpop.f32.mrf.mxu0
    %v4959 = vadd.f32 0.0, %v4958
    %4960 = vdwg.mxu0
    %v4961 = vadd.f32 %v4844, %v4899
    %v4962 = vadd.f32 %v4845, %v4919
    %v4963 = vadd.f32 %v4846, %v4939
    %v4964 = vadd.f32 %v4847, %v4959
    %4965 = vrot.lane.b32.xlu0 %v3800, 8
    %v4966 = vpop.permute.xlu0 %4965
    %4967 = vrot.lane.b32.xlu0 %v3801, 8
    %v4968 = vpop.permute.xlu0 %4967
    %4969 = vrot.lane.b32.xlu0 %v3802, 8
    %v4970 = vpop.permute.xlu0 %4969
    %4971 = vrot.lane.b32.xlu0 %v3803, 8
    %v4972 = vpop.permute.xlu0 %4971
    %v4973 = vsel %vm1474, %v4970, %v4972
    %v4974 = vsel %vm1474, %v4968, %v4970
    %v4975 = vsel %vm1474, %v4966, %v4968
    %v4976 = vsel %vm1474, %v4972, %v4966
    %v4977 = vmul.f32 %v4976, %v1482
    %v4978 = vmul.f32 %v4975, %v1483
    %v4979 = vmul.f32 %v4974, %v1484
    %v4980 = vmul.f32 %v4973, %v1485
    %s4981 = scalar_lea.vmem %s4, 40
    %v4982 = vld [vmem:[%s4981] sm:$0xf]
    %v4984 = vsel %vm143, %v4982, 0
    %v4987 = vsel %vm147, %v4977, 0
    %v4990 = vsel %vm147, %v4978, 0
    %v4993 = vsel %vm147, %v4979, 0
    %v4996 = vsel %vm147, %v4980, 0
    %4998 = vmatpush.msra.mxu0 0.0
    %4999 = vmatpush.msra.mxu0 0.0
    %5000 = vmatpush.msra.mxu0 0.0
    %5001 = vmatpush.msra.mxu0 0.0
    %5002 = vmatpush.msra.mxu0 0.0
    %5003 = vmatpush.msra.mxu0 0.0
    %5004 = vmatpush.msra.mxu0 0.0
    %5005 = vmatpush.msra.mxu0 0.0
    %5006 = vmatpush.msra.mxu0 0.0
    %5007 = vmatpush.msra.mxu0 0.0
    %5008 = vmatpush.msra.mxu0 0.0
    %5009 = vmatpush.msra.mxu0 0.0
    %5010 = vmatpush.msra.mxu0 0.0
    %5011 = vmatpush.msra.mxu0 0.0
    %5012 = vmatpush.msra.mxu0 0.0
    %5013 = vmatpush.msra.mxu0 %v4987
    %5014 = vmatmul.f32.gmra.mxu0 %v4984
    %v5015 = vpop.f32.mrf.mxu0
    %v5016 = vadd.f32 0.0, %v5015
    %5017 = vdwg.mxu0
    %5018 = vmatpush.msra.mxu0 0.0
    %5019 = vmatpush.msra.mxu0 0.0
    %5020 = vmatpush.msra.mxu0 0.0
    %5021 = vmatpush.msra.mxu0 0.0
    %5022 = vmatpush.msra.mxu0 0.0
    %5023 = vmatpush.msra.mxu0 0.0
    %5024 = vmatpush.msra.mxu0 0.0
    %5025 = vmatpush.msra.mxu0 0.0
    %5026 = vmatpush.msra.mxu0 0.0
    %5027 = vmatpush.msra.mxu0 0.0
    %5028 = vmatpush.msra.mxu0 0.0
    %5029 = vmatpush.msra.mxu0 0.0
    %5030 = vmatpush.msra.mxu0 0.0
    %5031 = vmatpush.msra.mxu0 0.0
    %5032 = vmatpush.msra.mxu0 0.0
    %5033 = vmatpush.msra.mxu0 %v4990
    %5034 = vmatmul.f32.gmra.mxu0 %v4984
    %v5035 = vpop.f32.mrf.mxu0
    %v5036 = vadd.f32 0.0, %v5035
    %5037 = vdwg.mxu0
    %5038 = vmatpush.msra.mxu0 0.0
    %5039 = vmatpush.msra.mxu0 0.0
    %5040 = vmatpush.msra.mxu0 0.0
    %5041 = vmatpush.msra.mxu0 0.0
    %5042 = vmatpush.msra.mxu0 0.0
    %5043 = vmatpush.msra.mxu0 0.0
    %5044 = vmatpush.msra.mxu0 0.0
    %5045 = vmatpush.msra.mxu0 0.0
    %5046 = vmatpush.msra.mxu0 0.0
    %5047 = vmatpush.msra.mxu0 0.0
    %5048 = vmatpush.msra.mxu0 0.0
    %5049 = vmatpush.msra.mxu0 0.0
    %5050 = vmatpush.msra.mxu0 0.0
    %5051 = vmatpush.msra.mxu0 0.0
    %5052 = vmatpush.msra.mxu0 0.0
    %5053 = vmatpush.msra.mxu0 %v4993
    %5054 = vmatmul.f32.gmra.mxu0 %v4984
    %v5055 = vpop.f32.mrf.mxu0
    %v5056 = vadd.f32 0.0, %v5055
    %5057 = vdwg.mxu0
    %5058 = vmatpush.msra.mxu0 0.0
    %5059 = vmatpush.msra.mxu0 0.0
    %5060 = vmatpush.msra.mxu0 0.0
    %5061 = vmatpush.msra.mxu0 0.0
    %5062 = vmatpush.msra.mxu0 0.0
    %5063 = vmatpush.msra.mxu0 0.0
    %5064 = vmatpush.msra.mxu0 0.0
    %5065 = vmatpush.msra.mxu0 0.0
    %5066 = vmatpush.msra.mxu0 0.0
    %5067 = vmatpush.msra.mxu0 0.0
    %5068 = vmatpush.msra.mxu0 0.0
    %5069 = vmatpush.msra.mxu0 0.0
    %5070 = vmatpush.msra.mxu0 0.0
    %5071 = vmatpush.msra.mxu0 0.0
    %5072 = vmatpush.msra.mxu0 0.0
    %5073 = vmatpush.msra.mxu0 %v4996
    %5074 = vmatmul.f32.gmra.mxu0 %v4984
    %v5075 = vpop.f32.mrf.mxu0
    %v5076 = vadd.f32 0.0, %v5075
    %5077 = vdwg.mxu0
    %v5078 = vadd.f32 %v4961, %v5016
    %v5079 = vadd.f32 %v4962, %v5036
    %v5080 = vadd.f32 %v4963, %v5056
    %v5081 = vadd.f32 %v4964, %v5076
    %5082 = vrot.lane.b32.xlu0 %v3800, 7
    %v5083 = vpop.permute.xlu0 %5082
    %5084 = vrot.lane.b32.xlu0 %v3801, 7
    %v5085 = vpop.permute.xlu0 %5084
    %5086 = vrot.lane.b32.xlu0 %v3802, 7
    %v5087 = vpop.permute.xlu0 %5086
    %5088 = vrot.lane.b32.xlu0 %v3803, 7
    %v5089 = vpop.permute.xlu0 %5088
    %v5090 = vsel %vm1614, %v5087, %v5089
    %v5091 = vsel %vm1614, %v5085, %v5087
    %v5092 = vsel %vm1614, %v5083, %v5085
    %v5093 = vsel %vm1614, %v5089, %v5083
    %v5094 = vmul.f32 %v5093, %v1622
    %v5095 = vmul.f32 %v5092, %v1623
    %v5096 = vmul.f32 %v5091, %v1624
    %v5097 = vmul.f32 %v5090, %v1625
    %s5098 = scalar_lea.vmem %s4, 44
    %v5099 = vld [vmem:[%s5098] sm:$0xf]
    %v5101 = vsel %vm143, %v5099, 0
    %v5104 = vsel %vm147, %v5094, 0
    %v5107 = vsel %vm147, %v5095, 0
    %v5110 = vsel %vm147, %v5096, 0
    %v5113 = vsel %vm147, %v5097, 0
    %5115 = vmatpush.msra.mxu0 0.0
    %5116 = vmatpush.msra.mxu0 0.0
    %5117 = vmatpush.msra.mxu0 0.0
    %5118 = vmatpush.msra.mxu0 0.0
    %5119 = vmatpush.msra.mxu0 0.0
    %5120 = vmatpush.msra.mxu0 0.0
    %5121 = vmatpush.msra.mxu0 0.0
    %5122 = vmatpush.msra.mxu0 0.0
    %5123 = vmatpush.msra.mxu0 0.0
    %5124 = vmatpush.msra.mxu0 0.0
    %5125 = vmatpush.msra.mxu0 0.0
    %5126 = vmatpush.msra.mxu0 0.0
    %5127 = vmatpush.msra.mxu0 0.0
    %5128 = vmatpush.msra.mxu0 0.0
    %5129 = vmatpush.msra.mxu0 0.0
    %5130 = vmatpush.msra.mxu0 %v5104
    %5131 = vmatmul.f32.gmra.mxu0 %v5101
    %v5132 = vpop.f32.mrf.mxu0
    %v5133 = vadd.f32 0.0, %v5132
    %5134 = vdwg.mxu0
    %5135 = vmatpush.msra.mxu0 0.0
    %5136 = vmatpush.msra.mxu0 0.0
    %5137 = vmatpush.msra.mxu0 0.0
    %5138 = vmatpush.msra.mxu0 0.0
    %5139 = vmatpush.msra.mxu0 0.0
    %5140 = vmatpush.msra.mxu0 0.0
    %5141 = vmatpush.msra.mxu0 0.0
    %5142 = vmatpush.msra.mxu0 0.0
    %5143 = vmatpush.msra.mxu0 0.0
    %5144 = vmatpush.msra.mxu0 0.0
    %5145 = vmatpush.msra.mxu0 0.0
    %5146 = vmatpush.msra.mxu0 0.0
    %5147 = vmatpush.msra.mxu0 0.0
    %5148 = vmatpush.msra.mxu0 0.0
    %5149 = vmatpush.msra.mxu0 0.0
    %5150 = vmatpush.msra.mxu0 %v5107
    %5151 = vmatmul.f32.gmra.mxu0 %v5101
    %v5152 = vpop.f32.mrf.mxu0
    %v5153 = vadd.f32 0.0, %v5152
    %5154 = vdwg.mxu0
    %5155 = vmatpush.msra.mxu0 0.0
    %5156 = vmatpush.msra.mxu0 0.0
    %5157 = vmatpush.msra.mxu0 0.0
    %5158 = vmatpush.msra.mxu0 0.0
    %5159 = vmatpush.msra.mxu0 0.0
    %5160 = vmatpush.msra.mxu0 0.0
    %5161 = vmatpush.msra.mxu0 0.0
    %5162 = vmatpush.msra.mxu0 0.0
    %5163 = vmatpush.msra.mxu0 0.0
    %5164 = vmatpush.msra.mxu0 0.0
    %5165 = vmatpush.msra.mxu0 0.0
    %5166 = vmatpush.msra.mxu0 0.0
    %5167 = vmatpush.msra.mxu0 0.0
    %5168 = vmatpush.msra.mxu0 0.0
    %5169 = vmatpush.msra.mxu0 0.0
    %5170 = vmatpush.msra.mxu0 %v5110
    %5171 = vmatmul.f32.gmra.mxu0 %v5101
    %v5172 = vpop.f32.mrf.mxu0
    %v5173 = vadd.f32 0.0, %v5172
    %5174 = vdwg.mxu0
    %5175 = vmatpush.msra.mxu0 0.0
    %5176 = vmatpush.msra.mxu0 0.0
    %5177 = vmatpush.msra.mxu0 0.0
    %5178 = vmatpush.msra.mxu0 0.0
    %5179 = vmatpush.msra.mxu0 0.0
    %5180 = vmatpush.msra.mxu0 0.0
    %5181 = vmatpush.msra.mxu0 0.0
    %5182 = vmatpush.msra.mxu0 0.0
    %5183 = vmatpush.msra.mxu0 0.0
    %5184 = vmatpush.msra.mxu0 0.0
    %5185 = vmatpush.msra.mxu0 0.0
    %5186 = vmatpush.msra.mxu0 0.0
    %5187 = vmatpush.msra.mxu0 0.0
    %5188 = vmatpush.msra.mxu0 0.0
    %5189 = vmatpush.msra.mxu0 0.0
    %5190 = vmatpush.msra.mxu0 %v5113
    %5191 = vmatmul.f32.gmra.mxu0 %v5101
    %v5192 = vpop.f32.mrf.mxu0
    %v5193 = vadd.f32 0.0, %v5192
    %5194 = vdwg.mxu0
    %v5195 = vadd.f32 %v5078, %v5133
    %v5196 = vadd.f32 %v5079, %v5153
    %v5197 = vadd.f32 %v5080, %v5173
    %v5198 = vadd.f32 %v5081, %v5193
    %5199 = vrot.lane.b32.xlu0 %v3800, 1
    %v5200 = vpop.permute.xlu0 %5199
    %5201 = vrot.lane.b32.xlu0 %v3801, 1
    %v5202 = vpop.permute.xlu0 %5201
    %5203 = vrot.lane.b32.xlu0 %v3802, 1
    %v5204 = vpop.permute.xlu0 %5203
    %5205 = vrot.lane.b32.xlu0 %v3803, 1
    %v5206 = vpop.permute.xlu0 %5205
    %v5207 = vsel %vm1754, %v5204, %v5206
    %v5208 = vsel %vm1754, %v5202, %v5204
    %v5209 = vsel %vm1754, %v5200, %v5202
    %v5210 = vsel %vm1754, %v5206, %v5200
    %v5211 = vmul.f32 %v5210, %v1762
    %v5212 = vmul.f32 %v5209, %v1763
    %v5213 = vmul.f32 %v5208, %v1764
    %v5214 = vmul.f32 %v5207, %v1765
    %s5215 = scalar_lea.vmem %s4, 48
    %v5216 = vld [vmem:[%s5215] sm:$0xf]
    %v5218 = vsel %vm143, %v5216, 0
    %v5221 = vsel %vm147, %v5211, 0
    %v5224 = vsel %vm147, %v5212, 0
    %v5227 = vsel %vm147, %v5213, 0
    %v5230 = vsel %vm147, %v5214, 0
    %5232 = vmatpush.msra.mxu0 0.0
    %5233 = vmatpush.msra.mxu0 0.0
    %5234 = vmatpush.msra.mxu0 0.0
    %5235 = vmatpush.msra.mxu0 0.0
    %5236 = vmatpush.msra.mxu0 0.0
    %5237 = vmatpush.msra.mxu0 0.0
    %5238 = vmatpush.msra.mxu0 0.0
    %5239 = vmatpush.msra.mxu0 0.0
    %5240 = vmatpush.msra.mxu0 0.0
    %5241 = vmatpush.msra.mxu0 0.0
    %5242 = vmatpush.msra.mxu0 0.0
    %5243 = vmatpush.msra.mxu0 0.0
    %5244 = vmatpush.msra.mxu0 0.0
    %5245 = vmatpush.msra.mxu0 0.0
    %5246 = vmatpush.msra.mxu0 0.0
    %5247 = vmatpush.msra.mxu0 %v5221
    %5248 = vmatmul.f32.gmra.mxu0 %v5218
    %v5249 = vpop.f32.mrf.mxu0
    %v5250 = vadd.f32 0.0, %v5249
    %5251 = vdwg.mxu0
    %5252 = vmatpush.msra.mxu0 0.0
    %5253 = vmatpush.msra.mxu0 0.0
    %5254 = vmatpush.msra.mxu0 0.0
    %5255 = vmatpush.msra.mxu0 0.0
    %5256 = vmatpush.msra.mxu0 0.0
    %5257 = vmatpush.msra.mxu0 0.0
    %5258 = vmatpush.msra.mxu0 0.0
    %5259 = vmatpush.msra.mxu0 0.0
    %5260 = vmatpush.msra.mxu0 0.0
    %5261 = vmatpush.msra.mxu0 0.0
    %5262 = vmatpush.msra.mxu0 0.0
    %5263 = vmatpush.msra.mxu0 0.0
    %5264 = vmatpush.msra.mxu0 0.0
    %5265 = vmatpush.msra.mxu0 0.0
    %5266 = vmatpush.msra.mxu0 0.0
    %5267 = vmatpush.msra.mxu0 %v5224
    %5268 = vmatmul.f32.gmra.mxu0 %v5218
    %v5269 = vpop.f32.mrf.mxu0
    %v5270 = vadd.f32 0.0, %v5269
    %5271 = vdwg.mxu0
    %5272 = vmatpush.msra.mxu0 0.0
    %5273 = vmatpush.msra.mxu0 0.0
    %5274 = vmatpush.msra.mxu0 0.0
    %5275 = vmatpush.msra.mxu0 0.0
    %5276 = vmatpush.msra.mxu0 0.0
    %5277 = vmatpush.msra.mxu0 0.0
    %5278 = vmatpush.msra.mxu0 0.0
    %5279 = vmatpush.msra.mxu0 0.0
    %5280 = vmatpush.msra.mxu0 0.0
    %5281 = vmatpush.msra.mxu0 0.0
    %5282 = vmatpush.msra.mxu0 0.0
    %5283 = vmatpush.msra.mxu0 0.0
    %5284 = vmatpush.msra.mxu0 0.0
    %5285 = vmatpush.msra.mxu0 0.0
    %5286 = vmatpush.msra.mxu0 0.0
    %5287 = vmatpush.msra.mxu0 %v5227
    %5288 = vmatmul.f32.gmra.mxu0 %v5218
    %v5289 = vpop.f32.mrf.mxu0
    %v5290 = vadd.f32 0.0, %v5289
    %5291 = vdwg.mxu0
    %5292 = vmatpush.msra.mxu0 0.0
    %5293 = vmatpush.msra.mxu0 0.0
    %5294 = vmatpush.msra.mxu0 0.0
    %5295 = vmatpush.msra.mxu0 0.0
    %5296 = vmatpush.msra.mxu0 0.0
    %5297 = vmatpush.msra.mxu0 0.0
    %5298 = vmatpush.msra.mxu0 0.0
    %5299 = vmatpush.msra.mxu0 0.0
    %5300 = vmatpush.msra.mxu0 0.0
    %5301 = vmatpush.msra.mxu0 0.0
    %5302 = vmatpush.msra.mxu0 0.0
    %5303 = vmatpush.msra.mxu0 0.0
    %5304 = vmatpush.msra.mxu0 0.0
    %5305 = vmatpush.msra.mxu0 0.0
    %5306 = vmatpush.msra.mxu0 0.0
    %5307 = vmatpush.msra.mxu0 %v5230
    %5308 = vmatmul.f32.gmra.mxu0 %v5218
    %v5309 = vpop.f32.mrf.mxu0
    %v5310 = vadd.f32 0.0, %v5309
    %5311 = vdwg.mxu0
    %v5312 = vadd.f32 %v5195, %v5250
    %v5313 = vadd.f32 %v5196, %v5270
    %v5314 = vadd.f32 %v5197, %v5290
    %v5315 = vadd.f32 %v5198, %v5310
    %s5316 = scalar_lea.vmem %s4, 52
    %v5317 = vld [vmem:[%s5316] sm:$0xf]
    %v5319 = vsel %vm143, %v5317, 0
    %v5322 = vsel %vm147, %v3800, 0
    %v5325 = vsel %vm147, %v3801, 0
    %v5328 = vsel %vm147, %v3802, 0
    %v5331 = vsel %vm147, %v3803, 0
    %5333 = vmatpush.msra.mxu0 0.0
    %5334 = vmatpush.msra.mxu0 0.0
    %5335 = vmatpush.msra.mxu0 0.0
    %5336 = vmatpush.msra.mxu0 0.0
    %5337 = vmatpush.msra.mxu0 0.0
    %5338 = vmatpush.msra.mxu0 0.0
    %5339 = vmatpush.msra.mxu0 0.0
    %5340 = vmatpush.msra.mxu0 0.0
    %5341 = vmatpush.msra.mxu0 0.0
    %5342 = vmatpush.msra.mxu0 0.0
    %5343 = vmatpush.msra.mxu0 0.0
    %5344 = vmatpush.msra.mxu0 0.0
    %5345 = vmatpush.msra.mxu0 0.0
    %5346 = vmatpush.msra.mxu0 0.0
    %5347 = vmatpush.msra.mxu0 0.0
    %5348 = vmatpush.msra.mxu0 %v5322
    %5349 = vmatmul.f32.gmra.mxu0 %v5319
    %v5350 = vpop.f32.mrf.mxu0
    %v5351 = vadd.f32 0.0, %v5350
    %5352 = vdwg.mxu0
    %5353 = vmatpush.msra.mxu0 0.0
    %5354 = vmatpush.msra.mxu0 0.0
    %5355 = vmatpush.msra.mxu0 0.0
    %5356 = vmatpush.msra.mxu0 0.0
    %5357 = vmatpush.msra.mxu0 0.0
    %5358 = vmatpush.msra.mxu0 0.0
    %5359 = vmatpush.msra.mxu0 0.0
    %5360 = vmatpush.msra.mxu0 0.0
    %5361 = vmatpush.msra.mxu0 0.0
    %5362 = vmatpush.msra.mxu0 0.0
    %5363 = vmatpush.msra.mxu0 0.0
    %5364 = vmatpush.msra.mxu0 0.0
    %5365 = vmatpush.msra.mxu0 0.0
    %5366 = vmatpush.msra.mxu0 0.0
    %5367 = vmatpush.msra.mxu0 0.0
    %5368 = vmatpush.msra.mxu0 %v5325
    %5369 = vmatmul.f32.gmra.mxu0 %v5319
    %v5370 = vpop.f32.mrf.mxu0
    %v5371 = vadd.f32 0.0, %v5370
    %5372 = vdwg.mxu0
    %5373 = vmatpush.msra.mxu0 0.0
    %5374 = vmatpush.msra.mxu0 0.0
    %5375 = vmatpush.msra.mxu0 0.0
    %5376 = vmatpush.msra.mxu0 0.0
    %5377 = vmatpush.msra.mxu0 0.0
    %5378 = vmatpush.msra.mxu0 0.0
    %5379 = vmatpush.msra.mxu0 0.0
    %5380 = vmatpush.msra.mxu0 0.0
    %5381 = vmatpush.msra.mxu0 0.0
    %5382 = vmatpush.msra.mxu0 0.0
    %5383 = vmatpush.msra.mxu0 0.0
    %5384 = vmatpush.msra.mxu0 0.0
    %5385 = vmatpush.msra.mxu0 0.0
    %5386 = vmatpush.msra.mxu0 0.0
    %5387 = vmatpush.msra.mxu0 0.0
    %5388 = vmatpush.msra.mxu0 %v5328
    %5389 = vmatmul.f32.gmra.mxu0 %v5319
    %v5390 = vpop.f32.mrf.mxu0
    %v5391 = vadd.f32 0.0, %v5390
    %5392 = vdwg.mxu0
    %5393 = vmatpush.msra.mxu0 0.0
    %5394 = vmatpush.msra.mxu0 0.0
    %5395 = vmatpush.msra.mxu0 0.0
    %5396 = vmatpush.msra.mxu0 0.0
    %5397 = vmatpush.msra.mxu0 0.0
    %5398 = vmatpush.msra.mxu0 0.0
    %5399 = vmatpush.msra.mxu0 0.0
    %5400 = vmatpush.msra.mxu0 0.0
    %5401 = vmatpush.msra.mxu0 0.0
    %5402 = vmatpush.msra.mxu0 0.0
    %5403 = vmatpush.msra.mxu0 0.0
    %5404 = vmatpush.msra.mxu0 0.0
    %5405 = vmatpush.msra.mxu0 0.0
    %5406 = vmatpush.msra.mxu0 0.0
    %5407 = vmatpush.msra.mxu0 0.0
    %5408 = vmatpush.msra.mxu0 %v5331
    %5409 = vmatmul.f32.gmra.mxu0 %v5319
    %v5410 = vpop.f32.mrf.mxu0
    %v5411 = vadd.f32 0.0, %v5410
    %5412 = vdwg.mxu0
    %v5413 = vadd.f32 %v5312, %v5351
    %v5414 = vadd.f32 %v5313, %v5371
    %v5415 = vadd.f32 %v5314, %v5391
    %v5416 = vadd.f32 %v5315, %v5411
    %5417 = vrot.lane.b32.xlu0 %v3800, 127
    %v5418 = vpop.permute.xlu0 %5417
    %5419 = vrot.lane.b32.xlu0 %v3801, 127
    %v5420 = vpop.permute.xlu0 %5419
    %5421 = vrot.lane.b32.xlu0 %v3802, 127
    %v5422 = vpop.permute.xlu0 %5421
    %5423 = vrot.lane.b32.xlu0 %v3803, 127
    %v5424 = vpop.permute.xlu0 %5423
    %v5425 = vsel %vm1998, %v5422, %v5424
    %v5426 = vsel %vm1998, %v5420, %v5422
    %v5427 = vsel %vm1998, %v5418, %v5420
    %v5428 = vsel %vm1998, %v5424, %v5418
    %v5429 = vmul.f32 %v5427, %v2006
    %v5430 = vmul.f32 %v5426, %v2007
    %v5431 = vmul.f32 %v5425, %v2008
    %v5432 = vmul.f32 %v5428, %v2009
    %s5433 = scalar_lea.vmem %s4, 56
    %v5434 = vld [vmem:[%s5433] sm:$0xf]
    %v5436 = vsel %vm143, %v5434, 0
    %v5439 = vsel %vm147, %v5429, 0
    %v5442 = vsel %vm147, %v5430, 0
    %v5445 = vsel %vm147, %v5431, 0
    %v5448 = vsel %vm147, %v5432, 0
    %5450 = vmatpush.msra.mxu0 0.0
    %5451 = vmatpush.msra.mxu0 0.0
    %5452 = vmatpush.msra.mxu0 0.0
    %5453 = vmatpush.msra.mxu0 0.0
    %5454 = vmatpush.msra.mxu0 0.0
    %5455 = vmatpush.msra.mxu0 0.0
    %5456 = vmatpush.msra.mxu0 0.0
    %5457 = vmatpush.msra.mxu0 0.0
    %5458 = vmatpush.msra.mxu0 0.0
    %5459 = vmatpush.msra.mxu0 0.0
    %5460 = vmatpush.msra.mxu0 0.0
    %5461 = vmatpush.msra.mxu0 0.0
    %5462 = vmatpush.msra.mxu0 0.0
    %5463 = vmatpush.msra.mxu0 0.0
    %5464 = vmatpush.msra.mxu0 0.0
    %5465 = vmatpush.msra.mxu0 %v5439
    %5466 = vmatmul.f32.gmra.mxu0 %v5436
    %v5467 = vpop.f32.mrf.mxu0
    %v5468 = vadd.f32 0.0, %v5467
    %5469 = vdwg.mxu0
    %5470 = vmatpush.msra.mxu0 0.0
    %5471 = vmatpush.msra.mxu0 0.0
    %5472 = vmatpush.msra.mxu0 0.0
    %5473 = vmatpush.msra.mxu0 0.0
    %5474 = vmatpush.msra.mxu0 0.0
    %5475 = vmatpush.msra.mxu0 0.0
    %5476 = vmatpush.msra.mxu0 0.0
    %5477 = vmatpush.msra.mxu0 0.0
    %5478 = vmatpush.msra.mxu0 0.0
    %5479 = vmatpush.msra.mxu0 0.0
    %5480 = vmatpush.msra.mxu0 0.0
    %5481 = vmatpush.msra.mxu0 0.0
    %5482 = vmatpush.msra.mxu0 0.0
    %5483 = vmatpush.msra.mxu0 0.0
    %5484 = vmatpush.msra.mxu0 0.0
    %5485 = vmatpush.msra.mxu0 %v5442
    %5486 = vmatmul.f32.gmra.mxu0 %v5436
    %v5487 = vpop.f32.mrf.mxu0
    %v5488 = vadd.f32 0.0, %v5487
    %5489 = vdwg.mxu0
    %5490 = vmatpush.msra.mxu0 0.0
    %5491 = vmatpush.msra.mxu0 0.0
    %5492 = vmatpush.msra.mxu0 0.0
    %5493 = vmatpush.msra.mxu0 0.0
    %5494 = vmatpush.msra.mxu0 0.0
    %5495 = vmatpush.msra.mxu0 0.0
    %5496 = vmatpush.msra.mxu0 0.0
    %5497 = vmatpush.msra.mxu0 0.0
    %5498 = vmatpush.msra.mxu0 0.0
    %5499 = vmatpush.msra.mxu0 0.0
    %5500 = vmatpush.msra.mxu0 0.0
    %5501 = vmatpush.msra.mxu0 0.0
    %5502 = vmatpush.msra.mxu0 0.0
    %5503 = vmatpush.msra.mxu0 0.0
    %5504 = vmatpush.msra.mxu0 0.0
    %5505 = vmatpush.msra.mxu0 %v5445
    %5506 = vmatmul.f32.gmra.mxu0 %v5436
    %v5507 = vpop.f32.mrf.mxu0
    %v5508 = vadd.f32 0.0, %v5507
    %5509 = vdwg.mxu0
    %5510 = vmatpush.msra.mxu0 0.0
    %5511 = vmatpush.msra.mxu0 0.0
    %5512 = vmatpush.msra.mxu0 0.0
    %5513 = vmatpush.msra.mxu0 0.0
    %5514 = vmatpush.msra.mxu0 0.0
    %5515 = vmatpush.msra.mxu0 0.0
    %5516 = vmatpush.msra.mxu0 0.0
    %5517 = vmatpush.msra.mxu0 0.0
    %5518 = vmatpush.msra.mxu0 0.0
    %5519 = vmatpush.msra.mxu0 0.0
    %5520 = vmatpush.msra.mxu0 0.0
    %5521 = vmatpush.msra.mxu0 0.0
    %5522 = vmatpush.msra.mxu0 0.0
    %5523 = vmatpush.msra.mxu0 0.0
    %5524 = vmatpush.msra.mxu0 0.0
    %5525 = vmatpush.msra.mxu0 %v5448
    %5526 = vmatmul.f32.gmra.mxu0 %v5436
    %v5527 = vpop.f32.mrf.mxu0
    %v5528 = vadd.f32 0.0, %v5527
    %5529 = vdwg.mxu0
    %v5530 = vadd.f32 %v5413, %v5468
    %v5531 = vadd.f32 %v5414, %v5488
    %v5532 = vadd.f32 %v5415, %v5508
    %v5533 = vadd.f32 %v5416, %v5528
    %5534 = vrot.lane.b32.xlu0 %v3800, 121
    %v5535 = vpop.permute.xlu0 %5534
    %5536 = vrot.lane.b32.xlu0 %v3801, 121
    %v5537 = vpop.permute.xlu0 %5536
    %5538 = vrot.lane.b32.xlu0 %v3802, 121
    %v5539 = vpop.permute.xlu0 %5538
    %5540 = vrot.lane.b32.xlu0 %v3803, 121
    %v5541 = vpop.permute.xlu0 %5540
    %v5542 = vsel %vm2138, %v5539, %v5541
    %v5543 = vsel %vm2138, %v5537, %v5539
    %v5544 = vsel %vm2138, %v5535, %v5537
    %v5545 = vsel %vm2138, %v5541, %v5535
    %v5546 = vmul.f32 %v5544, %v2146
    %v5547 = vmul.f32 %v5543, %v2147
    %v5548 = vmul.f32 %v5542, %v2148
    %v5549 = vmul.f32 %v5545, %v2149
    %s5550 = scalar_lea.vmem %s4, 60
    %v5551 = vld [vmem:[%s5550] sm:$0xf]
    %v5553 = vsel %vm143, %v5551, 0
    %v5556 = vsel %vm147, %v5546, 0
    %v5559 = vsel %vm147, %v5547, 0
    %v5562 = vsel %vm147, %v5548, 0
    %v5565 = vsel %vm147, %v5549, 0
    %5567 = vmatpush.msra.mxu0 0.0
    %5568 = vmatpush.msra.mxu0 0.0
    %5569 = vmatpush.msra.mxu0 0.0
    %5570 = vmatpush.msra.mxu0 0.0
    %5571 = vmatpush.msra.mxu0 0.0
    %5572 = vmatpush.msra.mxu0 0.0
    %5573 = vmatpush.msra.mxu0 0.0
    %5574 = vmatpush.msra.mxu0 0.0
    %5575 = vmatpush.msra.mxu0 0.0
    %5576 = vmatpush.msra.mxu0 0.0
    %5577 = vmatpush.msra.mxu0 0.0
    %5578 = vmatpush.msra.mxu0 0.0
    %5579 = vmatpush.msra.mxu0 0.0
    %5580 = vmatpush.msra.mxu0 0.0
    %5581 = vmatpush.msra.mxu0 0.0
    %5582 = vmatpush.msra.mxu0 %v5556
    %5583 = vmatmul.f32.gmra.mxu0 %v5553
    %v5584 = vpop.f32.mrf.mxu0
    %v5585 = vadd.f32 0.0, %v5584
    %5586 = vdwg.mxu0
    %5587 = vmatpush.msra.mxu0 0.0
    %5588 = vmatpush.msra.mxu0 0.0
    %5589 = vmatpush.msra.mxu0 0.0
    %5590 = vmatpush.msra.mxu0 0.0
    %5591 = vmatpush.msra.mxu0 0.0
    %5592 = vmatpush.msra.mxu0 0.0
    %5593 = vmatpush.msra.mxu0 0.0
    %5594 = vmatpush.msra.mxu0 0.0
    %5595 = vmatpush.msra.mxu0 0.0
    %5596 = vmatpush.msra.mxu0 0.0
    %5597 = vmatpush.msra.mxu0 0.0
    %5598 = vmatpush.msra.mxu0 0.0
    %5599 = vmatpush.msra.mxu0 0.0
    %5600 = vmatpush.msra.mxu0 0.0
    %5601 = vmatpush.msra.mxu0 0.0
    %5602 = vmatpush.msra.mxu0 %v5559
    %5603 = vmatmul.f32.gmra.mxu0 %v5553
    %v5604 = vpop.f32.mrf.mxu0
    %v5605 = vadd.f32 0.0, %v5604
    %5606 = vdwg.mxu0
    %5607 = vmatpush.msra.mxu0 0.0
    %5608 = vmatpush.msra.mxu0 0.0
    %5609 = vmatpush.msra.mxu0 0.0
    %5610 = vmatpush.msra.mxu0 0.0
    %5611 = vmatpush.msra.mxu0 0.0
    %5612 = vmatpush.msra.mxu0 0.0
    %5613 = vmatpush.msra.mxu0 0.0
    %5614 = vmatpush.msra.mxu0 0.0
    %5615 = vmatpush.msra.mxu0 0.0
    %5616 = vmatpush.msra.mxu0 0.0
    %5617 = vmatpush.msra.mxu0 0.0
    %5618 = vmatpush.msra.mxu0 0.0
    %5619 = vmatpush.msra.mxu0 0.0
    %5620 = vmatpush.msra.mxu0 0.0
    %5621 = vmatpush.msra.mxu0 0.0
    %5622 = vmatpush.msra.mxu0 %v5562
    %5623 = vmatmul.f32.gmra.mxu0 %v5553
    %v5624 = vpop.f32.mrf.mxu0
    %v5625 = vadd.f32 0.0, %v5624
    %5626 = vdwg.mxu0
    %5627 = vmatpush.msra.mxu0 0.0
    %5628 = vmatpush.msra.mxu0 0.0
    %5629 = vmatpush.msra.mxu0 0.0
    %5630 = vmatpush.msra.mxu0 0.0
    %5631 = vmatpush.msra.mxu0 0.0
    %5632 = vmatpush.msra.mxu0 0.0
    %5633 = vmatpush.msra.mxu0 0.0
    %5634 = vmatpush.msra.mxu0 0.0
    %5635 = vmatpush.msra.mxu0 0.0
    %5636 = vmatpush.msra.mxu0 0.0
    %5637 = vmatpush.msra.mxu0 0.0
    %5638 = vmatpush.msra.mxu0 0.0
    %5639 = vmatpush.msra.mxu0 0.0
    %5640 = vmatpush.msra.mxu0 0.0
    %5641 = vmatpush.msra.mxu0 0.0
    %5642 = vmatpush.msra.mxu0 %v5565
    %5643 = vmatmul.f32.gmra.mxu0 %v5553
    %v5644 = vpop.f32.mrf.mxu0
    %v5645 = vadd.f32 0.0, %v5644
    %5646 = vdwg.mxu0
    %v5647 = vadd.f32 %v5530, %v5585
    %v5648 = vadd.f32 %v5531, %v5605
    %v5649 = vadd.f32 %v5532, %v5625
    %v5650 = vadd.f32 %v5533, %v5645
    %5651 = vrot.lane.b32.xlu0 %v3800, 120
    %v5652 = vpop.permute.xlu0 %5651
    %5653 = vrot.lane.b32.xlu0 %v3801, 120
    %v5654 = vpop.permute.xlu0 %5653
    %5655 = vrot.lane.b32.xlu0 %v3802, 120
    %v5656 = vpop.permute.xlu0 %5655
    %5657 = vrot.lane.b32.xlu0 %v3803, 120
    %v5658 = vpop.permute.xlu0 %5657
    %v5659 = vsel %vm2278, %v5656, %v5658
    %v5660 = vsel %vm2278, %v5654, %v5656
    %v5661 = vsel %vm2278, %v5652, %v5654
    %v5662 = vsel %vm2278, %v5658, %v5652
    %v5663 = vmul.f32 %v5661, %v2286
    %v5664 = vmul.f32 %v5660, %v2287
    %v5665 = vmul.f32 %v5659, %v2288
    %v5666 = vmul.f32 %v5662, %v2289
    %s5667 = scalar_lea.vmem %s4, 64
    %v5668 = vld [vmem:[%s5667] sm:$0xf]
    %v5670 = vsel %vm143, %v5668, 0
    %v5673 = vsel %vm147, %v5663, 0
    %v5676 = vsel %vm147, %v5664, 0
    %v5679 = vsel %vm147, %v5665, 0
    %v5682 = vsel %vm147, %v5666, 0
    %5684 = vmatpush.msra.mxu0 0.0
    %5685 = vmatpush.msra.mxu0 0.0
    %5686 = vmatpush.msra.mxu0 0.0
    %5687 = vmatpush.msra.mxu0 0.0
    %5688 = vmatpush.msra.mxu0 0.0
    %5689 = vmatpush.msra.mxu0 0.0
    %5690 = vmatpush.msra.mxu0 0.0
    %5691 = vmatpush.msra.mxu0 0.0
    %5692 = vmatpush.msra.mxu0 0.0
    %5693 = vmatpush.msra.mxu0 0.0
    %5694 = vmatpush.msra.mxu0 0.0
    %5695 = vmatpush.msra.mxu0 0.0
    %5696 = vmatpush.msra.mxu0 0.0
    %5697 = vmatpush.msra.mxu0 0.0
    %5698 = vmatpush.msra.mxu0 0.0
    %5699 = vmatpush.msra.mxu0 %v5673
    %5700 = vmatmul.f32.gmra.mxu0 %v5670
    %v5701 = vpop.f32.mrf.mxu0
    %v5702 = vadd.f32 0.0, %v5701
    %5703 = vdwg.mxu0
    %5704 = vmatpush.msra.mxu0 0.0
    %5705 = vmatpush.msra.mxu0 0.0
    %5706 = vmatpush.msra.mxu0 0.0
    %5707 = vmatpush.msra.mxu0 0.0
    %5708 = vmatpush.msra.mxu0 0.0
    %5709 = vmatpush.msra.mxu0 0.0
    %5710 = vmatpush.msra.mxu0 0.0
    %5711 = vmatpush.msra.mxu0 0.0
    %5712 = vmatpush.msra.mxu0 0.0
    %5713 = vmatpush.msra.mxu0 0.0
    %5714 = vmatpush.msra.mxu0 0.0
    %5715 = vmatpush.msra.mxu0 0.0
    %5716 = vmatpush.msra.mxu0 0.0
    %5717 = vmatpush.msra.mxu0 0.0
    %5718 = vmatpush.msra.mxu0 0.0
    %5719 = vmatpush.msra.mxu0 %v5676
    %5720 = vmatmul.f32.gmra.mxu0 %v5670
    %v5721 = vpop.f32.mrf.mxu0
    %v5722 = vadd.f32 0.0, %v5721
    %5723 = vdwg.mxu0
    %5724 = vmatpush.msra.mxu0 0.0
    %5725 = vmatpush.msra.mxu0 0.0
    %5726 = vmatpush.msra.mxu0 0.0
    %5727 = vmatpush.msra.mxu0 0.0
    %5728 = vmatpush.msra.mxu0 0.0
    %5729 = vmatpush.msra.mxu0 0.0
    %5730 = vmatpush.msra.mxu0 0.0
    %5731 = vmatpush.msra.mxu0 0.0
    %5732 = vmatpush.msra.mxu0 0.0
    %5733 = vmatpush.msra.mxu0 0.0
    %5734 = vmatpush.msra.mxu0 0.0
    %5735 = vmatpush.msra.mxu0 0.0
    %5736 = vmatpush.msra.mxu0 0.0
    %5737 = vmatpush.msra.mxu0 0.0
    %5738 = vmatpush.msra.mxu0 0.0
    %5739 = vmatpush.msra.mxu0 %v5679
    %5740 = vmatmul.f32.gmra.mxu0 %v5670
    %v5741 = vpop.f32.mrf.mxu0
    %v5742 = vadd.f32 0.0, %v5741
    %5743 = vdwg.mxu0
    %5744 = vmatpush.msra.mxu0 0.0
    %5745 = vmatpush.msra.mxu0 0.0
    %5746 = vmatpush.msra.mxu0 0.0
    %5747 = vmatpush.msra.mxu0 0.0
    %5748 = vmatpush.msra.mxu0 0.0
    %5749 = vmatpush.msra.mxu0 0.0
    %5750 = vmatpush.msra.mxu0 0.0
    %5751 = vmatpush.msra.mxu0 0.0
    %5752 = vmatpush.msra.mxu0 0.0
    %5753 = vmatpush.msra.mxu0 0.0
    %5754 = vmatpush.msra.mxu0 0.0
    %5755 = vmatpush.msra.mxu0 0.0
    %5756 = vmatpush.msra.mxu0 0.0
    %5757 = vmatpush.msra.mxu0 0.0
    %5758 = vmatpush.msra.mxu0 0.0
    %5759 = vmatpush.msra.mxu0 %v5682
    %5760 = vmatmul.f32.gmra.mxu0 %v5670
    %v5761 = vpop.f32.mrf.mxu0
    %v5762 = vadd.f32 0.0, %v5761
    %5763 = vdwg.mxu0
    %v5764 = vadd.f32 %v5647, %v5702
    %v5765 = vadd.f32 %v5648, %v5722
    %v5766 = vadd.f32 %v5649, %v5742
    %v5767 = vadd.f32 %v5650, %v5762
    %5768 = vrot.lane.b32.xlu0 %v3800, 119
    %v5769 = vpop.permute.xlu0 %5768
    %5770 = vrot.lane.b32.xlu0 %v3801, 119
    %v5771 = vpop.permute.xlu0 %5770
    %5772 = vrot.lane.b32.xlu0 %v3802, 119
    %v5773 = vpop.permute.xlu0 %5772
    %5774 = vrot.lane.b32.xlu0 %v3803, 119
    %v5775 = vpop.permute.xlu0 %5774
    %v5776 = vsel %vm2418, %v5773, %v5775
    %v5777 = vsel %vm2418, %v5771, %v5773
    %v5778 = vsel %vm2418, %v5769, %v5771
    %v5779 = vsel %vm2418, %v5775, %v5769
    %v5780 = vmul.f32 %v5778, %v2426
    %v5781 = vmul.f32 %v5777, %v2427
    %v5782 = vmul.f32 %v5776, %v2428
    %v5783 = vmul.f32 %v5779, %v2429
    %s5784 = scalar_lea.vmem %s4, 68
    %v5785 = vld [vmem:[%s5784] sm:$0xf]
    %v5787 = vsel %vm143, %v5785, 0
    %v5790 = vsel %vm147, %v5780, 0
    %v5793 = vsel %vm147, %v5781, 0
    %v5796 = vsel %vm147, %v5782, 0
    %v5799 = vsel %vm147, %v5783, 0
    %5801 = vmatpush.msra.mxu0 0.0
    %5802 = vmatpush.msra.mxu0 0.0
    %5803 = vmatpush.msra.mxu0 0.0
    %5804 = vmatpush.msra.mxu0 0.0
    %5805 = vmatpush.msra.mxu0 0.0
    %5806 = vmatpush.msra.mxu0 0.0
    %5807 = vmatpush.msra.mxu0 0.0
    %5808 = vmatpush.msra.mxu0 0.0
    %5809 = vmatpush.msra.mxu0 0.0
    %5810 = vmatpush.msra.mxu0 0.0
    %5811 = vmatpush.msra.mxu0 0.0
    %5812 = vmatpush.msra.mxu0 0.0
    %5813 = vmatpush.msra.mxu0 0.0
    %5814 = vmatpush.msra.mxu0 0.0
    %5815 = vmatpush.msra.mxu0 0.0
    %5816 = vmatpush.msra.mxu0 %v5790
    %5817 = vmatmul.f32.gmra.mxu0 %v5787
    %v5818 = vpop.f32.mrf.mxu0
    %v5819 = vadd.f32 0.0, %v5818
    %5820 = vdwg.mxu0
    %5821 = vmatpush.msra.mxu0 0.0
    %5822 = vmatpush.msra.mxu0 0.0
    %5823 = vmatpush.msra.mxu0 0.0
    %5824 = vmatpush.msra.mxu0 0.0
    %5825 = vmatpush.msra.mxu0 0.0
    %5826 = vmatpush.msra.mxu0 0.0
    %5827 = vmatpush.msra.mxu0 0.0
    %5828 = vmatpush.msra.mxu0 0.0
    %5829 = vmatpush.msra.mxu0 0.0
    %5830 = vmatpush.msra.mxu0 0.0
    %5831 = vmatpush.msra.mxu0 0.0
    %5832 = vmatpush.msra.mxu0 0.0
    %5833 = vmatpush.msra.mxu0 0.0
    %5834 = vmatpush.msra.mxu0 0.0
    %5835 = vmatpush.msra.mxu0 0.0
    %5836 = vmatpush.msra.mxu0 %v5793
    %5837 = vmatmul.f32.gmra.mxu0 %v5787
    %v5838 = vpop.f32.mrf.mxu0
    %v5839 = vadd.f32 0.0, %v5838
    %5840 = vdwg.mxu0
    %5841 = vmatpush.msra.mxu0 0.0
    %5842 = vmatpush.msra.mxu0 0.0
    %5843 = vmatpush.msra.mxu0 0.0
    %5844 = vmatpush.msra.mxu0 0.0
    %5845 = vmatpush.msra.mxu0 0.0
    %5846 = vmatpush.msra.mxu0 0.0
    %5847 = vmatpush.msra.mxu0 0.0
    %5848 = vmatpush.msra.mxu0 0.0
    %5849 = vmatpush.msra.mxu0 0.0
    %5850 = vmatpush.msra.mxu0 0.0
    %5851 = vmatpush.msra.mxu0 0.0
    %5852 = vmatpush.msra.mxu0 0.0
    %5853 = vmatpush.msra.mxu0 0.0
    %5854 = vmatpush.msra.mxu0 0.0
    %5855 = vmatpush.msra.mxu0 0.0
    %5856 = vmatpush.msra.mxu0 %v5796
    %5857 = vmatmul.f32.gmra.mxu0 %v5787
    %v5858 = vpop.f32.mrf.mxu0
    %v5859 = vadd.f32 0.0, %v5858
    %5860 = vdwg.mxu0
    %5861 = vmatpush.msra.mxu0 0.0
    %5862 = vmatpush.msra.mxu0 0.0
    %5863 = vmatpush.msra.mxu0 0.0
    %5864 = vmatpush.msra.mxu0 0.0
    %5865 = vmatpush.msra.mxu0 0.0
    %5866 = vmatpush.msra.mxu0 0.0
    %5867 = vmatpush.msra.mxu0 0.0
    %5868 = vmatpush.msra.mxu0 0.0
    %5869 = vmatpush.msra.mxu0 0.0
    %5870 = vmatpush.msra.mxu0 0.0
    %5871 = vmatpush.msra.mxu0 0.0
    %5872 = vmatpush.msra.mxu0 0.0
    %5873 = vmatpush.msra.mxu0 0.0
    %5874 = vmatpush.msra.mxu0 0.0
    %5875 = vmatpush.msra.mxu0 0.0
    %5876 = vmatpush.msra.mxu0 %v5799
    %5877 = vmatmul.f32.gmra.mxu0 %v5787
    %v5878 = vpop.f32.mrf.mxu0
    %v5879 = vadd.f32 0.0, %v5878
    %5880 = vdwg.mxu0
    %v5881 = vadd.f32 %v5764, %v5819
    %v5882 = vadd.f32 %v5765, %v5839
    %v5883 = vadd.f32 %v5766, %v5859
    %v5884 = vadd.f32 %v5767, %v5879
    %v5885 = vmul.f32 %v3814, %v2565
    %v5886 = vmul.f32 %v3813, %v2566
    %v5887 = vmul.f32 %v3812, %v2567
    %v5888 = vmul.f32 %v3815, %v2568
    %s5889 = scalar_lea.vmem %s4, 72
    %v5890 = vld [vmem:[%s5889] sm:$0xf]
    %v5892 = vsel %vm143, %v5890, 0
    %v5895 = vsel %vm147, %v5885, 0
    %v5898 = vsel %vm147, %v5886, 0
    %v5901 = vsel %vm147, %v5887, 0
    %v5904 = vsel %vm147, %v5888, 0
    %5906 = vmatpush.msra.mxu0 0.0
    %5907 = vmatpush.msra.mxu0 0.0
    %5908 = vmatpush.msra.mxu0 0.0
    %5909 = vmatpush.msra.mxu0 0.0
    %5910 = vmatpush.msra.mxu0 0.0
    %5911 = vmatpush.msra.mxu0 0.0
    %5912 = vmatpush.msra.mxu0 0.0
    %5913 = vmatpush.msra.mxu0 0.0
    %5914 = vmatpush.msra.mxu0 0.0
    %5915 = vmatpush.msra.mxu0 0.0
    %5916 = vmatpush.msra.mxu0 0.0
    %5917 = vmatpush.msra.mxu0 0.0
    %5918 = vmatpush.msra.mxu0 0.0
    %5919 = vmatpush.msra.mxu0 0.0
    %5920 = vmatpush.msra.mxu0 0.0
    %5921 = vmatpush.msra.mxu0 %v5895
    %5922 = vmatmul.f32.gmra.mxu0 %v5892
    %v5923 = vpop.f32.mrf.mxu0
    %v5924 = vadd.f32 0.0, %v5923
    %5925 = vdwg.mxu0
    %5926 = vmatpush.msra.mxu0 0.0
    %5927 = vmatpush.msra.mxu0 0.0
    %5928 = vmatpush.msra.mxu0 0.0
    %5929 = vmatpush.msra.mxu0 0.0
    %5930 = vmatpush.msra.mxu0 0.0
    %5931 = vmatpush.msra.mxu0 0.0
    %5932 = vmatpush.msra.mxu0 0.0
    %5933 = vmatpush.msra.mxu0 0.0
    %5934 = vmatpush.msra.mxu0 0.0
    %5935 = vmatpush.msra.mxu0 0.0
    %5936 = vmatpush.msra.mxu0 0.0
    %5937 = vmatpush.msra.mxu0 0.0
    %5938 = vmatpush.msra.mxu0 0.0
    %5939 = vmatpush.msra.mxu0 0.0
    %5940 = vmatpush.msra.mxu0 0.0
    %5941 = vmatpush.msra.mxu0 %v5898
    %5942 = vmatmul.f32.gmra.mxu0 %v5892
    %v5943 = vpop.f32.mrf.mxu0
    %v5944 = vadd.f32 0.0, %v5943
    %5945 = vdwg.mxu0
    %5946 = vmatpush.msra.mxu0 0.0
    %5947 = vmatpush.msra.mxu0 0.0
    %5948 = vmatpush.msra.mxu0 0.0
    %5949 = vmatpush.msra.mxu0 0.0
    %5950 = vmatpush.msra.mxu0 0.0
    %5951 = vmatpush.msra.mxu0 0.0
    %5952 = vmatpush.msra.mxu0 0.0
    %5953 = vmatpush.msra.mxu0 0.0
    %5954 = vmatpush.msra.mxu0 0.0
    %5955 = vmatpush.msra.mxu0 0.0
    %5956 = vmatpush.msra.mxu0 0.0
    %5957 = vmatpush.msra.mxu0 0.0
    %5958 = vmatpush.msra.mxu0 0.0
    %5959 = vmatpush.msra.mxu0 0.0
    %5960 = vmatpush.msra.mxu0 0.0
    %5961 = vmatpush.msra.mxu0 %v5901
    %5962 = vmatmul.f32.gmra.mxu0 %v5892
    %v5963 = vpop.f32.mrf.mxu0
    %v5964 = vadd.f32 0.0, %v5963
    %5965 = vdwg.mxu0
    %5966 = vmatpush.msra.mxu0 0.0
    %5967 = vmatpush.msra.mxu0 0.0
    %5968 = vmatpush.msra.mxu0 0.0
    %5969 = vmatpush.msra.mxu0 0.0
    %5970 = vmatpush.msra.mxu0 0.0
    %5971 = vmatpush.msra.mxu0 0.0
    %5972 = vmatpush.msra.mxu0 0.0
    %5973 = vmatpush.msra.mxu0 0.0
    %5974 = vmatpush.msra.mxu0 0.0
    %5975 = vmatpush.msra.mxu0 0.0
    %5976 = vmatpush.msra.mxu0 0.0
    %5977 = vmatpush.msra.mxu0 0.0
    %5978 = vmatpush.msra.mxu0 0.0
    %5979 = vmatpush.msra.mxu0 0.0
    %5980 = vmatpush.msra.mxu0 0.0
    %5981 = vmatpush.msra.mxu0 %v5904
    %5982 = vmatmul.f32.gmra.mxu0 %v5892
    %v5983 = vpop.f32.mrf.mxu0
    %v5984 = vadd.f32 0.0, %v5983
    %5985 = vdwg.mxu0
    %v5986 = vadd.f32 %v5881, %v5924
    %v5987 = vadd.f32 %v5882, %v5944
    %v5988 = vadd.f32 %v5883, %v5964
    %v5989 = vadd.f32 %v5884, %v5984
    %v5990 = vmul.f32 %v3831, %v2704
    %v5991 = vmul.f32 %v3830, %v2705
    %v5992 = vmul.f32 %v3829, %v2706
    %v5993 = vmul.f32 %v3832, %v2707
    %s5994 = scalar_lea.vmem %s4, 76
    %v5995 = vld [vmem:[%s5994] sm:$0xf]
    %v5997 = vsel %vm143, %v5995, 0
    %v6000 = vsel %vm147, %v5990, 0
    %v6003 = vsel %vm147, %v5991, 0
    %v6006 = vsel %vm147, %v5992, 0
    %v6009 = vsel %vm147, %v5993, 0
    %6011 = vmatpush.msra.mxu0 0.0
    %6012 = vmatpush.msra.mxu0 0.0
    %6013 = vmatpush.msra.mxu0 0.0
    %6014 = vmatpush.msra.mxu0 0.0
    %6015 = vmatpush.msra.mxu0 0.0
    %6016 = vmatpush.msra.mxu0 0.0
    %6017 = vmatpush.msra.mxu0 0.0
    %6018 = vmatpush.msra.mxu0 0.0
    %6019 = vmatpush.msra.mxu0 0.0
    %6020 = vmatpush.msra.mxu0 0.0
    %6021 = vmatpush.msra.mxu0 0.0
    %6022 = vmatpush.msra.mxu0 0.0
    %6023 = vmatpush.msra.mxu0 0.0
    %6024 = vmatpush.msra.mxu0 0.0
    %6025 = vmatpush.msra.mxu0 0.0
    %6026 = vmatpush.msra.mxu0 %v6000
    %6027 = vmatmul.f32.gmra.mxu0 %v5997
    %v6028 = vpop.f32.mrf.mxu0
    %v6029 = vadd.f32 0.0, %v6028
    %6030 = vdwg.mxu0
    %6031 = vmatpush.msra.mxu0 0.0
    %6032 = vmatpush.msra.mxu0 0.0
    %6033 = vmatpush.msra.mxu0 0.0
    %6034 = vmatpush.msra.mxu0 0.0
    %6035 = vmatpush.msra.mxu0 0.0
    %6036 = vmatpush.msra.mxu0 0.0
    %6037 = vmatpush.msra.mxu0 0.0
    %6038 = vmatpush.msra.mxu0 0.0
    %6039 = vmatpush.msra.mxu0 0.0
    %6040 = vmatpush.msra.mxu0 0.0
    %6041 = vmatpush.msra.mxu0 0.0
    %6042 = vmatpush.msra.mxu0 0.0
    %6043 = vmatpush.msra.mxu0 0.0
    %6044 = vmatpush.msra.mxu0 0.0
    %6045 = vmatpush.msra.mxu0 0.0
    %6046 = vmatpush.msra.mxu0 %v6003
    %6047 = vmatmul.f32.gmra.mxu0 %v5997
    %v6048 = vpop.f32.mrf.mxu0
    %v6049 = vadd.f32 0.0, %v6048
    %6050 = vdwg.mxu0
    %6051 = vmatpush.msra.mxu0 0.0
    %6052 = vmatpush.msra.mxu0 0.0
    %6053 = vmatpush.msra.mxu0 0.0
    %6054 = vmatpush.msra.mxu0 0.0
    %6055 = vmatpush.msra.mxu0 0.0
    %6056 = vmatpush.msra.mxu0 0.0
    %6057 = vmatpush.msra.mxu0 0.0
    %6058 = vmatpush.msra.mxu0 0.0
    %6059 = vmatpush.msra.mxu0 0.0
    %6060 = vmatpush.msra.mxu0 0.0
    %6061 = vmatpush.msra.mxu0 0.0
    %6062 = vmatpush.msra.mxu0 0.0
    %6063 = vmatpush.msra.mxu0 0.0
    %6064 = vmatpush.msra.mxu0 0.0
    %6065 = vmatpush.msra.mxu0 0.0
    %6066 = vmatpush.msra.mxu0 %v6006
    %6067 = vmatmul.f32.gmra.mxu0 %v5997
    %v6068 = vpop.f32.mrf.mxu0
    %v6069 = vadd.f32 0.0, %v6068
    %6070 = vdwg.mxu0
    %6071 = vmatpush.msra.mxu0 0.0
    %6072 = vmatpush.msra.mxu0 0.0
    %6073 = vmatpush.msra.mxu0 0.0
    %6074 = vmatpush.msra.mxu0 0.0
    %6075 = vmatpush.msra.mxu0 0.0
    %6076 = vmatpush.msra.mxu0 0.0
    %6077 = vmatpush.msra.mxu0 0.0
    %6078 = vmatpush.msra.mxu0 0.0
    %6079 = vmatpush.msra.mxu0 0.0
    %6080 = vmatpush.msra.mxu0 0.0
    %6081 = vmatpush.msra.mxu0 0.0
    %6082 = vmatpush.msra.mxu0 0.0
    %6083 = vmatpush.msra.mxu0 0.0
    %6084 = vmatpush.msra.mxu0 0.0
    %6085 = vmatpush.msra.mxu0 0.0
    %6086 = vmatpush.msra.mxu0 %v6009
    %6087 = vmatmul.f32.gmra.mxu0 %v5997
    %v6088 = vpop.f32.mrf.mxu0
    %v6089 = vadd.f32 0.0, %v6088
    %6090 = vdwg.mxu0
    %v6091 = vadd.f32 %v5986, %v6029
    %v6092 = vadd.f32 %v5987, %v6049
    %v6093 = vadd.f32 %v5988, %v6069
    %v6094 = vadd.f32 %v5989, %v6089
    %v6095 = vmul.f32 %v4039, %v2843
    %v6096 = vmul.f32 %v4038, %v2844
    %v6097 = vmul.f32 %v4037, %v2845
    %v6098 = vmul.f32 %v4040, %v2846
    %s6099 = scalar_lea.vmem %s4, 80
    %v6100 = vld [vmem:[%s6099] sm:$0xf]
    %v6102 = vsel %vm143, %v6100, 0
    %v6105 = vsel %vm147, %v6095, 0
    %v6108 = vsel %vm147, %v6096, 0
    %v6111 = vsel %vm147, %v6097, 0
    %v6114 = vsel %vm147, %v6098, 0
    %6116 = vmatpush.msra.mxu0 0.0
    %6117 = vmatpush.msra.mxu0 0.0
    %6118 = vmatpush.msra.mxu0 0.0
    %6119 = vmatpush.msra.mxu0 0.0
    %6120 = vmatpush.msra.mxu0 0.0
    %6121 = vmatpush.msra.mxu0 0.0
    %6122 = vmatpush.msra.mxu0 0.0
    %6123 = vmatpush.msra.mxu0 0.0
    %6124 = vmatpush.msra.mxu0 0.0
    %6125 = vmatpush.msra.mxu0 0.0
    %6126 = vmatpush.msra.mxu0 0.0
    %6127 = vmatpush.msra.mxu0 0.0
    %6128 = vmatpush.msra.mxu0 0.0
    %6129 = vmatpush.msra.mxu0 0.0
    %6130 = vmatpush.msra.mxu0 0.0
    %6131 = vmatpush.msra.mxu0 %v6105
    %6132 = vmatmul.f32.gmra.mxu0 %v6102
    %v6133 = vpop.f32.mrf.mxu0
    %v6134 = vadd.f32 0.0, %v6133
    %6135 = vdwg.mxu0
    %6136 = vmatpush.msra.mxu0 0.0
    %6137 = vmatpush.msra.mxu0 0.0
    %6138 = vmatpush.msra.mxu0 0.0
    %6139 = vmatpush.msra.mxu0 0.0
    %6140 = vmatpush.msra.mxu0 0.0
    %6141 = vmatpush.msra.mxu0 0.0
    %6142 = vmatpush.msra.mxu0 0.0
    %6143 = vmatpush.msra.mxu0 0.0
    %6144 = vmatpush.msra.mxu0 0.0
    %6145 = vmatpush.msra.mxu0 0.0
    %6146 = vmatpush.msra.mxu0 0.0
    %6147 = vmatpush.msra.mxu0 0.0
    %6148 = vmatpush.msra.mxu0 0.0
    %6149 = vmatpush.msra.mxu0 0.0
    %6150 = vmatpush.msra.mxu0 0.0
    %6151 = vmatpush.msra.mxu0 %v6108
    %6152 = vmatmul.f32.gmra.mxu0 %v6102
    %v6153 = vpop.f32.mrf.mxu0
    %v6154 = vadd.f32 0.0, %v6153
    %6155 = vdwg.mxu0
    %6156 = vmatpush.msra.mxu0 0.0
    %6157 = vmatpush.msra.mxu0 0.0
    %6158 = vmatpush.msra.mxu0 0.0
    %6159 = vmatpush.msra.mxu0 0.0
    %6160 = vmatpush.msra.mxu0 0.0
    %6161 = vmatpush.msra.mxu0 0.0
    %6162 = vmatpush.msra.mxu0 0.0
    %6163 = vmatpush.msra.mxu0 0.0
    %6164 = vmatpush.msra.mxu0 0.0
    %6165 = vmatpush.msra.mxu0 0.0
    %6166 = vmatpush.msra.mxu0 0.0
    %6167 = vmatpush.msra.mxu0 0.0
    %6168 = vmatpush.msra.mxu0 0.0
    %6169 = vmatpush.msra.mxu0 0.0
    %6170 = vmatpush.msra.mxu0 0.0
    %6171 = vmatpush.msra.mxu0 %v6111
    %6172 = vmatmul.f32.gmra.mxu0 %v6102
    %v6173 = vpop.f32.mrf.mxu0
    %v6174 = vadd.f32 0.0, %v6173
    %6175 = vdwg.mxu0
    %6176 = vmatpush.msra.mxu0 0.0
    %6177 = vmatpush.msra.mxu0 0.0
    %6178 = vmatpush.msra.mxu0 0.0
    %6179 = vmatpush.msra.mxu0 0.0
    %6180 = vmatpush.msra.mxu0 0.0
    %6181 = vmatpush.msra.mxu0 0.0
    %6182 = vmatpush.msra.mxu0 0.0
    %6183 = vmatpush.msra.mxu0 0.0
    %6184 = vmatpush.msra.mxu0 0.0
    %6185 = vmatpush.msra.mxu0 0.0
    %6186 = vmatpush.msra.mxu0 0.0
    %6187 = vmatpush.msra.mxu0 0.0
    %6188 = vmatpush.msra.mxu0 0.0
    %6189 = vmatpush.msra.mxu0 0.0
    %6190 = vmatpush.msra.mxu0 0.0
    %6191 = vmatpush.msra.mxu0 %v6114
    %6192 = vmatmul.f32.gmra.mxu0 %v6102
    %v6193 = vpop.f32.mrf.mxu0
    %v6194 = vadd.f32 0.0, %v6193
    %6195 = vdwg.mxu0
    %v6196 = vadd.f32 %v6091, %v6134
    %v6197 = vadd.f32 %v6092, %v6154
    %v6198 = vadd.f32 %v6093, %v6174
    %v6199 = vadd.f32 %v6094, %v6194
    %v6200 = vmul.f32 %v4156, %v2982
    %v6201 = vmul.f32 %v4155, %v2983
    %v6202 = vmul.f32 %v4154, %v2984
    %v6203 = vmul.f32 %v4157, %v2985
    %s6204 = scalar_lea.vmem %s4, 84
    %v6205 = vld [vmem:[%s6204] sm:$0xf]
    %v6207 = vsel %vm143, %v6205, 0
    %v6210 = vsel %vm147, %v6200, 0
    %v6213 = vsel %vm147, %v6201, 0
    %v6216 = vsel %vm147, %v6202, 0
    %v6219 = vsel %vm147, %v6203, 0
    %6221 = vmatpush.msra.mxu0 0.0
    %6222 = vmatpush.msra.mxu0 0.0
    %6223 = vmatpush.msra.mxu0 0.0
    %6224 = vmatpush.msra.mxu0 0.0
    %6225 = vmatpush.msra.mxu0 0.0
    %6226 = vmatpush.msra.mxu0 0.0
    %6227 = vmatpush.msra.mxu0 0.0
    %6228 = vmatpush.msra.mxu0 0.0
    %6229 = vmatpush.msra.mxu0 0.0
    %6230 = vmatpush.msra.mxu0 0.0
    %6231 = vmatpush.msra.mxu0 0.0
    %6232 = vmatpush.msra.mxu0 0.0
    %6233 = vmatpush.msra.mxu0 0.0
    %6234 = vmatpush.msra.mxu0 0.0
    %6235 = vmatpush.msra.mxu0 0.0
    %6236 = vmatpush.msra.mxu0 %v6210
    %6237 = vmatmul.f32.gmra.mxu0 %v6207
    %v6238 = vpop.f32.mrf.mxu0
    %v6239 = vadd.f32 0.0, %v6238
    %6240 = vdwg.mxu0
    %6241 = vmatpush.msra.mxu0 0.0
    %6242 = vmatpush.msra.mxu0 0.0
    %6243 = vmatpush.msra.mxu0 0.0
    %6244 = vmatpush.msra.mxu0 0.0
    %6245 = vmatpush.msra.mxu0 0.0
    %6246 = vmatpush.msra.mxu0 0.0
    %6247 = vmatpush.msra.mxu0 0.0
    %6248 = vmatpush.msra.mxu0 0.0
    %6249 = vmatpush.msra.mxu0 0.0
    %6250 = vmatpush.msra.mxu0 0.0
    %6251 = vmatpush.msra.mxu0 0.0
    %6252 = vmatpush.msra.mxu0 0.0
    %6253 = vmatpush.msra.mxu0 0.0
    %6254 = vmatpush.msra.mxu0 0.0
    %6255 = vmatpush.msra.mxu0 0.0
    %6256 = vmatpush.msra.mxu0 %v6213
    %6257 = vmatmul.f32.gmra.mxu0 %v6207
    %v6258 = vpop.f32.mrf.mxu0
    %v6259 = vadd.f32 0.0, %v6258
    %6260 = vdwg.mxu0
    %6261 = vmatpush.msra.mxu0 0.0
    %6262 = vmatpush.msra.mxu0 0.0
    %6263 = vmatpush.msra.mxu0 0.0
    %6264 = vmatpush.msra.mxu0 0.0
    %6265 = vmatpush.msra.mxu0 0.0
    %6266 = vmatpush.msra.mxu0 0.0
    %6267 = vmatpush.msra.mxu0 0.0
    %6268 = vmatpush.msra.mxu0 0.0
    %6269 = vmatpush.msra.mxu0 0.0
    %6270 = vmatpush.msra.mxu0 0.0
    %6271 = vmatpush.msra.mxu0 0.0
    %6272 = vmatpush.msra.mxu0 0.0
    %6273 = vmatpush.msra.mxu0 0.0
    %6274 = vmatpush.msra.mxu0 0.0
    %6275 = vmatpush.msra.mxu0 0.0
    %6276 = vmatpush.msra.mxu0 %v6216
    %6277 = vmatmul.f32.gmra.mxu0 %v6207
    %v6278 = vpop.f32.mrf.mxu0
    %v6279 = vadd.f32 0.0, %v6278
    %6280 = vdwg.mxu0
    %6281 = vmatpush.msra.mxu0 0.0
    %6282 = vmatpush.msra.mxu0 0.0
    %6283 = vmatpush.msra.mxu0 0.0
    %6284 = vmatpush.msra.mxu0 0.0
    %6285 = vmatpush.msra.mxu0 0.0
    %6286 = vmatpush.msra.mxu0 0.0
    %6287 = vmatpush.msra.mxu0 0.0
    %6288 = vmatpush.msra.mxu0 0.0
    %6289 = vmatpush.msra.mxu0 0.0
    %6290 = vmatpush.msra.mxu0 0.0
    %6291 = vmatpush.msra.mxu0 0.0
    %6292 = vmatpush.msra.mxu0 0.0
    %6293 = vmatpush.msra.mxu0 0.0
    %6294 = vmatpush.msra.mxu0 0.0
    %6295 = vmatpush.msra.mxu0 0.0
    %6296 = vmatpush.msra.mxu0 %v6219
    %6297 = vmatmul.f32.gmra.mxu0 %v6207
    %v6298 = vpop.f32.mrf.mxu0
    %v6299 = vadd.f32 0.0, %v6298
    %6300 = vdwg.mxu0
    %v6301 = vadd.f32 %v6196, %v6239
    %v6302 = vadd.f32 %v6197, %v6259
    %v6303 = vadd.f32 %v6198, %v6279
    %v6304 = vadd.f32 %v6199, %v6299
    %v6305 = vmul.f32 %v4273, %v3121
    %v6306 = vmul.f32 %v4272, %v3122
    %v6307 = vmul.f32 %v4271, %v3123
    %v6308 = vmul.f32 %v4274, %v3124
    %s6309 = scalar_lea.vmem %s4, 88
    %v6310 = vld [vmem:[%s6309] sm:$0xf]
    %v6312 = vsel %vm143, %v6310, 0
    %v6315 = vsel %vm147, %v6305, 0
    %v6318 = vsel %vm147, %v6306, 0
    %v6321 = vsel %vm147, %v6307, 0
    %v6324 = vsel %vm147, %v6308, 0
    %6326 = vmatpush.msra.mxu0 0.0
    %6327 = vmatpush.msra.mxu0 0.0
    %6328 = vmatpush.msra.mxu0 0.0
    %6329 = vmatpush.msra.mxu0 0.0
    %6330 = vmatpush.msra.mxu0 0.0
    %6331 = vmatpush.msra.mxu0 0.0
    %6332 = vmatpush.msra.mxu0 0.0
    %6333 = vmatpush.msra.mxu0 0.0
    %6334 = vmatpush.msra.mxu0 0.0
    %6335 = vmatpush.msra.mxu0 0.0
    %6336 = vmatpush.msra.mxu0 0.0
    %6337 = vmatpush.msra.mxu0 0.0
    %6338 = vmatpush.msra.mxu0 0.0
    %6339 = vmatpush.msra.mxu0 0.0
    %6340 = vmatpush.msra.mxu0 0.0
    %6341 = vmatpush.msra.mxu0 %v6315
    %6342 = vmatmul.f32.gmra.mxu0 %v6312
    %v6343 = vpop.f32.mrf.mxu0
    %v6344 = vadd.f32 0.0, %v6343
    %6345 = vdwg.mxu0
    %6346 = vmatpush.msra.mxu0 0.0
    %6347 = vmatpush.msra.mxu0 0.0
    %6348 = vmatpush.msra.mxu0 0.0
    %6349 = vmatpush.msra.mxu0 0.0
    %6350 = vmatpush.msra.mxu0 0.0
    %6351 = vmatpush.msra.mxu0 0.0
    %6352 = vmatpush.msra.mxu0 0.0
    %6353 = vmatpush.msra.mxu0 0.0
    %6354 = vmatpush.msra.mxu0 0.0
    %6355 = vmatpush.msra.mxu0 0.0
    %6356 = vmatpush.msra.mxu0 0.0
    %6357 = vmatpush.msra.mxu0 0.0
    %6358 = vmatpush.msra.mxu0 0.0
    %6359 = vmatpush.msra.mxu0 0.0
    %6360 = vmatpush.msra.mxu0 0.0
    %6361 = vmatpush.msra.mxu0 %v6318
    %6362 = vmatmul.f32.gmra.mxu0 %v6312
    %v6363 = vpop.f32.mrf.mxu0
    %v6364 = vadd.f32 0.0, %v6363
    %6365 = vdwg.mxu0
    %6366 = vmatpush.msra.mxu0 0.0
    %6367 = vmatpush.msra.mxu0 0.0
    %6368 = vmatpush.msra.mxu0 0.0
    %6369 = vmatpush.msra.mxu0 0.0
    %6370 = vmatpush.msra.mxu0 0.0
    %6371 = vmatpush.msra.mxu0 0.0
    %6372 = vmatpush.msra.mxu0 0.0
    %6373 = vmatpush.msra.mxu0 0.0
    %6374 = vmatpush.msra.mxu0 0.0
    %6375 = vmatpush.msra.mxu0 0.0
    %6376 = vmatpush.msra.mxu0 0.0
    %6377 = vmatpush.msra.mxu0 0.0
    %6378 = vmatpush.msra.mxu0 0.0
    %6379 = vmatpush.msra.mxu0 0.0
    %6380 = vmatpush.msra.mxu0 0.0
    %6381 = vmatpush.msra.mxu0 %v6321
    %6382 = vmatmul.f32.gmra.mxu0 %v6312
    %v6383 = vpop.f32.mrf.mxu0
    %v6384 = vadd.f32 0.0, %v6383
    %6385 = vdwg.mxu0
    %6386 = vmatpush.msra.mxu0 0.0
    %6387 = vmatpush.msra.mxu0 0.0
    %6388 = vmatpush.msra.mxu0 0.0
    %6389 = vmatpush.msra.mxu0 0.0
    %6390 = vmatpush.msra.mxu0 0.0
    %6391 = vmatpush.msra.mxu0 0.0
    %6392 = vmatpush.msra.mxu0 0.0
    %6393 = vmatpush.msra.mxu0 0.0
    %6394 = vmatpush.msra.mxu0 0.0
    %6395 = vmatpush.msra.mxu0 0.0
    %6396 = vmatpush.msra.mxu0 0.0
    %6397 = vmatpush.msra.mxu0 0.0
    %6398 = vmatpush.msra.mxu0 0.0
    %6399 = vmatpush.msra.mxu0 0.0
    %6400 = vmatpush.msra.mxu0 0.0
    %6401 = vmatpush.msra.mxu0 %v6324
    %6402 = vmatmul.f32.gmra.mxu0 %v6312
    %v6403 = vpop.f32.mrf.mxu0
    %v6404 = vadd.f32 0.0, %v6403
    %6405 = vdwg.mxu0
    %v6406 = vadd.f32 %v6301, %v6344
    %v6407 = vadd.f32 %v6302, %v6364
    %v6408 = vadd.f32 %v6303, %v6384
    %v6409 = vadd.f32 %v6304, %v6404
    %v6410 = vmul.f32 %v4390, %v3260
    %v6411 = vmul.f32 %v4389, %v3261
    %v6412 = vmul.f32 %v4388, %v3262
    %v6413 = vmul.f32 %v4391, %v3263
    %s6414 = scalar_lea.vmem %s4, 92
    %v6415 = vld [vmem:[%s6414] sm:$0xf]
    %v6417 = vsel %vm143, %v6415, 0
    %v6420 = vsel %vm147, %v6410, 0
    %v6423 = vsel %vm147, %v6411, 0
    %v6426 = vsel %vm147, %v6412, 0
    %v6429 = vsel %vm147, %v6413, 0
    %6431 = vmatpush.msra.mxu0 0.0
    %6432 = vmatpush.msra.mxu0 0.0
    %6433 = vmatpush.msra.mxu0 0.0
    %6434 = vmatpush.msra.mxu0 0.0
    %6435 = vmatpush.msra.mxu0 0.0
    %6436 = vmatpush.msra.mxu0 0.0
    %6437 = vmatpush.msra.mxu0 0.0
    %6438 = vmatpush.msra.mxu0 0.0
    %6439 = vmatpush.msra.mxu0 0.0
    %6440 = vmatpush.msra.mxu0 0.0
    %6441 = vmatpush.msra.mxu0 0.0
    %6442 = vmatpush.msra.mxu0 0.0
    %6443 = vmatpush.msra.mxu0 0.0
    %6444 = vmatpush.msra.mxu0 0.0
    %6445 = vmatpush.msra.mxu0 0.0
    %6446 = vmatpush.msra.mxu0 %v6420
    %6447 = vmatmul.f32.gmra.mxu0 %v6417
    %v6448 = vpop.f32.mrf.mxu0
    %v6449 = vadd.f32 0.0, %v6448
    %6450 = vdwg.mxu0
    %6451 = vmatpush.msra.mxu0 0.0
    %6452 = vmatpush.msra.mxu0 0.0
    %6453 = vmatpush.msra.mxu0 0.0
    %6454 = vmatpush.msra.mxu0 0.0
    %6455 = vmatpush.msra.mxu0 0.0
    %6456 = vmatpush.msra.mxu0 0.0
    %6457 = vmatpush.msra.mxu0 0.0
    %6458 = vmatpush.msra.mxu0 0.0
    %6459 = vmatpush.msra.mxu0 0.0
    %6460 = vmatpush.msra.mxu0 0.0
    %6461 = vmatpush.msra.mxu0 0.0
    %6462 = vmatpush.msra.mxu0 0.0
    %6463 = vmatpush.msra.mxu0 0.0
    %6464 = vmatpush.msra.mxu0 0.0
    %6465 = vmatpush.msra.mxu0 0.0
    %6466 = vmatpush.msra.mxu0 %v6423
    %6467 = vmatmul.f32.gmra.mxu0 %v6417
    %v6468 = vpop.f32.mrf.mxu0
    %v6469 = vadd.f32 0.0, %v6468
    %6470 = vdwg.mxu0
    %6471 = vmatpush.msra.mxu0 0.0
    %6472 = vmatpush.msra.mxu0 0.0
    %6473 = vmatpush.msra.mxu0 0.0
    %6474 = vmatpush.msra.mxu0 0.0
    %6475 = vmatpush.msra.mxu0 0.0
    %6476 = vmatpush.msra.mxu0 0.0
    %6477 = vmatpush.msra.mxu0 0.0
    %6478 = vmatpush.msra.mxu0 0.0
    %6479 = vmatpush.msra.mxu0 0.0
    %6480 = vmatpush.msra.mxu0 0.0
    %6481 = vmatpush.msra.mxu0 0.0
    %6482 = vmatpush.msra.mxu0 0.0
    %6483 = vmatpush.msra.mxu0 0.0
    %6484 = vmatpush.msra.mxu0 0.0
    %6485 = vmatpush.msra.mxu0 0.0
    %6486 = vmatpush.msra.mxu0 %v6426
    %6487 = vmatmul.f32.gmra.mxu0 %v6417
    %v6488 = vpop.f32.mrf.mxu0
    %v6489 = vadd.f32 0.0, %v6488
    %6490 = vdwg.mxu0
    %6491 = vmatpush.msra.mxu0 0.0
    %6492 = vmatpush.msra.mxu0 0.0
    %6493 = vmatpush.msra.mxu0 0.0
    %6494 = vmatpush.msra.mxu0 0.0
    %6495 = vmatpush.msra.mxu0 0.0
    %6496 = vmatpush.msra.mxu0 0.0
    %6497 = vmatpush.msra.mxu0 0.0
    %6498 = vmatpush.msra.mxu0 0.0
    %6499 = vmatpush.msra.mxu0 0.0
    %6500 = vmatpush.msra.mxu0 0.0
    %6501 = vmatpush.msra.mxu0 0.0
    %6502 = vmatpush.msra.mxu0 0.0
    %6503 = vmatpush.msra.mxu0 0.0
    %6504 = vmatpush.msra.mxu0 0.0
    %6505 = vmatpush.msra.mxu0 0.0
    %6506 = vmatpush.msra.mxu0 %v6429
    %6507 = vmatmul.f32.gmra.mxu0 %v6417
    %v6508 = vpop.f32.mrf.mxu0
    %v6509 = vadd.f32 0.0, %v6508
    %6510 = vdwg.mxu0
    %v6511 = vadd.f32 %v6406, %v6449
    %v6512 = vadd.f32 %v6407, %v6469
    %v6513 = vadd.f32 %v6408, %v6489
    %v6514 = vadd.f32 %v6409, %v6509
    %v6515 = vmul.f32 %v4507, %v3399
    %v6516 = vmul.f32 %v4506, %v3400
    %v6517 = vmul.f32 %v4505, %v3401
    %v6518 = vmul.f32 %v4508, %v3402
    %s6519 = scalar_lea.vmem %s4, 96
    %v6520 = vld [vmem:[%s6519] sm:$0xf]
    %v6522 = vsel %vm143, %v6520, 0
    %v6525 = vsel %vm147, %v6515, 0
    %v6528 = vsel %vm147, %v6516, 0
    %v6531 = vsel %vm147, %v6517, 0
    %v6534 = vsel %vm147, %v6518, 0
    %6536 = vmatpush.msra.mxu0 0.0
    %6537 = vmatpush.msra.mxu0 0.0
    %6538 = vmatpush.msra.mxu0 0.0
    %6539 = vmatpush.msra.mxu0 0.0
    %6540 = vmatpush.msra.mxu0 0.0
    %6541 = vmatpush.msra.mxu0 0.0
    %6542 = vmatpush.msra.mxu0 0.0
    %6543 = vmatpush.msra.mxu0 0.0
    %6544 = vmatpush.msra.mxu0 0.0
    %6545 = vmatpush.msra.mxu0 0.0
    %6546 = vmatpush.msra.mxu0 0.0
    %6547 = vmatpush.msra.mxu0 0.0
    %6548 = vmatpush.msra.mxu0 0.0
    %6549 = vmatpush.msra.mxu0 0.0
    %6550 = vmatpush.msra.mxu0 0.0
    %6551 = vmatpush.msra.mxu0 %v6525
    %6552 = vmatmul.f32.gmra.mxu0 %v6522
    %v6553 = vpop.f32.mrf.mxu0
    %v6554 = vadd.f32 0.0, %v6553
    %6555 = vdwg.mxu0
    %6556 = vmatpush.msra.mxu0 0.0
    %6557 = vmatpush.msra.mxu0 0.0
    %6558 = vmatpush.msra.mxu0 0.0
    %6559 = vmatpush.msra.mxu0 0.0
    %6560 = vmatpush.msra.mxu0 0.0
    %6561 = vmatpush.msra.mxu0 0.0
    %6562 = vmatpush.msra.mxu0 0.0
    %6563 = vmatpush.msra.mxu0 0.0
    %6564 = vmatpush.msra.mxu0 0.0
    %6565 = vmatpush.msra.mxu0 0.0
    %6566 = vmatpush.msra.mxu0 0.0
    %6567 = vmatpush.msra.mxu0 0.0
    %6568 = vmatpush.msra.mxu0 0.0
    %6569 = vmatpush.msra.mxu0 0.0
    %6570 = vmatpush.msra.mxu0 0.0
    %6571 = vmatpush.msra.mxu0 %v6528
    %6572 = vmatmul.f32.gmra.mxu0 %v6522
    %v6573 = vpop.f32.mrf.mxu0
    %v6574 = vadd.f32 0.0, %v6573
    %6575 = vdwg.mxu0
    %6576 = vmatpush.msra.mxu0 0.0
    %6577 = vmatpush.msra.mxu0 0.0
    %6578 = vmatpush.msra.mxu0 0.0
    %6579 = vmatpush.msra.mxu0 0.0
    %6580 = vmatpush.msra.mxu0 0.0
    %6581 = vmatpush.msra.mxu0 0.0
    %6582 = vmatpush.msra.mxu0 0.0
    %6583 = vmatpush.msra.mxu0 0.0
    %6584 = vmatpush.msra.mxu0 0.0
    %6585 = vmatpush.msra.mxu0 0.0
    %6586 = vmatpush.msra.mxu0 0.0
    %6587 = vmatpush.msra.mxu0 0.0
    %6588 = vmatpush.msra.mxu0 0.0
    %6589 = vmatpush.msra.mxu0 0.0
    %6590 = vmatpush.msra.mxu0 0.0
    %6591 = vmatpush.msra.mxu0 %v6531
    %6592 = vmatmul.f32.gmra.mxu0 %v6522
    %v6593 = vpop.f32.mrf.mxu0
    %v6594 = vadd.f32 0.0, %v6593
    %6595 = vdwg.mxu0
    %6596 = vmatpush.msra.mxu0 0.0
    %6597 = vmatpush.msra.mxu0 0.0
    %6598 = vmatpush.msra.mxu0 0.0
    %6599 = vmatpush.msra.mxu0 0.0
    %6600 = vmatpush.msra.mxu0 0.0
    %6601 = vmatpush.msra.mxu0 0.0
    %6602 = vmatpush.msra.mxu0 0.0
    %6603 = vmatpush.msra.mxu0 0.0
    %6604 = vmatpush.msra.mxu0 0.0
    %6605 = vmatpush.msra.mxu0 0.0
    %6606 = vmatpush.msra.mxu0 0.0
    %6607 = vmatpush.msra.mxu0 0.0
    %6608 = vmatpush.msra.mxu0 0.0
    %6609 = vmatpush.msra.mxu0 0.0
    %6610 = vmatpush.msra.mxu0 0.0
    %6611 = vmatpush.msra.mxu0 %v6534
    %6612 = vmatmul.f32.gmra.mxu0 %v6522
    %v6613 = vpop.f32.mrf.mxu0
    %v6614 = vadd.f32 0.0, %v6613
    %6615 = vdwg.mxu0
    %v6616 = vadd.f32 %v6511, %v6554
    %v6617 = vadd.f32 %v6512, %v6574
    %v6618 = vadd.f32 %v6513, %v6594
    %v6619 = vadd.f32 %v6514, %v6614
    %v6620 = vmul.f32 %v4624, %v3538
    %v6621 = vmul.f32 %v4623, %v3539
    %v6622 = vmul.f32 %v4622, %v3540
    %v6623 = vmul.f32 %v4625, %v3541
    %s6624 = scalar_lea.vmem %s4, 100
    %v6625 = vld [vmem:[%s6624] sm:$0xf]
    %v6627 = vsel %vm143, %v6625, 0
    %v6630 = vsel %vm147, %v6620, 0
    %v6633 = vsel %vm147, %v6621, 0
    %v6636 = vsel %vm147, %v6622, 0
    %v6639 = vsel %vm147, %v6623, 0
    %6641 = vmatpush.msra.mxu0 0.0
    %6642 = vmatpush.msra.mxu0 0.0
    %6643 = vmatpush.msra.mxu0 0.0
    %6644 = vmatpush.msra.mxu0 0.0
    %6645 = vmatpush.msra.mxu0 0.0
    %6646 = vmatpush.msra.mxu0 0.0
    %6647 = vmatpush.msra.mxu0 0.0
    %6648 = vmatpush.msra.mxu0 0.0
    %6649 = vmatpush.msra.mxu0 0.0
    %6650 = vmatpush.msra.mxu0 0.0
    %6651 = vmatpush.msra.mxu0 0.0
    %6652 = vmatpush.msra.mxu0 0.0
    %6653 = vmatpush.msra.mxu0 0.0
    %6654 = vmatpush.msra.mxu0 0.0
    %6655 = vmatpush.msra.mxu0 0.0
    %6656 = vmatpush.msra.mxu0 %v6630
    %6657 = vmatmul.f32.gmra.mxu0 %v6627
    %v6658 = vpop.f32.mrf.mxu0
    %v6659 = vadd.f32 0.0, %v6658
    %6660 = vdwg.mxu0
    %6661 = vmatpush.msra.mxu0 0.0
    %6662 = vmatpush.msra.mxu0 0.0
    %6663 = vmatpush.msra.mxu0 0.0
    %6664 = vmatpush.msra.mxu0 0.0
    %6665 = vmatpush.msra.mxu0 0.0
    %6666 = vmatpush.msra.mxu0 0.0
    %6667 = vmatpush.msra.mxu0 0.0
    %6668 = vmatpush.msra.mxu0 0.0
    %6669 = vmatpush.msra.mxu0 0.0
    %6670 = vmatpush.msra.mxu0 0.0
    %6671 = vmatpush.msra.mxu0 0.0
    %6672 = vmatpush.msra.mxu0 0.0
    %6673 = vmatpush.msra.mxu0 0.0
    %6674 = vmatpush.msra.mxu0 0.0
    %6675 = vmatpush.msra.mxu0 0.0
    %6676 = vmatpush.msra.mxu0 %v6633
    %6677 = vmatmul.f32.gmra.mxu0 %v6627
    %v6678 = vpop.f32.mrf.mxu0
    %v6679 = vadd.f32 0.0, %v6678
    %6680 = vdwg.mxu0
    %6681 = vmatpush.msra.mxu0 0.0
    %6682 = vmatpush.msra.mxu0 0.0
    %6683 = vmatpush.msra.mxu0 0.0
    %6684 = vmatpush.msra.mxu0 0.0
    %6685 = vmatpush.msra.mxu0 0.0
    %6686 = vmatpush.msra.mxu0 0.0
    %6687 = vmatpush.msra.mxu0 0.0
    %6688 = vmatpush.msra.mxu0 0.0
    %6689 = vmatpush.msra.mxu0 0.0
    %6690 = vmatpush.msra.mxu0 0.0
    %6691 = vmatpush.msra.mxu0 0.0
    %6692 = vmatpush.msra.mxu0 0.0
    %6693 = vmatpush.msra.mxu0 0.0
    %6694 = vmatpush.msra.mxu0 0.0
    %6695 = vmatpush.msra.mxu0 0.0
    %6696 = vmatpush.msra.mxu0 %v6636
    %6697 = vmatmul.f32.gmra.mxu0 %v6627
    %v6698 = vpop.f32.mrf.mxu0
    %v6699 = vadd.f32 0.0, %v6698
    %6700 = vdwg.mxu0
    %6701 = vmatpush.msra.mxu0 0.0
    %6702 = vmatpush.msra.mxu0 0.0
    %6703 = vmatpush.msra.mxu0 0.0
    %6704 = vmatpush.msra.mxu0 0.0
    %6705 = vmatpush.msra.mxu0 0.0
    %6706 = vmatpush.msra.mxu0 0.0
    %6707 = vmatpush.msra.mxu0 0.0
    %6708 = vmatpush.msra.mxu0 0.0
    %6709 = vmatpush.msra.mxu0 0.0
    %6710 = vmatpush.msra.mxu0 0.0
    %6711 = vmatpush.msra.mxu0 0.0
    %6712 = vmatpush.msra.mxu0 0.0
    %6713 = vmatpush.msra.mxu0 0.0
    %6714 = vmatpush.msra.mxu0 0.0
    %6715 = vmatpush.msra.mxu0 0.0
    %6716 = vmatpush.msra.mxu0 %v6639
    %6717 = vmatmul.f32.gmra.mxu0 %v6627
    %v6718 = vpop.f32.mrf.mxu0
    %v6719 = vadd.f32 0.0, %v6718
    %6720 = vdwg.mxu0
    %v6721 = vadd.f32 %v6616, %v6659
    %v6722 = vadd.f32 %v6617, %v6679
    %v6723 = vadd.f32 %v6618, %v6699
    %v6724 = vadd.f32 %v6619, %v6719
    %v6725 = vmul.f32 %v4741, %v3677
    %v6726 = vmul.f32 %v4740, %v3678
    %v6727 = vmul.f32 %v4739, %v3679
    %v6728 = vmul.f32 %v4742, %v3680
    %s6729 = scalar_lea.vmem %s4, 104
    %v6730 = vld [vmem:[%s6729] sm:$0xf]
    %v6732 = vsel %vm143, %v6730, 0
    %v6735 = vsel %vm147, %v6725, 0
    %v6738 = vsel %vm147, %v6726, 0
    %v6741 = vsel %vm147, %v6727, 0
    %v6744 = vsel %vm147, %v6728, 0
    %6746 = vmatpush.msra.mxu0 0.0
    %6747 = vmatpush.msra.mxu0 0.0
    %6748 = vmatpush.msra.mxu0 0.0
    %6749 = vmatpush.msra.mxu0 0.0
    %6750 = vmatpush.msra.mxu0 0.0
    %6751 = vmatpush.msra.mxu0 0.0
    %6752 = vmatpush.msra.mxu0 0.0
    %6753 = vmatpush.msra.mxu0 0.0
    %6754 = vmatpush.msra.mxu0 0.0
    %6755 = vmatpush.msra.mxu0 0.0
    %6756 = vmatpush.msra.mxu0 0.0
    %6757 = vmatpush.msra.mxu0 0.0
    %6758 = vmatpush.msra.mxu0 0.0
    %6759 = vmatpush.msra.mxu0 0.0
    %6760 = vmatpush.msra.mxu0 0.0
    %6761 = vmatpush.msra.mxu0 %v6735
    %6762 = vmatmul.f32.gmra.mxu0 %v6732
    %v6763 = vpop.f32.mrf.mxu0
    %v6764 = vadd.f32 0.0, %v6763
    %6765 = vdwg.mxu0
    %6766 = vmatpush.msra.mxu0 0.0
    %6767 = vmatpush.msra.mxu0 0.0
    %6768 = vmatpush.msra.mxu0 0.0
    %6769 = vmatpush.msra.mxu0 0.0
    %6770 = vmatpush.msra.mxu0 0.0
    %6771 = vmatpush.msra.mxu0 0.0
    %6772 = vmatpush.msra.mxu0 0.0
    %6773 = vmatpush.msra.mxu0 0.0
    %6774 = vmatpush.msra.mxu0 0.0
    %6775 = vmatpush.msra.mxu0 0.0
    %6776 = vmatpush.msra.mxu0 0.0
    %6777 = vmatpush.msra.mxu0 0.0
    %6778 = vmatpush.msra.mxu0 0.0
    %6779 = vmatpush.msra.mxu0 0.0
    %6780 = vmatpush.msra.mxu0 0.0
    %6781 = vmatpush.msra.mxu0 %v6738
    %6782 = vmatmul.f32.gmra.mxu0 %v6732
    %v6783 = vpop.f32.mrf.mxu0
    %v6784 = vadd.f32 0.0, %v6783
    %6785 = vdwg.mxu0
    %6786 = vmatpush.msra.mxu0 0.0
    %6787 = vmatpush.msra.mxu0 0.0
    %6788 = vmatpush.msra.mxu0 0.0
    %6789 = vmatpush.msra.mxu0 0.0
    %6790 = vmatpush.msra.mxu0 0.0
    %6791 = vmatpush.msra.mxu0 0.0
    %6792 = vmatpush.msra.mxu0 0.0
    %6793 = vmatpush.msra.mxu0 0.0
    %6794 = vmatpush.msra.mxu0 0.0
    %6795 = vmatpush.msra.mxu0 0.0
    %6796 = vmatpush.msra.mxu0 0.0
    %6797 = vmatpush.msra.mxu0 0.0
    %6798 = vmatpush.msra.mxu0 0.0
    %6799 = vmatpush.msra.mxu0 0.0
    %6800 = vmatpush.msra.mxu0 0.0
    %6801 = vmatpush.msra.mxu0 %v6741
    %6802 = vmatmul.f32.gmra.mxu0 %v6732
    %v6803 = vpop.f32.mrf.mxu0
    %v6804 = vadd.f32 0.0, %v6803
    %6805 = vdwg.mxu0
    %6806 = vmatpush.msra.mxu0 0.0
    %6807 = vmatpush.msra.mxu0 0.0
    %6808 = vmatpush.msra.mxu0 0.0
    %6809 = vmatpush.msra.mxu0 0.0
    %6810 = vmatpush.msra.mxu0 0.0
    %6811 = vmatpush.msra.mxu0 0.0
    %6812 = vmatpush.msra.mxu0 0.0
    %6813 = vmatpush.msra.mxu0 0.0
    %6814 = vmatpush.msra.mxu0 0.0
    %6815 = vmatpush.msra.mxu0 0.0
    %6816 = vmatpush.msra.mxu0 0.0
    %6817 = vmatpush.msra.mxu0 0.0
    %6818 = vmatpush.msra.mxu0 0.0
    %6819 = vmatpush.msra.mxu0 0.0
    %6820 = vmatpush.msra.mxu0 0.0
    %6821 = vmatpush.msra.mxu0 %v6744
    %6822 = vmatmul.f32.gmra.mxu0 %v6732
    %v6823 = vpop.f32.mrf.mxu0
    %v6824 = vadd.f32 0.0, %v6823
    %6825 = vdwg.mxu0
    %v6826 = vadd.f32 %v6721, %v6764
    %v6827 = vadd.f32 %v6722, %v6784
    %v6828 = vadd.f32 %v6723, %v6804
    %v6829 = vadd.f32 %v6724, %v6824
    %v6830 = vld [vmem:[%s5] sm:$0xf]
    %6832 = vset.pattern.permute.xlu0 0
    %6833 = vperm.xlu0 %6832, %v6830
    %v6834 = vpop.permute.xlu0 %6833
    %v6836 = vadd.f32 %v6826, %v6834
    %v6837 = vadd.f32 %v6827, %v6834
    %v6838 = vadd.f32 %v6828, %v6834
    %v6839 = vadd.f32 %v6829, %v6834
    %v6840 = vld [vmem:[#allocation2] sm:$0xff]
    %v6841 = vld [vmem:[#allocation2 + $0x8] sm:$0xff]
    %v6842 = vld [vmem:[#allocation2 + $0x10] sm:$0xff]
    %v6843 = vld [vmem:[#allocation2 + $0x18] sm:$0xff]
    %v6844 = vld [vmem:[#allocation2 + $0x20] sm:$0xff]
    %v6845 = vld [vmem:[#allocation2 + $0x28] sm:$0xff]
    %v6846 = vld [vmem:[#allocation2 + $0x30] sm:$0xff]
    %v6847 = vld [vmem:[#allocation2 + $0x38] sm:$0xff]
    %v6848 = vld [vmem:[#allocation2 + $0x40] sm:$0xff]
    %v6849 = vld [vmem:[#allocation2 + $0x48] sm:$0xff]
    %v6850 = vld [vmem:[#allocation2 + $0x50] sm:$0xff]
    %v6851 = vld [vmem:[#allocation2 + $0x58] sm:$0xff]
    %v6852 = vld [vmem:[#allocation2 + $0x60] sm:$0xff]
    %v6853 = vld [vmem:[#allocation2 + $0x68] sm:$0xff]
    %v6854 = vld [vmem:[#allocation2 + $0x70] sm:$0xff]
    %v6855 = vld [vmem:[#allocation2 + $0x78] sm:$0xff]
    %v6856 = vld [vmem:[#allocation2 + $0x80] sm:$0xff]
    %v6857 = vld [vmem:[#allocation2 + $0x88] sm:$0xff]
    %v6858 = vld [vmem:[#allocation2 + $0x90] sm:$0xff]
    %v6859 = vld [vmem:[#allocation2 + $0x98] sm:$0xff]
    %v6860 = vld [vmem:[#allocation2 + $0xa0] sm:$0xff]
    %v6861 = vld [vmem:[#allocation2 + $0xa8] sm:$0xff]
    %v6862 = vld [vmem:[#allocation2 + $0xb0] sm:$0xff]
    %v6863 = vld [vmem:[#allocation2 + $0xb8] sm:$0xff]
    %v6864 = vld [vmem:[#allocation2 + $0xc0] sm:$0xff]
    %v6865 = vld [vmem:[#allocation2 + $0xc8] sm:$0xff]
    %v6866 = vld [vmem:[#allocation2 + $0xd0] sm:$0xff]
    %v6867 = vld [vmem:[#allocation2 + $0xd8] sm:$0xff]
    %v6868 = vld [vmem:[#allocation2 + $0xe0] sm:$0xff]
    %v6869 = vld [vmem:[#allocation2 + $0xe8] sm:$0xff]
    %v6870 = vld [vmem:[#allocation2 + $0xf0] sm:$0xff]
    %v6871 = vld [vmem:[#allocation2 + $0xf8] sm:$0xff]
    %v6872 = vld [vmem:[#allocation2 + $0x100] sm:$0xff]
    %v6873 = vld [vmem:[#allocation2 + $0x108] sm:$0xff]
    %v6874 = vld [vmem:[#allocation2 + $0x110] sm:$0xff]
    %v6875 = vld [vmem:[#allocation2 + $0x118] sm:$0xff]
    %v6876 = vld [vmem:[#allocation2 + $0x120] sm:$0xff]
    %v6877 = vld [vmem:[#allocation2 + $0x128] sm:$0xff]
    %v6878 = vld [vmem:[#allocation2 + $0x130] sm:$0xff]
    %v6879 = vld [vmem:[#allocation2 + $0x138] sm:$0xff]
    %v6880 = vld [vmem:[#allocation2 + $0x140] sm:$0xff]
    %v6881 = vld [vmem:[#allocation2 + $0x148] sm:$0xff]
    %v6882 = vld [vmem:[#allocation2 + $0x150] sm:$0xff]
    %v6883 = vld [vmem:[#allocation2 + $0x158] sm:$0xff]
    %v6884 = vld [vmem:[#allocation2 + $0x160] sm:$0xff]
    %v6885 = vld [vmem:[#allocation2 + $0x168] sm:$0xff]
    %v6886 = vld [vmem:[#allocation2 + $0x170] sm:$0xff]
    %v6887 = vld [vmem:[#allocation2 + $0x178] sm:$0xff]
    %v6888 = vld [vmem:[#allocation2 + $0x180] sm:$0xff]
    %v6889 = vld [vmem:[#allocation2 + $0x188] sm:$0xff]
    %v6890 = vld [vmem:[#allocation2 + $0x190] sm:$0xff]
    %v6891 = vld [vmem:[#allocation2 + $0x198] sm:$0xff]
    %v6892 = vld [vmem:[#allocation2 + $0x1a0] sm:$0xff]
    %v6893 = vld [vmem:[#allocation2 + $0x1a8] sm:$0xff]
    %v6894 = vld [vmem:[#allocation2 + $0x1b0] sm:$0xff]
    %v6895 = vld [vmem:[#allocation2 + $0x1b8] sm:$0xff]
    %v6896 = vld [vmem:[#allocation2 + $0x1c0] sm:$0xff]
    %v6897 = vld [vmem:[#allocation2 + $0x1c8] sm:$0xff]
    %v6898 = vld [vmem:[#allocation2 + $0x1d0] sm:$0xff]
    %v6899 = vld [vmem:[#allocation2 + $0x1d8] sm:$0xff]
    %v6900 = vld [vmem:[#allocation2 + $0x1e0] sm:$0xff]
    %v6901 = vld [vmem:[#allocation2 + $0x1e8] sm:$0xff]
    %v6902 = vld [vmem:[#allocation2 + $0x1f0] sm:$0xff]
    %v6903 = vld [vmem:[#allocation2 + $0x1f8] sm:$0xff]
    %6904 = vmatpush.msra.mxu0 %v6855
    %6905 = vmatpush.msra.mxu0 %v6854
    %6906 = vmatpush.msra.mxu0 %v6853
    %6907 = vmatpush.msra.mxu0 %v6852
    %6908 = vmatpush.msra.mxu0 %v6851
    %6909 = vmatpush.msra.mxu0 %v6850
    %6910 = vmatpush.msra.mxu0 %v6849
    %6911 = vmatpush.msra.mxu0 %v6848
    %6912 = vmatpush.msra.mxu0 %v6847
    %6913 = vmatpush.msra.mxu0 %v6846
    %6914 = vmatpush.msra.mxu0 %v6845
    %6915 = vmatpush.msra.mxu0 %v6844
    %6916 = vmatpush.msra.mxu0 %v6843
    %6917 = vmatpush.msra.mxu0 %v6842
    %6918 = vmatpush.msra.mxu0 %v6841
    %6919 = vmatpush.msra.mxu0 %v6840
    %6920 = vmatmul.f32.gmra.mxu0 %v6836
    %v6921 = vpop.f32.mrf.mxu0
    %v6922 = vadd.f32 0.0, %v6921
    %6923 = vdwg.mxu0
    %6924 = vmatpush.msra.mxu0 %v6871
    %6925 = vmatpush.msra.mxu0 %v6870
    %6926 = vmatpush.msra.mxu0 %v6869
    %6927 = vmatpush.msra.mxu0 %v6868
    %6928 = vmatpush.msra.mxu0 %v6867
    %6929 = vmatpush.msra.mxu0 %v6866
    %6930 = vmatpush.msra.mxu0 %v6865
    %6931 = vmatpush.msra.mxu0 %v6864
    %6932 = vmatpush.msra.mxu0 %v6863
    %6933 = vmatpush.msra.mxu0 %v6862
    %6934 = vmatpush.msra.mxu0 %v6861
    %6935 = vmatpush.msra.mxu0 %v6860
    %6936 = vmatpush.msra.mxu0 %v6859
    %6937 = vmatpush.msra.mxu0 %v6858
    %6938 = vmatpush.msra.mxu0 %v6857
    %6939 = vmatpush.msra.mxu0 %v6856
    %6940 = vmatmul.f32.gmra.mxu0 %v6837
    %v6941 = vpop.f32.mrf.mxu0
    %v6942 = vadd.f32 %v6922, %v6941
    %6943 = vdwg.mxu0
    %6944 = vmatpush.msra.mxu0 %v6887
    %6945 = vmatpush.msra.mxu0 %v6886
    %6946 = vmatpush.msra.mxu0 %v6885
    %6947 = vmatpush.msra.mxu0 %v6884
    %6948 = vmatpush.msra.mxu0 %v6883
    %6949 = vmatpush.msra.mxu0 %v6882
    %6950 = vmatpush.msra.mxu0 %v6881
    %6951 = vmatpush.msra.mxu0 %v6880
    %6952 = vmatpush.msra.mxu0 %v6879
    %6953 = vmatpush.msra.mxu0 %v6878
    %6954 = vmatpush.msra.mxu0 %v6877
    %6955 = vmatpush.msra.mxu0 %v6876
    %6956 = vmatpush.msra.mxu0 %v6875
    %6957 = vmatpush.msra.mxu0 %v6874
    %6958 = vmatpush.msra.mxu0 %v6873
    %6959 = vmatpush.msra.mxu0 %v6872
    %6960 = vmatmul.f32.gmra.mxu0 %v6838
    %v6961 = vpop.f32.mrf.mxu0
    %v6962 = vadd.f32 %v6942, %v6961
    %6963 = vdwg.mxu0
    %6964 = vmatpush.msra.mxu0 %v6903
    %6965 = vmatpush.msra.mxu0 %v6902
    %6966 = vmatpush.msra.mxu0 %v6901
    %6967 = vmatpush.msra.mxu0 %v6900
    %6968 = vmatpush.msra.mxu0 %v6899
    %6969 = vmatpush.msra.mxu0 %v6898
    %6970 = vmatpush.msra.mxu0 %v6897
    %6971 = vmatpush.msra.mxu0 %v6896
    %6972 = vmatpush.msra.mxu0 %v6895
    %6973 = vmatpush.msra.mxu0 %v6894
    %6974 = vmatpush.msra.mxu0 %v6893
    %6975 = vmatpush.msra.mxu0 %v6892
    %6976 = vmatpush.msra.mxu0 %v6891
    %6977 = vmatpush.msra.mxu0 %v6890
    %6978 = vmatpush.msra.mxu0 %v6889
    %6979 = vmatpush.msra.mxu0 %v6888
    %6980 = vmatmul.f32.gmra.mxu0 %v6839
    %v6981 = vpop.f32.mrf.mxu0
    %v6982 = vadd.f32 %v6962, %v6981
    %6983 = vdwg.mxu0
    %v6984 = vld [vmem:[%s7] sm:$0x3]
    %v6985 = vld [vmem:[%s8] sm:$0x3]
    %6987 = vset.pattern.permute.xlu0 0
    %6988 = vperm.xlu0 %6987, %v6985
    %v6989 = vpop.permute.xlu0 %6988
    %v6992 = vsel %vm143, %v6984, 0
    %v6995 = vsel %vm147, %v6982, 0
    %6997 = vmatpush.msra.mxu0 0.0
    %6998 = vmatpush.msra.mxu0 0.0
    %6999 = vmatpush.msra.mxu0 0.0
    %7000 = vmatpush.msra.mxu0 0.0
    %7001 = vmatpush.msra.mxu0 0.0
    %7002 = vmatpush.msra.mxu0 0.0
    %7003 = vmatpush.msra.mxu0 0.0
    %7004 = vmatpush.msra.mxu0 0.0
    %7005 = vmatpush.msra.mxu0 0.0
    %7006 = vmatpush.msra.mxu0 0.0
    %7007 = vmatpush.msra.mxu0 0.0
    %7008 = vmatpush.msra.mxu0 0.0
    %7009 = vmatpush.msra.mxu0 0.0
    %7010 = vmatpush.msra.mxu0 0.0
    %7011 = vmatpush.msra.mxu0 0.0
    %7012 = vmatpush.msra.mxu0 %v6995
    %7013 = vmatmul.f32.gmra.mxu0 %v6992
    %v7014 = vpop.f32.mrf.mxu0
    %v7015 = vadd.f32 %v6989, %v7014
    %7016 = vdwg.mxu0
    %v7017 = vmax.f32 %v7015, 0.0
    %v7018 = vld [vmem:[%s9] sm:$0xf]
    %v7019 = vld [vmem:[%s10] sm:$0xf]
    %7021 = vset.pattern.permute.xlu0 0
    %7022 = vperm.xlu0 %7021, %v7019
    %v7023 = vpop.permute.xlu0 %7022
    %vm7025 = vcmask 15360
    %v7027 = vsel %vm7025, %v7018, 0
    %vm7029 = vcmask 1041408
    %v7031 = vsel %vm7029, %v7017, 0
    %7033 = vmatpush.msra.mxu0 0.0
    %7034 = vmatpush.msra.mxu0 0.0
    %7035 = vmatpush.msra.mxu0 0.0
    %7036 = vmatpush.msra.mxu0 0.0
    %7037 = vmatpush.msra.mxu0 0.0
    %7038 = vmatpush.msra.mxu0 0.0
    %7039 = vmatpush.msra.mxu0 0.0
    %7040 = vmatpush.msra.mxu0 0.0
    %7041 = vmatpush.msra.mxu0 0.0
    %7042 = vmatpush.msra.mxu0 0.0
    %7043 = vmatpush.msra.mxu0 0.0
    %7044 = vmatpush.msra.mxu0 0.0
    %7045 = vmatpush.msra.mxu0 0.0
    %7046 = vmatpush.msra.mxu0 0.0
    %7047 = vmatpush.msra.mxu0 0.0
    %7048 = vmatpush.msra.mxu0 %v7031
    %7049 = vmatmul.f32.gmra.mxu0 %v7027
    %v7050 = vpop.f32.mrf.mxu0
    %v7051 = vadd.f32 %v7023, %v7050
    %7052 = vdwg.mxu0
    %v7053 = vsub.f32 0.0, %v7051
    %v7054 = vmul.f32 %v7053, 1.442695
    %v7055 = vpow.pop %v7054
    %v7056 = vadd.f32 %v7055, 1.0
    %v7057 = vrcp.pop %v7056
    %v7058 = vmul.f32 %v7056, %v7057
    %v7059 = vsub.f32 1.0, %v7058
    %v7060 = vmul.f32 %v7057, %v7059
    %v7061 = vadd.f32 %v7057, %v7060
    %vm7062 = vweird.f32 %v7056
    %vm7063 = vweird.f32 %v7057
    %vm7064 = vmor %vm7062, %vm7063
    %v7065 = vsel %vm7064, %v7057, %v7061
    %v7066 = vand.u32 2147483647, %v7056
    %vm7067 = vcmp.eq.f32.partialorder %v7066, 8.507059e+37
    %v7068 = vand.u32 %v7056, 2147483648
    %v7069 = vor.u32 1.1754944e-38, %v7068
    %v7070 = vsel %vm7067, %v7069, %v7065
    %7072 = vset.pattern.permute.xlu0 0
    %7073 = vperm.xlu0 %7072, %v7070
    %v7074 = vpop.permute.xlu0 %7073
    %7076 = vset.pattern.permute.xlu0 1
    %7077 = vperm.xlu0 %7076, %v7070
    %v7078 = vpop.permute.xlu0 %7077
    %v7080 = vmul.f32 %v6836, %v7074
    %v7081 = vmul.f32 %v6837, %v7074
    %v7082 = vmul.f32 %v6838, %v7078
    %v7083 = vmul.f32 %v6839, %v7078
    %7086 = vst [vmem:[#allocation1] ss:$2 sm:$0xff] %v55
    %s7087 = scalar_lea.vmem [#allocation1], 16
    %7088 = vst [vmem:[%s7087] ss:$2 sm:$0xff] %v56
    %v7089 = vld.sshfl [vmem:[#allocation1] sm:$0xff pattern:$0x75316420]
    %v7090 = vld.sshfl [vmem:[#allocation1 + $0x8] sm:$0xff pattern:$0x75316420]
    %v7091 = vld.sshfl [vmem:[#allocation1 + $0x10] sm:$0xff pattern:$0x75316420]
    %v7092 = vld.sshfl [vmem:[#allocation1 + $0x18] sm:$0xff pattern:$0x75316420]
    %v7097 = vadd.f32 %v7080, %v7089
    %v7098 = vadd.f32 %v7081, %v7090
    %v7099 = vadd.f32 %v7082, %v7091
    %v7100 = vadd.f32 %v7083, %v7092
    %v7105 = vrot.slane %v7098, 4
    %v7106 = vrot.slane %v7100, 4
    %v7107 = vsel %vm147, %v7097, %v7105
    %v7108 = vsel %vm147, %v7099, %v7106
    %7111 = vst [vmem:[#allocation5] sm:$0xff] %v7107
    %7112 = vst [vmem:[#allocation5 + $0x8] sm:$0xff] %v7108
    // Predicated region
    $region50: #{tpu_custom_call.1} parent=1 // pred_check
      _
    $region51: #{tpu_custom_call.1} parent=1 // pred_check_branch
      %7114 = sbr.rel (0) target = $region53
    $region52: #{tpu_custom_call.1} parent=1 // pred_region
      %7116 = vsyncadd [#allocation4], 0
      %s7118 = sshll.u32 [#allocation5], 4
      %s7119 = int_to_ptr.vmem [resolvable:$true] %s7118
      %s7120 = sshll.u32 %s11, 4
      %s7121 = int_to_ptr.hbm [resolvable:$true] %s7120
      %7123 = dma.vmem_to_hbm [thread:$0]  %s7119, 256, %s7121, [#allocation4]
    $region53: #{tpu_custom_call.1} parent=1 // pred_fallthru
      _
    // Predicated region
    $region54: #{tpu_custom_call.1} parent=1 // pred_check
      _
    $region55: #{tpu_custom_call.1} parent=1 // pred_check_branch
      %7125 = sbr.rel (0) target = $region57
    $region56: #{tpu_custom_call.1} parent=1 // pred_region
      %7127 = dma.done [#allocation4], 256
    $region57: #{tpu_custom_call.1} parent=1 // pred_fallthru
      _
    %7128 = vsyncpa [#allocation3], 1
    %7129 = vsyncpa [#allocation4], 1

</llo_original>
